<compile_context>
chip_gen: v7x
topology: tpu7x:2x2x1
jax: 0.10.0
libtpu: 0.0.40
codegen_flags: <defaults>
</compile_context>

<pallas_src>
import numpy as np

import jax
import jax.numpy as jnp
from jax.experimental import pallas as pl
from jax.experimental.pallas import tpu as pltpu


_NT = 16  # 4x4 kernel -> 16 taps for every conv in this model


# -----------------------------------------------------------------------------
# Host-side (static / wrapper-side) preprocessing — pure data re-arrangement.
# -----------------------------------------------------------------------------
def _im2col_nhwc(x, kh, kw, stride, pad):
    """x: (N, H, W, C) -> (patches (N, OH*OW, kh*kw*C) with tap-major K, OH, OW)."""
    if pad > 0:
        x = jnp.pad(x, ((0, 0), (pad, pad), (pad, pad), (0, 0)))
    n, hp, wp, c = x.shape
    oh = (hp - kh) // stride + 1
    ow = (wp - kw) // stride + 1
    slabs = []
    for i in range(kh):
        for j in range(kw):
            slabs.append(x[:, i:i + stride * oh:stride,
                            j:j + stride * ow:stride, :])
    p = jnp.stack(slabs, axis=3).reshape(n, oh * ow, kh * kw * c)
    return p, oh, ow


def _w_to_mat(w_oihw):
    """(Cout, Cin, KH, KW) -> (KH*KW*Cin, Cout); K rows tap-major, cin-minor."""
    cout, cin, kh, kw = w_oihw.shape
    return jnp.transpose(w_oihw, (2, 3, 1, 0)).reshape(kh * kw * cin, cout)


def _selection_matrix(h_in, w_in, kh, kw, stride, pads):
    """Static 0/1 gather matrix S (kh*kw*M_out, M_in), rows tap-major.

    Row t*M_out + m_out selects the input pixel read by kernel tap t for output
    pixel m_out; taps falling into the zero padding get an all-zero row, so the
    padding costs nothing in-kernel.  Returns (S bf16, h_out, w_out).
    """
    (pad_t, pad_b), (pad_l, pad_r) = pads
    h_out = (h_in + pad_t + pad_b - kh) // stride + 1
    w_out = (w_in + pad_l + pad_r - kw) // stride + 1
    m_out = h_out * w_out
    s = np.zeros((kh * kw * m_out, h_in * w_in), np.float32)
    for i in range(kh):
        for j in range(kw):
            t = i * kw + j
            for y in range(h_out):
                r = y * stride + i - pad_t
                if r < 0 or r >= h_in:
                    continue
                for x in range(w_out):
                    c = x * stride + j - pad_l
                    if 0 <= c < w_in:
                        s[t * m_out + y * w_out + x, r * w_in + c] = 1.0
    return jnp.asarray(s, jnp.bfloat16), h_out, w_out


def _head_matrix(h_in, w_in, w_oihw, pads):
    """Fold ZeroPad2d((1,0,1,0)) + Conv2d(Cin->1, 4x4, pad=1, no bias) into one
    (M_in*Cin, M_out) matrix so the head is a single MXU matmul with a
    lane-dense (1, M_out) result.  Row order = m_in-major, channel-minor
    (matches the in-kernel flattening of the layer-4 activation)."""
    (pad_t, pad_b), (pad_l, pad_r) = pads
    cout, cin, kh, kw = w_oihw.shape
    assert cout == 1
    h_out = h_in + pad_t + pad_b - kh + 1
    w_out = w_in + pad_l + pad_r - kw + 1
    m_in, m_out = h_in * w_in, h_out * w_out
    idx_i = np.zeros((m_in, m_out), np.int32)
    idx_j = np.zeros((m_in, m_out), np.int32)
    msk = np.zeros((m_in, m_out), np.float32)
    for y in range(h_out):
        for x in range(w_out):
            mo = y * w_out + x
            for r in range(h_in):
                for cc in range(w_in):
                    i, j = r - y + pad_t, cc - x + pad_l
                    if 0 <= i < kh and 0 <= j < kw:
                        mi = r * w_in + cc
                        idx_i[mi, mo], idx_j[mi, mo], msk[mi, mo] = i, j, 1.0
    wh = w_oihw[0][:, idx_i, idx_j] * msk                # (Cin, M_in, M_out)
    wh = jnp.transpose(wh, (1, 0, 2)).reshape(m_in * cin, m_out)
    return wh, m_out


# -----------------------------------------------------------------------------
# In-kernel building blocks
# -----------------------------------------------------------------------------
def _leaky_relu(x):
    return jnp.maximum(x, 0.2 * x)                       # LeakyReLU(0.2), f32 VPU


def _instance_norm(x):
    # InstanceNorm2d(affine=False, eps=1e-5), biased variance.  The two sums
    # are independent (co-issue on the two XLU ports); only scalar multiplies
    # afterwards — no jnp.mean.
    inv_m = 1.0 / x.shape[0]
    mean = jnp.sum(x, axis=0, keepdims=True) * inv_m
    mean_sq = jnp.sum(x * x, axis=0, keepdims=True) * inv_m
    var = jnp.maximum(mean_sq - mean * mean, 0.0)
    return (x - mean) * jax.lax.rsqrt(var + 1e-5)


def _conv_in_lrelu(a_f32, s_ref, w_ref, b_ref, pstage_ref, pr_ref):
    """Conv(4x4, s=2, p=1) + InstanceNorm + LeakyReLU as TWO MXU matmuls."""
    m_out = pr_ref.shape[0]
    cin = a_f32.shape[1]
    a_bf = a_f32.astype(jnp.bfloat16)
    # (1) ONE gather matmul over all 16 taps (S rows tap-major, entries 0/1).
    p = jnp.dot(s_ref[...], a_bf, preferred_element_type=jnp.float32)
    # Exact cast: every row of p is a copy of a bf16 row of a_bf (or zeros).
    pstage_ref[...] = p.astype(jnp.bfloat16)             # (16*M_out, Cin)
    # (2) Repack tap-major rows -> (M_out, 16*Cin): 16 static VMEM copies;
    #     column block t holds tap t, matching W_cat's row order.
    for t in range(_NT):
        pr_ref[:, t * cin:(t + 1) * cin] = pstage_ref[t * m_out:(t + 1) * m_out, :]
    # (3) ONE conv matmul with K = 16*Cin, f32 accumulation on the MXU.
    y = jnp.dot(pr_ref[...], w_ref[...], preferred_element_type=jnp.float32)
    return _leaky_relu(_instance_norm(y + b_ref[...]))


def _patchgan_kernel(p1_ref, w1_ref, b1_ref,
                     s2_ref, w2_ref, b2_ref,
                     s3_ref, w3_ref, b3_ref,
                     s4_ref, w4_ref, b4_ref,
                     w5_ref,
                     out_ref,
                     pst2_ref, pr2_ref, pst3_ref, pr3_ref, pst4_ref, pr4_ref,
                     a4_ref, h_ref):
    f32 = jnp.float32

    # layer 1: one MXU matmul over wrapper-side im2col patches + LeakyReLU
    a = jnp.dot(p1_ref[...], w1_ref[...], preferred_element_type=f32)
    a = _leaky_relu(a + b1_ref[...])                              # (256, 32)

    # layers 2-4: merged-tap conv + InstanceNorm + LeakyReLU, VMEM resident
    a = _conv_in_lrelu(a, s2_ref, w2_ref, b2_ref, pst2_ref, pr2_ref)   # (64, 64)
    a = _conv_in_lrelu(a, s3_ref, w3_ref, b3_ref, pst3_ref, pr3_ref)   # (16, 128)
    a = _conv_in_lrelu(a, s4_ref, w4_ref, b4_ref, pst4_ref, pr4_ref)   # (4, 256)

    # output head: folded host-side into one (M_in*Cin, M_out) matrix ->
    # single matmul with a lane-dense (1, 4) result.
    m4, c4 = a.shape
    a4_ref[...] = a.astype(jnp.bfloat16)
    for r in range(m4):                                   # flatten (4,256)->(1,1024)
        h_ref[:, r * c4:(r + 1) * c4] = a4_ref[r:r + 1, :]
    out_ref[...] = jnp.dot(h_ref[...], w5_ref[...],
                           preferred_element_type=f32).astype(out_ref.dtype)


# -----------------------------------------------------------------------------
# Forward wrapper
# -----------------------------------------------------------------------------
def patchgan_forward(params, x_nchw):
    """x_nchw: (N, C, H, W) f32 -> flattened patch logits (== torch .view(-1))."""
    n = x_nchw.shape[0]
    bf = jnp.bfloat16
    x = jnp.transpose(x_nchw, (0, 2, 3, 1)).astype(bf)    # NHWC, cast once

    # Layer-1 patches stay wrapper-side (Cin=3 would waste MXU / lane dim if
    # gathered in-kernel); this is a handful of fused XLA ops on tiny data.
    p1, oh1, ow1 = _im2col_nhwc(x, 4, 4, stride=2, pad=1)  # (N, 256, 48) bf16
    w1 = _w_to_mat(params["w1"]).astype(bf)
    b1 = params["b1"].reshape(1, -1)

    sym = ((1, 1), (1, 1))
    s2, oh2, ow2 = _selection_matrix(oh1, ow1, 4, 4, 2, sym)
    s3, oh3, ow3 = _selection_matrix(oh2, ow2, 4, 4, 2, sym)
    s4, oh4, ow4 = _selection_matrix(oh3, ow3, 4, 4, 2, sym)

    w2 = _w_to_mat(params["w2"]).astype(bf)
    w3 = _w_to_mat(params["w3"]).astype(bf)
    w4 = _w_to_mat(params["w4"]).astype(bf)
    b2 = params["b2"].reshape(1, -1)
    b3 = params["b3"].reshape(1, -1)
    b4 = params["b4"].reshape(1, -1)

    # head: ZeroPad2d((1,0,1,0)) + conv pad=1 -> total pads ((2,1),(2,1)), s=1.
    w5, m5 = _head_matrix(oh4, ow4, params["w_out"], ((2, 1), (2, 1)))
    w5 = w5.astype(bf)

    m1, k1 = p1.shape[1], p1.shape[2]

    def const_spec(arr):
        return pl.BlockSpec(arr.shape, lambda i: (0,) * arr.ndim)

    out = pl.pallas_call(
        _patchgan_kernel,
        out_shape=jax.ShapeDtypeStruct((n, 1, m5), jnp.float32),
        grid=(n,),
        in_specs=[
            pl.BlockSpec((None, m1, k1), lambda i: (i, 0, 0)),
            const_spec(w1), const_spec(b1),
            const_spec(s2), const_spec(w2), const_spec(b2),
            const_spec(s3), const_spec(w3), const_spec(b3),
            const_spec(s4), const_spec(w4), const_spec(b4),
            const_spec(w5),
        ],
        out_specs=pl.BlockSpec((None, 1, m5), lambda i: (i, 0, 0)),
        scratch_shapes=[
            pltpu.VMEM((s2.shape[0], w2.shape[0] // _NT), bf),   # P2   (1024, 32)
            pltpu.VMEM((s2.shape[0] // _NT, w2.shape[0]), bf),   # Pr2  (64, 512)
            pltpu.VMEM((s3.shape[0], w3.shape[0] // _NT), bf),   # P3   (256, 64)
            pltpu.VMEM((s3.shape[0] // _NT, w3.shape[0]), bf),   # Pr3  (16, 1024)
            pltpu.VMEM((s4.shape[0], w4.shape[0] // _NT), bf),   # P4   (64, 128)
            pltpu.VMEM((s4.shape[0] // _NT, w4.shape[0]), bf),   # Pr4  (4, 2048)
            pltpu.VMEM((s4.shape[0] // _NT, w4.shape[1]), bf),   # A4   (4, 256)
            pltpu.VMEM((1, w5.shape[0]), bf),                    # head (1, 1024)
        ],
        compiler_params=pltpu.CompilerParams(
            dimension_semantics=("parallel",)),
    )(p1, w1, b1, s2, w2, b2, s3, w3, b3, s4, w4, b4, w5)

    # (N, 1, m5) flattens in the same order as torch's (N, 1, OH, OW).view(-1).
    return out.reshape(-1)


def init_params(key, n_in_channels=3, n_fmaps=32):
    dims = [(n_fmaps, n_in_channels), (n_fmaps * 2, n_fmaps),
            (n_fmaps * 4, n_fmaps * 2), (n_fmaps * 8, n_fmaps * 4)]
    params = {}
    for li, (co, ci) in enumerate(dims, start=1):
        key, k1, k2 = jax.random.split(key, 3)
        params[f"w{li}"] = 0.05 * jax.random.normal(k1, (co, ci, 4, 4), jnp.float32)
        params[f"b{li}"] = 0.05 * jax.random.normal(k2, (co,), jnp.float32)
    key, k1 = jax.random.split(key)
    params["w_out"] = 0.05 * jax.random.normal(k1, (1, n_fmaps * 8, 4, 4), jnp.float32)
    return params


# -----------------------------------------------------------------------------
# Pure-JAX reference (module semantics, with the same bf16-operand convention
# the kernel uses for its MXU matmuls; all other math in f32).
# -----------------------------------------------------------------------------
def reference_forward(params, x_nchw):
    f32 = jnp.float32

    def rbf16(v):
        return v.astype(jnp.bfloat16).astype(f32)

    def conv(x, w, stride, pads, bias=None):
        y = jax.lax.conv_general_dilated(
            rbf16(x), rbf16(w),
            window_strides=(stride, stride), padding=pads,
            dimension_numbers=("NCHW", "OIHW", "NCHW"),
            precision=jax.lax.Precision.HIGHEST)
        if bias is not None:
            y = y + bias.reshape(1, -1, 1, 1)
        return y

    def inorm(x):
        m = jnp.mean(x, axis=(2, 3), keepdims=True)
        v = jnp.mean(jnp.square(x - m), axis=(2, 3), keepdims=True)
        return (x - m) * jax.lax.rsqrt(v + 1e-5)

    def lrelu(x):
        return jnp.where(x >= 0.0, x, 0.2 * x)

    pad1 = [(1, 1), (1, 1)]
    h = lrelu(conv(x_nchw, params["w1"], 2, pad1, params["b1"]))
    h = lrelu(inorm(conv(h, params["w2"], 2, pad1, params["b2"])))
    h = lrelu(inorm(conv(h, params["w3"], 2, pad1, params["b3"])))
    h = lrelu(inorm(conv(h, params["w4"], 2, pad1, params["b4"])))
    h = jnp.pad(h, ((0, 0), (0, 0), (1, 0), (1, 0)))      # ZeroPad2d((1,0,1,0))
    h = conv(h, params["w_out"], 1, pad1)                 # head, bias=False
    return h.reshape(-1)


if __name__ == "__main__":
    key = jax.random.PRNGKey(0)
    kparam, kin = jax.random.split(key)

    n_in_channels, n_fmaps = 3, 32
    params = init_params(kparam, n_in_channels, n_fmaps)

    # Small input consistent with four stride-2 stages: (2, 3, 32, 32).
    x = jax.random.normal(kin, (2, n_in_channels, 32, 32), jnp.float32)

    y = jax.jit(patchgan_forward)(params, x)
    jax.block_until_ready(y)
    assert y.shape == (2 * 2 * 2,), y.shape               # (N, 1, 2, 2).view(-1)

    y_ref = reference_forward(params, x)
    jax.block_until_ready(y_ref)
    max_err = float(jnp.max(jnp.abs(y - y_ref)))
    assert max_err < 2e-2, f"max abs err vs reference: {max_err}"

    print("KERNEL_OK")
</pallas_src>

<mosaic_0001>
module attributes {stable_mosaic.version = 11 : i64} {
  func.func @_patchgan_kernel(%arg0: i32, %arg1: memref<1x256x48xbf16, #tpu.memory_space<vmem>>, %arg2: memref<48x32xbf16, #tpu.memory_space<vmem>>, %arg3: memref<1x32xf32, #tpu.memory_space<vmem>>, %arg4: memref<1024x256xbf16, #tpu.memory_space<vmem>>, %arg5: memref<512x64xbf16, #tpu.memory_space<vmem>>, %arg6: memref<1x64xf32, #tpu.memory_space<vmem>>, %arg7: memref<256x64xbf16, #tpu.memory_space<vmem>>, %arg8: memref<1024x128xbf16, #tpu.memory_space<vmem>>, %arg9: memref<1x128xf32, #tpu.memory_space<vmem>>, %arg10: memref<64x16xbf16, #tpu.memory_space<vmem>>, %arg11: memref<2048x256xbf16, #tpu.memory_space<vmem>>, %arg12: memref<1x256xf32, #tpu.memory_space<vmem>>, %arg13: memref<1024x4xbf16, #tpu.memory_space<vmem>>, %arg14: memref<1x1x4xf32, #tpu.memory_space<vmem>>, %arg15: memref<1024x32xbf16, #tpu.memory_space<vmem>>, %arg16: memref<64x512xbf16, #tpu.memory_space<vmem>>, %arg17: memref<256x64xbf16, #tpu.memory_space<vmem>>, %arg18: memref<16x1024xbf16, #tpu.memory_space<vmem>>, %arg19: memref<64x128xbf16, #tpu.memory_space<vmem>>, %arg20: memref<4x2048xbf16, #tpu.memory_space<vmem>>, %arg21: memref<4x256xbf16, #tpu.memory_space<vmem>>, %arg22: memref<1x1024xbf16, #tpu.memory_space<vmem>>) attributes {dimension_semantics = [#tpu.dimension_semantics<parallel>], iteration_bounds = array<i64: 2>, scalar_prefetch = 0 : i64, scratch_operands = 8 : i64, tpu.core_type = #tpu.core_type<tc>, window_params = [{transform_indices = @transform_0, window_bounds = array<i64: 1, 256, 48>}, {pipeline_mode = #tpu.pipeline_mode<synchronous>, transform_indices = @transform_1, window_bounds = array<i64: 48, 32>}, {pipeline_mode = #tpu.pipeline_mode<synchronous>, transform_indices = @transform_2, window_bounds = array<i64: 1, 32>}, {pipeline_mode = #tpu.pipeline_mode<synchronous>, transform_indices = @transform_3, window_bounds = array<i64: 1024, 256>}, {pipeline_mode = #tpu.pipeline_mode<synchronous>, transform_indices = @transform_4, window_bounds = array<i64: 512, 64>}, {pipeline_mode = #tpu.pipeline_mode<synchronous>, transform_indices = @transform_5, window_bounds = array<i64: 1, 64>}, {pipeline_mode = #tpu.pipeline_mode<synchronous>, transform_indices = @transform_6, window_bounds = array<i64: 256, 64>}, {pipeline_mode = #tpu.pipeline_mode<synchronous>, transform_indices = @transform_7, window_bounds = array<i64: 1024, 128>}, {pipeline_mode = #tpu.pipeline_mode<synchronous>, transform_indices = @transform_8, window_bounds = array<i64: 1, 128>}, {pipeline_mode = #tpu.pipeline_mode<synchronous>, transform_indices = @transform_9, window_bounds = array<i64: 64, 16>}, {pipeline_mode = #tpu.pipeline_mode<synchronous>, transform_indices = @transform_10, window_bounds = array<i64: 2048, 256>}, {pipeline_mode = #tpu.pipeline_mode<synchronous>, transform_indices = @transform_11, window_bounds = array<i64: 1, 256>}, {pipeline_mode = #tpu.pipeline_mode<synchronous>, transform_indices = @transform_12, window_bounds = array<i64: 1024, 4>}, {transform_indices = @transform_13, window_bounds = array<i64: 1, 1, 4>}]} {
    %c0 = arith.constant 0 : index
    %c0_0 = arith.constant 0 : index
    %c0_1 = arith.constant 0 : index
    %0 = vector.load %arg1[%c0, %c0_0, %c0_1] : memref<1x256x48xbf16, #tpu.memory_space<vmem>>, vector<1x256x48xbf16>
    %1 = vector.shape_cast %0 : vector<1x256x48xbf16> to vector<256x48xbf16>
    %c0_2 = arith.constant 0 : index
    %c0_3 = arith.constant 0 : index
    %2 = vector.load %arg2[%c0_2, %c0_3] : memref<48x32xbf16, #tpu.memory_space<vmem>>, vector<48x32xbf16>
    %cst = arith.constant dense<0.000000e+00> : vector<256x32xf32>
    %3 = tpu.matmul %1, %2, %cst {dimension_numbers = #tpu.dot_dimension_numbers<[1], [0], [0], [1], [0, 0, 1, 1], [], []>} : vector<256x48xbf16>, vector<48x32xbf16>, vector<256x32xf32> -> vector<256x32xf32>
    %c0_4 = arith.constant 0 : index
    %c0_5 = arith.constant 0 : index
    %4 = vector.load %arg3[%c0_4, %c0_5] : memref<1x32xf32, #tpu.memory_space<vmem>>, vector<1x32xf32>
    %5 = vector.broadcast %4 : vector<1x32xf32> to vector<256x32xf32>
    %6 = arith.addf %3, %5 : vector<256x32xf32>
    %cst_6 = arith.constant 2.000000e-01 : f32
    %7 = vector.broadcast %cst_6 : f32 to vector<256x32xf32>
    %8 = arith.mulf %7, %6 : vector<256x32xf32>
    %9 = arith.maximumf %6, %8 : vector<256x32xf32>
    %10 = arith.truncf %9 : vector<256x32xf32> to vector<256x32xbf16>
    %c0_7 = arith.constant 0 : index
    %c0_8 = arith.constant 0 : index
    %11 = vector.load %arg4[%c0_7, %c0_8] : memref<1024x256xbf16, #tpu.memory_space<vmem>>, vector<1024x256xbf16>
    %cst_9 = arith.constant dense<0.000000e+00> : vector<1024x32xf32>
    %12 = tpu.matmul %11, %10, %cst_9 {dimension_numbers = #tpu.dot_dimension_numbers<[1], [0], [0], [1], [0, 0, 1, 1], [], []>} : vector<1024x256xbf16>, vector<256x32xbf16>, vector<1024x32xf32> -> vector<1024x32xf32>
    %13 = arith.truncf %12 : vector<1024x32xf32> to vector<1024x32xbf16>
    %c0_10 = arith.constant 0 : index
    %c0_11 = arith.constant 0 : index
    %14 = vector.load %arg15[%c0_10, %c0_11] : memref<1024x32xbf16, #tpu.memory_space<vmem>>, vector<1024x32xbf16>
    tpu.vector_store %arg15[%c0_10, %c0_11], %13 {strides = array<i32>} : memref<1024x32xbf16, #tpu.memory_space<vmem>>, vector<1024x32xbf16>,
    %c0_12 = arith.constant 0 : index
    %c0_13 = arith.constant 0 : index
    %15 = vector.load %arg15[%c0_12, %c0_13] : memref<1024x32xbf16, #tpu.memory_space<vmem>>, vector<64x32xbf16>
    %c0_14 = arith.constant 0 : index
    %c0_15 = arith.constant 0 : index
    %16 = vector.load %arg16[%c0_14, %c0_15] : memref<64x512xbf16, #tpu.memory_space<vmem>>, vector<64x32xbf16>
    tpu.vector_store %arg16[%c0_14, %c0_15], %15 {strides = array<i32>} : memref<64x512xbf16, #tpu.memory_space<vmem>>, vector<64x32xbf16>,
    %c64 = arith.constant 64 : index
    %c0_16 = arith.constant 0 : index
    %17 = vector.load %arg15[%c64, %c0_16] : memref<1024x32xbf16, #tpu.memory_space<vmem>>, vector<64x32xbf16>
    %c0_17 = arith.constant 0 : index
    %c32 = arith.constant 32 : index
    %18 = vector.load %arg16[%c0_17, %c32] : memref<64x512xbf16, #tpu.memory_space<vmem>>, vector<64x32xbf16>
    tpu.vector_store %arg16[%c0_17, %c32], %17 {strides = array<i32>} : memref<64x512xbf16, #tpu.memory_space<vmem>>, vector<64x32xbf16>,
    %c128 = arith.constant 128 : index
    %c0_18 = arith.constant 0 : index
    %19 = vector.load %arg15[%c128, %c0_18] : memref<1024x32xbf16, #tpu.memory_space<vmem>>, vector<64x32xbf16>
    %c0_19 = arith.constant 0 : index
    %c64_20 = arith.constant 64 : index
    %20 = vector.load %arg16[%c0_19, %c64_20] : memref<64x512xbf16, #tpu.memory_space<vmem>>, vector<64x32xbf16>
    tpu.vector_store %arg16[%c0_19, %c64_20], %19 {strides = array<i32>} : memref<64x512xbf16, #tpu.memory_space<vmem>>, vector<64x32xbf16>,
    %c192 = arith.constant 192 : index
    %c0_21 = arith.constant 0 : index
    %21 = vector.load %arg15[%c192, %c0_21] : memref<1024x32xbf16, #tpu.memory_space<vmem>>, vector<64x32xbf16>
    %c0_22 = arith.constant 0 : index
    %c96 = arith.constant 96 : index
    %22 = vector.load %arg16[%c0_22, %c96] : memref<64x512xbf16, #tpu.memory_space<vmem>>, vector<64x32xbf16>
    tpu.vector_store %arg16[%c0_22, %c96], %21 {strides = array<i32>} : memref<64x512xbf16, #tpu.memory_space<vmem>>, vector<64x32xbf16>,
    %c256 = arith.constant 256 : index
    %c0_23 = arith.constant 0 : index
    %23 = vector.load %arg15[%c256, %c0_23] : memref<1024x32xbf16, #tpu.memory_space<vmem>>, vector<64x32xbf16>
    %c0_24 = arith.constant 0 : index
    %c128_25 = arith.constant 128 : index
    %24 = vector.load %arg16[%c0_24, %c128_25] : memref<64x512xbf16, #tpu.memory_space<vmem>>, vector<64x32xbf16>
    tpu.vector_store %arg16[%c0_24, %c128_25], %23 {strides = array<i32>} : memref<64x512xbf16, #tpu.memory_space<vmem>>, vector<64x32xbf16>,
    %c320 = arith.constant 320 : index
    %c0_26 = arith.constant 0 : index
    %25 = vector.load %arg15[%c320, %c0_26] : memref<1024x32xbf16, #tpu.memory_space<vmem>>, vector<64x32xbf16>
    %c0_27 = arith.constant 0 : index
    %c160 = arith.constant 160 : index
    %26 = vector.load %arg16[%c0_27, %c160] : memref<64x512xbf16, #tpu.memory_space<vmem>>, vector<64x32xbf16>
    tpu.vector_store %arg16[%c0_27, %c160], %25 {strides = array<i32>} : memref<64x512xbf16, #tpu.memory_space<vmem>>, vector<64x32xbf16>,
    %c384 = arith.constant 384 : index
    %c0_28 = arith.constant 0 : index
    %27 = vector.load %arg15[%c384, %c0_28] : memref<1024x32xbf16, #tpu.memory_space<vmem>>, vector<64x32xbf16>
    %c0_29 = arith.constant 0 : index
    %c192_30 = arith.constant 192 : index
    %28 = vector.load %arg16[%c0_29, %c192_30] : memref<64x512xbf16, #tpu.memory_space<vmem>>, vector<64x32xbf16>
    tpu.vector_store %arg16[%c0_29, %c192_30], %27 {strides = array<i32>} : memref<64x512xbf16, #tpu.memory_space<vmem>>, vector<64x32xbf16>,
    %c448 = arith.constant 448 : index
    %c0_31 = arith.constant 0 : index
    %29 = vector.load %arg15[%c448, %c0_31] : memref<1024x32xbf16, #tpu.memory_space<vmem>>, vector<64x32xbf16>
    %c0_32 = arith.constant 0 : index
    %c224 = arith.constant 224 : index
    %30 = vector.load %arg16[%c0_32, %c224] : memref<64x512xbf16, #tpu.memory_space<vmem>>, vector<64x32xbf16>
    tpu.vector_store %arg16[%c0_32, %c224], %29 {strides = array<i32>} : memref<64x512xbf16, #tpu.memory_space<vmem>>, vector<64x32xbf16>,
    %c512 = arith.constant 512 : index
    %c0_33 = arith.constant 0 : index
    %31 = vector.load %arg15[%c512, %c0_33] : memref<1024x32xbf16, #tpu.memory_space<vmem>>, vector<64x32xbf16>
    %c0_34 = arith.constant 0 : index
    %c256_35 = arith.constant 256 : index
    %32 = vector.load %arg16[%c0_34, %c256_35] : memref<64x512xbf16, #tpu.memory_space<vmem>>, vector<64x32xbf16>
    tpu.vector_store %arg16[%c0_34, %c256_35], %31 {strides = array<i32>} : memref<64x512xbf16, #tpu.memory_space<vmem>>, vector<64x32xbf16>,
    %c576 = arith.constant 576 : index
    %c0_36 = arith.constant 0 : index
    %33 = vector.load %arg15[%c576, %c0_36] : memref<1024x32xbf16, #tpu.memory_space<vmem>>, vector<64x32xbf16>
    %c0_37 = arith.constant 0 : index
    %c288 = arith.constant 288 : index
    %34 = vector.load %arg16[%c0_37, %c288] : memref<64x512xbf16, #tpu.memory_space<vmem>>, vector<64x32xbf16>
    tpu.vector_store %arg16[%c0_37, %c288], %33 {strides = array<i32>} : memref<64x512xbf16, #tpu.memory_space<vmem>>, vector<64x32xbf16>,
    %c640 = arith.constant 640 : index
    %c0_38 = arith.constant 0 : index
    %35 = vector.load %arg15[%c640, %c0_38] : memref<1024x32xbf16, #tpu.memory_space<vmem>>, vector<64x32xbf16>
    %c0_39 = arith.constant 0 : index
    %c320_40 = arith.constant 320 : index
    %36 = vector.load %arg16[%c0_39, %c320_40] : memref<64x512xbf16, #tpu.memory_space<vmem>>, vector<64x32xbf16>
    tpu.vector_store %arg16[%c0_39, %c320_40], %35 {strides = array<i32>} : memref<64x512xbf16, #tpu.memory_space<vmem>>, vector<64x32xbf16>,
    %c704 = arith.constant 704 : index
    %c0_41 = arith.constant 0 : index
    %37 = vector.load %arg15[%c704, %c0_41] : memref<1024x32xbf16, #tpu.memory_space<vmem>>, vector<64x32xbf16>
    %c0_42 = arith.constant 0 : index
    %c352 = arith.constant 352 : index
    %38 = vector.load %arg16[%c0_42, %c352] : memref<64x512xbf16, #tpu.memory_space<vmem>>, vector<64x32xbf16>
    tpu.vector_store %arg16[%c0_42, %c352], %37 {strides = array<i32>} : memref<64x512xbf16, #tpu.memory_space<vmem>>, vector<64x32xbf16>,
    %c768 = arith.constant 768 : index
    %c0_43 = arith.constant 0 : index
    %39 = vector.load %arg15[%c768, %c0_43] : memref<1024x32xbf16, #tpu.memory_space<vmem>>, vector<64x32xbf16>
    %c0_44 = arith.constant 0 : index
    %c384_45 = arith.constant 384 : index
    %40 = vector.load %arg16[%c0_44, %c384_45] : memref<64x512xbf16, #tpu.memory_space<vmem>>, vector<64x32xbf16>
    tpu.vector_store %arg16[%c0_44, %c384_45], %39 {strides = array<i32>} : memref<64x512xbf16, #tpu.memory_space<vmem>>, vector<64x32xbf16>,
    %c832 = arith.constant 832 : index
    %c0_46 = arith.constant 0 : index
    %41 = vector.load %arg15[%c832, %c0_46] : memref<1024x32xbf16, #tpu.memory_space<vmem>>, vector<64x32xbf16>
    %c0_47 = arith.constant 0 : index
    %c416 = arith.constant 416 : index
    %42 = vector.load %arg16[%c0_47, %c416] : memref<64x512xbf16, #tpu.memory_space<vmem>>, vector<64x32xbf16>
    tpu.vector_store %arg16[%c0_47, %c416], %41 {strides = array<i32>} : memref<64x512xbf16, #tpu.memory_space<vmem>>, vector<64x32xbf16>,
    %c896 = arith.constant 896 : index
    %c0_48 = arith.constant 0 : index
    %43 = vector.load %arg15[%c896, %c0_48] : memref<1024x32xbf16, #tpu.memory_space<vmem>>, vector<64x32xbf16>
    %c0_49 = arith.constant 0 : index
    %c448_50 = arith.constant 448 : index
    %44 = vector.load %arg16[%c0_49, %c448_50] : memref<64x512xbf16, #tpu.memory_space<vmem>>, vector<64x32xbf16>
    tpu.vector_store %arg16[%c0_49, %c448_50], %43 {strides = array<i32>} : memref<64x512xbf16, #tpu.memory_space<vmem>>, vector<64x32xbf16>,
    %c960 = arith.constant 960 : index
    %c0_51 = arith.constant 0 : index
    %45 = vector.load %arg15[%c960, %c0_51] : memref<1024x32xbf16, #tpu.memory_space<vmem>>, vector<64x32xbf16>
    %c0_52 = arith.constant 0 : index
    %c480 = arith.constant 480 : index
    %46 = vector.load %arg16[%c0_52, %c480] : memref<64x512xbf16, #tpu.memory_space<vmem>>, vector<64x32xbf16>
    tpu.vector_store %arg16[%c0_52, %c480], %45 {strides = array<i32>} : memref<64x512xbf16, #tpu.memory_space<vmem>>, vector<64x32xbf16>,
    %c0_53 = arith.constant 0 : index
    %c0_54 = arith.constant 0 : index
    %47 = vector.load %arg16[%c0_53, %c0_54] : memref<64x512xbf16, #tpu.memory_space<vmem>>, vector<64x512xbf16>
    %c0_55 = arith.constant 0 : index
    %c0_56 = arith.constant 0 : index
    %48 = vector.load %arg5[%c0_55, %c0_56] : memref<512x64xbf16, #tpu.memory_space<vmem>>, vector<512x64xbf16>
    %cst_57 = arith.constant dense<0.000000e+00> : vector<64x64xf32>
    %49 = tpu.matmul %47, %48, %cst_57 {dimension_numbers = #tpu.dot_dimension_numbers<[1], [0], [0], [1], [0, 0, 1, 1], [], []>} : vector<64x512xbf16>, vector<512x64xbf16>, vector<64x64xf32> -> vector<64x64xf32>
    %c0_58 = arith.constant 0 : index
    %c0_59 = arith.constant 0 : index
    %50 = vector.load %arg6[%c0_58, %c0_59] : memref<1x64xf32, #tpu.memory_space<vmem>>, vector<1x64xf32>
    %51 = vector.broadcast %50 : vector<1x64xf32> to vector<64x64xf32>
    %52 = arith.addf %49, %51 : vector<64x64xf32>
    %cst_60 = arith.constant dense<0.000000e+00> : vector<64xf32>
    %53 = vector.multi_reduction <add>, %52, %cst_60 [0] : vector<64x64xf32> to vector<64xf32>
    %54 = vector.shape_cast %53 : vector<64xf32> to vector<1x64xf32>
    %cst_61 = arith.constant 1.562500e-02 : f32
    %55 = vector.broadcast %cst_61 : f32 to vector<1x64xf32>
    %56 = arith.mulf %54, %55 : vector<1x64xf32>
    %57 = arith.mulf %52, %52 : vector<64x64xf32>
    %cst_62 = arith.constant dense<0.000000e+00> : vector<64xf32>
    %58 = vector.multi_reduction <add>, %57, %cst_62 [0] : vector<64x64xf32> to vector<64xf32>
    %59 = vector.shape_cast %58 : vector<64xf32> to vector<1x64xf32>
    %cst_63 = arith.constant 1.562500e-02 : f32
    %60 = vector.broadcast %cst_63 : f32 to vector<1x64xf32>
    %61 = arith.mulf %59, %60 : vector<1x64xf32>
    %62 = arith.mulf %56, %56 : vector<1x64xf32>
    %63 = arith.subf %61, %62 : vector<1x64xf32>
    %cst_64 = arith.constant 0.000000e+00 : f32
    %64 = vector.broadcast %cst_64 : f32 to vector<1x64xf32>
    %65 = arith.maximumf %63, %64 : vector<1x64xf32>
    %66 = vector.broadcast %56 : vector<1x64xf32> to vector<64x64xf32>
    %67 = arith.subf %52, %66 : vector<64x64xf32>
    %cst_65 = arith.constant 9.99999974E-6 : f32
    %68 = vector.broadcast %cst_65 : f32 to vector<1x64xf32>
    %69 = arith.addf %65, %68 : vector<1x64xf32>
    %70 = math.rsqrt %69 : vector<1x64xf32>
    %71 = vector.broadcast %70 : vector<1x64xf32> to vector<64x64xf32>
    %72 = arith.mulf %67, %71 : vector<64x64xf32>
    %cst_66 = arith.constant 2.000000e-01 : f32
    %73 = vector.broadcast %cst_66 : f32 to vector<64x64xf32>
    %74 = arith.mulf %73, %72 : vector<64x64xf32>
    %75 = arith.maximumf %72, %74 : vector<64x64xf32>
    %76 = arith.truncf %75 : vector<64x64xf32> to vector<64x64xbf16>
    %c0_67 = arith.constant 0 : index
    %c0_68 = arith.constant 0 : index
    %77 = vector.load %arg7[%c0_67, %c0_68] : memref<256x64xbf16, #tpu.memory_space<vmem>>, vector<256x64xbf16>
    %cst_69 = arith.constant dense<0.000000e+00> : vector<256x64xf32>
    %78 = tpu.matmul %77, %76, %cst_69 {dimension_numbers = #tpu.dot_dimension_numbers<[1], [0], [0], [1], [0, 0, 1, 1], [], []>} : vector<256x64xbf16>, vector<64x64xbf16>, vector<256x64xf32> -> vector<256x64xf32>
    %79 = arith.truncf %78 : vector<256x64xf32> to vector<256x64xbf16>
    %c0_70 = arith.constant 0 : index
    %c0_71 = arith.constant 0 : index
    %80 = vector.load %arg17[%c0_70, %c0_71] : memref<256x64xbf16, #tpu.memory_space<vmem>>, vector<256x64xbf16>
    tpu.vector_store %arg17[%c0_70, %c0_71], %79 {strides = array<i32>} : memref<256x64xbf16, #tpu.memory_space<vmem>>, vector<256x64xbf16>,
    %c0_72 = arith.constant 0 : index
    %c0_73 = arith.constant 0 : index
    %81 = vector.load %arg17[%c0_72, %c0_73] : memref<256x64xbf16, #tpu.memory_space<vmem>>, vector<16x64xbf16>
    %c0_74 = arith.constant 0 : index
    %c0_75 = arith.constant 0 : index
    %82 = vector.load %arg18[%c0_74, %c0_75] : memref<16x1024xbf16, #tpu.memory_space<vmem>>, vector<16x64xbf16>
    tpu.vector_store %arg18[%c0_74, %c0_75], %81 {strides = array<i32>} : memref<16x1024xbf16, #tpu.memory_space<vmem>>, vector<16x64xbf16>,
    %c16 = arith.constant 16 : index
    %c0_76 = arith.constant 0 : index
    %83 = vector.load %arg17[%c16, %c0_76] : memref<256x64xbf16, #tpu.memory_space<vmem>>, vector<16x64xbf16>
    %c0_77 = arith.constant 0 : index
    %c64_78 = arith.constant 64 : index
    %84 = vector.load %arg18[%c0_77, %c64_78] : memref<16x1024xbf16, #tpu.memory_space<vmem>>, vector<16x64xbf16>
    tpu.vector_store %arg18[%c0_77, %c64_78], %83 {strides = array<i32>} : memref<16x1024xbf16, #tpu.memory_space<vmem>>, vector<16x64xbf16>,
    %c32_79 = arith.constant 32 : index
    %c0_80 = arith.constant 0 : index
    %85 = vector.load %arg17[%c32_79, %c0_80] : memref<256x64xbf16, #tpu.memory_space<vmem>>, vector<16x64xbf16>
    %c0_81 = arith.constant 0 : index
    %c128_82 = arith.constant 128 : index
    %86 = vector.load %arg18[%c0_81, %c128_82] : memref<16x1024xbf16, #tpu.memory_space<vmem>>, vector<16x64xbf16>
    tpu.vector_store %arg18[%c0_81, %c128_82], %85 {strides = array<i32>} : memref<16x1024xbf16, #tpu.memory_space<vmem>>, vector<16x64xbf16>,
    %c48 = arith.constant 48 : index
    %c0_83 = arith.constant 0 : index
    %87 = vector.load %arg17[%c48, %c0_83] : memref<256x64xbf16, #tpu.memory_space<vmem>>, vector<16x64xbf16>
    %c0_84 = arith.constant 0 : index
    %c192_85 = arith.constant 192 : index
    %88 = vector.load %arg18[%c0_84, %c192_85] : memref<16x1024xbf16, #tpu.memory_space<vmem>>, vector<16x64xbf16>
    tpu.vector_store %arg18[%c0_84, %c192_85], %87 {strides = array<i32>} : memref<16x1024xbf16, #tpu.memory_space<vmem>>, vector<16x64xbf16>,
    %c64_86 = arith.constant 64 : index
    %c0_87 = arith.constant 0 : index
    %89 = vector.load %arg17[%c64_86, %c0_87] : memref<256x64xbf16, #tpu.memory_space<vmem>>, vector<16x64xbf16>
    %c0_88 = arith.constant 0 : index
    %c256_89 = arith.constant 256 : index
    %90 = vector.load %arg18[%c0_88, %c256_89] : memref<16x1024xbf16, #tpu.memory_space<vmem>>, vector<16x64xbf16>
    tpu.vector_store %arg18[%c0_88, %c256_89], %89 {strides = array<i32>} : memref<16x1024xbf16, #tpu.memory_space<vmem>>, vector<16x64xbf16>,
    %c80 = arith.constant 80 : index
    %c0_90 = arith.constant 0 : index
    %91 = vector.load %arg17[%c80, %c0_90] : memref<256x64xbf16, #tpu.memory_space<vmem>>, vector<16x64xbf16>
    %c0_91 = arith.constant 0 : index
    %c320_92 = arith.constant 320 : index
    %92 = vector.load %arg18[%c0_91, %c320_92] : memref<16x1024xbf16, #tpu.memory_space<vmem>>, vector<16x64xbf16>
    tpu.vector_store %arg18[%c0_91, %c320_92], %91 {strides = array<i32>} : memref<16x1024xbf16, #tpu.memory_space<vmem>>, vector<16x64xbf16>,
    %c96_93 = arith.constant 96 : index
    %c0_94 = arith.constant 0 : index
    %93 = vector.load %arg17[%c96_93, %c0_94] : memref<256x64xbf16, #tpu.memory_space<vmem>>, vector<16x64xbf16>
    %c0_95 = arith.constant 0 : index
    %c384_96 = arith.constant 384 : index
    %94 = vector.load %arg18[%c0_95, %c384_96] : memref<16x1024xbf16, #tpu.memory_space<vmem>>, vector<16x64xbf16>
    tpu.vector_store %arg18[%c0_95, %c384_96], %93 {strides = array<i32>} : memref<16x1024xbf16, #tpu.memory_space<vmem>>, vector<16x64xbf16>,
    %c112 = arith.constant 112 : index
    %c0_97 = arith.constant 0 : index
    %95 = vector.load %arg17[%c112, %c0_97] : memref<256x64xbf16, #tpu.memory_space<vmem>>, vector<16x64xbf16>
    %c0_98 = arith.constant 0 : index
    %c448_99 = arith.constant 448 : index
    %96 = vector.load %arg18[%c0_98, %c448_99] : memref<16x1024xbf16, #tpu.memory_space<vmem>>, vector<16x64xbf16>
    tpu.vector_store %arg18[%c0_98, %c448_99], %95 {strides = array<i32>} : memref<16x1024xbf16, #tpu.memory_space<vmem>>, vector<16x64xbf16>,
    %c128_100 = arith.constant 128 : index
    %c0_101 = arith.constant 0 : index
    %97 = vector.load %arg17[%c128_100, %c0_101] : memref<256x64xbf16, #tpu.memory_space<vmem>>, vector<16x64xbf16>
    %c0_102 = arith.constant 0 : index
    %c512_103 = arith.constant 512 : index
    %98 = vector.load %arg18[%c0_102, %c512_103] : memref<16x1024xbf16, #tpu.memory_space<vmem>>, vector<16x64xbf16>
    tpu.vector_store %arg18[%c0_102, %c512_103], %97 {strides = array<i32>} : memref<16x1024xbf16, #tpu.memory_space<vmem>>, vector<16x64xbf16>,
    %c144 = arith.constant 144 : index
    %c0_104 = arith.constant 0 : index
    %99 = vector.load %arg17[%c144, %c0_104] : memref<256x64xbf16, #tpu.memory_space<vmem>>, vector<16x64xbf16>
    %c0_105 = arith.constant 0 : index
    %c576_106 = arith.constant 576 : index
    %100 = vector.load %arg18[%c0_105, %c576_106] : memref<16x1024xbf16, #tpu.memory_space<vmem>>, vector<16x64xbf16>
    tpu.vector_store %arg18[%c0_105, %c576_106], %99 {strides = array<i32>} : memref<16x1024xbf16, #tpu.memory_space<vmem>>, vector<16x64xbf16>,
    %c160_107 = arith.constant 160 : index
    %c0_108 = arith.constant 0 : index
    %101 = vector.load %arg17[%c160_107, %c0_108] : memref<256x64xbf16, #tpu.memory_space<vmem>>, vector<16x64xbf16>
    %c0_109 = arith.constant 0 : index
    %c640_110 = arith.constant 640 : index
    %102 = vector.load %arg18[%c0_109, %c640_110] : memref<16x1024xbf16, #tpu.memory_space<vmem>>, vector<16x64xbf16>
    tpu.vector_store %arg18[%c0_109, %c640_110], %101 {strides = array<i32>} : memref<16x1024xbf16, #tpu.memory_space<vmem>>, vector<16x64xbf16>,
    %c176 = arith.constant 176 : index
    %c0_111 = arith.constant 0 : index
    %103 = vector.load %arg17[%c176, %c0_111] : memref<256x64xbf16, #tpu.memory_space<vmem>>, vector<16x64xbf16>
    %c0_112 = arith.constant 0 : index
    %c704_113 = arith.constant 704 : index
    %104 = vector.load %arg18[%c0_112, %c704_113] : memref<16x1024xbf16, #tpu.memory_space<vmem>>, vector<16x64xbf16>
    tpu.vector_store %arg18[%c0_112, %c704_113], %103 {strides = array<i32>} : memref<16x1024xbf16, #tpu.memory_space<vmem>>, vector<16x64xbf16>,
    %c192_114 = arith.constant 192 : index
    %c0_115 = arith.constant 0 : index
    %105 = vector.load %arg17[%c192_114, %c0_115] : memref<256x64xbf16, #tpu.memory_space<vmem>>, vector<16x64xbf16>
    %c0_116 = arith.constant 0 : index
    %c768_117 = arith.constant 768 : index
    %106 = vector.load %arg18[%c0_116, %c768_117] : memref<16x1024xbf16, #tpu.memory_space<vmem>>, vector<16x64xbf16>
    tpu.vector_store %arg18[%c0_116, %c768_117], %105 {strides = array<i32>} : memref<16x1024xbf16, #tpu.memory_space<vmem>>, vector<16x64xbf16>,
    %c208 = arith.constant 208 : index
    %c0_118 = arith.constant 0 : index
    %107 = vector.load %arg17[%c208, %c0_118] : memref<256x64xbf16, #tpu.memory_space<vmem>>, vector<16x64xbf16>
    %c0_119 = arith.constant 0 : index
    %c832_120 = arith.constant 832 : index
    %108 = vector.load %arg18[%c0_119, %c832_120] : memref<16x1024xbf16, #tpu.memory_space<vmem>>, vector<16x64xbf16>
    tpu.vector_store %arg18[%c0_119, %c832_120], %107 {strides = array<i32>} : memref<16x1024xbf16, #tpu.memory_space<vmem>>, vector<16x64xbf16>,
    %c224_121 = arith.constant 224 : index
    %c0_122 = arith.constant 0 : index
    %109 = vector.load %arg17[%c224_121, %c0_122] : memref<256x64xbf16, #tpu.memory_space<vmem>>, vector<16x64xbf16>
    %c0_123 = arith.constant 0 : index
    %c896_124 = arith.constant 896 : index
    %110 = vector.load %arg18[%c0_123, %c896_124] : memref<16x1024xbf16, #tpu.memory_space<vmem>>, vector<16x64xbf16>
    tpu.vector_store %arg18[%c0_123, %c896_124], %109 {strides = array<i32>} : memref<16x1024xbf16, #tpu.memory_space<vmem>>, vector<16x64xbf16>,
    %c240 = arith.constant 240 : index
    %c0_125 = arith.constant 0 : index
    %111 = vector.load %arg17[%c240, %c0_125] : memref<256x64xbf16, #tpu.memory_space<vmem>>, vector<16x64xbf16>
    %c0_126 = arith.constant 0 : index
    %c960_127 = arith.constant 960 : index
    %112 = vector.load %arg18[%c0_126, %c960_127] : memref<16x1024xbf16, #tpu.memory_space<vmem>>, vector<16x64xbf16>
    tpu.vector_store %arg18[%c0_126, %c960_127], %111 {strides = array<i32>} : memref<16x1024xbf16, #tpu.memory_space<vmem>>, vector<16x64xbf16>,
    %c0_128 = arith.constant 0 : index
    %c0_129 = arith.constant 0 : index
    %113 = vector.load %arg18[%c0_128, %c0_129] : memref<16x1024xbf16, #tpu.memory_space<vmem>>, vector<16x1024xbf16>
    %c0_130 = arith.constant 0 : index
    %c0_131 = arith.constant 0 : index
    %114 = vector.load %arg8[%c0_130, %c0_131] : memref<1024x128xbf16, #tpu.memory_space<vmem>>, vector<1024x128xbf16>
    %cst_132 = arith.constant dense<0.000000e+00> : vector<16x128xf32>
    %115 = tpu.matmul %113, %114, %cst_132 {dimension_numbers = #tpu.dot_dimension_numbers<[1], [0], [0], [1], [0, 0, 1, 1], [], []>} : vector<16x1024xbf16>, vector<1024x128xbf16>, vector<16x128xf32> -> vector<16x128xf32>
    %c0_133 = arith.constant 0 : index
    %c0_134 = arith.constant 0 : index
    %116 = vector.load %arg9[%c0_133, %c0_134] : memref<1x128xf32, #tpu.memory_space<vmem>>, vector<1x128xf32>
    %117 = vector.broadcast %116 : vector<1x128xf32> to vector<16x128xf32>
    %118 = arith.addf %115, %117 : vector<16x128xf32>
    %cst_135 = arith.constant dense<0.000000e+00> : vector<128xf32>
    %119 = vector.multi_reduction <add>, %118, %cst_135 [0] : vector<16x128xf32> to vector<128xf32>
    %120 = vector.shape_cast %119 : vector<128xf32> to vector<1x128xf32>
    %cst_136 = arith.constant 6.250000e-02 : f32
    %121 = vector.broadcast %cst_136 : f32 to vector<1x128xf32>
    %122 = arith.mulf %120, %121 : vector<1x128xf32>
    %123 = arith.mulf %118, %118 : vector<16x128xf32>
    %cst_137 = arith.constant dense<0.000000e+00> : vector<128xf32>
    %124 = vector.multi_reduction <add>, %123, %cst_137 [0] : vector<16x128xf32> to vector<128xf32>
    %125 = vector.shape_cast %124 : vector<128xf32> to vector<1x128xf32>
    %cst_138 = arith.constant 6.250000e-02 : f32
    %126 = vector.broadcast %cst_138 : f32 to vector<1x128xf32>
    %127 = arith.mulf %125, %126 : vector<1x128xf32>
    %128 = arith.mulf %122, %122 : vector<1x128xf32>
    %129 = arith.subf %127, %128 : vector<1x128xf32>
    %cst_139 = arith.constant 0.000000e+00 : f32
    %130 = vector.broadcast %cst_139 : f32 to vector<1x128xf32>
    %131 = arith.maximumf %129, %130 : vector<1x128xf32>
    %132 = vector.broadcast %122 : vector<1x128xf32> to vector<16x128xf32>
    %133 = arith.subf %118, %132 : vector<16x128xf32>
    %cst_140 = arith.constant 9.99999974E-6 : f32
    %134 = vector.broadcast %cst_140 : f32 to vector<1x128xf32>
    %135 = arith.addf %131, %134 : vector<1x128xf32>
    %136 = math.rsqrt %135 : vector<1x128xf32>
    %137 = vector.broadcast %136 : vector<1x128xf32> to vector<16x128xf32>
    %138 = arith.mulf %133, %137 : vector<16x128xf32>
    %cst_141 = arith.constant 2.000000e-01 : f32
    %139 = vector.broadcast %cst_141 : f32 to vector<16x128xf32>
    %140 = arith.mulf %139, %138 : vector<16x128xf32>
    %141 = arith.maximumf %138, %140 : vector<16x128xf32>
    %142 = arith.truncf %141 : vector<16x128xf32> to vector<16x128xbf16>
    %c0_142 = arith.constant 0 : index
    %c0_143 = arith.constant 0 : index
    %143 = vector.load %arg10[%c0_142, %c0_143] : memref<64x16xbf16, #tpu.memory_space<vmem>>, vector<64x16xbf16>
    %cst_144 = arith.constant dense<0.000000e+00> : vector<64x128xf32>
    %144 = tpu.matmul %143, %142, %cst_144 {dimension_numbers = #tpu.dot_dimension_numbers<[1], [0], [0], [1], [0, 0, 1, 1], [], []>} : vector<64x16xbf16>, vector<16x128xbf16>, vector<64x128xf32> -> vector<64x128xf32>
    %145 = arith.truncf %144 : vector<64x128xf32> to vector<64x128xbf16>
    %c0_145 = arith.constant 0 : index
    %c0_146 = arith.constant 0 : index
    %146 = vector.load %arg19[%c0_145, %c0_146] : memref<64x128xbf16, #tpu.memory_space<vmem>>, vector<64x128xbf16>
    tpu.vector_store %arg19[%c0_145, %c0_146], %145 {strides = array<i32>} : memref<64x128xbf16, #tpu.memory_space<vmem>>, vector<64x128xbf16>,
    %c0_147 = arith.constant 0 : index
    %c0_148 = arith.constant 0 : index
    %147 = vector.load %arg19[%c0_147, %c0_148] : memref<64x128xbf16, #tpu.memory_space<vmem>>, vector<4x128xbf16>
    %c0_149 = arith.constant 0 : index
    %c0_150 = arith.constant 0 : index
    %148 = vector.load %arg20[%c0_149, %c0_150] : memref<4x2048xbf16, #tpu.memory_space<vmem>>, vector<4x128xbf16>
    tpu.vector_store %arg20[%c0_149, %c0_150], %147 {strides = array<i32>} : memref<4x2048xbf16, #tpu.memory_space<vmem>>, vector<4x128xbf16>,
    %c4 = arith.constant 4 : index
    %c0_151 = arith.constant 0 : index
    %149 = vector.load %arg19[%c4, %c0_151] : memref<64x128xbf16, #tpu.memory_space<vmem>>, vector<4x128xbf16>
    %c0_152 = arith.constant 0 : index
    %c128_153 = arith.constant 128 : index
    %150 = vector.load %arg20[%c0_152, %c128_153] : memref<4x2048xbf16, #tpu.memory_space<vmem>>, vector<4x128xbf16>
    tpu.vector_store %arg20[%c0_152, %c128_153], %149 {strides = array<i32>} : memref<4x2048xbf16, #tpu.memory_space<vmem>>, vector<4x128xbf16>,
    %c8 = arith.constant 8 : index
    %c0_154 = arith.constant 0 : index
    %151 = vector.load %arg19[%c8, %c0_154] : memref<64x128xbf16, #tpu.memory_space<vmem>>, vector<4x128xbf16>
    %c0_155 = arith.constant 0 : index
    %c256_156 = arith.constant 256 : index
    %152 = vector.load %arg20[%c0_155, %c256_156] : memref<4x2048xbf16, #tpu.memory_space<vmem>>, vector<4x128xbf16>
    tpu.vector_store %arg20[%c0_155, %c256_156], %151 {strides = array<i32>} : memref<4x2048xbf16, #tpu.memory_space<vmem>>, vector<4x128xbf16>,
    %c12 = arith.constant 12 : index
    %c0_157 = arith.constant 0 : index
    %153 = vector.load %arg19[%c12, %c0_157] : memref<64x128xbf16, #tpu.memory_space<vmem>>, vector<4x128xbf16>
    %c0_158 = arith.constant 0 : index
    %c384_159 = arith.constant 384 : index
    %154 = vector.load %arg20[%c0_158, %c384_159] : memref<4x2048xbf16, #tpu.memory_space<vmem>>, vector<4x128xbf16>
    tpu.vector_store %arg20[%c0_158, %c384_159], %153 {strides = array<i32>} : memref<4x2048xbf16, #tpu.memory_space<vmem>>, vector<4x128xbf16>,
    %c16_160 = arith.constant 16 : index
    %c0_161 = arith.constant 0 : index
    %155 = vector.load %arg19[%c16_160, %c0_161] : memref<64x128xbf16, #tpu.memory_space<vmem>>, vector<4x128xbf16>
    %c0_162 = arith.constant 0 : index
    %c512_163 = arith.constant 512 : index
    %156 = vector.load %arg20[%c0_162, %c512_163] : memref<4x2048xbf16, #tpu.memory_space<vmem>>, vector<4x128xbf16>
    tpu.vector_store %arg20[%c0_162, %c512_163], %155 {strides = array<i32>} : memref<4x2048xbf16, #tpu.memory_space<vmem>>, vector<4x128xbf16>,
    %c20 = arith.constant 20 : index
    %c0_164 = arith.constant 0 : index
    %157 = vector.load %arg19[%c20, %c0_164] : memref<64x128xbf16, #tpu.memory_space<vmem>>, vector<4x128xbf16>
    %c0_165 = arith.constant 0 : index
    %c640_166 = arith.constant 640 : index
    %158 = vector.load %arg20[%c0_165, %c640_166] : memref<4x2048xbf16, #tpu.memory_space<vmem>>, vector<4x128xbf16>
    tpu.vector_store %arg20[%c0_165, %c640_166], %157 {strides = array<i32>} : memref<4x2048xbf16, #tpu.memory_space<vmem>>, vector<4x128xbf16>,
    %c24 = arith.constant 24 : index
    %c0_167 = arith.constant 0 : index
    %159 = vector.load %arg19[%c24, %c0_167] : memref<64x128xbf16, #tpu.memory_space<vmem>>, vector<4x128xbf16>
    %c0_168 = arith.constant 0 : index
    %c768_169 = arith.constant 768 : index
    %160 = vector.load %arg20[%c0_168, %c768_169] : memref<4x2048xbf16, #tpu.memory_space<vmem>>, vector<4x128xbf16>
    tpu.vector_store %arg20[%c0_168, %c768_169], %159 {strides = array<i32>} : memref<4x2048xbf16, #tpu.memory_space<vmem>>, vector<4x128xbf16>,
    %c28 = arith.constant 28 : index
    %c0_170 = arith.constant 0 : index
    %161 = vector.load %arg19[%c28, %c0_170] : memref<64x128xbf16, #tpu.memory_space<vmem>>, vector<4x128xbf16>
    %c0_171 = arith.constant 0 : index
    %c896_172 = arith.constant 896 : index
    %162 = vector.load %arg20[%c0_171, %c896_172] : memref<4x2048xbf16, #tpu.memory_space<vmem>>, vector<4x128xbf16>
    tpu.vector_store %arg20[%c0_171, %c896_172], %161 {strides = array<i32>} : memref<4x2048xbf16, #tpu.memory_space<vmem>>, vector<4x128xbf16>,
    %c32_173 = arith.constant 32 : index
    %c0_174 = arith.constant 0 : index
    %163 = vector.load %arg19[%c32_173, %c0_174] : memref<64x128xbf16, #tpu.memory_space<vmem>>, vector<4x128xbf16>
    %c0_175 = arith.constant 0 : index
    %c1024 = arith.constant 1024 : index
    %164 = vector.load %arg20[%c0_175, %c1024] : memref<4x2048xbf16, #tpu.memory_space<vmem>>, vector<4x128xbf16>
    tpu.vector_store %arg20[%c0_175, %c1024], %163 {strides = array<i32>} : memref<4x2048xbf16, #tpu.memory_space<vmem>>, vector<4x128xbf16>,
    %c36 = arith.constant 36 : index
    %c0_176 = arith.constant 0 : index
    %165 = vector.load %arg19[%c36, %c0_176] : memref<64x128xbf16, #tpu.memory_space<vmem>>, vector<4x128xbf16>
    %c0_177 = arith.constant 0 : index
    %c1152 = arith.constant 1152 : index
    %166 = vector.load %arg20[%c0_177, %c1152] : memref<4x2048xbf16, #tpu.memory_space<vmem>>, vector<4x128xbf16>
    tpu.vector_store %arg20[%c0_177, %c1152], %165 {strides = array<i32>} : memref<4x2048xbf16, #tpu.memory_space<vmem>>, vector<4x128xbf16>,
    %c40 = arith.constant 40 : index
    %c0_178 = arith.constant 0 : index
    %167 = vector.load %arg19[%c40, %c0_178] : memref<64x128xbf16, #tpu.memory_space<vmem>>, vector<4x128xbf16>
    %c0_179 = arith.constant 0 : index
    %c1280 = arith.constant 1280 : index
    %168 = vector.load %arg20[%c0_179, %c1280] : memref<4x2048xbf16, #tpu.memory_space<vmem>>, vector<4x128xbf16>
    tpu.vector_store %arg20[%c0_179, %c1280], %167 {strides = array<i32>} : memref<4x2048xbf16, #tpu.memory_space<vmem>>, vector<4x128xbf16>,
    %c44 = arith.constant 44 : index
    %c0_180 = arith.constant 0 : index
    %169 = vector.load %arg19[%c44, %c0_180] : memref<64x128xbf16, #tpu.memory_space<vmem>>, vector<4x128xbf16>
    %c0_181 = arith.constant 0 : index
    %c1408 = arith.constant 1408 : index
    %170 = vector.load %arg20[%c0_181, %c1408] : memref<4x2048xbf16, #tpu.memory_space<vmem>>, vector<4x128xbf16>
    tpu.vector_store %arg20[%c0_181, %c1408], %169 {strides = array<i32>} : memref<4x2048xbf16, #tpu.memory_space<vmem>>, vector<4x128xbf16>,
    %c48_182 = arith.constant 48 : index
    %c0_183 = arith.constant 0 : index
    %171 = vector.load %arg19[%c48_182, %c0_183] : memref<64x128xbf16, #tpu.memory_space<vmem>>, vector<4x128xbf16>
    %c0_184 = arith.constant 0 : index
    %c1536 = arith.constant 1536 : index
    %172 = vector.load %arg20[%c0_184, %c1536] : memref<4x2048xbf16, #tpu.memory_space<vmem>>, vector<4x128xbf16>
    tpu.vector_store %arg20[%c0_184, %c1536], %171 {strides = array<i32>} : memref<4x2048xbf16, #tpu.memory_space<vmem>>, vector<4x128xbf16>,
    %c52 = arith.constant 52 : index
    %c0_185 = arith.constant 0 : index
    %173 = vector.load %arg19[%c52, %c0_185] : memref<64x128xbf16, #tpu.memory_space<vmem>>, vector<4x128xbf16>
    %c0_186 = arith.constant 0 : index
    %c1664 = arith.constant 1664 : index
    %174 = vector.load %arg20[%c0_186, %c1664] : memref<4x2048xbf16, #tpu.memory_space<vmem>>, vector<4x128xbf16>
    tpu.vector_store %arg20[%c0_186, %c1664], %173 {strides = array<i32>} : memref<4x2048xbf16, #tpu.memory_space<vmem>>, vector<4x128xbf16>,
    %c56 = arith.constant 56 : index
    %c0_187 = arith.constant 0 : index
    %175 = vector.load %arg19[%c56, %c0_187] : memref<64x128xbf16, #tpu.memory_space<vmem>>, vector<4x128xbf16>
    %c0_188 = arith.constant 0 : index
    %c1792 = arith.constant 1792 : index
    %176 = vector.load %arg20[%c0_188, %c1792] : memref<4x2048xbf16, #tpu.memory_space<vmem>>, vector<4x128xbf16>
    tpu.vector_store %arg20[%c0_188, %c1792], %175 {strides = array<i32>} : memref<4x2048xbf16, #tpu.memory_space<vmem>>, vector<4x128xbf16>,
    %c60 = arith.constant 60 : index
    %c0_189 = arith.constant 0 : index
    %177 = vector.load %arg19[%c60, %c0_189] : memref<64x128xbf16, #tpu.memory_space<vmem>>, vector<4x128xbf16>
    %c0_190 = arith.constant 0 : index
    %c1920 = arith.constant 1920 : index
    %178 = vector.load %arg20[%c0_190, %c1920] : memref<4x2048xbf16, #tpu.memory_space<vmem>>, vector<4x128xbf16>
    tpu.vector_store %arg20[%c0_190, %c1920], %177 {strides = array<i32>} : memref<4x2048xbf16, #tpu.memory_space<vmem>>, vector<4x128xbf16>,
    %c0_191 = arith.constant 0 : index
    %c0_192 = arith.constant 0 : index
    %179 = vector.load %arg20[%c0_191, %c0_192] : memref<4x2048xbf16, #tpu.memory_space<vmem>>, vector<4x2048xbf16>
    %c0_193 = arith.constant 0 : index
    %c0_194 = arith.constant 0 : index
    %180 = vector.load %arg11[%c0_193, %c0_194] : memref<2048x256xbf16, #tpu.memory_space<vmem>>, vector<2048x256xbf16>
    %cst_195 = arith.constant dense<0.000000e+00> : vector<4x256xf32>
    %181 = tpu.matmul %179, %180, %cst_195 {dimension_numbers = #tpu.dot_dimension_numbers<[1], [0], [0], [1], [0, 0, 1, 1], [], []>} : vector<4x2048xbf16>, vector<2048x256xbf16>, vector<4x256xf32> -> vector<4x256xf32>
    %c0_196 = arith.constant 0 : index
    %c0_197 = arith.constant 0 : index
    %182 = vector.load %arg12[%c0_196, %c0_197] : memref<1x256xf32, #tpu.memory_space<vmem>>, vector<1x256xf32>
    %183 = vector.broadcast %182 : vector<1x256xf32> to vector<4x256xf32>
    %184 = arith.addf %181, %183 : vector<4x256xf32>
    %cst_198 = arith.constant dense<0.000000e+00> : vector<256xf32>
    %185 = vector.multi_reduction <add>, %184, %cst_198 [0] : vector<4x256xf32> to vector<256xf32>
    %186 = vector.shape_cast %185 : vector<256xf32> to vector<1x256xf32>
    %cst_199 = arith.constant 2.500000e-01 : f32
    %187 = vector.broadcast %cst_199 : f32 to vector<1x256xf32>
    %188 = arith.mulf %186, %187 : vector<1x256xf32>
    %189 = arith.mulf %184, %184 : vector<4x256xf32>
    %cst_200 = arith.constant dense<0.000000e+00> : vector<256xf32>
    %190 = vector.multi_reduction <add>, %189, %cst_200 [0] : vector<4x256xf32> to vector<256xf32>
    %191 = vector.shape_cast %190 : vector<256xf32> to vector<1x256xf32>
    %cst_201 = arith.constant 2.500000e-01 : f32
    %192 = vector.broadcast %cst_201 : f32 to vector<1x256xf32>
    %193 = arith.mulf %191, %192 : vector<1x256xf32>
    %194 = arith.mulf %188, %188 : vector<1x256xf32>
    %195 = arith.subf %193, %194 : vector<1x256xf32>
    %cst_202 = arith.constant 0.000000e+00 : f32
    %196 = vector.broadcast %cst_202 : f32 to vector<1x256xf32>
    %197 = arith.maximumf %195, %196 : vector<1x256xf32>
    %198 = vector.broadcast %188 : vector<1x256xf32> to vector<4x256xf32>
    %199 = arith.subf %184, %198 : vector<4x256xf32>
    %cst_203 = arith.constant 9.99999974E-6 : f32
    %200 = vector.broadcast %cst_203 : f32 to vector<1x256xf32>
    %201 = arith.addf %197, %200 : vector<1x256xf32>
    %202 = math.rsqrt %201 : vector<1x256xf32>
    %203 = vector.broadcast %202 : vector<1x256xf32> to vector<4x256xf32>
    %204 = arith.mulf %199, %203 : vector<4x256xf32>
    %cst_204 = arith.constant 2.000000e-01 : f32
    %205 = vector.broadcast %cst_204 : f32 to vector<4x256xf32>
    %206 = arith.mulf %205, %204 : vector<4x256xf32>
    %207 = arith.maximumf %204, %206 : vector<4x256xf32>
    %208 = arith.truncf %207 : vector<4x256xf32> to vector<4x256xbf16>
    %c0_205 = arith.constant 0 : index
    %c0_206 = arith.constant 0 : index
    %209 = vector.load %arg21[%c0_205, %c0_206] : memref<4x256xbf16, #tpu.memory_space<vmem>>, vector<4x256xbf16>
    tpu.vector_store %arg21[%c0_205, %c0_206], %208 {strides = array<i32>} : memref<4x256xbf16, #tpu.memory_space<vmem>>, vector<4x256xbf16>,
    %c0_207 = arith.constant 0 : index
    %c0_208 = arith.constant 0 : index
    %210 = vector.load %arg21[%c0_207, %c0_208] : memref<4x256xbf16, #tpu.memory_space<vmem>>, vector<1x256xbf16>
    %c0_209 = arith.constant 0 : index
    %c0_210 = arith.constant 0 : index
    %211 = vector.load %arg22[%c0_209, %c0_210] : memref<1x1024xbf16, #tpu.memory_space<vmem>>, vector<1x256xbf16>
    tpu.vector_store %arg22[%c0_209, %c0_210], %210 {strides = array<i32>} : memref<1x1024xbf16, #tpu.memory_space<vmem>>, vector<1x256xbf16>,
    %c1 = arith.constant 1 : index
    %c0_211 = arith.constant 0 : index
    %212 = vector.load %arg21[%c1, %c0_211] : memref<4x256xbf16, #tpu.memory_space<vmem>>, vector<1x256xbf16>
    %c0_212 = arith.constant 0 : index
    %c256_213 = arith.constant 256 : index
    %213 = vector.load %arg22[%c0_212, %c256_213] : memref<1x1024xbf16, #tpu.memory_space<vmem>>, vector<1x256xbf16>
    tpu.vector_store %arg22[%c0_212, %c256_213], %212 {strides = array<i32>} : memref<1x1024xbf16, #tpu.memory_space<vmem>>, vector<1x256xbf16>,
    %c2 = arith.constant 2 : index
    %c0_214 = arith.constant 0 : index
    %214 = vector.load %arg21[%c2, %c0_214] : memref<4x256xbf16, #tpu.memory_space<vmem>>, vector<1x256xbf16>
    %c0_215 = arith.constant 0 : index
    %c512_216 = arith.constant 512 : index
    %215 = vector.load %arg22[%c0_215, %c512_216] : memref<1x1024xbf16, #tpu.memory_space<vmem>>, vector<1x256xbf16>
    tpu.vector_store %arg22[%c0_215, %c512_216], %214 {strides = array<i32>} : memref<1x1024xbf16, #tpu.memory_space<vmem>>, vector<1x256xbf16>,
    %c3 = arith.constant 3 : index
    %c0_217 = arith.constant 0 : index
    %216 = vector.load %arg21[%c3, %c0_217] : memref<4x256xbf16, #tpu.memory_space<vmem>>, vector<1x256xbf16>
    %c0_218 = arith.constant 0 : index
    %c768_219 = arith.constant 768 : index
    %217 = vector.load %arg22[%c0_218, %c768_219] : memref<1x1024xbf16, #tpu.memory_space<vmem>>, vector<1x256xbf16>
    tpu.vector_store %arg22[%c0_218, %c768_219], %216 {strides = array<i32>} : memref<1x1024xbf16, #tpu.memory_space<vmem>>, vector<1x256xbf16>,
    %c0_220 = arith.constant 0 : index
    %c0_221 = arith.constant 0 : index
    %218 = vector.load %arg22[%c0_220, %c0_221] : memref<1x1024xbf16, #tpu.memory_space<vmem>>, vector<1x1024xbf16>
    %c0_222 = arith.constant 0 : index
    %c0_223 = arith.constant 0 : index
    %219 = vector.load %arg13[%c0_222, %c0_223] : memref<1024x4xbf16, #tpu.memory_space<vmem>>, vector<1024x4xbf16>
    %cst_224 = arith.constant dense<0.000000e+00> : vector<1x4xf32>
    %220 = tpu.matmul %218, %219, %cst_224 {dimension_numbers = #tpu.dot_dimension_numbers<[1], [0], [0], [1], [0, 0, 1, 1], [], []>} : vector<1x1024xbf16>, vector<1024x4xbf16>, vector<1x4xf32> -> vector<1x4xf32>
    %c0_225 = arith.constant 0 : index
    %c0_226 = arith.constant 0 : index
    %c0_227 = arith.constant 0 : index
    %221 = vector.load %arg14[%c0_225, %c0_226, %c0_227] : memref<1x1x4xf32, #tpu.memory_space<vmem>>, vector<1x1x4xf32>
    %222 = vector.shape_cast %221 : vector<1x1x4xf32> to vector<1x4xf32>
    %223 = vector.shape_cast %220 : vector<1x4xf32> to vector<1x1x4xf32>
    tpu.vector_store %arg14[%c0_225, %c0_226, %c0_227], %223 {strides = array<i32>} : memref<1x1x4xf32, #tpu.memory_space<vmem>>, vector<1x1x4xf32>,
    return
  }
  func.func @transform_0(%arg0: i32) -> (i32, i32, i32) {
    %c0_i32 = arith.constant 0 : i32
    %c0_i32_0 = arith.constant 0 : i32
    %c0_i32_1 = arith.constant 0 : i32
    return %arg0, %c0_i32, %c0_i32_0 : i32, i32, i32
  }
  func.func @transform_1(%arg0: i32) -> (i32, i32) {
    %c0_i32 = arith.constant 0 : i32
    %c0_i32_0 = arith.constant 0 : i32
    %c0_i32_1 = arith.constant 0 : i32
    return %c0_i32, %c0_i32_0 : i32, i32
  }
  func.func @transform_2(%arg0: i32) -> (i32, i32) {
    %c0_i32 = arith.constant 0 : i32
    %c0_i32_0 = arith.constant 0 : i32
    %c0_i32_1 = arith.constant 0 : i32
    return %c0_i32, %c0_i32_0 : i32, i32
  }
  func.func @transform_3(%arg0: i32) -> (i32, i32) {
    %c0_i32 = arith.constant 0 : i32
    %c0_i32_0 = arith.constant 0 : i32
    %c0_i32_1 = arith.constant 0 : i32
    return %c0_i32, %c0_i32_0 : i32, i32
  }
  func.func @transform_4(%arg0: i32) -> (i32, i32) {
    %c0_i32 = arith.constant 0 : i32
    %c0_i32_0 = arith.constant 0 : i32
    %c0_i32_1 = arith.constant 0 : i32
    return %c0_i32, %c0_i32_0 : i32, i32
  }
  func.func @transform_5(%arg0: i32) -> (i32, i32) {
    %c0_i32 = arith.constant 0 : i32
    %c0_i32_0 = arith.constant 0 : i32
    %c0_i32_1 = arith.constant 0 : i32
    return %c0_i32, %c0_i32_0 : i32, i32
  }
  func.func @transform_6(%arg0: i32) -> (i32, i32) {
    %c0_i32 = arith.constant 0 : i32
    %c0_i32_0 = arith.constant 0 : i32
    %c0_i32_1 = arith.constant 0 : i32
    return %c0_i32, %c0_i32_0 : i32, i32
  }
  func.func @transform_7(%arg0: i32) -> (i32, i32) {
    %c0_i32 = arith.constant 0 : i32
    %c0_i32_0 = arith.constant 0 : i32
    %c0_i32_1 = arith.constant 0 : i32
    return %c0_i32, %c0_i32_0 : i32, i32
  }
  func.func @transform_8(%arg0: i32) -> (i32, i32) {
    %c0_i32 = arith.constant 0 : i32
    %c0_i32_0 = arith.constant 0 : i32
    %c0_i32_1 = arith.constant 0 : i32
    return %c0_i32, %c0_i32_0 : i32, i32
  }
  func.func @transform_9(%arg0: i32) -> (i32, i32) {
    %c0_i32 = arith.constant 0 : i32
    %c0_i32_0 = arith.constant 0 : i32
    %c0_i32_1 = arith.constant 0 : i32
    return %c0_i32, %c0_i32_0 : i32, i32
  }
  func.func @transform_10(%arg0: i32) -> (i32, i32) {
    %c0_i32 = arith.constant 0 : i32
    %c0_i32_0 = arith.constant 0 : i32
    %c0_i32_1 = arith.constant 0 : i32
    return %c0_i32, %c0_i32_0 : i32, i32
  }
  func.func @transform_11(%arg0: i32) -> (i32, i32) {
    %c0_i32 = arith.constant 0 : i32
    %c0_i32_0 = arith.constant 0 : i32
    %c0_i32_1 = arith.constant 0 : i32
    return %c0_i32, %c0_i32_0 : i32, i32
  }
  func.func @transform_12(%arg0: i32) -> (i32, i32) {
    %c0_i32 = arith.constant 0 : i32
    %c0_i32_0 = arith.constant 0 : i32
    %c0_i32_1 = arith.constant 0 : i32
    return %c0_i32, %c0_i32_0 : i32, i32
  }
  func.func @transform_13(%arg0: i32) -> (i32, i32, i32) {
    %c0_i32 = arith.constant 0 : i32
    %c0_i32_0 = arith.constant 0 : i32
    %c0_i32_1 = arith.constant 0 : i32
    return %arg0, %c0_i32, %c0_i32_0 : i32, i32, i32
  }
}

</mosaic_0001>

<llo_original>
// kernel: patchgan_forward.1
$region0: #{patchgan_forward.1}
  #allocation0 [shape = 'u32[]', space=smem, size = 0x4, offset = 0x4, fixed_abs, tag = 'smem constant byte address 0x4 - core index']
  #allocation1 [shape = 'u32[144,128]{1,0:T(1,128)}', space=vmem, size = 0x12000, scoped, tag = 'internal scratch']
  #allocation2 [shape = 'bf16[1024,32]{1,0:T(16,128)(2,1)}', space=vmem, size = 0x40000, scoped, tag = 'scratch operand']
  #allocation3 [shape = 'bf16[64,512]{1,0:T(16,128)(2,1)}', space=vmem, size = 0x10000, scoped, tag = 'scratch operand']
  #allocation4 [shape = 'bf16[256,64]{1,0:T(16,128)(2,1)}', space=vmem, size = 0x10000, scoped, tag = 'scratch operand']
  #allocation5 [shape = 'bf16[16,1024]{1,0:T(16,128)(2,1)}', space=vmem, size = 0x8000, scoped, tag = 'scratch operand']
  #allocation6 [shape = 'bf16[64,128]{1,0:T(16,128)(2,1)}', space=vmem, size = 0x4000, scoped, tag = 'scratch operand']
  #allocation7 [shape = 'bf16[4,2048]{1,0:T(4,128)(2,1)}', space=vmem, size = 0x4000, scoped, tag = 'scratch operand']
  #allocation8 [shape = 'bf16[4,256]{1,0:T(4,128)(2,1)}', space=vmem, size = 0x800, scoped, tag = 'scratch operand']
  #allocation9 [shape = 'bf16[1,1024]{1,0:T(2,128)(2,1)}', space=vmem, size = 0x1000, scoped, tag = 'scratch operand']
  %s0 = inlined_call_operand.vmem [shape: bf16[2,256,48], index: 0, kind: input, shape index: {}]
  %s1 = inlined_call_operand.vmem [shape: bf16[48,32], index: 1, kind: input, shape index: {}]
  %s2 = inlined_call_operand.vmem [shape: f32[1,32], index: 2, kind: input, shape index: {}]
  %s3 = inlined_call_operand.vmem [shape: bf16[1024,256], index: 3, kind: input, shape index: {}]
  %s4 = inlined_call_operand.vmem [shape: bf16[512,64], index: 4, kind: input, shape index: {}]
  %s5 = inlined_call_operand.vmem [shape: f32[1,64], index: 5, kind: input, shape index: {}]
  %s6 = inlined_call_operand.vmem [shape: bf16[256,64], index: 6, kind: input, shape index: {}]
  %s7 = inlined_call_operand.vmem [shape: bf16[1024,128], index: 7, kind: input, shape index: {}]
  %s8 = inlined_call_operand.vmem [shape: f32[1,128], index: 8, kind: input, shape index: {}]
  %s9 = inlined_call_operand.vmem [shape: bf16[64,16], index: 9, kind: input, shape index: {}]
  %s10 = inlined_call_operand.vmem [shape: bf16[2048,256], index: 10, kind: input, shape index: {}]
  %s11 = inlined_call_operand.vmem [shape: f32[1,256], index: 11, kind: input, shape index: {}]
  %s12 = inlined_call_operand.vmem [shape: bf16[1024,4], index: 12, kind: input, shape index: {}]
  %s13 = inlined_call_operand.vmem [shape: f32[2,1,4], index: 13, kind: output, shape index: {}]
  %s14 = sld [smem:[#allocation0]]
  $region85: #{patchgan_forward.1} parent=0
    _
  %s16 = ssub.s32 1, %s14
  %s17 = scalar_select 0, %s16, %s14
  loop: start=0, step=1, limit=4
  $region2: #{patchgan_forward.1} parent=0 // loop_pre_header
    _
  $region3: #{patchgan_forward.1} parent=0 // loop_header
    %s19 = sphi 0, %s23
    %p20 = scmp.ge.s32.totalorder %s19, 4
    %s29 = sphi 0, %s31
    %s32 = sphi 0, %s29
    %s33 = sphi 0, %s32
    %s49 = sphi 0, %s33
    %s53 = sphi 0, %s53
    %s55 = sphi 0, %s53
    %s56 = sphi 0, %s55
    %s70 = sphi 0, %s56
    %s74 = sphi 0, %s74
    %s76 = sphi 0, %s74
    %s77 = sphi 0, %s76
    %s91 = sphi 0, %s77
    %s95 = sphi 0, %s95
    %s97 = sphi 0, %s95
    %s98 = sphi 0, %s97
    %s112 = sphi 0, %s98
    %s116 = sphi 0, %s116
    %s118 = sphi 0, %s116
    %s119 = sphi 0, %s118
    %s133 = sphi 0, %s119
    %s137 = sphi 0, %s137
    %s139 = sphi 0, %s137
    %s140 = sphi 0, %s139
    %s154 = sphi 0, %s140
    %s158 = sphi 0, %s158
    %s160 = sphi 0, %s158
    %s161 = sphi 0, %s160
    %s175 = sphi 0, %s161
    %s179 = sphi 0, %s179
    %s181 = sphi 0, %s179
    %s182 = sphi 0, %s181
    %s196 = sphi 0, %s182
    %s200 = sphi 0, %s200
    %s202 = sphi 0, %s200
    %s203 = sphi 0, %s202
    %s217 = sphi 0, %s203
    %s221 = sphi 0, %s221
    %s223 = sphi 0, %s221
    %s224 = sphi 0, %s223
    %s238 = sphi 0, %s224
    %s242 = sphi 0, %s242
    %s244 = sphi 0, %s242
    %s245 = sphi 0, %s244
    %s259 = sphi 0, %s245
    %s263 = sphi 0, %s263
    %s265 = sphi 0, %s263
    %s266 = sphi 0, %s265
    %s280 = sphi 0, %s266
    %s284 = sphi 0, %s284
    %s286 = sphi 0, %s284
    %s287 = sphi 0, %s286
    %s301 = sphi 0, %s287
    %s307 = sphi 0, %s309
    %s310 = sphi 0, %s307
    %s311 = sphi 0, %s310
    %s327 = sphi 0, %s311
  $region4: #{patchgan_forward.1} parent=0 // loop_header_branch
    %22 = sbr.rel (%p20) target = $region8
  $region5: #{patchgan_forward.1} parent=0 // loop_body
    %s24 = ssub.s32 %s19, 1
    %s25 = ssub.s32 %s19, 2
    %s26 = sadd.s32 %s19, 1
    %s27 = ssub.s32 %s19, %s26
    %p28 = scmp.eq.s32.totalorder %s27, 0
    %s30 = sadd.s32 %s29, 1
    %s31 = scalar_select %p28, %s29, %s30
    %p34 = pneg %p28
    %p35 = scmp.eq.s32.totalorder %s19, 1
    %p36 = por %p34, %p35
    %p37 = scmp.ne.s32.totalorder %s29, %s32
    %p38 = scmp.eq.s32.totalorder %s19, 0
    %p39 = por %p37, %p38
    %p40 = scmp.ne.s32.totalorder %s29, %s32
    %p41 = scmp.eq.s32.totalorder %s24, 1
    %p42 = por %p40, %p41
    %p43 = scmp.ne.s32.totalorder %s32, %s33
    %p44 = scmp.eq.s32.totalorder %s24, 0
    %p45 = por %p43, %p44
    %p46 = scmp.ne.s32.totalorder %s32, %s33
    %p47 = scmp.eq.s32.totalorder %s25, 1
    %p48 = por %p46, %p47
    %p50 = scmp.ne.s32.totalorder %s33, %s49
    %p51 = scmp.eq.s32.totalorder %s25, 0
    %p52 = por %p50, %p51
    %s54 = sadd.s32 %s53, 1
    %p57 = scmp.eq.s32.totalorder %s19, 1
    %p58 = scmp.ne.s32.totalorder %s53, %s55
    %p59 = scmp.eq.s32.totalorder %s19, 0
    %p60 = por %p58, %p59
    %p61 = scmp.ne.s32.totalorder %s53, %s55
    %p62 = scmp.eq.s32.totalorder %s24, 1
    %p63 = por %p61, %p62
    %p64 = scmp.ne.s32.totalorder %s55, %s56
    %p65 = scmp.eq.s32.totalorder %s24, 0
    %p66 = por %p64, %p65
    %p67 = scmp.ne.s32.totalorder %s55, %s56
    %p68 = scmp.eq.s32.totalorder %s25, 1
    %p69 = por %p67, %p68
    %p71 = scmp.ne.s32.totalorder %s56, %s70
    %p72 = scmp.eq.s32.totalorder %s25, 0
    %p73 = por %p71, %p72
    %s75 = sadd.s32 %s74, 1
    %p78 = scmp.eq.s32.totalorder %s19, 1
    %p79 = scmp.ne.s32.totalorder %s74, %s76
    %p80 = scmp.eq.s32.totalorder %s19, 0
    %p81 = por %p79, %p80
    %p82 = scmp.ne.s32.totalorder %s74, %s76
    %p83 = scmp.eq.s32.totalorder %s24, 1
    %p84 = por %p82, %p83
    %p85 = scmp.ne.s32.totalorder %s76, %s77
    %p86 = scmp.eq.s32.totalorder %s24, 0
    %p87 = por %p85, %p86
    %p88 = scmp.ne.s32.totalorder %s76, %s77
    %p89 = scmp.eq.s32.totalorder %s25, 1
    %p90 = por %p88, %p89
    %p92 = scmp.ne.s32.totalorder %s77, %s91
    %p93 = scmp.eq.s32.totalorder %s25, 0
    %p94 = por %p92, %p93
    %s96 = sadd.s32 %s95, 1
    %p99 = scmp.eq.s32.totalorder %s19, 1
    %p100 = scmp.ne.s32.totalorder %s95, %s97
    %p101 = scmp.eq.s32.totalorder %s19, 0
    %p102 = por %p100, %p101
    %p103 = scmp.ne.s32.totalorder %s95, %s97
    %p104 = scmp.eq.s32.totalorder %s24, 1
    %p105 = por %p103, %p104
    %p106 = scmp.ne.s32.totalorder %s97, %s98
    %p107 = scmp.eq.s32.totalorder %s24, 0
    %p108 = por %p106, %p107
    %p109 = scmp.ne.s32.totalorder %s97, %s98
    %p110 = scmp.eq.s32.totalorder %s25, 1
    %p111 = por %p109, %p110
    %p113 = scmp.ne.s32.totalorder %s98, %s112
    %p114 = scmp.eq.s32.totalorder %s25, 0
    %p115 = por %p113, %p114
    %s117 = sadd.s32 %s116, 1
    %p120 = scmp.eq.s32.totalorder %s19, 1
    %p121 = scmp.ne.s32.totalorder %s116, %s118
    %p122 = scmp.eq.s32.totalorder %s19, 0
    %p123 = por %p121, %p122
    %p124 = scmp.ne.s32.totalorder %s116, %s118
    %p125 = scmp.eq.s32.totalorder %s24, 1
    %p126 = por %p124, %p125
    %p127 = scmp.ne.s32.totalorder %s118, %s119
    %p128 = scmp.eq.s32.totalorder %s24, 0
    %p129 = por %p127, %p128
    %p130 = scmp.ne.s32.totalorder %s118, %s119
    %p131 = scmp.eq.s32.totalorder %s25, 1
    %p132 = por %p130, %p131
    %p134 = scmp.ne.s32.totalorder %s119, %s133
    %p135 = scmp.eq.s32.totalorder %s25, 0
    %p136 = por %p134, %p135
    %s138 = sadd.s32 %s137, 1
    %p141 = scmp.eq.s32.totalorder %s19, 1
    %p142 = scmp.ne.s32.totalorder %s137, %s139
    %p143 = scmp.eq.s32.totalorder %s19, 0
    %p144 = por %p142, %p143
    %p145 = scmp.ne.s32.totalorder %s137, %s139
    %p146 = scmp.eq.s32.totalorder %s24, 1
    %p147 = por %p145, %p146
    %p148 = scmp.ne.s32.totalorder %s139, %s140
    %p149 = scmp.eq.s32.totalorder %s24, 0
    %p150 = por %p148, %p149
    %p151 = scmp.ne.s32.totalorder %s139, %s140
    %p152 = scmp.eq.s32.totalorder %s25, 1
    %p153 = por %p151, %p152
    %p155 = scmp.ne.s32.totalorder %s140, %s154
    %p156 = scmp.eq.s32.totalorder %s25, 0
    %p157 = por %p155, %p156
    %s159 = sadd.s32 %s158, 1
    %p162 = scmp.eq.s32.totalorder %s19, 1
    %p163 = scmp.ne.s32.totalorder %s158, %s160
    %p164 = scmp.eq.s32.totalorder %s19, 0
    %p165 = por %p163, %p164
    %p166 = scmp.ne.s32.totalorder %s158, %s160
    %p167 = scmp.eq.s32.totalorder %s24, 1
    %p168 = por %p166, %p167
    %p169 = scmp.ne.s32.totalorder %s160, %s161
    %p170 = scmp.eq.s32.totalorder %s24, 0
    %p171 = por %p169, %p170
    %p172 = scmp.ne.s32.totalorder %s160, %s161
    %p173 = scmp.eq.s32.totalorder %s25, 1
    %p174 = por %p172, %p173
    %p176 = scmp.ne.s32.totalorder %s161, %s175
    %p177 = scmp.eq.s32.totalorder %s25, 0
    %p178 = por %p176, %p177
    %s180 = sadd.s32 %s179, 1
    %p183 = scmp.eq.s32.totalorder %s19, 1
    %p184 = scmp.ne.s32.totalorder %s179, %s181
    %p185 = scmp.eq.s32.totalorder %s19, 0
    %p186 = por %p184, %p185
    %p187 = scmp.ne.s32.totalorder %s179, %s181
    %p188 = scmp.eq.s32.totalorder %s24, 1
    %p189 = por %p187, %p188
    %p190 = scmp.ne.s32.totalorder %s181, %s182
    %p191 = scmp.eq.s32.totalorder %s24, 0
    %p192 = por %p190, %p191
    %p193 = scmp.ne.s32.totalorder %s181, %s182
    %p194 = scmp.eq.s32.totalorder %s25, 1
    %p195 = por %p193, %p194
    %p197 = scmp.ne.s32.totalorder %s182, %s196
    %p198 = scmp.eq.s32.totalorder %s25, 0
    %p199 = por %p197, %p198
    %s201 = sadd.s32 %s200, 1
    %p204 = scmp.eq.s32.totalorder %s19, 1
    %p205 = scmp.ne.s32.totalorder %s200, %s202
    %p206 = scmp.eq.s32.totalorder %s19, 0
    %p207 = por %p205, %p206
    %p208 = scmp.ne.s32.totalorder %s200, %s202
    %p209 = scmp.eq.s32.totalorder %s24, 1
    %p210 = por %p208, %p209
    %p211 = scmp.ne.s32.totalorder %s202, %s203
    %p212 = scmp.eq.s32.totalorder %s24, 0
    %p213 = por %p211, %p212
    %p214 = scmp.ne.s32.totalorder %s202, %s203
    %p215 = scmp.eq.s32.totalorder %s25, 1
    %p216 = por %p214, %p215
    %p218 = scmp.ne.s32.totalorder %s203, %s217
    %p219 = scmp.eq.s32.totalorder %s25, 0
    %p220 = por %p218, %p219
    %s222 = sadd.s32 %s221, 1
    %p225 = scmp.eq.s32.totalorder %s19, 1
    %p226 = scmp.ne.s32.totalorder %s221, %s223
    %p227 = scmp.eq.s32.totalorder %s19, 0
    %p228 = por %p226, %p227
    %p229 = scmp.ne.s32.totalorder %s221, %s223
    %p230 = scmp.eq.s32.totalorder %s24, 1
    %p231 = por %p229, %p230
    %p232 = scmp.ne.s32.totalorder %s223, %s224
    %p233 = scmp.eq.s32.totalorder %s24, 0
    %p234 = por %p232, %p233
    %p235 = scmp.ne.s32.totalorder %s223, %s224
    %p236 = scmp.eq.s32.totalorder %s25, 1
    %p237 = por %p235, %p236
    %p239 = scmp.ne.s32.totalorder %s224, %s238
    %p240 = scmp.eq.s32.totalorder %s25, 0
    %p241 = por %p239, %p240
    %s243 = sadd.s32 %s242, 1
    %p246 = scmp.eq.s32.totalorder %s19, 1
    %p247 = scmp.ne.s32.totalorder %s242, %s244
    %p248 = scmp.eq.s32.totalorder %s19, 0
    %p249 = por %p247, %p248
    %p250 = scmp.ne.s32.totalorder %s242, %s244
    %p251 = scmp.eq.s32.totalorder %s24, 1
    %p252 = por %p250, %p251
    %p253 = scmp.ne.s32.totalorder %s244, %s245
    %p254 = scmp.eq.s32.totalorder %s24, 0
    %p255 = por %p253, %p254
    %p256 = scmp.ne.s32.totalorder %s244, %s245
    %p257 = scmp.eq.s32.totalorder %s25, 1
    %p258 = por %p256, %p257
    %p260 = scmp.ne.s32.totalorder %s245, %s259
    %p261 = scmp.eq.s32.totalorder %s25, 0
    %p262 = por %p260, %p261
    %s264 = sadd.s32 %s263, 1
    %p267 = scmp.eq.s32.totalorder %s19, 1
    %p268 = scmp.ne.s32.totalorder %s263, %s265
    %p269 = scmp.eq.s32.totalorder %s19, 0
    %p270 = por %p268, %p269
    %p271 = scmp.ne.s32.totalorder %s263, %s265
    %p272 = scmp.eq.s32.totalorder %s24, 1
    %p273 = por %p271, %p272
    %p274 = scmp.ne.s32.totalorder %s265, %s266
    %p275 = scmp.eq.s32.totalorder %s24, 0
    %p276 = por %p274, %p275
    %p277 = scmp.ne.s32.totalorder %s265, %s266
    %p278 = scmp.eq.s32.totalorder %s25, 1
    %p279 = por %p277, %p278
    %p281 = scmp.ne.s32.totalorder %s266, %s280
    %p282 = scmp.eq.s32.totalorder %s25, 0
    %p283 = por %p281, %p282
    %s285 = sadd.s32 %s284, 1
    %p288 = scmp.eq.s32.totalorder %s19, 1
    %p289 = scmp.ne.s32.totalorder %s284, %s286
    %p290 = scmp.eq.s32.totalorder %s19, 0
    %p291 = por %p289, %p290
    %p292 = scmp.ne.s32.totalorder %s284, %s286
    %p293 = scmp.eq.s32.totalorder %s24, 1
    %p294 = por %p292, %p293
    %p295 = scmp.ne.s32.totalorder %s286, %s287
    %p296 = scmp.eq.s32.totalorder %s24, 0
    %p297 = por %p295, %p296
    %p298 = scmp.ne.s32.totalorder %s286, %s287
    %p299 = scmp.eq.s32.totalorder %s25, 1
    %p300 = por %p298, %p299
    %p302 = scmp.ne.s32.totalorder %s287, %s301
    %p303 = scmp.eq.s32.totalorder %s25, 0
    %p304 = por %p302, %p303
    %s305 = ssub.s32 %s19, %s26
    %p306 = scmp.eq.s32.totalorder %s305, 0
    %s308 = sadd.s32 %s307, 1
    %s309 = scalar_select %p306, %s307, %s308
    %p312 = pneg %p306
    %p313 = scmp.eq.s32.totalorder %s19, 1
    %p314 = por %p312, %p313
    %p315 = scmp.ne.s32.totalorder %s307, %s310
    %p316 = scmp.eq.s32.totalorder %s19, 0
    %p317 = por %p315, %p316
    %p318 = scmp.ne.s32.totalorder %s307, %s310
    %p319 = scmp.eq.s32.totalorder %s24, 1
    %p320 = por %p318, %p319
    %p321 = scmp.ne.s32.totalorder %s310, %s311
    %p322 = scmp.eq.s32.totalorder %s24, 0
    %p323 = por %p321, %p322
    %p324 = scmp.ne.s32.totalorder %s310, %s311
    %p325 = scmp.eq.s32.totalorder %s25, 1
    %p326 = por %p324, %p325
    %p328 = scmp.ne.s32.totalorder %s311, %s327
    %p329 = scmp.eq.s32.totalorder %s25, 0
    %p330 = por %p328, %p329
    %p331 = scmp.le.s32.totalorder 1, %s19
    %p332 = scmp.lt.s32.totalorder %s19, 3
    %p333 = pnand %p331, %p332
    %p334 = pneg %p333
    // Predicated region
    $region9: #{patchgan_forward.1} parent=5 // pred_check
      _
    $region10: #{patchgan_forward.1} parent=5 // pred_check_branch
      %336 = sbr.rel (%p333) target = $region12
    $region11: #{patchgan_forward.1} parent=5 // pred_region
      %s337 = ssub.s32 %s19, 1
      // Predicated region
      $region13: #{patchgan_forward.1} parent=11 // pred_check
        %p338 = pneg %p66
      $region14: #{patchgan_forward.1} parent=11 // pred_check_branch
        %340 = sbr.rel (%p338) target = $region16
      $region15: #{patchgan_forward.1} parent=11 // pred_region
        _
      $region16: #{patchgan_forward.1} parent=11 // pred_fallthru
        _
      // Predicated region
      $region17: #{patchgan_forward.1} parent=11 // pred_check
        %p341 = pneg %p87
      $region18: #{patchgan_forward.1} parent=11 // pred_check_branch
        %343 = sbr.rel (%p341) target = $region20
      $region19: #{patchgan_forward.1} parent=11 // pred_region
        _
      $region20: #{patchgan_forward.1} parent=11 // pred_fallthru
        _
      // Predicated region
      $region21: #{patchgan_forward.1} parent=11 // pred_check
        %p344 = pneg %p108
      $region22: #{patchgan_forward.1} parent=11 // pred_check_branch
        %346 = sbr.rel (%p344) target = $region24
      $region23: #{patchgan_forward.1} parent=11 // pred_region
        _
      $region24: #{patchgan_forward.1} parent=11 // pred_fallthru
        _
      // Predicated region
      $region25: #{patchgan_forward.1} parent=11 // pred_check
        %p347 = pneg %p129
      $region26: #{patchgan_forward.1} parent=11 // pred_check_branch
        %349 = sbr.rel (%p347) target = $region28
      $region27: #{patchgan_forward.1} parent=11 // pred_region
        _
      $region28: #{patchgan_forward.1} parent=11 // pred_fallthru
        _
      // Predicated region
      $region29: #{patchgan_forward.1} parent=11 // pred_check
        %p350 = pneg %p150
      $region30: #{patchgan_forward.1} parent=11 // pred_check_branch
        %352 = sbr.rel (%p350) target = $region32
      $region31: #{patchgan_forward.1} parent=11 // pred_region
        _
      $region32: #{patchgan_forward.1} parent=11 // pred_fallthru
        _
      // Predicated region
      $region33: #{patchgan_forward.1} parent=11 // pred_check
        %p353 = pneg %p171
      $region34: #{patchgan_forward.1} parent=11 // pred_check_branch
        %355 = sbr.rel (%p353) target = $region36
      $region35: #{patchgan_forward.1} parent=11 // pred_region
        _
      $region36: #{patchgan_forward.1} parent=11 // pred_fallthru
        _
      // Predicated region
      $region37: #{patchgan_forward.1} parent=11 // pred_check
        %p356 = pneg %p192
      $region38: #{patchgan_forward.1} parent=11 // pred_check_branch
        %358 = sbr.rel (%p356) target = $region40
      $region39: #{patchgan_forward.1} parent=11 // pred_region
        _
      $region40: #{patchgan_forward.1} parent=11 // pred_fallthru
        _
      // Predicated region
      $region41: #{patchgan_forward.1} parent=11 // pred_check
        %p359 = pneg %p213
      $region42: #{patchgan_forward.1} parent=11 // pred_check_branch
        %361 = sbr.rel (%p359) target = $region44
      $region43: #{patchgan_forward.1} parent=11 // pred_region
        _
      $region44: #{patchgan_forward.1} parent=11 // pred_fallthru
        _
      // Predicated region
      $region45: #{patchgan_forward.1} parent=11 // pred_check
        %p362 = pneg %p234
      $region46: #{patchgan_forward.1} parent=11 // pred_check_branch
        %364 = sbr.rel (%p362) target = $region48
      $region47: #{patchgan_forward.1} parent=11 // pred_region
        _
      $region48: #{patchgan_forward.1} parent=11 // pred_fallthru
        _
      // Predicated region
      $region49: #{patchgan_forward.1} parent=11 // pred_check
        %p365 = pneg %p255
      $region50: #{patchgan_forward.1} parent=11 // pred_check_branch
        %367 = sbr.rel (%p365) target = $region52
      $region51: #{patchgan_forward.1} parent=11 // pred_region
        _
      $region52: #{patchgan_forward.1} parent=11 // pred_fallthru
        _
      // Predicated region
      $region53: #{patchgan_forward.1} parent=11 // pred_check
        %p368 = pneg %p276
      $region54: #{patchgan_forward.1} parent=11 // pred_check_branch
        %370 = sbr.rel (%p368) target = $region56
      $region55: #{patchgan_forward.1} parent=11 // pred_region
        _
      $region56: #{patchgan_forward.1} parent=11 // pred_fallthru
        _
      // Predicated region
      $region57: #{patchgan_forward.1} parent=11 // pred_check
        %p371 = pneg %p297
      $region58: #{patchgan_forward.1} parent=11 // pred_check_branch
        %373 = sbr.rel (%p371) target = $region60
      $region59: #{patchgan_forward.1} parent=11 // pred_region
        _
      $region60: #{patchgan_forward.1} parent=11 // pred_fallthru
        _
    $region12: #{patchgan_forward.1} parent=5 // pred_fallthru
      _
    %p374 = scmp.lt.s32.totalorder %s19, 2
    // Predicated region
    $region61: #{patchgan_forward.1} parent=5 // pred_check
      %p375 = pneg %p374
    $region62: #{patchgan_forward.1} parent=5 // pred_check_branch
      %377 = sbr.rel (%p375) target = $region64
    $region63: #{patchgan_forward.1} parent=5 // pred_region
      // Predicated region
      $region65: #{patchgan_forward.1} parent=63 // pred_check
        %p378 = pneg %p39
      $region66: #{patchgan_forward.1} parent=63 // pred_check_branch
        %380 = sbr.rel (%p378) target = $region68
      $region67: #{patchgan_forward.1} parent=63 // pred_region
        %p381 = scmp.lt.s32.totalorder %s19, 1
        %s382 = scalar_select %p381, %s19, 1
        %s383 = smul.addr %s382, 32
        %s384 = smul.addr %s383, 4
        %s385 = scalar_lea.vmem %s0, %s384
      $region68: #{patchgan_forward.1} parent=63 // pred_fallthru
        _
    $region64: #{patchgan_forward.1} parent=5 // pred_fallthru
      _
    %p386 = scmp.le.s32.totalorder 1, %s19
    %p387 = scmp.lt.s32.totalorder %s19, 3
    %p388 = pnand %p386, %p387
    %p389 = pneg %p388
    // Predicated region
    $region69: #{patchgan_forward.1} parent=5 // pred_check
      _
    $region70: #{patchgan_forward.1} parent=5 // pred_check_branch
      %391 = sbr.rel (%p388) target = $region72
    $region71: #{patchgan_forward.1} parent=5 // pred_region
      %s392 = ssub.s32 %s19, 1
      %p393 = scmp.lt.s32.totalorder %s24, 1
      %s394 = scalar_select %p393, %s24, 1
      %s395 = smul.addr %s394, 32
      %s396 = smul.addr %s395, 4
      %s397 = scalar_lea.vmem %s0, %s396
      %p398 = pneg %p45
      %p399 = pneg %p42
      %p400 = pneg %p66
      %p401 = pneg %p63
      %p402 = pneg %p87
      %p403 = pneg %p84
      %p404 = pneg %p108
      %p405 = pneg %p105
      %p406 = pneg %p129
      %p407 = pneg %p126
      %p408 = pneg %p150
      %p409 = pneg %p147
      %p410 = pneg %p171
      %p411 = pneg %p168
      %p412 = pneg %p192
      %p413 = pneg %p189
      %p414 = pneg %p213
      %p415 = pneg %p210
      %p416 = pneg %p234
      %p417 = pneg %p231
      %p418 = pneg %p255
      %p419 = pneg %p252
      %p420 = pneg %p276
      %p421 = pneg %p273
      %p422 = pneg %p297
      %p423 = pneg %p294
      %p424 = pneg %p323
      %p425 = pneg %p320
      %p426 = scmp.lt.s32.totalorder %s24, 1
      %s427 = scalar_select %p426, %s24, 1
      %s428 = scalar_lea.vmem %s13, %s427
      %p429 = scmp.lt.s32.totalorder %s24, 1
      %s430 = scalar_select %p429, %s24, 1
      %s431 = smul.addr %s430, 32
      %s432 = smul.addr %s431, 4
      %s433 = scalar_lea.vmem %s0, %s432
      %p434 = scmp.lt.s32.totalorder %s24, 1
      %s435 = scalar_select %p434, %s24, 1
      %s436 = scalar_lea.vmem %s13, %s435
      %v438 = vld [vmem:[%s433] sm:$0xf]
      %v439 = vld [vmem:[%s433 + $0x4] sm:$0xf]
      %v440 = vld [vmem:[%s433 + $0x8] sm:$0xf]
      %v441 = vld [vmem:[%s433 + $0xc] sm:$0xf]
      %v442 = vld [vmem:[%s433 + $0x10] sm:$0xf]
      %v443 = vld [vmem:[%s433 + $0x14] sm:$0xf]
      %v444 = vld [vmem:[%s433 + $0x18] sm:$0xf]
      %v445 = vld [vmem:[%s433 + $0x1c] sm:$0xf]
      %v446 = vld [vmem:[%s433 + $0x20] sm:$0xf]
      %v447 = vld [vmem:[%s433 + $0x24] sm:$0xf]
      %v448 = vld [vmem:[%s433 + $0x28] sm:$0xf]
      %v449 = vld [vmem:[%s433 + $0x2c] sm:$0xf]
      %v450 = vld [vmem:[%s433 + $0x30] sm:$0xf]
      %v451 = vld [vmem:[%s433 + $0x34] sm:$0xf]
      %v452 = vld [vmem:[%s433 + $0x38] sm:$0xf]
      %v453 = vld [vmem:[%s433 + $0x3c] sm:$0xf]
      %v454 = vld [vmem:[%s433 + $0x40] sm:$0xf]
      %v455 = vld [vmem:[%s433 + $0x44] sm:$0xf]
      %v456 = vld [vmem:[%s433 + $0x48] sm:$0xf]
      %v457 = vld [vmem:[%s433 + $0x4c] sm:$0xf]
      %v458 = vld [vmem:[%s433 + $0x50] sm:$0xf]
      %v459 = vld [vmem:[%s433 + $0x54] sm:$0xf]
      %v460 = vld [vmem:[%s433 + $0x58] sm:$0xf]
      %v461 = vld [vmem:[%s433 + $0x5c] sm:$0xf]
      %v462 = vld [vmem:[%s433 + $0x60] sm:$0xf]
      %v463 = vld [vmem:[%s433 + $0x64] sm:$0xf]
      %v464 = vld [vmem:[%s433 + $0x68] sm:$0xf]
      %v465 = vld [vmem:[%s433 + $0x6c] sm:$0xf]
      %v466 = vld [vmem:[%s433 + $0x70] sm:$0xf]
      %v467 = vld [vmem:[%s433 + $0x74] sm:$0xf]
      %v468 = vld [vmem:[%s433 + $0x78] sm:$0xf]
      %v469 = vld [vmem:[%s433 + $0x7c] sm:$0xf]
      %v470 = vld [vmem:[%s1] sm:$0xf]
      %v471 = vld [vmem:[%s1 + $0x4] sm:$0xf]
      %v472 = vld [vmem:[%s1 + $0x8] sm:$0xf]
      %v473 = vld [vmem:[%s1 + $0xc] sm:$0xf]
      %v474 = vld [vmem:[%s1 + $0x10] sm:$0xf]
      %v475 = vld [vmem:[%s1 + $0x14] sm:$0xf]
      %v476 = vld [vmem:[%s2] sm:$0x1]
      %v478 = vlaneseq
      %v479 = vshrl.u32 %v478, 7
      %v480 = vsub.s32 0, %v479
      %v481 = vrot.slane %v476, %v480
      %v515 = vunpack.c.l.b16 %v438
      %v516 = vunpack.c.l.b16 %v439
      %v517 = vunpack.c.l.b16 %v440
      %v518 = vunpack.c.l.b16 %v441
      %v519 = vunpack.c.l.b16 %v442
      %v520 = vunpack.c.l.b16 %v443
      %v521 = vunpack.c.l.b16 %v444
      %v522 = vunpack.c.l.b16 %v445
      %v523 = vunpack.c.l.b16 %v446
      %v524 = vunpack.c.l.b16 %v447
      %v525 = vunpack.c.l.b16 %v448
      %v526 = vunpack.c.l.b16 %v449
      %v527 = vunpack.c.l.b16 %v450
      %v528 = vunpack.c.l.b16 %v451
      %v529 = vunpack.c.l.b16 %v452
      %v530 = vunpack.c.l.b16 %v453
      %v531 = vunpack.c.l.b16 %v454
      %v532 = vunpack.c.l.b16 %v455
      %v533 = vunpack.c.l.b16 %v456
      %v534 = vunpack.c.l.b16 %v457
      %v535 = vunpack.c.l.b16 %v458
      %v536 = vunpack.c.l.b16 %v459
      %v537 = vunpack.c.l.b16 %v460
      %v538 = vunpack.c.l.b16 %v461
      %v539 = vunpack.c.l.b16 %v462
      %v540 = vunpack.c.l.b16 %v463
      %v541 = vunpack.c.l.b16 %v464
      %v542 = vunpack.c.l.b16 %v465
      %v543 = vunpack.c.l.b16 %v466
      %v544 = vunpack.c.l.b16 %v467
      %v545 = vunpack.c.l.b16 %v468
      %v546 = vunpack.c.l.b16 %v469
      %v547 = vpack.c.b16 %v516, %v515
      %v548 = vpack.c.b16 %v518, %v517
      %v549 = vpack.c.b16 %v520, %v519
      %v550 = vpack.c.b16 %v522, %v521
      %v551 = vpack.c.b16 %v524, %v523
      %v552 = vpack.c.b16 %v526, %v525
      %v553 = vpack.c.b16 %v528, %v527
      %v554 = vpack.c.b16 %v530, %v529
      %v555 = vpack.c.b16 %v532, %v531
      %v556 = vpack.c.b16 %v534, %v533
      %v557 = vpack.c.b16 %v536, %v535
      %v558 = vpack.c.b16 %v538, %v537
      %v559 = vpack.c.b16 %v540, %v539
      %v560 = vpack.c.b16 %v542, %v541
      %v561 = vpack.c.b16 %v544, %v543
      %v562 = vpack.c.b16 %v546, %v545
      %v569 = vunpack.c.l.b16 %v470
      %v570 = vunpack.c.l.b16 %v471
      %v571 = vunpack.c.l.b16 %v472
      %v572 = vunpack.c.l.b16 %v473
      %v573 = vunpack.c.l.b16 %v474
      %v574 = vunpack.c.l.b16 %v475
      %v575 = vpack.c.b16 %v570, %v569
      %v576 = vpack.c.b16 %v572, %v571
      %v577 = vpack.c.b16 %v574, %v573
      %vm581 = vcmask 392192
      %v583 = vsel %vm581, %v547, 0
      %v586 = vsel %vm581, %v548, 0
      %v589 = vsel %vm581, %v549, 0
      %v592 = vsel %vm581, %v550, 0
      %v595 = vsel %vm581, %v551, 0
      %v598 = vsel %vm581, %v552, 0
      %v601 = vsel %vm581, %v553, 0
      %v604 = vsel %vm581, %v554, 0
      %v607 = vsel %vm581, %v555, 0
      %v610 = vsel %vm581, %v556, 0
      %v613 = vsel %vm581, %v557, 0
      %v616 = vsel %vm581, %v558, 0
      %v619 = vsel %vm581, %v559, 0
      %v622 = vsel %vm581, %v560, 0
      %v625 = vsel %vm581, %v561, 0
      %v628 = vsel %vm581, %v562, 0
      %630 = vmatprep.subr.bf16.mxu0 0
      %631 = vmatpush1.bf16.msra.mxu0 %v575
      %632 = vmatprep.subr.bf16.mxu0 0
      %633 = vmatpush1.bf16.msra.mxu0 %v576
      %634 = vmatprep.subr.bf16.mxu0 0
      %635 = vmatpush1.bf16.msra.mxu0 %v577
      %636 = vmatprep.subr.bf16.mxu0 0
      %637 = vmatpush1.bf16.msra.mxu0 0
      %638 = vmatprep.subr.bf16.mxu0 0
      %639 = vmatpush1.bf16.msra.mxu0 0
      %640 = vmatprep.subr.bf16.mxu0 0
      %641 = vmatpush1.bf16.msra.mxu0 0
      %642 = vmatprep.subr.bf16.mxu0 0
      %643 = vmatpush1.bf16.msra.mxu0 0
      %644 = vmatprep.subr.bf16.mxu0 0
      %645 = vmatpush1.bf16.msra.mxu0 0
      %646 = vmatprep.subr.bf16.mxu0 0
      %647 = vmatpush1.bf16.msra.mxu0 0
      %648 = vmatprep.subr.bf16.mxu0 0
      %649 = vmatpush1.bf16.msra.mxu0 0
      %650 = vmatprep.subr.bf16.mxu0 0
      %651 = vmatpush1.bf16.msra.mxu0 0
      %652 = vmatprep.subr.bf16.mxu0 0
      %653 = vmatpush1.bf16.msra.mxu0 0
      %654 = vmatprep.subr.bf16.mxu0 0
      %655 = vmatpush1.bf16.msra.mxu0 0
      %656 = vmatprep.subr.bf16.mxu0 0
      %657 = vmatpush1.bf16.msra.mxu0 0
      %658 = vmatprep.subr.bf16.mxu0 0
      %659 = vmatpush1.bf16.msra.mxu0 0
      %660 = vmatprep.subr.bf16.mxu0 0
      %661 = vmatpush1.bf16.msra.mxu0 0
      %662 = vmatprep.mubr.bf16.mxu0 0
      %663 = vmatmul.mubr.bf16.gmra.mrb[0].mxu0 %v583
      %v664 = vpop.f32.mrb[0].mxu0
      %v665 = vadd.f32 %v481, %v664
      %v666 = vpop.f32.mrb[0].mxu0
      %v667 = vpop.f32.mrb[0].mxu0
      %v668 = vadd.f32 %v481, %v667
      %v669 = vpop.f32.mrb[0].mxu0
      %670 = vmatprep.mubr.bf16.mxu0 0
      %671 = vmatmul.mubr.bf16.gmra.mrb[0].mxu0 %v586
      %v672 = vpop.f32.mrb[0].mxu0
      %v673 = vadd.f32 %v481, %v672
      %v674 = vpop.f32.mrb[0].mxu0
      %v675 = vpop.f32.mrb[0].mxu0
      %v676 = vadd.f32 %v481, %v675
      %v677 = vpop.f32.mrb[0].mxu0
      %678 = vmatprep.mubr.bf16.mxu0 0
      %679 = vmatmul.mubr.bf16.gmra.mrb[0].mxu0 %v589
      %v680 = vpop.f32.mrb[0].mxu0
      %v681 = vadd.f32 %v481, %v680
      %v682 = vpop.f32.mrb[0].mxu0
      %v683 = vpop.f32.mrb[0].mxu0
      %v684 = vadd.f32 %v481, %v683
      %v685 = vpop.f32.mrb[0].mxu0
      %686 = vmatprep.mubr.bf16.mxu0 0
      %687 = vmatmul.mubr.bf16.gmra.mrb[0].mxu0 %v592
      %v688 = vpop.f32.mrb[0].mxu0
      %v689 = vadd.f32 %v481, %v688
      %v690 = vpop.f32.mrb[0].mxu0
      %v691 = vpop.f32.mrb[0].mxu0
      %v692 = vadd.f32 %v481, %v691
      %v693 = vpop.f32.mrb[0].mxu0
      %694 = vmatprep.mubr.bf16.mxu0 0
      %695 = vmatmul.mubr.bf16.gmra.mrb[0].mxu0 %v595
      %v696 = vpop.f32.mrb[0].mxu0
      %v697 = vadd.f32 %v481, %v696
      %v698 = vpop.f32.mrb[0].mxu0
      %v699 = vpop.f32.mrb[0].mxu0
      %v700 = vadd.f32 %v481, %v699
      %v701 = vpop.f32.mrb[0].mxu0
      %702 = vmatprep.mubr.bf16.mxu0 0
      %703 = vmatmul.mubr.bf16.gmra.mrb[0].mxu0 %v598
      %v704 = vpop.f32.mrb[0].mxu0
      %v705 = vadd.f32 %v481, %v704
      %v706 = vpop.f32.mrb[0].mxu0
      %v707 = vpop.f32.mrb[0].mxu0
      %v708 = vadd.f32 %v481, %v707
      %v709 = vpop.f32.mrb[0].mxu0
      %710 = vmatprep.mubr.bf16.mxu0 0
      %711 = vmatmul.mubr.bf16.gmra.mrb[0].mxu0 %v601
      %v712 = vpop.f32.mrb[0].mxu0
      %v713 = vadd.f32 %v481, %v712
      %v714 = vpop.f32.mrb[0].mxu0
      %v715 = vpop.f32.mrb[0].mxu0
      %v716 = vadd.f32 %v481, %v715
      %v717 = vpop.f32.mrb[0].mxu0
      %718 = vmatprep.mubr.bf16.mxu0 0
      %719 = vmatmul.mubr.bf16.gmra.mrb[0].mxu0 %v604
      %v720 = vpop.f32.mrb[0].mxu0
      %v721 = vadd.f32 %v481, %v720
      %v722 = vpop.f32.mrb[0].mxu0
      %v723 = vpop.f32.mrb[0].mxu0
      %v724 = vadd.f32 %v481, %v723
      %v725 = vpop.f32.mrb[0].mxu0
      %726 = vmatprep.mubr.bf16.mxu0 0
      %727 = vmatmul.mubr.bf16.gmra.mrb[0].mxu0 %v607
      %v728 = vpop.f32.mrb[0].mxu0
      %v729 = vadd.f32 %v481, %v728
      %v730 = vpop.f32.mrb[0].mxu0
      %v731 = vpop.f32.mrb[0].mxu0
      %v732 = vadd.f32 %v481, %v731
      %v733 = vpop.f32.mrb[0].mxu0
      %734 = vmatprep.mubr.bf16.mxu0 0
      %735 = vmatmul.mubr.bf16.gmra.mrb[0].mxu0 %v610
      %v736 = vpop.f32.mrb[0].mxu0
      %v737 = vadd.f32 %v481, %v736
      %v738 = vpop.f32.mrb[0].mxu0
      %v739 = vpop.f32.mrb[0].mxu0
      %v740 = vadd.f32 %v481, %v739
      %v741 = vpop.f32.mrb[0].mxu0
      %742 = vmatprep.mubr.bf16.mxu0 0
      %743 = vmatmul.mubr.bf16.gmra.mrb[0].mxu0 %v613
      %v744 = vpop.f32.mrb[0].mxu0
      %v745 = vadd.f32 %v481, %v744
      %v746 = vpop.f32.mrb[0].mxu0
      %v747 = vpop.f32.mrb[0].mxu0
      %v748 = vadd.f32 %v481, %v747
      %v749 = vpop.f32.mrb[0].mxu0
      %750 = vmatprep.mubr.bf16.mxu0 0
      %751 = vmatmul.mubr.bf16.gmra.mrb[0].mxu0 %v616
      %v752 = vpop.f32.mrb[0].mxu0
      %v753 = vadd.f32 %v481, %v752
      %v754 = vpop.f32.mrb[0].mxu0
      %v755 = vpop.f32.mrb[0].mxu0
      %v756 = vadd.f32 %v481, %v755
      %v757 = vpop.f32.mrb[0].mxu0
      %758 = vmatprep.mubr.bf16.mxu0 0
      %759 = vmatmul.mubr.bf16.gmra.mrb[0].mxu0 %v619
      %v760 = vpop.f32.mrb[0].mxu0
      %v761 = vadd.f32 %v481, %v760
      %v762 = vpop.f32.mrb[0].mxu0
      %v763 = vpop.f32.mrb[0].mxu0
      %v764 = vadd.f32 %v481, %v763
      %v765 = vpop.f32.mrb[0].mxu0
      %766 = vmatprep.mubr.bf16.mxu0 0
      %767 = vmatmul.mubr.bf16.gmra.mrb[0].mxu0 %v622
      %v768 = vpop.f32.mrb[0].mxu0
      %v769 = vadd.f32 %v481, %v768
      %v770 = vpop.f32.mrb[0].mxu0
      %v771 = vpop.f32.mrb[0].mxu0
      %v772 = vadd.f32 %v481, %v771
      %v773 = vpop.f32.mrb[0].mxu0
      %774 = vmatprep.mubr.bf16.mxu0 0
      %775 = vmatmul.mubr.bf16.gmra.mrb[0].mxu0 %v625
      %v776 = vpop.f32.mrb[0].mxu0
      %v777 = vadd.f32 %v481, %v776
      %v778 = vpop.f32.mrb[0].mxu0
      %v779 = vpop.f32.mrb[0].mxu0
      %v780 = vadd.f32 %v481, %v779
      %v781 = vpop.f32.mrb[0].mxu0
      %782 = vmatprep.mubr.bf16.mxu0 0
      %783 = vmatmul.mubr.bf16.gmra.mrb[0].mxu0 %v628
      %v784 = vpop.f32.mrb[0].mxu0
      %v785 = vadd.f32 %v481, %v784
      %v786 = vpop.f32.mrb[0].mxu0
      %v787 = vpop.f32.mrb[0].mxu0
      %v788 = vadd.f32 %v481, %v787
      %v789 = vpop.f32.mrb[0].mxu0
      %790 = vdwg.mxu0
      %v791 = vmul.f32 %v665, 0.2
      %v792 = vmul.f32 %v668, 0.2
      %v793 = vmul.f32 %v673, 0.2
      %v794 = vmul.f32 %v676, 0.2
      %v795 = vmul.f32 %v681, 0.2
      %v796 = vmul.f32 %v684, 0.2
      %v797 = vmul.f32 %v689, 0.2
      %v798 = vmul.f32 %v692, 0.2
      %v799 = vmul.f32 %v697, 0.2
      %v800 = vmul.f32 %v700, 0.2
      %v801 = vmul.f32 %v705, 0.2
      %v802 = vmul.f32 %v708, 0.2
      %v803 = vmul.f32 %v713, 0.2
      %v804 = vmul.f32 %v716, 0.2
      %v805 = vmul.f32 %v721, 0.2
      %v806 = vmul.f32 %v724, 0.2
      %v807 = vmul.f32 %v729, 0.2
      %v808 = vmul.f32 %v732, 0.2
      %v809 = vmul.f32 %v737, 0.2
      %v810 = vmul.f32 %v740, 0.2
      %v811 = vmul.f32 %v745, 0.2
      %v812 = vmul.f32 %v748, 0.2
      %v813 = vmul.f32 %v753, 0.2
      %v814 = vmul.f32 %v756, 0.2
      %v815 = vmul.f32 %v761, 0.2
      %v816 = vmul.f32 %v764, 0.2
      %v817 = vmul.f32 %v769, 0.2
      %v818 = vmul.f32 %v772, 0.2
      %v819 = vmul.f32 %v777, 0.2
      %v820 = vmul.f32 %v780, 0.2
      %v821 = vmul.f32 %v785, 0.2
      %v822 = vmul.f32 %v788, 0.2
      %v823 = vmax.f32 %v665, %v791
      %v824 = vmax.f32 %v668, %v792
      %v825 = vmax.f32 %v673, %v793
      %v826 = vmax.f32 %v676, %v794
      %v827 = vmax.f32 %v681, %v795
      %v828 = vmax.f32 %v684, %v796
      %v829 = vmax.f32 %v689, %v797
      %v830 = vmax.f32 %v692, %v798
      %v831 = vmax.f32 %v697, %v799
      %v832 = vmax.f32 %v700, %v800
      %v833 = vmax.f32 %v705, %v801
      %v834 = vmax.f32 %v708, %v802
      %v835 = vmax.f32 %v713, %v803
      %v836 = vmax.f32 %v716, %v804
      %v837 = vmax.f32 %v721, %v805
      %v838 = vmax.f32 %v724, %v806
      %v839 = vmax.f32 %v729, %v807
      %v840 = vmax.f32 %v732, %v808
      %v841 = vmax.f32 %v737, %v809
      %v842 = vmax.f32 %v740, %v810
      %v843 = vmax.f32 %v745, %v811
      %v844 = vmax.f32 %v748, %v812
      %v845 = vmax.f32 %v753, %v813
      %v846 = vmax.f32 %v756, %v814
      %v847 = vmax.f32 %v761, %v815
      %v848 = vmax.f32 %v764, %v816
      %v849 = vmax.f32 %v769, %v817
      %v850 = vmax.f32 %v772, %v818
      %v851 = vmax.f32 %v777, %v819
      %v852 = vmax.f32 %v780, %v820
      %v853 = vmax.f32 %v785, %v821
      %v854 = vmax.f32 %v788, %v822
      %v855 = vpack.c.bf16 %v824, %v823
      %v856 = vpack.c.bf16 %v826, %v825
      %v857 = vpack.c.bf16 %v828, %v827
      %v858 = vpack.c.bf16 %v830, %v829
      %v859 = vpack.c.bf16 %v832, %v831
      %v860 = vpack.c.bf16 %v834, %v833
      %v861 = vpack.c.bf16 %v836, %v835
      %v862 = vpack.c.bf16 %v838, %v837
      %v863 = vpack.c.bf16 %v840, %v839
      %v864 = vpack.c.bf16 %v842, %v841
      %v865 = vpack.c.bf16 %v844, %v843
      %v866 = vpack.c.bf16 %v846, %v845
      %v867 = vpack.c.bf16 %v848, %v847
      %v868 = vpack.c.bf16 %v850, %v849
      %v869 = vpack.c.bf16 %v852, %v851
      %v870 = vpack.c.bf16 %v854, %v853
      %v871 = vld [vmem:[%s3] sm:$0xff]
      %v872 = vld [vmem:[%s3 + $0x8] sm:$0xff]
      %v873 = vld [vmem:[%s3 + $0x10] sm:$0xff]
      %v874 = vld [vmem:[%s3 + $0x18] sm:$0xff]
      %v875 = vld [vmem:[%s3 + $0x20] sm:$0xff]
      %v876 = vld [vmem:[%s3 + $0x28] sm:$0xff]
      %v877 = vld [vmem:[%s3 + $0x30] sm:$0xff]
      %v878 = vld [vmem:[%s3 + $0x38] sm:$0xff]
      %v879 = vld [vmem:[%s3 + $0x40] sm:$0xff]
      %v880 = vld [vmem:[%s3 + $0x48] sm:$0xff]
      %v881 = vld [vmem:[%s3 + $0x50] sm:$0xff]
      %v882 = vld [vmem:[%s3 + $0x58] sm:$0xff]
      %v883 = vld [vmem:[%s3 + $0x60] sm:$0xff]
      %v884 = vld [vmem:[%s3 + $0x68] sm:$0xff]
      %v885 = vld [vmem:[%s3 + $0x70] sm:$0xff]
      %v886 = vld [vmem:[%s3 + $0x78] sm:$0xff]
      %v887 = vld [vmem:[%s3 + $0x80] sm:$0xff]
      %v888 = vld [vmem:[%s3 + $0x88] sm:$0xff]
      %v889 = vld [vmem:[%s3 + $0x90] sm:$0xff]
      %v890 = vld [vmem:[%s3 + $0x98] sm:$0xff]
      %v891 = vld [vmem:[%s3 + $0xa0] sm:$0xff]
      %v892 = vld [vmem:[%s3 + $0xa8] sm:$0xff]
      %v893 = vld [vmem:[%s3 + $0xb0] sm:$0xff]
      %v894 = vld [vmem:[%s3 + $0xb8] sm:$0xff]
      %v895 = vld [vmem:[%s3 + $0xc0] sm:$0xff]
      %v896 = vld [vmem:[%s3 + $0xc8] sm:$0xff]
      %v897 = vld [vmem:[%s3 + $0xd0] sm:$0xff]
      %v898 = vld [vmem:[%s3 + $0xd8] sm:$0xff]
      %v899 = vld [vmem:[%s3 + $0xe0] sm:$0xff]
      %v900 = vld [vmem:[%s3 + $0xe8] sm:$0xff]
      %v901 = vld [vmem:[%s3 + $0xf0] sm:$0xff]
      %v902 = vld [vmem:[%s3 + $0xf8] sm:$0xff]
      %v903 = vld [vmem:[%s3 + $0x100] sm:$0xff]
      %v904 = vld [vmem:[%s3 + $0x108] sm:$0xff]
      %v905 = vld [vmem:[%s3 + $0x110] sm:$0xff]
      %v906 = vld [vmem:[%s3 + $0x118] sm:$0xff]
      %v907 = vld [vmem:[%s3 + $0x120] sm:$0xff]
      %v908 = vld [vmem:[%s3 + $0x128] sm:$0xff]
      %v909 = vld [vmem:[%s3 + $0x130] sm:$0xff]
      %v910 = vld [vmem:[%s3 + $0x138] sm:$0xff]
      %v911 = vld [vmem:[%s3 + $0x140] sm:$0xff]
      %v912 = vld [vmem:[%s3 + $0x148] sm:$0xff]
      %v913 = vld [vmem:[%s3 + $0x150] sm:$0xff]
      %v914 = vld [vmem:[%s3 + $0x158] sm:$0xff]
      %v915 = vld [vmem:[%s3 + $0x160] sm:$0xff]
      %v916 = vld [vmem:[%s3 + $0x168] sm:$0xff]
      %v917 = vld [vmem:[%s3 + $0x170] sm:$0xff]
      %v918 = vld [vmem:[%s3 + $0x178] sm:$0xff]
      %v919 = vld [vmem:[%s3 + $0x180] sm:$0xff]
      %v920 = vld [vmem:[%s3 + $0x188] sm:$0xff]
      %v921 = vld [vmem:[%s3 + $0x190] sm:$0xff]
      %v922 = vld [vmem:[%s3 + $0x198] sm:$0xff]
      %v923 = vld [vmem:[%s3 + $0x1a0] sm:$0xff]
      %v924 = vld [vmem:[%s3 + $0x1a8] sm:$0xff]
      %v925 = vld [vmem:[%s3 + $0x1b0] sm:$0xff]
      %v926 = vld [vmem:[%s3 + $0x1b8] sm:$0xff]
      %v927 = vld [vmem:[%s3 + $0x1c0] sm:$0xff]
      %v928 = vld [vmem:[%s3 + $0x1c8] sm:$0xff]
      %v929 = vld [vmem:[%s3 + $0x1d0] sm:$0xff]
      %v930 = vld [vmem:[%s3 + $0x1d8] sm:$0xff]
      %v931 = vld [vmem:[%s3 + $0x1e0] sm:$0xff]
      %v932 = vld [vmem:[%s3 + $0x1e8] sm:$0xff]
      %v933 = vld [vmem:[%s3 + $0x1f0] sm:$0xff]
      %v934 = vld [vmem:[%s3 + $0x1f8] sm:$0xff]
      %v935 = vld [vmem:[%s3 + $0x200] sm:$0xff]
      %v936 = vld [vmem:[%s3 + $0x208] sm:$0xff]
      %v937 = vld [vmem:[%s3 + $0x210] sm:$0xff]
      %v938 = vld [vmem:[%s3 + $0x218] sm:$0xff]
      %v939 = vld [vmem:[%s3 + $0x220] sm:$0xff]
      %v940 = vld [vmem:[%s3 + $0x228] sm:$0xff]
      %v941 = vld [vmem:[%s3 + $0x230] sm:$0xff]
      %v942 = vld [vmem:[%s3 + $0x238] sm:$0xff]
      %v943 = vld [vmem:[%s3 + $0x240] sm:$0xff]
      %v944 = vld [vmem:[%s3 + $0x248] sm:$0xff]
      %v945 = vld [vmem:[%s3 + $0x250] sm:$0xff]
      %v946 = vld [vmem:[%s3 + $0x258] sm:$0xff]
      %v947 = vld [vmem:[%s3 + $0x260] sm:$0xff]
      %v948 = vld [vmem:[%s3 + $0x268] sm:$0xff]
      %v949 = vld [vmem:[%s3 + $0x270] sm:$0xff]
      %v950 = vld [vmem:[%s3 + $0x278] sm:$0xff]
      %v951 = vld [vmem:[%s3 + $0x280] sm:$0xff]
      %v952 = vld [vmem:[%s3 + $0x288] sm:$0xff]
      %v953 = vld [vmem:[%s3 + $0x290] sm:$0xff]
      %v954 = vld [vmem:[%s3 + $0x298] sm:$0xff]
      %v955 = vld [vmem:[%s3 + $0x2a0] sm:$0xff]
      %v956 = vld [vmem:[%s3 + $0x2a8] sm:$0xff]
      %v957 = vld [vmem:[%s3 + $0x2b0] sm:$0xff]
      %v958 = vld [vmem:[%s3 + $0x2b8] sm:$0xff]
      %v959 = vld [vmem:[%s3 + $0x2c0] sm:$0xff]
      %v960 = vld [vmem:[%s3 + $0x2c8] sm:$0xff]
      %v961 = vld [vmem:[%s3 + $0x2d0] sm:$0xff]
      %v962 = vld [vmem:[%s3 + $0x2d8] sm:$0xff]
      %v963 = vld [vmem:[%s3 + $0x2e0] sm:$0xff]
      %v964 = vld [vmem:[%s3 + $0x2e8] sm:$0xff]
      %v965 = vld [vmem:[%s3 + $0x2f0] sm:$0xff]
      %v966 = vld [vmem:[%s3 + $0x2f8] sm:$0xff]
      %v967 = vld [vmem:[%s3 + $0x300] sm:$0xff]
      %v968 = vld [vmem:[%s3 + $0x308] sm:$0xff]
      %v969 = vld [vmem:[%s3 + $0x310] sm:$0xff]
      %v970 = vld [vmem:[%s3 + $0x318] sm:$0xff]
      %v971 = vld [vmem:[%s3 + $0x320] sm:$0xff]
      %v972 = vld [vmem:[%s3 + $0x328] sm:$0xff]
      %v973 = vld [vmem:[%s3 + $0x330] sm:$0xff]
      %v974 = vld [vmem:[%s3 + $0x338] sm:$0xff]
      %v975 = vld [vmem:[%s3 + $0x340] sm:$0xff]
      %v976 = vld [vmem:[%s3 + $0x348] sm:$0xff]
      %v977 = vld [vmem:[%s3 + $0x350] sm:$0xff]
      %v978 = vld [vmem:[%s3 + $0x358] sm:$0xff]
      %v979 = vld [vmem:[%s3 + $0x360] sm:$0xff]
      %v980 = vld [vmem:[%s3 + $0x368] sm:$0xff]
      %v981 = vld [vmem:[%s3 + $0x370] sm:$0xff]
      %v982 = vld [vmem:[%s3 + $0x378] sm:$0xff]
      %v983 = vld [vmem:[%s3 + $0x380] sm:$0xff]
      %v984 = vld [vmem:[%s3 + $0x388] sm:$0xff]
      %v985 = vld [vmem:[%s3 + $0x390] sm:$0xff]
      %v986 = vld [vmem:[%s3 + $0x398] sm:$0xff]
      %v987 = vld [vmem:[%s3 + $0x3a0] sm:$0xff]
      %v988 = vld [vmem:[%s3 + $0x3a8] sm:$0xff]
      %v989 = vld [vmem:[%s3 + $0x3b0] sm:$0xff]
      %v990 = vld [vmem:[%s3 + $0x3b8] sm:$0xff]
      %v991 = vld [vmem:[%s3 + $0x3c0] sm:$0xff]
      %v992 = vld [vmem:[%s3 + $0x3c8] sm:$0xff]
      %v993 = vld [vmem:[%s3 + $0x3d0] sm:$0xff]
      %v994 = vld [vmem:[%s3 + $0x3d8] sm:$0xff]
      %v995 = vld [vmem:[%s3 + $0x3e0] sm:$0xff]
      %v996 = vld [vmem:[%s3 + $0x3e8] sm:$0xff]
      %v997 = vld [vmem:[%s3 + $0x3f0] sm:$0xff]
      %v998 = vld [vmem:[%s3 + $0x3f8] sm:$0xff]
      %v1127 = vunpack.c.l.b16 %v871
      %v1128 = vunpack.c.h.b16 %v871
      %v1129 = vunpack.c.l.b16 %v872
      %v1130 = vunpack.c.h.b16 %v872
      %v1131 = vunpack.c.l.b16 %v873
      %v1132 = vunpack.c.h.b16 %v873
      %v1133 = vunpack.c.l.b16 %v874
      %v1134 = vunpack.c.h.b16 %v874
      %v1135 = vunpack.c.l.b16 %v875
      %v1136 = vunpack.c.h.b16 %v875
      %v1137 = vunpack.c.l.b16 %v876
      %v1138 = vunpack.c.h.b16 %v876
      %v1139 = vunpack.c.l.b16 %v877
      %v1140 = vunpack.c.h.b16 %v877
      %v1141 = vunpack.c.l.b16 %v878
      %v1142 = vunpack.c.h.b16 %v878
      %v1143 = vunpack.c.l.b16 %v879
      %v1144 = vunpack.c.h.b16 %v879
      %v1145 = vunpack.c.l.b16 %v880
      %v1146 = vunpack.c.h.b16 %v880
      %v1147 = vunpack.c.l.b16 %v881
      %v1148 = vunpack.c.h.b16 %v881
      %v1149 = vunpack.c.l.b16 %v882
      %v1150 = vunpack.c.h.b16 %v882
      %v1151 = vunpack.c.l.b16 %v883
      %v1152 = vunpack.c.h.b16 %v883
      %v1153 = vunpack.c.l.b16 %v884
      %v1154 = vunpack.c.h.b16 %v884
      %v1155 = vunpack.c.l.b16 %v885
      %v1156 = vunpack.c.h.b16 %v885
      %v1157 = vunpack.c.l.b16 %v886
      %v1158 = vunpack.c.h.b16 %v886
      %v1159 = vunpack.c.l.b16 %v887
      %v1160 = vunpack.c.h.b16 %v887
      %v1161 = vunpack.c.l.b16 %v888
      %v1162 = vunpack.c.h.b16 %v888
      %v1163 = vunpack.c.l.b16 %v889
      %v1164 = vunpack.c.h.b16 %v889
      %v1165 = vunpack.c.l.b16 %v890
      %v1166 = vunpack.c.h.b16 %v890
      %v1167 = vunpack.c.l.b16 %v891
      %v1168 = vunpack.c.h.b16 %v891
      %v1169 = vunpack.c.l.b16 %v892
      %v1170 = vunpack.c.h.b16 %v892
      %v1171 = vunpack.c.l.b16 %v893
      %v1172 = vunpack.c.h.b16 %v893
      %v1173 = vunpack.c.l.b16 %v894
      %v1174 = vunpack.c.h.b16 %v894
      %v1175 = vunpack.c.l.b16 %v895
      %v1176 = vunpack.c.h.b16 %v895
      %v1177 = vunpack.c.l.b16 %v896
      %v1178 = vunpack.c.h.b16 %v896
      %v1179 = vunpack.c.l.b16 %v897
      %v1180 = vunpack.c.h.b16 %v897
      %v1181 = vunpack.c.l.b16 %v898
      %v1182 = vunpack.c.h.b16 %v898
      %v1183 = vunpack.c.l.b16 %v899
      %v1184 = vunpack.c.h.b16 %v899
      %v1185 = vunpack.c.l.b16 %v900
      %v1186 = vunpack.c.h.b16 %v900
      %v1187 = vunpack.c.l.b16 %v901
      %v1188 = vunpack.c.h.b16 %v901
      %v1189 = vunpack.c.l.b16 %v902
      %v1190 = vunpack.c.h.b16 %v902
      %v1191 = vunpack.c.l.b16 %v903
      %v1192 = vunpack.c.h.b16 %v903
      %v1193 = vunpack.c.l.b16 %v904
      %v1194 = vunpack.c.h.b16 %v904
      %v1195 = vunpack.c.l.b16 %v905
      %v1196 = vunpack.c.h.b16 %v905
      %v1197 = vunpack.c.l.b16 %v906
      %v1198 = vunpack.c.h.b16 %v906
      %v1199 = vunpack.c.l.b16 %v907
      %v1200 = vunpack.c.h.b16 %v907
      %v1201 = vunpack.c.l.b16 %v908
      %v1202 = vunpack.c.h.b16 %v908
      %v1203 = vunpack.c.l.b16 %v909
      %v1204 = vunpack.c.h.b16 %v909
      %v1205 = vunpack.c.l.b16 %v910
      %v1206 = vunpack.c.h.b16 %v910
      %v1207 = vunpack.c.l.b16 %v911
      %v1208 = vunpack.c.h.b16 %v911
      %v1209 = vunpack.c.l.b16 %v912
      %v1210 = vunpack.c.h.b16 %v912
      %v1211 = vunpack.c.l.b16 %v913
      %v1212 = vunpack.c.h.b16 %v913
      %v1213 = vunpack.c.l.b16 %v914
      %v1214 = vunpack.c.h.b16 %v914
      %v1215 = vunpack.c.l.b16 %v915
      %v1216 = vunpack.c.h.b16 %v915
      %v1217 = vunpack.c.l.b16 %v916
      %v1218 = vunpack.c.h.b16 %v916
      %v1219 = vunpack.c.l.b16 %v917
      %v1220 = vunpack.c.h.b16 %v917
      %v1221 = vunpack.c.l.b16 %v918
      %v1222 = vunpack.c.h.b16 %v918
      %v1223 = vunpack.c.l.b16 %v919
      %v1224 = vunpack.c.h.b16 %v919
      %v1225 = vunpack.c.l.b16 %v920
      %v1226 = vunpack.c.h.b16 %v920
      %v1227 = vunpack.c.l.b16 %v921
      %v1228 = vunpack.c.h.b16 %v921
      %v1229 = vunpack.c.l.b16 %v922
      %v1230 = vunpack.c.h.b16 %v922
      %v1231 = vunpack.c.l.b16 %v923
      %v1232 = vunpack.c.h.b16 %v923
      %v1233 = vunpack.c.l.b16 %v924
      %v1234 = vunpack.c.h.b16 %v924
      %v1235 = vunpack.c.l.b16 %v925
      %v1236 = vunpack.c.h.b16 %v925
      %v1237 = vunpack.c.l.b16 %v926
      %v1238 = vunpack.c.h.b16 %v926
      %v1239 = vunpack.c.l.b16 %v927
      %v1240 = vunpack.c.h.b16 %v927
      %v1241 = vunpack.c.l.b16 %v928
      %v1242 = vunpack.c.h.b16 %v928
      %v1243 = vunpack.c.l.b16 %v929
      %v1244 = vunpack.c.h.b16 %v929
      %v1245 = vunpack.c.l.b16 %v930
      %v1246 = vunpack.c.h.b16 %v930
      %v1247 = vunpack.c.l.b16 %v931
      %v1248 = vunpack.c.h.b16 %v931
      %v1249 = vunpack.c.l.b16 %v932
      %v1250 = vunpack.c.h.b16 %v932
      %v1251 = vunpack.c.l.b16 %v933
      %v1252 = vunpack.c.h.b16 %v933
      %v1253 = vunpack.c.l.b16 %v934
      %v1254 = vunpack.c.h.b16 %v934
      %v1255 = vunpack.c.l.b16 %v935
      %v1256 = vunpack.c.h.b16 %v935
      %v1257 = vunpack.c.l.b16 %v936
      %v1258 = vunpack.c.h.b16 %v936
      %v1259 = vunpack.c.l.b16 %v937
      %v1260 = vunpack.c.h.b16 %v937
      %v1261 = vunpack.c.l.b16 %v938
      %v1262 = vunpack.c.h.b16 %v938
      %v1263 = vunpack.c.l.b16 %v939
      %v1264 = vunpack.c.h.b16 %v939
      %v1265 = vunpack.c.l.b16 %v940
      %v1266 = vunpack.c.h.b16 %v940
      %v1267 = vunpack.c.l.b16 %v941
      %v1268 = vunpack.c.h.b16 %v941
      %v1269 = vunpack.c.l.b16 %v942
      %v1270 = vunpack.c.h.b16 %v942
      %v1271 = vunpack.c.l.b16 %v943
      %v1272 = vunpack.c.h.b16 %v943
      %v1273 = vunpack.c.l.b16 %v944
      %v1274 = vunpack.c.h.b16 %v944
      %v1275 = vunpack.c.l.b16 %v945
      %v1276 = vunpack.c.h.b16 %v945
      %v1277 = vunpack.c.l.b16 %v946
      %v1278 = vunpack.c.h.b16 %v946
      %v1279 = vunpack.c.l.b16 %v947
      %v1280 = vunpack.c.h.b16 %v947
      %v1281 = vunpack.c.l.b16 %v948
      %v1282 = vunpack.c.h.b16 %v948
      %v1283 = vunpack.c.l.b16 %v949
      %v1284 = vunpack.c.h.b16 %v949
      %v1285 = vunpack.c.l.b16 %v950
      %v1286 = vunpack.c.h.b16 %v950
      %v1287 = vunpack.c.l.b16 %v951
      %v1288 = vunpack.c.h.b16 %v951
      %v1289 = vunpack.c.l.b16 %v952
      %v1290 = vunpack.c.h.b16 %v952
      %v1291 = vunpack.c.l.b16 %v953
      %v1292 = vunpack.c.h.b16 %v953
      %v1293 = vunpack.c.l.b16 %v954
      %v1294 = vunpack.c.h.b16 %v954
      %v1295 = vunpack.c.l.b16 %v955
      %v1296 = vunpack.c.h.b16 %v955
      %v1297 = vunpack.c.l.b16 %v956
      %v1298 = vunpack.c.h.b16 %v956
      %v1299 = vunpack.c.l.b16 %v957
      %v1300 = vunpack.c.h.b16 %v957
      %v1301 = vunpack.c.l.b16 %v958
      %v1302 = vunpack.c.h.b16 %v958
      %v1303 = vunpack.c.l.b16 %v959
      %v1304 = vunpack.c.h.b16 %v959
      %v1305 = vunpack.c.l.b16 %v960
      %v1306 = vunpack.c.h.b16 %v960
      %v1307 = vunpack.c.l.b16 %v961
      %v1308 = vunpack.c.h.b16 %v961
      %v1309 = vunpack.c.l.b16 %v962
      %v1310 = vunpack.c.h.b16 %v962
      %v1311 = vunpack.c.l.b16 %v963
      %v1312 = vunpack.c.h.b16 %v963
      %v1313 = vunpack.c.l.b16 %v964
      %v1314 = vunpack.c.h.b16 %v964
      %v1315 = vunpack.c.l.b16 %v965
      %v1316 = vunpack.c.h.b16 %v965
      %v1317 = vunpack.c.l.b16 %v966
      %v1318 = vunpack.c.h.b16 %v966
      %v1319 = vunpack.c.l.b16 %v967
      %v1320 = vunpack.c.h.b16 %v967
      %v1321 = vunpack.c.l.b16 %v968
      %v1322 = vunpack.c.h.b16 %v968
      %v1323 = vunpack.c.l.b16 %v969
      %v1324 = vunpack.c.h.b16 %v969
      %v1325 = vunpack.c.l.b16 %v970
      %v1326 = vunpack.c.h.b16 %v970
      %v1327 = vunpack.c.l.b16 %v971
      %v1328 = vunpack.c.h.b16 %v971
      %v1329 = vunpack.c.l.b16 %v972
      %v1330 = vunpack.c.h.b16 %v972
      %v1331 = vunpack.c.l.b16 %v973
      %v1332 = vunpack.c.h.b16 %v973
      %v1333 = vunpack.c.l.b16 %v974
      %v1334 = vunpack.c.h.b16 %v974
      %v1335 = vunpack.c.l.b16 %v975
      %v1336 = vunpack.c.h.b16 %v975
      %v1337 = vunpack.c.l.b16 %v976
      %v1338 = vunpack.c.h.b16 %v976
      %v1339 = vunpack.c.l.b16 %v977
      %v1340 = vunpack.c.h.b16 %v977
      %v1341 = vunpack.c.l.b16 %v978
      %v1342 = vunpack.c.h.b16 %v978
      %v1343 = vunpack.c.l.b16 %v979
      %v1344 = vunpack.c.h.b16 %v979
      %v1345 = vunpack.c.l.b16 %v980
      %v1346 = vunpack.c.h.b16 %v980
      %v1347 = vunpack.c.l.b16 %v981
      %v1348 = vunpack.c.h.b16 %v981
      %v1349 = vunpack.c.l.b16 %v982
      %v1350 = vunpack.c.h.b16 %v982
      %v1351 = vunpack.c.l.b16 %v983
      %v1352 = vunpack.c.h.b16 %v983
      %v1353 = vunpack.c.l.b16 %v984
      %v1354 = vunpack.c.h.b16 %v984
      %v1355 = vunpack.c.l.b16 %v985
      %v1356 = vunpack.c.h.b16 %v985
      %v1357 = vunpack.c.l.b16 %v986
      %v1358 = vunpack.c.h.b16 %v986
      %v1359 = vunpack.c.l.b16 %v987
      %v1360 = vunpack.c.h.b16 %v987
      %v1361 = vunpack.c.l.b16 %v988
      %v1362 = vunpack.c.h.b16 %v988
      %v1363 = vunpack.c.l.b16 %v989
      %v1364 = vunpack.c.h.b16 %v989
      %v1365 = vunpack.c.l.b16 %v990
      %v1366 = vunpack.c.h.b16 %v990
      %v1367 = vunpack.c.l.b16 %v991
      %v1368 = vunpack.c.h.b16 %v991
      %v1369 = vunpack.c.l.b16 %v992
      %v1370 = vunpack.c.h.b16 %v992
      %v1371 = vunpack.c.l.b16 %v993
      %v1372 = vunpack.c.h.b16 %v993
      %v1373 = vunpack.c.l.b16 %v994
      %v1374 = vunpack.c.h.b16 %v994
      %v1375 = vunpack.c.l.b16 %v995
      %v1376 = vunpack.c.h.b16 %v995
      %v1377 = vunpack.c.l.b16 %v996
      %v1378 = vunpack.c.h.b16 %v996
      %v1379 = vunpack.c.l.b16 %v997
      %v1380 = vunpack.c.h.b16 %v997
      %v1381 = vunpack.c.l.b16 %v998
      %v1382 = vunpack.c.h.b16 %v998
      %v1383 = vpack.c.b16 %v1129, %v1127
      %v1384 = vpack.c.b16 %v1130, %v1128
      %v1385 = vpack.c.b16 %v1133, %v1131
      %v1386 = vpack.c.b16 %v1134, %v1132
      %v1387 = vpack.c.b16 %v1137, %v1135
      %v1388 = vpack.c.b16 %v1138, %v1136
      %v1389 = vpack.c.b16 %v1141, %v1139
      %v1390 = vpack.c.b16 %v1142, %v1140
      %v1391 = vpack.c.b16 %v1145, %v1143
      %v1392 = vpack.c.b16 %v1146, %v1144
      %v1393 = vpack.c.b16 %v1149, %v1147
      %v1394 = vpack.c.b16 %v1150, %v1148
      %v1395 = vpack.c.b16 %v1153, %v1151
      %v1396 = vpack.c.b16 %v1154, %v1152
      %v1397 = vpack.c.b16 %v1157, %v1155
      %v1398 = vpack.c.b16 %v1158, %v1156
      %v1399 = vpack.c.b16 %v1161, %v1159
      %v1400 = vpack.c.b16 %v1162, %v1160
      %v1401 = vpack.c.b16 %v1165, %v1163
      %v1402 = vpack.c.b16 %v1166, %v1164
      %v1403 = vpack.c.b16 %v1169, %v1167
      %v1404 = vpack.c.b16 %v1170, %v1168
      %v1405 = vpack.c.b16 %v1173, %v1171
      %v1406 = vpack.c.b16 %v1174, %v1172
      %v1407 = vpack.c.b16 %v1177, %v1175
      %v1408 = vpack.c.b16 %v1178, %v1176
      %v1409 = vpack.c.b16 %v1181, %v1179
      %v1410 = vpack.c.b16 %v1182, %v1180
      %v1411 = vpack.c.b16 %v1185, %v1183
      %v1412 = vpack.c.b16 %v1186, %v1184
      %v1413 = vpack.c.b16 %v1189, %v1187
      %v1414 = vpack.c.b16 %v1190, %v1188
      %v1415 = vpack.c.b16 %v1193, %v1191
      %v1416 = vpack.c.b16 %v1194, %v1192
      %v1417 = vpack.c.b16 %v1197, %v1195
      %v1418 = vpack.c.b16 %v1198, %v1196
      %v1419 = vpack.c.b16 %v1201, %v1199
      %v1420 = vpack.c.b16 %v1202, %v1200
      %v1421 = vpack.c.b16 %v1205, %v1203
      %v1422 = vpack.c.b16 %v1206, %v1204
      %v1423 = vpack.c.b16 %v1209, %v1207
      %v1424 = vpack.c.b16 %v1210, %v1208
      %v1425 = vpack.c.b16 %v1213, %v1211
      %v1426 = vpack.c.b16 %v1214, %v1212
      %v1427 = vpack.c.b16 %v1217, %v1215
      %v1428 = vpack.c.b16 %v1218, %v1216
      %v1429 = vpack.c.b16 %v1221, %v1219
      %v1430 = vpack.c.b16 %v1222, %v1220
      %v1431 = vpack.c.b16 %v1225, %v1223
      %v1432 = vpack.c.b16 %v1226, %v1224
      %v1433 = vpack.c.b16 %v1229, %v1227
      %v1434 = vpack.c.b16 %v1230, %v1228
      %v1435 = vpack.c.b16 %v1233, %v1231
      %v1436 = vpack.c.b16 %v1234, %v1232
      %v1437 = vpack.c.b16 %v1237, %v1235
      %v1438 = vpack.c.b16 %v1238, %v1236
      %v1439 = vpack.c.b16 %v1241, %v1239
      %v1440 = vpack.c.b16 %v1242, %v1240
      %v1441 = vpack.c.b16 %v1245, %v1243
      %v1442 = vpack.c.b16 %v1246, %v1244
      %v1443 = vpack.c.b16 %v1249, %v1247
      %v1444 = vpack.c.b16 %v1250, %v1248
      %v1445 = vpack.c.b16 %v1253, %v1251
      %v1446 = vpack.c.b16 %v1254, %v1252
      %v1447 = vpack.c.b16 %v1257, %v1255
      %v1448 = vpack.c.b16 %v1258, %v1256
      %v1449 = vpack.c.b16 %v1261, %v1259
      %v1450 = vpack.c.b16 %v1262, %v1260
      %v1451 = vpack.c.b16 %v1265, %v1263
      %v1452 = vpack.c.b16 %v1266, %v1264
      %v1453 = vpack.c.b16 %v1269, %v1267
      %v1454 = vpack.c.b16 %v1270, %v1268
      %v1455 = vpack.c.b16 %v1273, %v1271
      %v1456 = vpack.c.b16 %v1274, %v1272
      %v1457 = vpack.c.b16 %v1277, %v1275
      %v1458 = vpack.c.b16 %v1278, %v1276
      %v1459 = vpack.c.b16 %v1281, %v1279
      %v1460 = vpack.c.b16 %v1282, %v1280
      %v1461 = vpack.c.b16 %v1285, %v1283
      %v1462 = vpack.c.b16 %v1286, %v1284
      %v1463 = vpack.c.b16 %v1289, %v1287
      %v1464 = vpack.c.b16 %v1290, %v1288
      %v1465 = vpack.c.b16 %v1293, %v1291
      %v1466 = vpack.c.b16 %v1294, %v1292
      %v1467 = vpack.c.b16 %v1297, %v1295
      %v1468 = vpack.c.b16 %v1298, %v1296
      %v1469 = vpack.c.b16 %v1301, %v1299
      %v1470 = vpack.c.b16 %v1302, %v1300
      %v1471 = vpack.c.b16 %v1305, %v1303
      %v1472 = vpack.c.b16 %v1306, %v1304
      %v1473 = vpack.c.b16 %v1309, %v1307
      %v1474 = vpack.c.b16 %v1310, %v1308
      %v1475 = vpack.c.b16 %v1313, %v1311
      %v1476 = vpack.c.b16 %v1314, %v1312
      %v1477 = vpack.c.b16 %v1317, %v1315
      %v1478 = vpack.c.b16 %v1318, %v1316
      %v1479 = vpack.c.b16 %v1321, %v1319
      %v1480 = vpack.c.b16 %v1322, %v1320
      %v1481 = vpack.c.b16 %v1325, %v1323
      %v1482 = vpack.c.b16 %v1326, %v1324
      %v1483 = vpack.c.b16 %v1329, %v1327
      %v1484 = vpack.c.b16 %v1330, %v1328
      %v1485 = vpack.c.b16 %v1333, %v1331
      %v1486 = vpack.c.b16 %v1334, %v1332
      %v1487 = vpack.c.b16 %v1337, %v1335
      %v1488 = vpack.c.b16 %v1338, %v1336
      %v1489 = vpack.c.b16 %v1341, %v1339
      %v1490 = vpack.c.b16 %v1342, %v1340
      %v1491 = vpack.c.b16 %v1345, %v1343
      %v1492 = vpack.c.b16 %v1346, %v1344
      %v1493 = vpack.c.b16 %v1349, %v1347
      %v1494 = vpack.c.b16 %v1350, %v1348
      %v1495 = vpack.c.b16 %v1353, %v1351
      %v1496 = vpack.c.b16 %v1354, %v1352
      %v1497 = vpack.c.b16 %v1357, %v1355
      %v1498 = vpack.c.b16 %v1358, %v1356
      %v1499 = vpack.c.b16 %v1361, %v1359
      %v1500 = vpack.c.b16 %v1362, %v1360
      %v1501 = vpack.c.b16 %v1365, %v1363
      %v1502 = vpack.c.b16 %v1366, %v1364
      %v1503 = vpack.c.b16 %v1369, %v1367
      %v1504 = vpack.c.b16 %v1370, %v1368
      %v1505 = vpack.c.b16 %v1373, %v1371
      %v1506 = vpack.c.b16 %v1374, %v1372
      %v1507 = vpack.c.b16 %v1377, %v1375
      %v1508 = vpack.c.b16 %v1378, %v1376
      %v1509 = vpack.c.b16 %v1381, %v1379
      %v1510 = vpack.c.b16 %v1382, %v1380
      %1639 = vmatprep.subr.bf16.mxu0 0
      %1640 = vmatpush1.bf16.msra.mxu0 %v855
      %1641 = vmatprep.subr.bf16.mxu0 0
      %1642 = vmatpush1.bf16.msra.mxu0 %v856
      %1643 = vmatprep.subr.bf16.mxu0 0
      %1644 = vmatpush1.bf16.msra.mxu0 %v857
      %1645 = vmatprep.subr.bf16.mxu0 0
      %1646 = vmatpush1.bf16.msra.mxu0 %v858
      %1647 = vmatprep.subr.bf16.mxu0 0
      %1648 = vmatpush1.bf16.msra.mxu0 %v859
      %1649 = vmatprep.subr.bf16.mxu0 0
      %1650 = vmatpush1.bf16.msra.mxu0 %v860
      %1651 = vmatprep.subr.bf16.mxu0 0
      %1652 = vmatpush1.bf16.msra.mxu0 %v861
      %1653 = vmatprep.subr.bf16.mxu0 0
      %1654 = vmatpush1.bf16.msra.mxu0 %v862
      %1655 = vmatprep.subr.bf16.mxu0 0
      %1656 = vmatpush1.bf16.msra.mxu0 %v863
      %1657 = vmatprep.subr.bf16.mxu0 0
      %1658 = vmatpush1.bf16.msra.mxu0 %v864
      %1659 = vmatprep.subr.bf16.mxu0 0
      %1660 = vmatpush1.bf16.msra.mxu0 %v865
      %1661 = vmatprep.subr.bf16.mxu0 0
      %1662 = vmatpush1.bf16.msra.mxu0 %v866
      %1663 = vmatprep.subr.bf16.mxu0 0
      %1664 = vmatpush1.bf16.msra.mxu0 %v867
      %1665 = vmatprep.subr.bf16.mxu0 0
      %1666 = vmatpush1.bf16.msra.mxu0 %v868
      %1667 = vmatprep.subr.bf16.mxu0 0
      %1668 = vmatpush1.bf16.msra.mxu0 %v869
      %1669 = vmatprep.subr.bf16.mxu0 0
      %1670 = vmatpush1.bf16.msra.mxu0 %v870
      %1671 = vmatprep.mubr.bf16.mxu0 %v1384
      %1672 = vmatmul.mubr.bf16.gmra.mrb[0].mxu0 %v1383
      %v1673 = vpop.f32.mrb[0].mxu0
      %v1674 = vadd.f32 0.0, %v1673
      %v1675 = vpop.f32.mrb[0].mxu0
      %v1676 = vpop.f32.mrb[0].mxu0
      %v1677 = vadd.f32 0.0, %v1676
      %v1678 = vpop.f32.mrb[0].mxu0
      %1679 = vmatprep.mubr.bf16.mxu0 %v1386
      %1680 = vmatmul.mubr.bf16.gmra.mrb[0].mxu0 %v1385
      %v1681 = vpop.f32.mrb[0].mxu0
      %v1682 = vadd.f32 0.0, %v1681
      %v1683 = vpop.f32.mrb[0].mxu0
      %v1684 = vpop.f32.mrb[0].mxu0
      %v1685 = vadd.f32 0.0, %v1684
      %v1686 = vpop.f32.mrb[0].mxu0
      %1687 = vmatprep.mubr.bf16.mxu0 %v1388
      %1688 = vmatmul.mubr.bf16.gmra.mrb[0].mxu0 %v1387
      %v1689 = vpop.f32.mrb[0].mxu0
      %v1690 = vadd.f32 0.0, %v1689
      %v1691 = vpop.f32.mrb[0].mxu0
      %v1692 = vpop.f32.mrb[0].mxu0
      %v1693 = vadd.f32 0.0, %v1692
      %v1694 = vpop.f32.mrb[0].mxu0
      %1695 = vmatprep.mubr.bf16.mxu0 %v1390
      %1696 = vmatmul.mubr.bf16.gmra.mrb[0].mxu0 %v1389
      %v1697 = vpop.f32.mrb[0].mxu0
      %v1698 = vadd.f32 0.0, %v1697
      %v1699 = vpop.f32.mrb[0].mxu0
      %v1700 = vpop.f32.mrb[0].mxu0
      %v1701 = vadd.f32 0.0, %v1700
      %v1702 = vpop.f32.mrb[0].mxu0
      %1703 = vmatprep.mubr.bf16.mxu0 %v1392
      %1704 = vmatmul.mubr.bf16.gmra.mrb[0].mxu0 %v1391
      %v1705 = vpop.f32.mrb[0].mxu0
      %v1706 = vadd.f32 0.0, %v1705
      %v1707 = vpop.f32.mrb[0].mxu0
      %v1708 = vpop.f32.mrb[0].mxu0
      %v1709 = vadd.f32 0.0, %v1708
      %v1710 = vpop.f32.mrb[0].mxu0
      %1711 = vmatprep.mubr.bf16.mxu0 %v1394
      %1712 = vmatmul.mubr.bf16.gmra.mrb[0].mxu0 %v1393
      %v1713 = vpop.f32.mrb[0].mxu0
      %v1714 = vadd.f32 0.0, %v1713
      %v1715 = vpop.f32.mrb[0].mxu0
      %v1716 = vpop.f32.mrb[0].mxu0
      %v1717 = vadd.f32 0.0, %v1716
      %v1718 = vpop.f32.mrb[0].mxu0
      %1719 = vmatprep.mubr.bf16.mxu0 %v1396
      %1720 = vmatmul.mubr.bf16.gmra.mrb[0].mxu0 %v1395
      %v1721 = vpop.f32.mrb[0].mxu0
      %v1722 = vadd.f32 0.0, %v1721
      %v1723 = vpop.f32.mrb[0].mxu0
      %v1724 = vpop.f32.mrb[0].mxu0
      %v1725 = vadd.f32 0.0, %v1724
      %v1726 = vpop.f32.mrb[0].mxu0
      %1727 = vmatprep.mubr.bf16.mxu0 %v1398
      %1728 = vmatmul.mubr.bf16.gmra.mrb[0].mxu0 %v1397
      %v1729 = vpop.f32.mrb[0].mxu0
      %v1730 = vadd.f32 0.0, %v1729
      %v1731 = vpop.f32.mrb[0].mxu0
      %v1732 = vpop.f32.mrb[0].mxu0
      %v1733 = vadd.f32 0.0, %v1732
      %v1734 = vpop.f32.mrb[0].mxu0
      %1735 = vmatprep.mubr.bf16.mxu0 %v1400
      %1736 = vmatmul.mubr.bf16.gmra.mrb[0].mxu0 %v1399
      %v1737 = vpop.f32.mrb[0].mxu0
      %v1738 = vadd.f32 0.0, %v1737
      %v1739 = vpop.f32.mrb[0].mxu0
      %v1740 = vpop.f32.mrb[0].mxu0
      %v1741 = vadd.f32 0.0, %v1740
      %v1742 = vpop.f32.mrb[0].mxu0
      %1743 = vmatprep.mubr.bf16.mxu0 %v1402
      %1744 = vmatmul.mubr.bf16.gmra.mrb[0].mxu0 %v1401
      %v1745 = vpop.f32.mrb[0].mxu0
      %v1746 = vadd.f32 0.0, %v1745
      %v1747 = vpop.f32.mrb[0].mxu0
      %v1748 = vpop.f32.mrb[0].mxu0
      %v1749 = vadd.f32 0.0, %v1748
      %v1750 = vpop.f32.mrb[0].mxu0
      %1751 = vmatprep.mubr.bf16.mxu0 %v1404
      %1752 = vmatmul.mubr.bf16.gmra.mrb[0].mxu0 %v1403
      %v1753 = vpop.f32.mrb[0].mxu0
      %v1754 = vadd.f32 0.0, %v1753
      %v1755 = vpop.f32.mrb[0].mxu0
      %v1756 = vpop.f32.mrb[0].mxu0
      %v1757 = vadd.f32 0.0, %v1756
      %v1758 = vpop.f32.mrb[0].mxu0
      %1759 = vmatprep.mubr.bf16.mxu0 %v1406
      %1760 = vmatmul.mubr.bf16.gmra.mrb[0].mxu0 %v1405
      %v1761 = vpop.f32.mrb[0].mxu0
      %v1762 = vadd.f32 0.0, %v1761
      %v1763 = vpop.f32.mrb[0].mxu0
      %v1764 = vpop.f32.mrb[0].mxu0
      %v1765 = vadd.f32 0.0, %v1764
      %v1766 = vpop.f32.mrb[0].mxu0
      %1767 = vmatprep.mubr.bf16.mxu0 %v1408
      %1768 = vmatmul.mubr.bf16.gmra.mrb[0].mxu0 %v1407
      %v1769 = vpop.f32.mrb[0].mxu0
      %v1770 = vadd.f32 0.0, %v1769
      %v1771 = vpop.f32.mrb[0].mxu0
      %v1772 = vpop.f32.mrb[0].mxu0
      %v1773 = vadd.f32 0.0, %v1772
      %v1774 = vpop.f32.mrb[0].mxu0
      %1775 = vmatprep.mubr.bf16.mxu0 %v1410
      %1776 = vmatmul.mubr.bf16.gmra.mrb[0].mxu0 %v1409
      %v1777 = vpop.f32.mrb[0].mxu0
      %v1778 = vadd.f32 0.0, %v1777
      %v1779 = vpop.f32.mrb[0].mxu0
      %v1780 = vpop.f32.mrb[0].mxu0
      %v1781 = vadd.f32 0.0, %v1780
      %v1782 = vpop.f32.mrb[0].mxu0
      %1783 = vmatprep.mubr.bf16.mxu0 %v1412
      %1784 = vmatmul.mubr.bf16.gmra.mrb[0].mxu0 %v1411
      %v1785 = vpop.f32.mrb[0].mxu0
      %v1786 = vadd.f32 0.0, %v1785
      %v1787 = vpop.f32.mrb[0].mxu0
      %v1788 = vpop.f32.mrb[0].mxu0
      %v1789 = vadd.f32 0.0, %v1788
      %v1790 = vpop.f32.mrb[0].mxu0
      %1791 = vmatprep.mubr.bf16.mxu0 %v1414
      %1792 = vmatmul.mubr.bf16.gmra.mrb[0].mxu0 %v1413
      %v1793 = vpop.f32.mrb[0].mxu0
      %v1794 = vadd.f32 0.0, %v1793
      %v1795 = vpop.f32.mrb[0].mxu0
      %v1796 = vpop.f32.mrb[0].mxu0
      %v1797 = vadd.f32 0.0, %v1796
      %v1798 = vpop.f32.mrb[0].mxu0
      %1799 = vmatprep.mubr.bf16.mxu0 %v1416
      %1800 = vmatmul.mubr.bf16.gmra.mrb[0].mxu0 %v1415
      %v1801 = vpop.f32.mrb[0].mxu0
      %v1802 = vadd.f32 0.0, %v1801
      %v1803 = vpop.f32.mrb[0].mxu0
      %v1804 = vpop.f32.mrb[0].mxu0
      %v1805 = vadd.f32 0.0, %v1804
      %v1806 = vpop.f32.mrb[0].mxu0
      %1807 = vmatprep.mubr.bf16.mxu0 %v1418
      %1808 = vmatmul.mubr.bf16.gmra.mrb[0].mxu0 %v1417
      %v1809 = vpop.f32.mrb[0].mxu0
      %v1810 = vadd.f32 0.0, %v1809
      %v1811 = vpop.f32.mrb[0].mxu0
      %v1812 = vpop.f32.mrb[0].mxu0
      %v1813 = vadd.f32 0.0, %v1812
      %v1814 = vpop.f32.mrb[0].mxu0
      %1815 = vmatprep.mubr.bf16.mxu0 %v1420
      %1816 = vmatmul.mubr.bf16.gmra.mrb[0].mxu0 %v1419
      %v1817 = vpop.f32.mrb[0].mxu0
      %v1818 = vadd.f32 0.0, %v1817
      %v1819 = vpop.f32.mrb[0].mxu0
      %v1820 = vpop.f32.mrb[0].mxu0
      %v1821 = vadd.f32 0.0, %v1820
      %v1822 = vpop.f32.mrb[0].mxu0
      %1823 = vmatprep.mubr.bf16.mxu0 %v1422
      %1824 = vmatmul.mubr.bf16.gmra.mrb[0].mxu0 %v1421
      %v1825 = vpop.f32.mrb[0].mxu0
      %v1826 = vadd.f32 0.0, %v1825
      %v1827 = vpop.f32.mrb[0].mxu0
      %v1828 = vpop.f32.mrb[0].mxu0
      %v1829 = vadd.f32 0.0, %v1828
      %v1830 = vpop.f32.mrb[0].mxu0
      %1831 = vmatprep.mubr.bf16.mxu0 %v1424
      %1832 = vmatmul.mubr.bf16.gmra.mrb[0].mxu0 %v1423
      %v1833 = vpop.f32.mrb[0].mxu0
      %v1834 = vadd.f32 0.0, %v1833
      %v1835 = vpop.f32.mrb[0].mxu0
      %v1836 = vpop.f32.mrb[0].mxu0
      %v1837 = vadd.f32 0.0, %v1836
      %v1838 = vpop.f32.mrb[0].mxu0
      %1839 = vmatprep.mubr.bf16.mxu0 %v1426
      %1840 = vmatmul.mubr.bf16.gmra.mrb[0].mxu0 %v1425
      %v1841 = vpop.f32.mrb[0].mxu0
      %v1842 = vadd.f32 0.0, %v1841
      %v1843 = vpop.f32.mrb[0].mxu0
      %v1844 = vpop.f32.mrb[0].mxu0
      %v1845 = vadd.f32 0.0, %v1844
      %v1846 = vpop.f32.mrb[0].mxu0
      %1847 = vmatprep.mubr.bf16.mxu0 %v1428
      %1848 = vmatmul.mubr.bf16.gmra.mrb[0].mxu0 %v1427
      %v1849 = vpop.f32.mrb[0].mxu0
      %v1850 = vadd.f32 0.0, %v1849
      %v1851 = vpop.f32.mrb[0].mxu0
      %v1852 = vpop.f32.mrb[0].mxu0
      %v1853 = vadd.f32 0.0, %v1852
      %v1854 = vpop.f32.mrb[0].mxu0
      %1855 = vmatprep.mubr.bf16.mxu0 %v1430
      %1856 = vmatmul.mubr.bf16.gmra.mrb[0].mxu0 %v1429
      %v1857 = vpop.f32.mrb[0].mxu0
      %v1858 = vadd.f32 0.0, %v1857
      %v1859 = vpop.f32.mrb[0].mxu0
      %v1860 = vpop.f32.mrb[0].mxu0
      %v1861 = vadd.f32 0.0, %v1860
      %v1862 = vpop.f32.mrb[0].mxu0
      %1863 = vmatprep.mubr.bf16.mxu0 %v1432
      %1864 = vmatmul.mubr.bf16.gmra.mrb[0].mxu0 %v1431
      %v1865 = vpop.f32.mrb[0].mxu0
      %v1866 = vadd.f32 0.0, %v1865
      %v1867 = vpop.f32.mrb[0].mxu0
      %v1868 = vpop.f32.mrb[0].mxu0
      %v1869 = vadd.f32 0.0, %v1868
      %v1870 = vpop.f32.mrb[0].mxu0
      %1871 = vmatprep.mubr.bf16.mxu0 %v1434
      %1872 = vmatmul.mubr.bf16.gmra.mrb[0].mxu0 %v1433
      %v1873 = vpop.f32.mrb[0].mxu0
      %v1874 = vadd.f32 0.0, %v1873
      %v1875 = vpop.f32.mrb[0].mxu0
      %v1876 = vpop.f32.mrb[0].mxu0
      %v1877 = vadd.f32 0.0, %v1876
      %v1878 = vpop.f32.mrb[0].mxu0
      %1879 = vmatprep.mubr.bf16.mxu0 %v1436
      %1880 = vmatmul.mubr.bf16.gmra.mrb[0].mxu0 %v1435
      %v1881 = vpop.f32.mrb[0].mxu0
      %v1882 = vadd.f32 0.0, %v1881
      %v1883 = vpop.f32.mrb[0].mxu0
      %v1884 = vpop.f32.mrb[0].mxu0
      %v1885 = vadd.f32 0.0, %v1884
      %v1886 = vpop.f32.mrb[0].mxu0
      %1887 = vmatprep.mubr.bf16.mxu0 %v1438
      %1888 = vmatmul.mubr.bf16.gmra.mrb[0].mxu0 %v1437
      %v1889 = vpop.f32.mrb[0].mxu0
      %v1890 = vadd.f32 0.0, %v1889
      %v1891 = vpop.f32.mrb[0].mxu0
      %v1892 = vpop.f32.mrb[0].mxu0
      %v1893 = vadd.f32 0.0, %v1892
      %v1894 = vpop.f32.mrb[0].mxu0
      %1895 = vmatprep.mubr.bf16.mxu0 %v1440
      %1896 = vmatmul.mubr.bf16.gmra.mrb[0].mxu0 %v1439
      %v1897 = vpop.f32.mrb[0].mxu0
      %v1898 = vadd.f32 0.0, %v1897
      %v1899 = vpop.f32.mrb[0].mxu0
      %v1900 = vpop.f32.mrb[0].mxu0
      %v1901 = vadd.f32 0.0, %v1900
      %v1902 = vpop.f32.mrb[0].mxu0
      %1903 = vmatprep.mubr.bf16.mxu0 %v1442
      %1904 = vmatmul.mubr.bf16.gmra.mrb[0].mxu0 %v1441
      %v1905 = vpop.f32.mrb[0].mxu0
      %v1906 = vadd.f32 0.0, %v1905
      %v1907 = vpop.f32.mrb[0].mxu0
      %v1908 = vpop.f32.mrb[0].mxu0
      %v1909 = vadd.f32 0.0, %v1908
      %v1910 = vpop.f32.mrb[0].mxu0
      %1911 = vmatprep.mubr.bf16.mxu0 %v1444
      %1912 = vmatmul.mubr.bf16.gmra.mrb[0].mxu0 %v1443
      %v1913 = vpop.f32.mrb[0].mxu0
      %v1914 = vadd.f32 0.0, %v1913
      %v1915 = vpop.f32.mrb[0].mxu0
      %v1916 = vpop.f32.mrb[0].mxu0
      %v1917 = vadd.f32 0.0, %v1916
      %v1918 = vpop.f32.mrb[0].mxu0
      %1919 = vmatprep.mubr.bf16.mxu0 %v1446
      %1920 = vmatmul.mubr.bf16.gmra.mrb[0].mxu0 %v1445
      %v1921 = vpop.f32.mrb[0].mxu0
      %v1922 = vadd.f32 0.0, %v1921
      %v1923 = vpop.f32.mrb[0].mxu0
      %v1924 = vpop.f32.mrb[0].mxu0
      %v1925 = vadd.f32 0.0, %v1924
      %v1926 = vpop.f32.mrb[0].mxu0
      %1927 = vmatprep.mubr.bf16.mxu0 %v1448
      %1928 = vmatmul.mubr.bf16.gmra.mrb[0].mxu0 %v1447
      %v1929 = vpop.f32.mrb[0].mxu0
      %v1930 = vadd.f32 0.0, %v1929
      %v1931 = vpop.f32.mrb[0].mxu0
      %v1932 = vpop.f32.mrb[0].mxu0
      %v1933 = vadd.f32 0.0, %v1932
      %v1934 = vpop.f32.mrb[0].mxu0
      %1935 = vmatprep.mubr.bf16.mxu0 %v1450
      %1936 = vmatmul.mubr.bf16.gmra.mrb[0].mxu0 %v1449
      %v1937 = vpop.f32.mrb[0].mxu0
      %v1938 = vadd.f32 0.0, %v1937
      %v1939 = vpop.f32.mrb[0].mxu0
      %v1940 = vpop.f32.mrb[0].mxu0
      %v1941 = vadd.f32 0.0, %v1940
      %v1942 = vpop.f32.mrb[0].mxu0
      %1943 = vmatprep.mubr.bf16.mxu0 %v1452
      %1944 = vmatmul.mubr.bf16.gmra.mrb[0].mxu0 %v1451
      %v1945 = vpop.f32.mrb[0].mxu0
      %v1946 = vadd.f32 0.0, %v1945
      %v1947 = vpop.f32.mrb[0].mxu0
      %v1948 = vpop.f32.mrb[0].mxu0
      %v1949 = vadd.f32 0.0, %v1948
      %v1950 = vpop.f32.mrb[0].mxu0
      %1951 = vmatprep.mubr.bf16.mxu0 %v1454
      %1952 = vmatmul.mubr.bf16.gmra.mrb[0].mxu0 %v1453
      %v1953 = vpop.f32.mrb[0].mxu0
      %v1954 = vadd.f32 0.0, %v1953
      %v1955 = vpop.f32.mrb[0].mxu0
      %v1956 = vpop.f32.mrb[0].mxu0
      %v1957 = vadd.f32 0.0, %v1956
      %v1958 = vpop.f32.mrb[0].mxu0
      %1959 = vmatprep.mubr.bf16.mxu0 %v1456
      %1960 = vmatmul.mubr.bf16.gmra.mrb[0].mxu0 %v1455
      %v1961 = vpop.f32.mrb[0].mxu0
      %v1962 = vadd.f32 0.0, %v1961
      %v1963 = vpop.f32.mrb[0].mxu0
      %v1964 = vpop.f32.mrb[0].mxu0
      %v1965 = vadd.f32 0.0, %v1964
      %v1966 = vpop.f32.mrb[0].mxu0
      %1967 = vmatprep.mubr.bf16.mxu0 %v1458
      %1968 = vmatmul.mubr.bf16.gmra.mrb[0].mxu0 %v1457
      %v1969 = vpop.f32.mrb[0].mxu0
      %v1970 = vadd.f32 0.0, %v1969
      %v1971 = vpop.f32.mrb[0].mxu0
      %v1972 = vpop.f32.mrb[0].mxu0
      %v1973 = vadd.f32 0.0, %v1972
      %v1974 = vpop.f32.mrb[0].mxu0
      %1975 = vmatprep.mubr.bf16.mxu0 %v1460
      %1976 = vmatmul.mubr.bf16.gmra.mrb[0].mxu0 %v1459
      %v1977 = vpop.f32.mrb[0].mxu0
      %v1978 = vadd.f32 0.0, %v1977
      %v1979 = vpop.f32.mrb[0].mxu0
      %v1980 = vpop.f32.mrb[0].mxu0
      %v1981 = vadd.f32 0.0, %v1980
      %v1982 = vpop.f32.mrb[0].mxu0
      %1983 = vmatprep.mubr.bf16.mxu0 %v1462
      %1984 = vmatmul.mubr.bf16.gmra.mrb[0].mxu0 %v1461
      %v1985 = vpop.f32.mrb[0].mxu0
      %v1986 = vadd.f32 0.0, %v1985
      %v1987 = vpop.f32.mrb[0].mxu0
      %v1988 = vpop.f32.mrb[0].mxu0
      %v1989 = vadd.f32 0.0, %v1988
      %v1990 = vpop.f32.mrb[0].mxu0
      %1991 = vmatprep.mubr.bf16.mxu0 %v1464
      %1992 = vmatmul.mubr.bf16.gmra.mrb[0].mxu0 %v1463
      %v1993 = vpop.f32.mrb[0].mxu0
      %v1994 = vadd.f32 0.0, %v1993
      %v1995 = vpop.f32.mrb[0].mxu0
      %v1996 = vpop.f32.mrb[0].mxu0
      %v1997 = vadd.f32 0.0, %v1996
      %v1998 = vpop.f32.mrb[0].mxu0
      %1999 = vmatprep.mubr.bf16.mxu0 %v1466
      %2000 = vmatmul.mubr.bf16.gmra.mrb[0].mxu0 %v1465
      %v2001 = vpop.f32.mrb[0].mxu0
      %v2002 = vadd.f32 0.0, %v2001
      %v2003 = vpop.f32.mrb[0].mxu0
      %v2004 = vpop.f32.mrb[0].mxu0
      %v2005 = vadd.f32 0.0, %v2004
      %v2006 = vpop.f32.mrb[0].mxu0
      %2007 = vmatprep.mubr.bf16.mxu0 %v1468
      %2008 = vmatmul.mubr.bf16.gmra.mrb[0].mxu0 %v1467
      %v2009 = vpop.f32.mrb[0].mxu0
      %v2010 = vadd.f32 0.0, %v2009
      %v2011 = vpop.f32.mrb[0].mxu0
      %v2012 = vpop.f32.mrb[0].mxu0
      %v2013 = vadd.f32 0.0, %v2012
      %v2014 = vpop.f32.mrb[0].mxu0
      %2015 = vmatprep.mubr.bf16.mxu0 %v1470
      %2016 = vmatmul.mubr.bf16.gmra.mrb[0].mxu0 %v1469
      %v2017 = vpop.f32.mrb[0].mxu0
      %v2018 = vadd.f32 0.0, %v2017
      %v2019 = vpop.f32.mrb[0].mxu0
      %v2020 = vpop.f32.mrb[0].mxu0
      %v2021 = vadd.f32 0.0, %v2020
      %v2022 = vpop.f32.mrb[0].mxu0
      %2023 = vmatprep.mubr.bf16.mxu0 %v1472
      %2024 = vmatmul.mubr.bf16.gmra.mrb[0].mxu0 %v1471
      %v2025 = vpop.f32.mrb[0].mxu0
      %v2026 = vadd.f32 0.0, %v2025
      %v2027 = vpop.f32.mrb[0].mxu0
      %v2028 = vpop.f32.mrb[0].mxu0
      %v2029 = vadd.f32 0.0, %v2028
      %v2030 = vpop.f32.mrb[0].mxu0
      %2031 = vmatprep.mubr.bf16.mxu0 %v1474
      %2032 = vmatmul.mubr.bf16.gmra.mrb[0].mxu0 %v1473
      %v2033 = vpop.f32.mrb[0].mxu0
      %v2034 = vadd.f32 0.0, %v2033
      %v2035 = vpop.f32.mrb[0].mxu0
      %v2036 = vpop.f32.mrb[0].mxu0
      %v2037 = vadd.f32 0.0, %v2036
      %v2038 = vpop.f32.mrb[0].mxu0
      %2039 = vmatprep.mubr.bf16.mxu0 %v1476
      %2040 = vmatmul.mubr.bf16.gmra.mrb[0].mxu0 %v1475
      %v2041 = vpop.f32.mrb[0].mxu0
      %v2042 = vadd.f32 0.0, %v2041
      %v2043 = vpop.f32.mrb[0].mxu0
      %v2044 = vpop.f32.mrb[0].mxu0
      %v2045 = vadd.f32 0.0, %v2044
      %v2046 = vpop.f32.mrb[0].mxu0
      %2047 = vmatprep.mubr.bf16.mxu0 %v1478
      %2048 = vmatmul.mubr.bf16.gmra.mrb[0].mxu0 %v1477
      %v2049 = vpop.f32.mrb[0].mxu0
      %v2050 = vadd.f32 0.0, %v2049
      %v2051 = vpop.f32.mrb[0].mxu0
      %v2052 = vpop.f32.mrb[0].mxu0
      %v2053 = vadd.f32 0.0, %v2052
      %v2054 = vpop.f32.mrb[0].mxu0
      %2055 = vmatprep.mubr.bf16.mxu0 %v1480
      %2056 = vmatmul.mubr.bf16.gmra.mrb[0].mxu0 %v1479
      %v2057 = vpop.f32.mrb[0].mxu0
      %v2058 = vadd.f32 0.0, %v2057
      %v2059 = vpop.f32.mrb[0].mxu0
      %v2060 = vpop.f32.mrb[0].mxu0
      %v2061 = vadd.f32 0.0, %v2060
      %v2062 = vpop.f32.mrb[0].mxu0
      %2063 = vmatprep.mubr.bf16.mxu0 %v1482
      %2064 = vmatmul.mubr.bf16.gmra.mrb[0].mxu0 %v1481
      %v2065 = vpop.f32.mrb[0].mxu0
      %v2066 = vadd.f32 0.0, %v2065
      %v2067 = vpop.f32.mrb[0].mxu0
      %v2068 = vpop.f32.mrb[0].mxu0
      %v2069 = vadd.f32 0.0, %v2068
      %v2070 = vpop.f32.mrb[0].mxu0
      %2071 = vmatprep.mubr.bf16.mxu0 %v1484
      %2072 = vmatmul.mubr.bf16.gmra.mrb[0].mxu0 %v1483
      %v2073 = vpop.f32.mrb[0].mxu0
      %v2074 = vadd.f32 0.0, %v2073
      %v2075 = vpop.f32.mrb[0].mxu0
      %v2076 = vpop.f32.mrb[0].mxu0
      %v2077 = vadd.f32 0.0, %v2076
      %v2078 = vpop.f32.mrb[0].mxu0
      %2079 = vmatprep.mubr.bf16.mxu0 %v1486
      %2080 = vmatmul.mubr.bf16.gmra.mrb[0].mxu0 %v1485
      %v2081 = vpop.f32.mrb[0].mxu0
      %v2082 = vadd.f32 0.0, %v2081
      %v2083 = vpop.f32.mrb[0].mxu0
      %v2084 = vpop.f32.mrb[0].mxu0
      %v2085 = vadd.f32 0.0, %v2084
      %v2086 = vpop.f32.mrb[0].mxu0
      %2087 = vmatprep.mubr.bf16.mxu0 %v1488
      %2088 = vmatmul.mubr.bf16.gmra.mrb[0].mxu0 %v1487
      %v2089 = vpop.f32.mrb[0].mxu0
      %v2090 = vadd.f32 0.0, %v2089
      %v2091 = vpop.f32.mrb[0].mxu0
      %v2092 = vpop.f32.mrb[0].mxu0
      %v2093 = vadd.f32 0.0, %v2092
      %v2094 = vpop.f32.mrb[0].mxu0
      %2095 = vmatprep.mubr.bf16.mxu0 %v1490
      %2096 = vmatmul.mubr.bf16.gmra.mrb[0].mxu0 %v1489
      %v2097 = vpop.f32.mrb[0].mxu0
      %v2098 = vadd.f32 0.0, %v2097
      %v2099 = vpop.f32.mrb[0].mxu0
      %v2100 = vpop.f32.mrb[0].mxu0
      %v2101 = vadd.f32 0.0, %v2100
      %v2102 = vpop.f32.mrb[0].mxu0
      %2103 = vmatprep.mubr.bf16.mxu0 %v1492
      %2104 = vmatmul.mubr.bf16.gmra.mrb[0].mxu0 %v1491
      %v2105 = vpop.f32.mrb[0].mxu0
      %v2106 = vadd.f32 0.0, %v2105
      %v2107 = vpop.f32.mrb[0].mxu0
      %v2108 = vpop.f32.mrb[0].mxu0
      %v2109 = vadd.f32 0.0, %v2108
      %v2110 = vpop.f32.mrb[0].mxu0
      %2111 = vmatprep.mubr.bf16.mxu0 %v1494
      %2112 = vmatmul.mubr.bf16.gmra.mrb[0].mxu0 %v1493
      %v2113 = vpop.f32.mrb[0].mxu0
      %v2114 = vadd.f32 0.0, %v2113
      %v2115 = vpop.f32.mrb[0].mxu0
      %v2116 = vpop.f32.mrb[0].mxu0
      %v2117 = vadd.f32 0.0, %v2116
      %v2118 = vpop.f32.mrb[0].mxu0
      %2119 = vmatprep.mubr.bf16.mxu0 %v1496
      %2120 = vmatmul.mubr.bf16.gmra.mrb[0].mxu0 %v1495
      %v2121 = vpop.f32.mrb[0].mxu0
      %v2122 = vadd.f32 0.0, %v2121
      %v2123 = vpop.f32.mrb[0].mxu0
      %v2124 = vpop.f32.mrb[0].mxu0
      %v2125 = vadd.f32 0.0, %v2124
      %v2126 = vpop.f32.mrb[0].mxu0
      %2127 = vmatprep.mubr.bf16.mxu0 %v1498
      %2128 = vmatmul.mubr.bf16.gmra.mrb[0].mxu0 %v1497
      %v2129 = vpop.f32.mrb[0].mxu0
      %v2130 = vadd.f32 0.0, %v2129
      %v2131 = vpop.f32.mrb[0].mxu0
      %v2132 = vpop.f32.mrb[0].mxu0
      %v2133 = vadd.f32 0.0, %v2132
      %v2134 = vpop.f32.mrb[0].mxu0
      %2135 = vmatprep.mubr.bf16.mxu0 %v1500
      %2136 = vmatmul.mubr.bf16.gmra.mrb[0].mxu0 %v1499
      %v2137 = vpop.f32.mrb[0].mxu0
      %v2138 = vadd.f32 0.0, %v2137
      %v2139 = vpop.f32.mrb[0].mxu0
      %v2140 = vpop.f32.mrb[0].mxu0
      %v2141 = vadd.f32 0.0, %v2140
      %v2142 = vpop.f32.mrb[0].mxu0
      %2143 = vmatprep.mubr.bf16.mxu0 %v1502
      %2144 = vmatmul.mubr.bf16.gmra.mrb[0].mxu0 %v1501
      %v2145 = vpop.f32.mrb[0].mxu0
      %v2146 = vadd.f32 0.0, %v2145
      %v2147 = vpop.f32.mrb[0].mxu0
      %v2148 = vpop.f32.mrb[0].mxu0
      %v2149 = vadd.f32 0.0, %v2148
      %v2150 = vpop.f32.mrb[0].mxu0
      %2151 = vmatprep.mubr.bf16.mxu0 %v1504
      %2152 = vmatmul.mubr.bf16.gmra.mrb[0].mxu0 %v1503
      %v2153 = vpop.f32.mrb[0].mxu0
      %v2154 = vadd.f32 0.0, %v2153
      %v2155 = vpop.f32.mrb[0].mxu0
      %v2156 = vpop.f32.mrb[0].mxu0
      %v2157 = vadd.f32 0.0, %v2156
      %v2158 = vpop.f32.mrb[0].mxu0
      %2159 = vmatprep.mubr.bf16.mxu0 %v1506
      %2160 = vmatmul.mubr.bf16.gmra.mrb[0].mxu0 %v1505
      %v2161 = vpop.f32.mrb[0].mxu0
      %v2162 = vadd.f32 0.0, %v2161
      %v2163 = vpop.f32.mrb[0].mxu0
      %v2164 = vpop.f32.mrb[0].mxu0
      %v2165 = vadd.f32 0.0, %v2164
      %v2166 = vpop.f32.mrb[0].mxu0
      %2167 = vmatprep.mubr.bf16.mxu0 %v1508
      %2168 = vmatmul.mubr.bf16.gmra.mrb[0].mxu0 %v1507
      %v2169 = vpop.f32.mrb[0].mxu0
      %v2170 = vadd.f32 0.0, %v2169
      %v2171 = vpop.f32.mrb[0].mxu0
      %v2172 = vpop.f32.mrb[0].mxu0
      %v2173 = vadd.f32 0.0, %v2172
      %v2174 = vpop.f32.mrb[0].mxu0
      %2175 = vmatprep.mubr.bf16.mxu0 %v1510
      %2176 = vmatmul.mubr.bf16.gmra.mrb[0].mxu0 %v1509
      %v2177 = vpop.f32.mrb[0].mxu0
      %v2178 = vadd.f32 0.0, %v2177
      %v2179 = vpop.f32.mrb[0].mxu0
      %v2180 = vpop.f32.mrb[0].mxu0
      %v2181 = vadd.f32 0.0, %v2180
      %v2182 = vpop.f32.mrb[0].mxu0
      %2183 = vdwg.mxu0
      %v2184 = vpack.c.bf16 %v1677, %v1674
      %v2185 = vpack.c.bf16 %v1685, %v1682
      %v2186 = vpack.c.bf16 %v1693, %v1690
      %v2187 = vpack.c.bf16 %v1701, %v1698
      %v2188 = vpack.c.bf16 %v1709, %v1706
      %v2189 = vpack.c.bf16 %v1717, %v1714
      %v2190 = vpack.c.bf16 %v1725, %v1722
      %v2191 = vpack.c.bf16 %v1733, %v1730
      %v2192 = vpack.c.bf16 %v1741, %v1738
      %v2193 = vpack.c.bf16 %v1749, %v1746
      %v2194 = vpack.c.bf16 %v1757, %v1754
      %v2195 = vpack.c.bf16 %v1765, %v1762
      %v2196 = vpack.c.bf16 %v1773, %v1770
      %v2197 = vpack.c.bf16 %v1781, %v1778
      %v2198 = vpack.c.bf16 %v1789, %v1786
      %v2199 = vpack.c.bf16 %v1797, %v1794
      %v2200 = vpack.c.bf16 %v1805, %v1802
      %v2201 = vpack.c.bf16 %v1813, %v1810
      %v2202 = vpack.c.bf16 %v1821, %v1818
      %v2203 = vpack.c.bf16 %v1829, %v1826
      %v2204 = vpack.c.bf16 %v1837, %v1834
      %v2205 = vpack.c.bf16 %v1845, %v1842
      %v2206 = vpack.c.bf16 %v1853, %v1850
      %v2207 = vpack.c.bf16 %v1861, %v1858
      %v2208 = vpack.c.bf16 %v1869, %v1866
      %v2209 = vpack.c.bf16 %v1877, %v1874
      %v2210 = vpack.c.bf16 %v1885, %v1882
      %v2211 = vpack.c.bf16 %v1893, %v1890
      %v2212 = vpack.c.bf16 %v1901, %v1898
      %v2213 = vpack.c.bf16 %v1909, %v1906
      %v2214 = vpack.c.bf16 %v1917, %v1914
      %v2215 = vpack.c.bf16 %v1925, %v1922
      %v2216 = vpack.c.bf16 %v1933, %v1930
      %v2217 = vpack.c.bf16 %v1941, %v1938
      %v2218 = vpack.c.bf16 %v1949, %v1946
      %v2219 = vpack.c.bf16 %v1957, %v1954
      %v2220 = vpack.c.bf16 %v1965, %v1962
      %v2221 = vpack.c.bf16 %v1973, %v1970
      %v2222 = vpack.c.bf16 %v1981, %v1978
      %v2223 = vpack.c.bf16 %v1989, %v1986
      %v2224 = vpack.c.bf16 %v1997, %v1994
      %v2225 = vpack.c.bf16 %v2005, %v2002
      %v2226 = vpack.c.bf16 %v2013, %v2010
      %v2227 = vpack.c.bf16 %v2021, %v2018
      %v2228 = vpack.c.bf16 %v2029, %v2026
      %v2229 = vpack.c.bf16 %v2037, %v2034
      %v2230 = vpack.c.bf16 %v2045, %v2042
      %v2231 = vpack.c.bf16 %v2053, %v2050
      %v2232 = vpack.c.bf16 %v2061, %v2058
      %v2233 = vpack.c.bf16 %v2069, %v2066
      %v2234 = vpack.c.bf16 %v2077, %v2074
      %v2235 = vpack.c.bf16 %v2085, %v2082
      %v2236 = vpack.c.bf16 %v2093, %v2090
      %v2237 = vpack.c.bf16 %v2101, %v2098
      %v2238 = vpack.c.bf16 %v2109, %v2106
      %v2239 = vpack.c.bf16 %v2117, %v2114
      %v2240 = vpack.c.bf16 %v2125, %v2122
      %v2241 = vpack.c.bf16 %v2133, %v2130
      %v2242 = vpack.c.bf16 %v2141, %v2138
      %v2243 = vpack.c.bf16 %v2149, %v2146
      %v2244 = vpack.c.bf16 %v2157, %v2154
      %v2245 = vpack.c.bf16 %v2165, %v2162
      %v2246 = vpack.c.bf16 %v2173, %v2170
      %v2247 = vpack.c.bf16 %v2181, %v2178
      %vm2248 = vcmask 261120
      %2249 = vst.msk [vmem:[#allocation2] sm:$0xff] %vm2248, %v2184
      %2250 = vst.msk [vmem:[#allocation2 + $0x8] sm:$0xff] %vm2248, %v2185
      %2251 = vst.msk [vmem:[#allocation2 + $0x10] sm:$0xff] %vm2248, %v2186
      %2252 = vst.msk [vmem:[#allocation2 + $0x18] sm:$0xff] %vm2248, %v2187
      %2253 = vst.msk [vmem:[#allocation2 + $0x20] sm:$0xff] %vm2248, %v2188
      %2254 = vst.msk [vmem:[#allocation2 + $0x28] sm:$0xff] %vm2248, %v2189
      %2255 = vst.msk [vmem:[#allocation2 + $0x30] sm:$0xff] %vm2248, %v2190
      %2256 = vst.msk [vmem:[#allocation2 + $0x38] sm:$0xff] %vm2248, %v2191
      %2257 = vst.msk [vmem:[#allocation2 + $0x40] sm:$0xff] %vm2248, %v2192
      %2258 = vst.msk [vmem:[#allocation2 + $0x48] sm:$0xff] %vm2248, %v2193
      %2259 = vst.msk [vmem:[#allocation2 + $0x50] sm:$0xff] %vm2248, %v2194
      %2260 = vst.msk [vmem:[#allocation2 + $0x58] sm:$0xff] %vm2248, %v2195
      %2261 = vst.msk [vmem:[#allocation2 + $0x60] sm:$0xff] %vm2248, %v2196
      %2262 = vst.msk [vmem:[#allocation2 + $0x68] sm:$0xff] %vm2248, %v2197
      %2263 = vst.msk [vmem:[#allocation2 + $0x70] sm:$0xff] %vm2248, %v2198
      %2264 = vst.msk [vmem:[#allocation2 + $0x78] sm:$0xff] %vm2248, %v2199
      %2265 = vst.msk [vmem:[#allocation2 + $0x80] sm:$0xff] %vm2248, %v2200
      %2266 = vst.msk [vmem:[#allocation2 + $0x88] sm:$0xff] %vm2248, %v2201
      %2267 = vst.msk [vmem:[#allocation2 + $0x90] sm:$0xff] %vm2248, %v2202
      %2268 = vst.msk [vmem:[#allocation2 + $0x98] sm:$0xff] %vm2248, %v2203
      %2269 = vst.msk [vmem:[#allocation2 + $0xa0] sm:$0xff] %vm2248, %v2204
      %2270 = vst.msk [vmem:[#allocation2 + $0xa8] sm:$0xff] %vm2248, %v2205
      %2271 = vst.msk [vmem:[#allocation2 + $0xb0] sm:$0xff] %vm2248, %v2206
      %2272 = vst.msk [vmem:[#allocation2 + $0xb8] sm:$0xff] %vm2248, %v2207
      %2273 = vst.msk [vmem:[#allocation2 + $0xc0] sm:$0xff] %vm2248, %v2208
      %2274 = vst.msk [vmem:[#allocation2 + $0xc8] sm:$0xff] %vm2248, %v2209
      %2275 = vst.msk [vmem:[#allocation2 + $0xd0] sm:$0xff] %vm2248, %v2210
      %2276 = vst.msk [vmem:[#allocation2 + $0xd8] sm:$0xff] %vm2248, %v2211
      %2277 = vst.msk [vmem:[#allocation2 + $0xe0] sm:$0xff] %vm2248, %v2212
      %2278 = vst.msk [vmem:[#allocation2 + $0xe8] sm:$0xff] %vm2248, %v2213
      %2279 = vst.msk [vmem:[#allocation2 + $0xf0] sm:$0xff] %vm2248, %v2214
      %2280 = vst.msk [vmem:[#allocation2 + $0xf8] sm:$0xff] %vm2248, %v2215
      %2281 = vst.msk [vmem:[#allocation2 + $0x100] sm:$0xff] %vm2248, %v2216
      %2282 = vst.msk [vmem:[#allocation2 + $0x108] sm:$0xff] %vm2248, %v2217
      %2283 = vst.msk [vmem:[#allocation2 + $0x110] sm:$0xff] %vm2248, %v2218
      %2284 = vst.msk [vmem:[#allocation2 + $0x118] sm:$0xff] %vm2248, %v2219
      %2285 = vst.msk [vmem:[#allocation2 + $0x120] sm:$0xff] %vm2248, %v2220
      %2286 = vst.msk [vmem:[#allocation2 + $0x128] sm:$0xff] %vm2248, %v2221
      %2287 = vst.msk [vmem:[#allocation2 + $0x130] sm:$0xff] %vm2248, %v2222
      %2288 = vst.msk [vmem:[#allocation2 + $0x138] sm:$0xff] %vm2248, %v2223
      %2289 = vst.msk [vmem:[#allocation2 + $0x140] sm:$0xff] %vm2248, %v2224
      %2290 = vst.msk [vmem:[#allocation2 + $0x148] sm:$0xff] %vm2248, %v2225
      %2291 = vst.msk [vmem:[#allocation2 + $0x150] sm:$0xff] %vm2248, %v2226
      %2292 = vst.msk [vmem:[#allocation2 + $0x158] sm:$0xff] %vm2248, %v2227
      %2293 = vst.msk [vmem:[#allocation2 + $0x160] sm:$0xff] %vm2248, %v2228
      %2294 = vst.msk [vmem:[#allocation2 + $0x168] sm:$0xff] %vm2248, %v2229
      %2295 = vst.msk [vmem:[#allocation2 + $0x170] sm:$0xff] %vm2248, %v2230
      %2296 = vst.msk [vmem:[#allocation2 + $0x178] sm:$0xff] %vm2248, %v2231
      %2297 = vst.msk [vmem:[#allocation2 + $0x180] sm:$0xff] %vm2248, %v2232
      %2298 = vst.msk [vmem:[#allocation2 + $0x188] sm:$0xff] %vm2248, %v2233
      %2299 = vst.msk [vmem:[#allocation2 + $0x190] sm:$0xff] %vm2248, %v2234
      %2300 = vst.msk [vmem:[#allocation2 + $0x198] sm:$0xff] %vm2248, %v2235
      %2301 = vst.msk [vmem:[#allocation2 + $0x1a0] sm:$0xff] %vm2248, %v2236
      %2302 = vst.msk [vmem:[#allocation2 + $0x1a8] sm:$0xff] %vm2248, %v2237
      %2303 = vst.msk [vmem:[#allocation2 + $0x1b0] sm:$0xff] %vm2248, %v2238
      %2304 = vst.msk [vmem:[#allocation2 + $0x1b8] sm:$0xff] %vm2248, %v2239
      %2305 = vst.msk [vmem:[#allocation2 + $0x1c0] sm:$0xff] %vm2248, %v2240
      %2306 = vst.msk [vmem:[#allocation2 + $0x1c8] sm:$0xff] %vm2248, %v2241
      %2307 = vst.msk [vmem:[#allocation2 + $0x1d0] sm:$0xff] %vm2248, %v2242
      %2308 = vst.msk [vmem:[#allocation2 + $0x1d8] sm:$0xff] %vm2248, %v2243
      %2309 = vst.msk [vmem:[#allocation2 + $0x1e0] sm:$0xff] %vm2248, %v2244
      %2310 = vst.msk [vmem:[#allocation2 + $0x1e8] sm:$0xff] %vm2248, %v2245
      %2311 = vst.msk [vmem:[#allocation2 + $0x1f0] sm:$0xff] %vm2248, %v2246
      %2312 = vst.msk [vmem:[#allocation2 + $0x1f8] sm:$0xff] %vm2248, %v2247
      %v2313 = vld [vmem:[#allocation2] sm:$0xff]
      %v2314 = vld [vmem:[#allocation2 + $0x8] sm:$0xff]
      %v2315 = vld [vmem:[#allocation2 + $0x10] sm:$0xff]
      %v2316 = vld [vmem:[#allocation2 + $0x18] sm:$0xff]
      %2317 = vst.msk [vmem:[#allocation3] sm:$0xff] %vm2248, %v2313
      %2318 = vst.msk [vmem:[#allocation3 + $0x20] sm:$0xff] %vm2248, %v2314
      %2319 = vst.msk [vmem:[#allocation3 + $0x40] sm:$0xff] %vm2248, %v2315
      %2320 = vst.msk [vmem:[#allocation3 + $0x60] sm:$0xff] %vm2248, %v2316
      %v2321 = vld [vmem:[#allocation2 + $0x20] sm:$0xff]
      %v2322 = vld [vmem:[#allocation2 + $0x28] sm:$0xff]
      %v2323 = vld [vmem:[#allocation2 + $0x30] sm:$0xff]
      %v2324 = vld [vmem:[#allocation2 + $0x38] sm:$0xff]
      %2329 = vrot.lane.b32.xlu0 %v2321, 32
      %v2330 = vpop.permute.xlu0 %2329
      %2331 = vrot.lane.b32.xlu0 %v2322, 32
      %v2332 = vpop.permute.xlu0 %2331
      %2333 = vrot.lane.b32.xlu0 %v2323, 32
      %v2334 = vpop.permute.xlu0 %2333
      %2335 = vrot.lane.b32.xlu0 %v2324, 32
      %v2336 = vpop.permute.xlu0 %2335
      %vm2341 = vcmask 523520
      %2342 = vst.msk [vmem:[#allocation3] sm:$0xff] %vm2341, %v2330
      %2343 = vst.msk [vmem:[#allocation3 + $0x20] sm:$0xff] %vm2341, %v2332
      %2344 = vst.msk [vmem:[#allocation3 + $0x40] sm:$0xff] %vm2341, %v2334
      %2345 = vst.msk [vmem:[#allocation3 + $0x60] sm:$0xff] %vm2341, %v2336
      %v2346 = vld [vmem:[#allocation2 + $0x40] sm:$0xff]
      %v2347 = vld [vmem:[#allocation2 + $0x48] sm:$0xff]
      %v2348 = vld [vmem:[#allocation2 + $0x50] sm:$0xff]
      %v2349 = vld [vmem:[#allocation2 + $0x58] sm:$0xff]
      %2354 = vrot.lane.b32.xlu0 %v2346, 64
      %v2355 = vpop.permute.xlu0 %2354
      %2356 = vrot.lane.b32.xlu0 %v2347, 64
      %v2357 = vpop.permute.xlu0 %2356
      %2358 = vrot.lane.b32.xlu0 %v2348, 64
      %v2359 = vpop.permute.xlu0 %2358
      %2360 = vrot.lane.b32.xlu0 %v2349, 64
      %v2361 = vpop.permute.xlu0 %2360
      %vm2366 = vcmask 785920
      %2367 = vst.msk [vmem:[#allocation3] sm:$0xff] %vm2366, %v2355
      %2368 = vst.msk [vmem:[#allocation3 + $0x20] sm:$0xff] %vm2366, %v2357
      %2369 = vst.msk [vmem:[#allocation3 + $0x40] sm:$0xff] %vm2366, %v2359
      %2370 = vst.msk [vmem:[#allocation3 + $0x60] sm:$0xff] %vm2366, %v2361
      %v2371 = vld [vmem:[#allocation2 + $0x60] sm:$0xff]
      %v2372 = vld [vmem:[#allocation2 + $0x68] sm:$0xff]
      %v2373 = vld [vmem:[#allocation2 + $0x70] sm:$0xff]
      %v2374 = vld [vmem:[#allocation2 + $0x78] sm:$0xff]
      %2379 = vrot.lane.b32.xlu0 %v2371, 96
      %v2380 = vpop.permute.xlu0 %2379
      %2381 = vrot.lane.b32.xlu0 %v2372, 96
      %v2382 = vpop.permute.xlu0 %2381
      %2383 = vrot.lane.b32.xlu0 %v2373, 96
      %v2384 = vpop.permute.xlu0 %2383
      %2385 = vrot.lane.b32.xlu0 %v2374, 96
      %v2386 = vpop.permute.xlu0 %2385
      %vm2391 = vcmask 1048320
      %2392 = vst.msk [vmem:[#allocation3] sm:$0xff] %vm2391, %v2380
      %2393 = vst.msk [vmem:[#allocation3 + $0x20] sm:$0xff] %vm2391, %v2382
      %2394 = vst.msk [vmem:[#allocation3 + $0x40] sm:$0xff] %vm2391, %v2384
      %2395 = vst.msk [vmem:[#allocation3 + $0x60] sm:$0xff] %vm2391, %v2386
      %v2396 = vld [vmem:[#allocation2 + $0x80] sm:$0xff]
      %v2397 = vld [vmem:[#allocation2 + $0x88] sm:$0xff]
      %v2398 = vld [vmem:[#allocation2 + $0x90] sm:$0xff]
      %v2399 = vld [vmem:[#allocation2 + $0x98] sm:$0xff]
      %2400 = vst.msk [vmem:[#allocation3 + $0x8] sm:$0xff] %vm2248, %v2396
      %2401 = vst.msk [vmem:[#allocation3 + $0x28] sm:$0xff] %vm2248, %v2397
      %2402 = vst.msk [vmem:[#allocation3 + $0x48] sm:$0xff] %vm2248, %v2398
      %2403 = vst.msk [vmem:[#allocation3 + $0x68] sm:$0xff] %vm2248, %v2399
      %v2404 = vld [vmem:[#allocation2 + $0xa0] sm:$0xff]
      %v2405 = vld [vmem:[#allocation2 + $0xa8] sm:$0xff]
      %v2406 = vld [vmem:[#allocation2 + $0xb0] sm:$0xff]
      %v2407 = vld [vmem:[#allocation2 + $0xb8] sm:$0xff]
      %2412 = vrot.lane.b32.xlu0 %v2404, 32
      %v2413 = vpop.permute.xlu0 %2412
      %2414 = vrot.lane.b32.xlu0 %v2405, 32
      %v2415 = vpop.permute.xlu0 %2414
      %2416 = vrot.lane.b32.xlu0 %v2406, 32
      %v2417 = vpop.permute.xlu0 %2416
      %2418 = vrot.lane.b32.xlu0 %v2407, 32
      %v2419 = vpop.permute.xlu0 %2418
      %2424 = vst.msk [vmem:[#allocation3 + $0x8] sm:$0xff] %vm2341, %v2413
      %2425 = vst.msk [vmem:[#allocation3 + $0x28] sm:$0xff] %vm2341, %v2415
      %2426 = vst.msk [vmem:[#allocation3 + $0x48] sm:$0xff] %vm2341, %v2417
      %2427 = vst.msk [vmem:[#allocation3 + $0x68] sm:$0xff] %vm2341, %v2419
      %v2428 = vld [vmem:[#allocation2 + $0xc0] sm:$0xff]
      %v2429 = vld [vmem:[#allocation2 + $0xc8] sm:$0xff]
      %v2430 = vld [vmem:[#allocation2 + $0xd0] sm:$0xff]
      %v2431 = vld [vmem:[#allocation2 + $0xd8] sm:$0xff]
      %2436 = vrot.lane.b32.xlu0 %v2428, 64
      %v2437 = vpop.permute.xlu0 %2436
      %2438 = vrot.lane.b32.xlu0 %v2429, 64
      %v2439 = vpop.permute.xlu0 %2438
      %2440 = vrot.lane.b32.xlu0 %v2430, 64
      %v2441 = vpop.permute.xlu0 %2440
      %2442 = vrot.lane.b32.xlu0 %v2431, 64
      %v2443 = vpop.permute.xlu0 %2442
      %2448 = vst.msk [vmem:[#allocation3 + $0x8] sm:$0xff] %vm2366, %v2437
      %2449 = vst.msk [vmem:[#allocation3 + $0x28] sm:$0xff] %vm2366, %v2439
      %2450 = vst.msk [vmem:[#allocation3 + $0x48] sm:$0xff] %vm2366, %v2441
      %2451 = vst.msk [vmem:[#allocation3 + $0x68] sm:$0xff] %vm2366, %v2443
      %v2452 = vld [vmem:[#allocation2 + $0xe0] sm:$0xff]
      %v2453 = vld [vmem:[#allocation2 + $0xe8] sm:$0xff]
      %v2454 = vld [vmem:[#allocation2 + $0xf0] sm:$0xff]
      %v2455 = vld [vmem:[#allocation2 + $0xf8] sm:$0xff]
      %2460 = vrot.lane.b32.xlu0 %v2452, 96
      %v2461 = vpop.permute.xlu0 %2460
      %2462 = vrot.lane.b32.xlu0 %v2453, 96
      %v2463 = vpop.permute.xlu0 %2462
      %2464 = vrot.lane.b32.xlu0 %v2454, 96
      %v2465 = vpop.permute.xlu0 %2464
      %2466 = vrot.lane.b32.xlu0 %v2455, 96
      %v2467 = vpop.permute.xlu0 %2466
      %2472 = vst.msk [vmem:[#allocation3 + $0x8] sm:$0xff] %vm2391, %v2461
      %2473 = vst.msk [vmem:[#allocation3 + $0x28] sm:$0xff] %vm2391, %v2463
      %2474 = vst.msk [vmem:[#allocation3 + $0x48] sm:$0xff] %vm2391, %v2465
      %2475 = vst.msk [vmem:[#allocation3 + $0x68] sm:$0xff] %vm2391, %v2467
      %v2476 = vld [vmem:[#allocation2 + $0x100] sm:$0xff]
      %v2477 = vld [vmem:[#allocation2 + $0x108] sm:$0xff]
      %v2478 = vld [vmem:[#allocation2 + $0x110] sm:$0xff]
      %v2479 = vld [vmem:[#allocation2 + $0x118] sm:$0xff]
      %2480 = vst.msk [vmem:[#allocation3 + $0x10] sm:$0xff] %vm2248, %v2476
      %2481 = vst.msk [vmem:[#allocation3 + $0x30] sm:$0xff] %vm2248, %v2477
      %2482 = vst.msk [vmem:[#allocation3 + $0x50] sm:$0xff] %vm2248, %v2478
      %2483 = vst.msk [vmem:[#allocation3 + $0x70] sm:$0xff] %vm2248, %v2479
      %v2484 = vld [vmem:[#allocation2 + $0x120] sm:$0xff]
      %v2485 = vld [vmem:[#allocation2 + $0x128] sm:$0xff]
      %v2486 = vld [vmem:[#allocation2 + $0x130] sm:$0xff]
      %v2487 = vld [vmem:[#allocation2 + $0x138] sm:$0xff]
      %2492 = vrot.lane.b32.xlu0 %v2484, 32
      %v2493 = vpop.permute.xlu0 %2492
      %2494 = vrot.lane.b32.xlu0 %v2485, 32
      %v2495 = vpop.permute.xlu0 %2494
      %2496 = vrot.lane.b32.xlu0 %v2486, 32
      %v2497 = vpop.permute.xlu0 %2496
      %2498 = vrot.lane.b32.xlu0 %v2487, 32
      %v2499 = vpop.permute.xlu0 %2498
      %2504 = vst.msk [vmem:[#allocation3 + $0x10] sm:$0xff] %vm2341, %v2493
      %2505 = vst.msk [vmem:[#allocation3 + $0x30] sm:$0xff] %vm2341, %v2495
      %2506 = vst.msk [vmem:[#allocation3 + $0x50] sm:$0xff] %vm2341, %v2497
      %2507 = vst.msk [vmem:[#allocation3 + $0x70] sm:$0xff] %vm2341, %v2499
      %v2508 = vld [vmem:[#allocation2 + $0x140] sm:$0xff]
      %v2509 = vld [vmem:[#allocation2 + $0x148] sm:$0xff]
      %v2510 = vld [vmem:[#allocation2 + $0x150] sm:$0xff]
      %v2511 = vld [vmem:[#allocation2 + $0x158] sm:$0xff]
      %2516 = vrot.lane.b32.xlu0 %v2508, 64
      %v2517 = vpop.permute.xlu0 %2516
      %2518 = vrot.lane.b32.xlu0 %v2509, 64
      %v2519 = vpop.permute.xlu0 %2518
      %2520 = vrot.lane.b32.xlu0 %v2510, 64
      %v2521 = vpop.permute.xlu0 %2520
      %2522 = vrot.lane.b32.xlu0 %v2511, 64
      %v2523 = vpop.permute.xlu0 %2522
      %2528 = vst.msk [vmem:[#allocation3 + $0x10] sm:$0xff] %vm2366, %v2517
      %2529 = vst.msk [vmem:[#allocation3 + $0x30] sm:$0xff] %vm2366, %v2519
      %2530 = vst.msk [vmem:[#allocation3 + $0x50] sm:$0xff] %vm2366, %v2521
      %2531 = vst.msk [vmem:[#allocation3 + $0x70] sm:$0xff] %vm2366, %v2523
      %v2532 = vld [vmem:[#allocation2 + $0x160] sm:$0xff]
      %v2533 = vld [vmem:[#allocation2 + $0x168] sm:$0xff]
      %v2534 = vld [vmem:[#allocation2 + $0x170] sm:$0xff]
      %v2535 = vld [vmem:[#allocation2 + $0x178] sm:$0xff]
      %2540 = vrot.lane.b32.xlu0 %v2532, 96
      %v2541 = vpop.permute.xlu0 %2540
      %2542 = vrot.lane.b32.xlu0 %v2533, 96
      %v2543 = vpop.permute.xlu0 %2542
      %2544 = vrot.lane.b32.xlu0 %v2534, 96
      %v2545 = vpop.permute.xlu0 %2544
      %2546 = vrot.lane.b32.xlu0 %v2535, 96
      %v2547 = vpop.permute.xlu0 %2546
      %2552 = vst.msk [vmem:[#allocation3 + $0x10] sm:$0xff] %vm2391, %v2541
      %2553 = vst.msk [vmem:[#allocation3 + $0x30] sm:$0xff] %vm2391, %v2543
      %2554 = vst.msk [vmem:[#allocation3 + $0x50] sm:$0xff] %vm2391, %v2545
      %2555 = vst.msk [vmem:[#allocation3 + $0x70] sm:$0xff] %vm2391, %v2547
      %v2556 = vld [vmem:[#allocation2 + $0x180] sm:$0xff]
      %v2557 = vld [vmem:[#allocation2 + $0x188] sm:$0xff]
      %v2558 = vld [vmem:[#allocation2 + $0x190] sm:$0xff]
      %v2559 = vld [vmem:[#allocation2 + $0x198] sm:$0xff]
      %2560 = vst.msk [vmem:[#allocation3 + $0x18] sm:$0xff] %vm2248, %v2556
      %2561 = vst.msk [vmem:[#allocation3 + $0x38] sm:$0xff] %vm2248, %v2557
      %2562 = vst.msk [vmem:[#allocation3 + $0x58] sm:$0xff] %vm2248, %v2558
      %2563 = vst.msk [vmem:[#allocation3 + $0x78] sm:$0xff] %vm2248, %v2559
      %v2564 = vld [vmem:[#allocation2 + $0x1a0] sm:$0xff]
      %v2565 = vld [vmem:[#allocation2 + $0x1a8] sm:$0xff]
      %v2566 = vld [vmem:[#allocation2 + $0x1b0] sm:$0xff]
      %v2567 = vld [vmem:[#allocation2 + $0x1b8] sm:$0xff]
      %2572 = vrot.lane.b32.xlu0 %v2564, 32
      %v2573 = vpop.permute.xlu0 %2572
      %2574 = vrot.lane.b32.xlu0 %v2565, 32
      %v2575 = vpop.permute.xlu0 %2574
      %2576 = vrot.lane.b32.xlu0 %v2566, 32
      %v2577 = vpop.permute.xlu0 %2576
      %2578 = vrot.lane.b32.xlu0 %v2567, 32
      %v2579 = vpop.permute.xlu0 %2578
      %2584 = vst.msk [vmem:[#allocation3 + $0x18] sm:$0xff] %vm2341, %v2573
      %2585 = vst.msk [vmem:[#allocation3 + $0x38] sm:$0xff] %vm2341, %v2575
      %2586 = vst.msk [vmem:[#allocation3 + $0x58] sm:$0xff] %vm2341, %v2577
      %2587 = vst.msk [vmem:[#allocation3 + $0x78] sm:$0xff] %vm2341, %v2579
      %v2588 = vld [vmem:[#allocation2 + $0x1c0] sm:$0xff]
      %v2589 = vld [vmem:[#allocation2 + $0x1c8] sm:$0xff]
      %v2590 = vld [vmem:[#allocation2 + $0x1d0] sm:$0xff]
      %v2591 = vld [vmem:[#allocation2 + $0x1d8] sm:$0xff]
      %2596 = vrot.lane.b32.xlu0 %v2588, 64
      %v2597 = vpop.permute.xlu0 %2596
      %2598 = vrot.lane.b32.xlu0 %v2589, 64
      %v2599 = vpop.permute.xlu0 %2598
      %2600 = vrot.lane.b32.xlu0 %v2590, 64
      %v2601 = vpop.permute.xlu0 %2600
      %2602 = vrot.lane.b32.xlu0 %v2591, 64
      %v2603 = vpop.permute.xlu0 %2602
      %2608 = vst.msk [vmem:[#allocation3 + $0x18] sm:$0xff] %vm2366, %v2597
      %2609 = vst.msk [vmem:[#allocation3 + $0x38] sm:$0xff] %vm2366, %v2599
      %2610 = vst.msk [vmem:[#allocation3 + $0x58] sm:$0xff] %vm2366, %v2601
      %2611 = vst.msk [vmem:[#allocation3 + $0x78] sm:$0xff] %vm2366, %v2603
      %v2612 = vld [vmem:[#allocation2 + $0x1e0] sm:$0xff]
      %v2613 = vld [vmem:[#allocation2 + $0x1e8] sm:$0xff]
      %v2614 = vld [vmem:[#allocation2 + $0x1f0] sm:$0xff]
      %v2615 = vld [vmem:[#allocation2 + $0x1f8] sm:$0xff]
      %2620 = vrot.lane.b32.xlu0 %v2612, 96
      %v2621 = vpop.permute.xlu0 %2620
      %2622 = vrot.lane.b32.xlu0 %v2613, 96
      %v2623 = vpop.permute.xlu0 %2622
      %2624 = vrot.lane.b32.xlu0 %v2614, 96
      %v2625 = vpop.permute.xlu0 %2624
      %2626 = vrot.lane.b32.xlu0 %v2615, 96
      %v2627 = vpop.permute.xlu0 %2626
      %2632 = vst.msk [vmem:[#allocation3 + $0x18] sm:$0xff] %vm2391, %v2621
      %2633 = vst.msk [vmem:[#allocation3 + $0x38] sm:$0xff] %vm2391, %v2623
      %2634 = vst.msk [vmem:[#allocation3 + $0x58] sm:$0xff] %vm2391, %v2625
      %2635 = vst.msk [vmem:[#allocation3 + $0x78] sm:$0xff] %vm2391, %v2627
      %v2636 = vld [vmem:[#allocation3] sm:$0xff]
      %v2637 = vld [vmem:[#allocation3 + $0x8] sm:$0xff]
      %v2638 = vld [vmem:[#allocation3 + $0x10] sm:$0xff]
      %v2639 = vld [vmem:[#allocation3 + $0x18] sm:$0xff]
      %v2640 = vld [vmem:[#allocation3 + $0x20] sm:$0xff]
      %v2641 = vld [vmem:[#allocation3 + $0x28] sm:$0xff]
      %v2642 = vld [vmem:[#allocation3 + $0x30] sm:$0xff]
      %v2643 = vld [vmem:[#allocation3 + $0x38] sm:$0xff]
      %v2644 = vld [vmem:[#allocation3 + $0x40] sm:$0xff]
      %v2645 = vld [vmem:[#allocation3 + $0x48] sm:$0xff]
      %v2646 = vld [vmem:[#allocation3 + $0x50] sm:$0xff]
      %v2647 = vld [vmem:[#allocation3 + $0x58] sm:$0xff]
      %v2648 = vld [vmem:[#allocation3 + $0x60] sm:$0xff]
      %v2649 = vld [vmem:[#allocation3 + $0x68] sm:$0xff]
      %v2650 = vld [vmem:[#allocation3 + $0x70] sm:$0xff]
      %v2651 = vld [vmem:[#allocation3 + $0x78] sm:$0xff]
      %v2652 = vld [vmem:[%s4] sm:$0xf]
      %v2653 = vld [vmem:[%s4 + $0x4] sm:$0xf]
      %v2654 = vld [vmem:[%s4 + $0x8] sm:$0xf]
      %v2655 = vld [vmem:[%s4 + $0xc] sm:$0xf]
      %v2656 = vld [vmem:[%s4 + $0x10] sm:$0xf]
      %v2657 = vld [vmem:[%s4 + $0x14] sm:$0xf]
      %v2658 = vld [vmem:[%s4 + $0x18] sm:$0xf]
      %v2659 = vld [vmem:[%s4 + $0x1c] sm:$0xf]
      %v2660 = vld [vmem:[%s4 + $0x20] sm:$0xf]
      %v2661 = vld [vmem:[%s4 + $0x24] sm:$0xf]
      %v2662 = vld [vmem:[%s4 + $0x28] sm:$0xf]
      %v2663 = vld [vmem:[%s4 + $0x2c] sm:$0xf]
      %v2664 = vld [vmem:[%s4 + $0x30] sm:$0xf]
      %v2665 = vld [vmem:[%s4 + $0x34] sm:$0xf]
      %v2666 = vld [vmem:[%s4 + $0x38] sm:$0xf]
      %v2667 = vld [vmem:[%s4 + $0x3c] sm:$0xf]
      %v2668 = vld [vmem:[%s4 + $0x40] sm:$0xf]
      %v2669 = vld [vmem:[%s4 + $0x44] sm:$0xf]
      %v2670 = vld [vmem:[%s4 + $0x48] sm:$0xf]
      %v2671 = vld [vmem:[%s4 + $0x4c] sm:$0xf]
      %v2672 = vld [vmem:[%s4 + $0x50] sm:$0xf]
      %v2673 = vld [vmem:[%s4 + $0x54] sm:$0xf]
      %v2674 = vld [vmem:[%s4 + $0x58] sm:$0xf]
      %v2675 = vld [vmem:[%s4 + $0x5c] sm:$0xf]
      %v2676 = vld [vmem:[%s4 + $0x60] sm:$0xf]
      %v2677 = vld [vmem:[%s4 + $0x64] sm:$0xf]
      %v2678 = vld [vmem:[%s4 + $0x68] sm:$0xf]
      %v2679 = vld [vmem:[%s4 + $0x6c] sm:$0xf]
      %v2680 = vld [vmem:[%s4 + $0x70] sm:$0xf]
      %v2681 = vld [vmem:[%s4 + $0x74] sm:$0xf]
      %v2682 = vld [vmem:[%s4 + $0x78] sm:$0xf]
      %v2683 = vld [vmem:[%s4 + $0x7c] sm:$0xf]
      %v2684 = vld [vmem:[%s4 + $0x80] sm:$0xf]
      %v2685 = vld [vmem:[%s4 + $0x84] sm:$0xf]
      %v2686 = vld [vmem:[%s4 + $0x88] sm:$0xf]
      %v2687 = vld [vmem:[%s4 + $0x8c] sm:$0xf]
      %v2688 = vld [vmem:[%s4 + $0x90] sm:$0xf]
      %v2689 = vld [vmem:[%s4 + $0x94] sm:$0xf]
      %v2690 = vld [vmem:[%s4 + $0x98] sm:$0xf]
      %v2691 = vld [vmem:[%s4 + $0x9c] sm:$0xf]
      %v2692 = vld [vmem:[%s4 + $0xa0] sm:$0xf]
      %v2693 = vld [vmem:[%s4 + $0xa4] sm:$0xf]
      %v2694 = vld [vmem:[%s4 + $0xa8] sm:$0xf]
      %v2695 = vld [vmem:[%s4 + $0xac] sm:$0xf]
      %v2696 = vld [vmem:[%s4 + $0xb0] sm:$0xf]
      %v2697 = vld [vmem:[%s4 + $0xb4] sm:$0xf]
      %v2698 = vld [vmem:[%s4 + $0xb8] sm:$0xf]
      %v2699 = vld [vmem:[%s4 + $0xbc] sm:$0xf]
      %v2700 = vld [vmem:[%s4 + $0xc0] sm:$0xf]
      %v2701 = vld [vmem:[%s4 + $0xc4] sm:$0xf]
      %v2702 = vld [vmem:[%s4 + $0xc8] sm:$0xf]
      %v2703 = vld [vmem:[%s4 + $0xcc] sm:$0xf]
      %v2704 = vld [vmem:[%s4 + $0xd0] sm:$0xf]
      %v2705 = vld [vmem:[%s4 + $0xd4] sm:$0xf]
      %v2706 = vld [vmem:[%s4 + $0xd8] sm:$0xf]
      %v2707 = vld [vmem:[%s4 + $0xdc] sm:$0xf]
      %v2708 = vld [vmem:[%s4 + $0xe0] sm:$0xf]
      %v2709 = vld [vmem:[%s4 + $0xe4] sm:$0xf]
      %v2710 = vld [vmem:[%s4 + $0xe8] sm:$0xf]
      %v2711 = vld [vmem:[%s4 + $0xec] sm:$0xf]
      %v2712 = vld [vmem:[%s4 + $0xf0] sm:$0xf]
      %v2713 = vld [vmem:[%s4 + $0xf4] sm:$0xf]
      %v2714 = vld [vmem:[%s4 + $0xf8] sm:$0xf]
      %v2715 = vld [vmem:[%s4 + $0xfc] sm:$0xf]
      %v2716 = vld [vmem:[%s5] sm:$0x1]
      %v2718 = vlaneseq
      %v2719 = vshrl.u32 %v2718, 7
      %v2720 = vsub.s32 0, %v2719
      %v2721 = vrot.slane %v2716, %v2720
      %v2787 = vunpack.c.l.b16 %v2652
      %v2788 = vunpack.c.l.b16 %v2653
      %v2789 = vunpack.c.l.b16 %v2654
      %v2790 = vunpack.c.l.b16 %v2655
      %v2791 = vunpack.c.l.b16 %v2656
      %v2792 = vunpack.c.l.b16 %v2657
      %v2793 = vunpack.c.l.b16 %v2658
      %v2794 = vunpack.c.l.b16 %v2659
      %v2795 = vunpack.c.l.b16 %v2660
      %v2796 = vunpack.c.l.b16 %v2661
      %v2797 = vunpack.c.l.b16 %v2662
      %v2798 = vunpack.c.l.b16 %v2663
      %v2799 = vunpack.c.l.b16 %v2664
      %v2800 = vunpack.c.l.b16 %v2665
      %v2801 = vunpack.c.l.b16 %v2666
      %v2802 = vunpack.c.l.b16 %v2667
      %v2803 = vunpack.c.l.b16 %v2668
      %v2804 = vunpack.c.l.b16 %v2669
      %v2805 = vunpack.c.l.b16 %v2670
      %v2806 = vunpack.c.l.b16 %v2671
      %v2807 = vunpack.c.l.b16 %v2672
      %v2808 = vunpack.c.l.b16 %v2673
      %v2809 = vunpack.c.l.b16 %v2674
      %v2810 = vunpack.c.l.b16 %v2675
      %v2811 = vunpack.c.l.b16 %v2676
      %v2812 = vunpack.c.l.b16 %v2677
      %v2813 = vunpack.c.l.b16 %v2678
      %v2814 = vunpack.c.l.b16 %v2679
      %v2815 = vunpack.c.l.b16 %v2680
      %v2816 = vunpack.c.l.b16 %v2681
      %v2817 = vunpack.c.l.b16 %v2682
      %v2818 = vunpack.c.l.b16 %v2683
      %v2819 = vunpack.c.l.b16 %v2684
      %v2820 = vunpack.c.l.b16 %v2685
      %v2821 = vunpack.c.l.b16 %v2686
      %v2822 = vunpack.c.l.b16 %v2687
      %v2823 = vunpack.c.l.b16 %v2688
      %v2824 = vunpack.c.l.b16 %v2689
      %v2825 = vunpack.c.l.b16 %v2690
      %v2826 = vunpack.c.l.b16 %v2691
      %v2827 = vunpack.c.l.b16 %v2692
      %v2828 = vunpack.c.l.b16 %v2693
      %v2829 = vunpack.c.l.b16 %v2694
      %v2830 = vunpack.c.l.b16 %v2695
      %v2831 = vunpack.c.l.b16 %v2696
      %v2832 = vunpack.c.l.b16 %v2697
      %v2833 = vunpack.c.l.b16 %v2698
      %v2834 = vunpack.c.l.b16 %v2699
      %v2835 = vunpack.c.l.b16 %v2700
      %v2836 = vunpack.c.l.b16 %v2701
      %v2837 = vunpack.c.l.b16 %v2702
      %v2838 = vunpack.c.l.b16 %v2703
      %v2839 = vunpack.c.l.b16 %v2704
      %v2840 = vunpack.c.l.b16 %v2705
      %v2841 = vunpack.c.l.b16 %v2706
      %v2842 = vunpack.c.l.b16 %v2707
      %v2843 = vunpack.c.l.b16 %v2708
      %v2844 = vunpack.c.l.b16 %v2709
      %v2845 = vunpack.c.l.b16 %v2710
      %v2846 = vunpack.c.l.b16 %v2711
      %v2847 = vunpack.c.l.b16 %v2712
      %v2848 = vunpack.c.l.b16 %v2713
      %v2849 = vunpack.c.l.b16 %v2714
      %v2850 = vunpack.c.l.b16 %v2715
      %v2851 = vpack.c.b16 %v2788, %v2787
      %v2852 = vpack.c.b16 %v2790, %v2789
      %v2853 = vpack.c.b16 %v2792, %v2791
      %v2854 = vpack.c.b16 %v2794, %v2793
      %v2855 = vpack.c.b16 %v2796, %v2795
      %v2856 = vpack.c.b16 %v2798, %v2797
      %v2857 = vpack.c.b16 %v2800, %v2799
      %v2858 = vpack.c.b16 %v2802, %v2801
      %v2859 = vpack.c.b16 %v2804, %v2803
      %v2860 = vpack.c.b16 %v2806, %v2805
      %v2861 = vpack.c.b16 %v2808, %v2807
      %v2862 = vpack.c.b16 %v2810, %v2809
      %v2863 = vpack.c.b16 %v2812, %v2811
      %v2864 = vpack.c.b16 %v2814, %v2813
      %v2865 = vpack.c.b16 %v2816, %v2815
      %v2866 = vpack.c.b16 %v2818, %v2817
      %v2867 = vpack.c.b16 %v2820, %v2819
      %v2868 = vpack.c.b16 %v2822, %v2821
      %v2869 = vpack.c.b16 %v2824, %v2823
      %v2870 = vpack.c.b16 %v2826, %v2825
      %v2871 = vpack.c.b16 %v2828, %v2827
      %v2872 = vpack.c.b16 %v2830, %v2829
      %v2873 = vpack.c.b16 %v2832, %v2831
      %v2874 = vpack.c.b16 %v2834, %v2833
      %v2875 = vpack.c.b16 %v2836, %v2835
      %v2876 = vpack.c.b16 %v2838, %v2837
      %v2877 = vpack.c.b16 %v2840, %v2839
      %v2878 = vpack.c.b16 %v2842, %v2841
      %v2879 = vpack.c.b16 %v2844, %v2843
      %v2880 = vpack.c.b16 %v2846, %v2845
      %v2881 = vpack.c.b16 %v2848, %v2847
      %v2882 = vpack.c.b16 %v2850, %v2849
      %2915 = vmatprep.subr.bf16.mxu0 0
      %2916 = vmatpush1.bf16.msra.mxu0 %v2851
      %2917 = vmatprep.subr.bf16.mxu0 0
      %2918 = vmatpush1.bf16.msra.mxu0 %v2852
      %2919 = vmatprep.subr.bf16.mxu0 0
      %2920 = vmatpush1.bf16.msra.mxu0 %v2853
      %2921 = vmatprep.subr.bf16.mxu0 0
      %2922 = vmatpush1.bf16.msra.mxu0 %v2854
      %2923 = vmatprep.subr.bf16.mxu0 0
      %2924 = vmatpush1.bf16.msra.mxu0 %v2855
      %2925 = vmatprep.subr.bf16.mxu0 0
      %2926 = vmatpush1.bf16.msra.mxu0 %v2856
      %2927 = vmatprep.subr.bf16.mxu0 0
      %2928 = vmatpush1.bf16.msra.mxu0 %v2857
      %2929 = vmatprep.subr.bf16.mxu0 0
      %2930 = vmatpush1.bf16.msra.mxu0 %v2858
      %2931 = vmatprep.subr.bf16.mxu0 0
      %2932 = vmatpush1.bf16.msra.mxu0 %v2859
      %2933 = vmatprep.subr.bf16.mxu0 0
      %2934 = vmatpush1.bf16.msra.mxu0 %v2860
      %2935 = vmatprep.subr.bf16.mxu0 0
      %2936 = vmatpush1.bf16.msra.mxu0 %v2861
      %2937 = vmatprep.subr.bf16.mxu0 0
      %2938 = vmatpush1.bf16.msra.mxu0 %v2862
      %2939 = vmatprep.subr.bf16.mxu0 0
      %2940 = vmatpush1.bf16.msra.mxu0 %v2863
      %2941 = vmatprep.subr.bf16.mxu0 0
      %2942 = vmatpush1.bf16.msra.mxu0 %v2864
      %2943 = vmatprep.subr.bf16.mxu0 0
      %2944 = vmatpush1.bf16.msra.mxu0 %v2865
      %2945 = vmatprep.subr.bf16.mxu0 0
      %2946 = vmatpush1.bf16.msra.mxu0 %v2866
      %2947 = vmatprep.mubr.bf16.mxu0 %v2637
      %2948 = vmatmul.mubr.bf16.gmra.mrb[0].mxu0 %v2636
      %v2949 = vpop.f32.mrb[0].mxu0
      %v2950 = vadd.f32 %v2721, %v2949
      %v2951 = vpop.f32.mrb[0].mxu0
      %v2952 = vpop.f32.mrb[0].mxu0
      %v2953 = vadd.f32 %v2721, %v2952
      %v2954 = vpop.f32.mrb[0].mxu0
      %2955 = vmatprep.mubr.bf16.mxu0 %v2641
      %2956 = vmatmul.mubr.bf16.gmra.mrb[0].mxu0 %v2640
      %v2957 = vpop.f32.mrb[0].mxu0
      %v2958 = vadd.f32 %v2721, %v2957
      %v2959 = vpop.f32.mrb[0].mxu0
      %v2960 = vpop.f32.mrb[0].mxu0
      %v2961 = vadd.f32 %v2721, %v2960
      %v2962 = vpop.f32.mrb[0].mxu0
      %2963 = vmatprep.mubr.bf16.mxu0 %v2645
      %2964 = vmatmul.mubr.bf16.gmra.mrb[0].mxu0 %v2644
      %v2965 = vpop.f32.mrb[0].mxu0
      %v2966 = vadd.f32 %v2721, %v2965
      %v2967 = vpop.f32.mrb[0].mxu0
      %v2968 = vpop.f32.mrb[0].mxu0
      %v2969 = vadd.f32 %v2721, %v2968
      %v2970 = vpop.f32.mrb[0].mxu0
      %2971 = vmatprep.mubr.bf16.mxu0 %v2649
      %2972 = vmatmul.mubr.bf16.gmra.mrb[0].mxu0 %v2648
      %v2973 = vpop.f32.mrb[0].mxu0
      %v2974 = vadd.f32 %v2721, %v2973
      %v2975 = vpop.f32.mrb[0].mxu0
      %v2976 = vpop.f32.mrb[0].mxu0
      %v2977 = vadd.f32 %v2721, %v2976
      %v2978 = vpop.f32.mrb[0].mxu0
      %2979 = vdwg.mxu0
      %2980 = vmatprep.subr.bf16.mxu0 0
      %2981 = vmatpush1.bf16.msra.mxu0 %v2867
      %2982 = vmatprep.subr.bf16.mxu0 0
      %2983 = vmatpush1.bf16.msra.mxu0 %v2868
      %2984 = vmatprep.subr.bf16.mxu0 0
      %2985 = vmatpush1.bf16.msra.mxu0 %v2869
      %2986 = vmatprep.subr.bf16.mxu0 0
      %2987 = vmatpush1.bf16.msra.mxu0 %v2870
      %2988 = vmatprep.subr.bf16.mxu0 0
      %2989 = vmatpush1.bf16.msra.mxu0 %v2871
      %2990 = vmatprep.subr.bf16.mxu0 0
      %2991 = vmatpush1.bf16.msra.mxu0 %v2872
      %2992 = vmatprep.subr.bf16.mxu0 0
      %2993 = vmatpush1.bf16.msra.mxu0 %v2873
      %2994 = vmatprep.subr.bf16.mxu0 0
      %2995 = vmatpush1.bf16.msra.mxu0 %v2874
      %2996 = vmatprep.subr.bf16.mxu0 0
      %2997 = vmatpush1.bf16.msra.mxu0 %v2875
      %2998 = vmatprep.subr.bf16.mxu0 0
      %2999 = vmatpush1.bf16.msra.mxu0 %v2876
      %3000 = vmatprep.subr.bf16.mxu0 0
      %3001 = vmatpush1.bf16.msra.mxu0 %v2877
      %3002 = vmatprep.subr.bf16.mxu0 0
      %3003 = vmatpush1.bf16.msra.mxu0 %v2878
      %3004 = vmatprep.subr.bf16.mxu0 0
      %3005 = vmatpush1.bf16.msra.mxu0 %v2879
      %3006 = vmatprep.subr.bf16.mxu0 0
      %3007 = vmatpush1.bf16.msra.mxu0 %v2880
      %3008 = vmatprep.subr.bf16.mxu0 0
      %3009 = vmatpush1.bf16.msra.mxu0 %v2881
      %3010 = vmatprep.subr.bf16.mxu0 0
      %3011 = vmatpush1.bf16.msra.mxu0 %v2882
      %3012 = vmatprep.mubr.bf16.mxu0 %v2639
      %3013 = vmatmul.mubr.bf16.gmra.mrb[0].mxu0 %v2638
      %v3014 = vpop.f32.mrb[0].mxu0
      %v3015 = vadd.f32 %v2950, %v3014
      %v3016 = vpop.f32.mrb[0].mxu0
      %v3017 = vpop.f32.mrb[0].mxu0
      %v3018 = vadd.f32 %v2953, %v3017
      %v3019 = vpop.f32.mrb[0].mxu0
      %3020 = vmatprep.mubr.bf16.mxu0 %v2643
      %3021 = vmatmul.mubr.bf16.gmra.mrb[0].mxu0 %v2642
      %v3022 = vpop.f32.mrb[0].mxu0
      %v3023 = vadd.f32 %v2958, %v3022
      %v3024 = vpop.f32.mrb[0].mxu0
      %v3025 = vpop.f32.mrb[0].mxu0
      %v3026 = vadd.f32 %v2961, %v3025
      %v3027 = vpop.f32.mrb[0].mxu0
      %3028 = vmatprep.mubr.bf16.mxu0 %v2647
      %3029 = vmatmul.mubr.bf16.gmra.mrb[0].mxu0 %v2646
      %v3030 = vpop.f32.mrb[0].mxu0
      %v3031 = vadd.f32 %v2966, %v3030
      %v3032 = vpop.f32.mrb[0].mxu0
      %v3033 = vpop.f32.mrb[0].mxu0
      %v3034 = vadd.f32 %v2969, %v3033
      %v3035 = vpop.f32.mrb[0].mxu0
      %3036 = vmatprep.mubr.bf16.mxu0 %v2651
      %3037 = vmatmul.mubr.bf16.gmra.mrb[0].mxu0 %v2650
      %v3038 = vpop.f32.mrb[0].mxu0
      %v3039 = vadd.f32 %v2974, %v3038
      %v3040 = vpop.f32.mrb[0].mxu0
      %v3041 = vpop.f32.mrb[0].mxu0
      %v3042 = vadd.f32 %v2977, %v3041
      %v3043 = vpop.f32.mrb[0].mxu0
      %3044 = vdwg.mxu0
      %vm3045 = vcmask 523264
      %v3046 = vsel %vm3045, %v3015, 0.0
      %v3047 = vsel %vm3045, %v3018, 0.0
      %v3048 = vadd.f32 %v3046, %v3047
      %v3049 = vsel %vm3045, %v3023, 0.0
      %v3050 = vadd.f32 %v3048, %v3049
      %v3051 = vsel %vm3045, %v3026, 0.0
      %v3052 = vadd.f32 %v3050, %v3051
      %v3053 = vsel %vm3045, %v3031, 0.0
      %v3054 = vadd.f32 %v3052, %v3053
      %v3055 = vsel %vm3045, %v3034, 0.0
      %v3056 = vadd.f32 %v3054, %v3055
      %v3057 = vsel %vm3045, %v3039, 0.0
      %v3058 = vadd.f32 %v3056, %v3057
      %v3059 = vsel %vm3045, %v3042, 0.0
      %v3060 = vadd.f32 %v3058, %v3059
      %v3061 = vrot.slane %v3060, 4
      %v3062 = vadd.f32 %v3060, %v3061
      %v3063 = vrot.slane %v3062, 2
      %v3064 = vadd.f32 %v3062, %v3063
      %v3065 = vrot.slane %v3064, 1
      %v3066 = vadd.f32 %v3064, %v3065
      %v3067 = vmul.f32 %v3066, 0.015625
      %v3068 = vmul.f32 %v3015, %v3015
      %v3069 = vmul.f32 %v3018, %v3018
      %v3070 = vmul.f32 %v3023, %v3023
      %v3071 = vmul.f32 %v3026, %v3026
      %v3072 = vmul.f32 %v3031, %v3031
      %v3073 = vmul.f32 %v3034, %v3034
      %v3074 = vmul.f32 %v3039, %v3039
      %v3075 = vmul.f32 %v3042, %v3042
      %v3076 = vsel %vm3045, %v3068, 0.0
      %v3077 = vsel %vm3045, %v3069, 0.0
      %v3078 = vadd.f32 %v3076, %v3077
      %v3079 = vsel %vm3045, %v3070, 0.0
      %v3080 = vadd.f32 %v3078, %v3079
      %v3081 = vsel %vm3045, %v3071, 0.0
      %v3082 = vadd.f32 %v3080, %v3081
      %v3083 = vsel %vm3045, %v3072, 0.0
      %v3084 = vadd.f32 %v3082, %v3083
      %v3085 = vsel %vm3045, %v3073, 0.0
      %v3086 = vadd.f32 %v3084, %v3085
      %v3087 = vsel %vm3045, %v3074, 0.0
      %v3088 = vadd.f32 %v3086, %v3087
      %v3089 = vsel %vm3045, %v3075, 0.0
      %v3090 = vadd.f32 %v3088, %v3089
      %v3091 = vrot.slane %v3090, 4
      %v3092 = vadd.f32 %v3090, %v3091
      %v3093 = vrot.slane %v3092, 2
      %v3094 = vadd.f32 %v3092, %v3093
      %v3095 = vrot.slane %v3094, 1
      %v3096 = vadd.f32 %v3094, %v3095
      %v3097 = vmul.f32 %v3096, 0.015625
      %v3098 = vmul.f32 %v3067, %v3067
      %v3099 = vsub.f32 %v3097, %v3098
      %v3100 = vmax.f32 %v3099, 0.0
      %v3101 = vsub.f32 %v3015, %v3067
      %v3102 = vsub.f32 %v3018, %v3067
      %v3103 = vsub.f32 %v3023, %v3067
      %v3104 = vsub.f32 %v3026, %v3067
      %v3105 = vsub.f32 %v3031, %v3067
      %v3106 = vsub.f32 %v3034, %v3067
      %v3107 = vsub.f32 %v3039, %v3067
      %v3108 = vsub.f32 %v3042, %v3067
      %v3109 = vadd.f32 %v3100, 1e-05
      %v3110 = vrsqrt.pop %v3109
      %v3111 = vmul.f32 %v3101, %v3110
      %v3112 = vmul.f32 %v3102, %v3110
      %v3113 = vmul.f32 %v3103, %v3110
      %v3114 = vmul.f32 %v3104, %v3110
      %v3115 = vmul.f32 %v3105, %v3110
      %v3116 = vmul.f32 %v3106, %v3110
      %v3117 = vmul.f32 %v3107, %v3110
      %v3118 = vmul.f32 %v3108, %v3110
      %v3119 = vmul.f32 %v3111, 0.2
      %v3120 = vmul.f32 %v3112, 0.2
      %v3121 = vmul.f32 %v3113, 0.2
      %v3122 = vmul.f32 %v3114, 0.2
      %v3123 = vmul.f32 %v3115, 0.2
      %v3124 = vmul.f32 %v3116, 0.2
      %v3125 = vmul.f32 %v3117, 0.2
      %v3126 = vmul.f32 %v3118, 0.2
      %v3127 = vmax.f32 %v3111, %v3119
      %v3128 = vmax.f32 %v3112, %v3120
      %v3129 = vmax.f32 %v3113, %v3121
      %v3130 = vmax.f32 %v3114, %v3122
      %v3131 = vmax.f32 %v3115, %v3123
      %v3132 = vmax.f32 %v3116, %v3124
      %v3133 = vmax.f32 %v3117, %v3125
      %v3134 = vmax.f32 %v3118, %v3126
      %v3135 = vpack.c.bf16 %v3128, %v3127
      %v3136 = vpack.c.bf16 %v3130, %v3129
      %v3137 = vpack.c.bf16 %v3132, %v3131
      %v3138 = vpack.c.bf16 %v3134, %v3133
      %v3139 = vld [vmem:[%s6] sm:$0xf]
      %v3140 = vld [vmem:[%s6 + $0x4] sm:$0xf]
      %v3141 = vld [vmem:[%s6 + $0x8] sm:$0xf]
      %v3142 = vld [vmem:[%s6 + $0xc] sm:$0xf]
      %v3143 = vld [vmem:[%s6 + $0x10] sm:$0xf]
      %v3144 = vld [vmem:[%s6 + $0x14] sm:$0xf]
      %v3145 = vld [vmem:[%s6 + $0x18] sm:$0xf]
      %v3146 = vld [vmem:[%s6 + $0x1c] sm:$0xf]
      %v3147 = vld [vmem:[%s6 + $0x20] sm:$0xf]
      %v3148 = vld [vmem:[%s6 + $0x24] sm:$0xf]
      %v3149 = vld [vmem:[%s6 + $0x28] sm:$0xf]
      %v3150 = vld [vmem:[%s6 + $0x2c] sm:$0xf]
      %v3151 = vld [vmem:[%s6 + $0x30] sm:$0xf]
      %v3152 = vld [vmem:[%s6 + $0x34] sm:$0xf]
      %v3153 = vld [vmem:[%s6 + $0x38] sm:$0xf]
      %v3154 = vld [vmem:[%s6 + $0x3c] sm:$0xf]
      %v3155 = vld [vmem:[%s6 + $0x40] sm:$0xf]
      %v3156 = vld [vmem:[%s6 + $0x44] sm:$0xf]
      %v3157 = vld [vmem:[%s6 + $0x48] sm:$0xf]
      %v3158 = vld [vmem:[%s6 + $0x4c] sm:$0xf]
      %v3159 = vld [vmem:[%s6 + $0x50] sm:$0xf]
      %v3160 = vld [vmem:[%s6 + $0x54] sm:$0xf]
      %v3161 = vld [vmem:[%s6 + $0x58] sm:$0xf]
      %v3162 = vld [vmem:[%s6 + $0x5c] sm:$0xf]
      %v3163 = vld [vmem:[%s6 + $0x60] sm:$0xf]
      %v3164 = vld [vmem:[%s6 + $0x64] sm:$0xf]
      %v3165 = vld [vmem:[%s6 + $0x68] sm:$0xf]
      %v3166 = vld [vmem:[%s6 + $0x6c] sm:$0xf]
      %v3167 = vld [vmem:[%s6 + $0x70] sm:$0xf]
      %v3168 = vld [vmem:[%s6 + $0x74] sm:$0xf]
      %v3169 = vld [vmem:[%s6 + $0x78] sm:$0xf]
      %v3170 = vld [vmem:[%s6 + $0x7c] sm:$0xf]
      %v3203 = vunpack.c.l.b16 %v3139
      %v3204 = vunpack.c.l.b16 %v3140
      %v3205 = vunpack.c.l.b16 %v3141
      %v3206 = vunpack.c.l.b16 %v3142
      %v3207 = vunpack.c.l.b16 %v3143
      %v3208 = vunpack.c.l.b16 %v3144
      %v3209 = vunpack.c.l.b16 %v3145
      %v3210 = vunpack.c.l.b16 %v3146
      %v3211 = vunpack.c.l.b16 %v3147
      %v3212 = vunpack.c.l.b16 %v3148
      %v3213 = vunpack.c.l.b16 %v3149
      %v3214 = vunpack.c.l.b16 %v3150
      %v3215 = vunpack.c.l.b16 %v3151
      %v3216 = vunpack.c.l.b16 %v3152
      %v3217 = vunpack.c.l.b16 %v3153
      %v3218 = vunpack.c.l.b16 %v3154
      %v3219 = vunpack.c.l.b16 %v3155
      %v3220 = vunpack.c.l.b16 %v3156
      %v3221 = vunpack.c.l.b16 %v3157
      %v3222 = vunpack.c.l.b16 %v3158
      %v3223 = vunpack.c.l.b16 %v3159
      %v3224 = vunpack.c.l.b16 %v3160
      %v3225 = vunpack.c.l.b16 %v3161
      %v3226 = vunpack.c.l.b16 %v3162
      %v3227 = vunpack.c.l.b16 %v3163
      %v3228 = vunpack.c.l.b16 %v3164
      %v3229 = vunpack.c.l.b16 %v3165
      %v3230 = vunpack.c.l.b16 %v3166
      %v3231 = vunpack.c.l.b16 %v3167
      %v3232 = vunpack.c.l.b16 %v3168
      %v3233 = vunpack.c.l.b16 %v3169
      %v3234 = vunpack.c.l.b16 %v3170
      %v3235 = vpack.c.b16 %v3204, %v3203
      %v3236 = vpack.c.b16 %v3206, %v3205
      %v3237 = vpack.c.b16 %v3208, %v3207
      %v3238 = vpack.c.b16 %v3210, %v3209
      %v3239 = vpack.c.b16 %v3212, %v3211
      %v3240 = vpack.c.b16 %v3214, %v3213
      %v3241 = vpack.c.b16 %v3216, %v3215
      %v3242 = vpack.c.b16 %v3218, %v3217
      %v3243 = vpack.c.b16 %v3220, %v3219
      %v3244 = vpack.c.b16 %v3222, %v3221
      %v3245 = vpack.c.b16 %v3224, %v3223
      %v3246 = vpack.c.b16 %v3226, %v3225
      %v3247 = vpack.c.b16 %v3228, %v3227
      %v3248 = vpack.c.b16 %v3230, %v3229
      %v3249 = vpack.c.b16 %v3232, %v3231
      %v3250 = vpack.c.b16 %v3234, %v3233
      %v3252 = vsel %vm3045, %v3235, 0
      %v3255 = vsel %vm3045, %v3236, 0
      %v3258 = vsel %vm3045, %v3237, 0
      %v3261 = vsel %vm3045, %v3238, 0
      %v3264 = vsel %vm3045, %v3239, 0
      %v3267 = vsel %vm3045, %v3240, 0
      %v3270 = vsel %vm3045, %v3241, 0
      %v3273 = vsel %vm3045, %v3242, 0
      %v3276 = vsel %vm3045, %v3243, 0
      %v3279 = vsel %vm3045, %v3244, 0
      %v3282 = vsel %vm3045, %v3245, 0
      %v3285 = vsel %vm3045, %v3246, 0
      %v3288 = vsel %vm3045, %v3247, 0
      %v3291 = vsel %vm3045, %v3248, 0
      %v3294 = vsel %vm3045, %v3249, 0
      %v3297 = vsel %vm3045, %v3250, 0
      %3299 = vmatprep.subr.bf16.mxu0 0
      %3300 = vmatpush1.bf16.msra.mxu0 %v3135
      %3301 = vmatprep.subr.bf16.mxu0 0
      %3302 = vmatpush1.bf16.msra.mxu0 %v3136
      %3303 = vmatprep.subr.bf16.mxu0 0
      %3304 = vmatpush1.bf16.msra.mxu0 %v3137
      %3305 = vmatprep.subr.bf16.mxu0 0
      %3306 = vmatpush1.bf16.msra.mxu0 %v3138
      %3307 = vmatprep.subr.bf16.mxu0 0
      %3308 = vmatpush1.bf16.msra.mxu0 0
      %3309 = vmatprep.subr.bf16.mxu0 0
      %3310 = vmatpush1.bf16.msra.mxu0 0
      %3311 = vmatprep.subr.bf16.mxu0 0
      %3312 = vmatpush1.bf16.msra.mxu0 0
      %3313 = vmatprep.subr.bf16.mxu0 0
      %3314 = vmatpush1.bf16.msra.mxu0 0
      %3315 = vmatprep.subr.bf16.mxu0 0
      %3316 = vmatpush1.bf16.msra.mxu0 0
      %3317 = vmatprep.subr.bf16.mxu0 0
      %3318 = vmatpush1.bf16.msra.mxu0 0
      %3319 = vmatprep.subr.bf16.mxu0 0
      %3320 = vmatpush1.bf16.msra.mxu0 0
      %3321 = vmatprep.subr.bf16.mxu0 0
      %3322 = vmatpush1.bf16.msra.mxu0 0
      %3323 = vmatprep.subr.bf16.mxu0 0
      %3324 = vmatpush1.bf16.msra.mxu0 0
      %3325 = vmatprep.subr.bf16.mxu0 0
      %3326 = vmatpush1.bf16.msra.mxu0 0
      %3327 = vmatprep.subr.bf16.mxu0 0
      %3328 = vmatpush1.bf16.msra.mxu0 0
      %3329 = vmatprep.subr.bf16.mxu0 0
      %3330 = vmatpush1.bf16.msra.mxu0 0
      %3331 = vmatprep.mubr.bf16.mxu0 0
      %3332 = vmatmul.mubr.bf16.gmra.mrb[0].mxu0 %v3252
      %v3333 = vpop.f32.mrb[0].mxu0
      %v3334 = vadd.f32 0.0, %v3333
      %v3335 = vpop.f32.mrb[0].mxu0
      %v3336 = vpop.f32.mrb[0].mxu0
      %v3337 = vadd.f32 0.0, %v3336
      %v3338 = vpop.f32.mrb[0].mxu0
      %3339 = vmatprep.mubr.bf16.mxu0 0
      %3340 = vmatmul.mubr.bf16.gmra.mrb[0].mxu0 %v3255
      %v3341 = vpop.f32.mrb[0].mxu0
      %v3342 = vadd.f32 0.0, %v3341
      %v3343 = vpop.f32.mrb[0].mxu0
      %v3344 = vpop.f32.mrb[0].mxu0
      %v3345 = vadd.f32 0.0, %v3344
      %v3346 = vpop.f32.mrb[0].mxu0
      %3347 = vmatprep.mubr.bf16.mxu0 0
      %3348 = vmatmul.mubr.bf16.gmra.mrb[0].mxu0 %v3258
      %v3349 = vpop.f32.mrb[0].mxu0
      %v3350 = vadd.f32 0.0, %v3349
      %v3351 = vpop.f32.mrb[0].mxu0
      %v3352 = vpop.f32.mrb[0].mxu0
      %v3353 = vadd.f32 0.0, %v3352
      %v3354 = vpop.f32.mrb[0].mxu0
      %3355 = vmatprep.mubr.bf16.mxu0 0
      %3356 = vmatmul.mubr.bf16.gmra.mrb[0].mxu0 %v3261
      %v3357 = vpop.f32.mrb[0].mxu0
      %v3358 = vadd.f32 0.0, %v3357
      %v3359 = vpop.f32.mrb[0].mxu0
      %v3360 = vpop.f32.mrb[0].mxu0
      %v3361 = vadd.f32 0.0, %v3360
      %v3362 = vpop.f32.mrb[0].mxu0
      %3363 = vmatprep.mubr.bf16.mxu0 0
      %3364 = vmatmul.mubr.bf16.gmra.mrb[0].mxu0 %v3264
      %v3365 = vpop.f32.mrb[0].mxu0
      %v3366 = vadd.f32 0.0, %v3365
      %v3367 = vpop.f32.mrb[0].mxu0
      %v3368 = vpop.f32.mrb[0].mxu0
      %v3369 = vadd.f32 0.0, %v3368
      %v3370 = vpop.f32.mrb[0].mxu0
      %3371 = vmatprep.mubr.bf16.mxu0 0
      %3372 = vmatmul.mubr.bf16.gmra.mrb[0].mxu0 %v3267
      %v3373 = vpop.f32.mrb[0].mxu0
      %v3374 = vadd.f32 0.0, %v3373
      %v3375 = vpop.f32.mrb[0].mxu0
      %v3376 = vpop.f32.mrb[0].mxu0
      %v3377 = vadd.f32 0.0, %v3376
      %v3378 = vpop.f32.mrb[0].mxu0
      %3379 = vmatprep.mubr.bf16.mxu0 0
      %3380 = vmatmul.mubr.bf16.gmra.mrb[0].mxu0 %v3270
      %v3381 = vpop.f32.mrb[0].mxu0
      %v3382 = vadd.f32 0.0, %v3381
      %v3383 = vpop.f32.mrb[0].mxu0
      %v3384 = vpop.f32.mrb[0].mxu0
      %v3385 = vadd.f32 0.0, %v3384
      %v3386 = vpop.f32.mrb[0].mxu0
      %3387 = vmatprep.mubr.bf16.mxu0 0
      %3388 = vmatmul.mubr.bf16.gmra.mrb[0].mxu0 %v3273
      %v3389 = vpop.f32.mrb[0].mxu0
      %v3390 = vadd.f32 0.0, %v3389
      %v3391 = vpop.f32.mrb[0].mxu0
      %v3392 = vpop.f32.mrb[0].mxu0
      %v3393 = vadd.f32 0.0, %v3392
      %v3394 = vpop.f32.mrb[0].mxu0
      %3395 = vmatprep.mubr.bf16.mxu0 0
      %3396 = vmatmul.mubr.bf16.gmra.mrb[0].mxu0 %v3276
      %v3397 = vpop.f32.mrb[0].mxu0
      %v3398 = vadd.f32 0.0, %v3397
      %v3399 = vpop.f32.mrb[0].mxu0
      %v3400 = vpop.f32.mrb[0].mxu0
      %v3401 = vadd.f32 0.0, %v3400
      %v3402 = vpop.f32.mrb[0].mxu0
      %3403 = vmatprep.mubr.bf16.mxu0 0
      %3404 = vmatmul.mubr.bf16.gmra.mrb[0].mxu0 %v3279
      %v3405 = vpop.f32.mrb[0].mxu0
      %v3406 = vadd.f32 0.0, %v3405
      %v3407 = vpop.f32.mrb[0].mxu0
      %v3408 = vpop.f32.mrb[0].mxu0
      %v3409 = vadd.f32 0.0, %v3408
      %v3410 = vpop.f32.mrb[0].mxu0
      %3411 = vmatprep.mubr.bf16.mxu0 0
      %3412 = vmatmul.mubr.bf16.gmra.mrb[0].mxu0 %v3282
      %v3413 = vpop.f32.mrb[0].mxu0
      %v3414 = vadd.f32 0.0, %v3413
      %v3415 = vpop.f32.mrb[0].mxu0
      %v3416 = vpop.f32.mrb[0].mxu0
      %v3417 = vadd.f32 0.0, %v3416
      %v3418 = vpop.f32.mrb[0].mxu0
      %3419 = vmatprep.mubr.bf16.mxu0 0
      %3420 = vmatmul.mubr.bf16.gmra.mrb[0].mxu0 %v3285
      %v3421 = vpop.f32.mrb[0].mxu0
      %v3422 = vadd.f32 0.0, %v3421
      %v3423 = vpop.f32.mrb[0].mxu0
      %v3424 = vpop.f32.mrb[0].mxu0
      %v3425 = vadd.f32 0.0, %v3424
      %v3426 = vpop.f32.mrb[0].mxu0
      %3427 = vmatprep.mubr.bf16.mxu0 0
      %3428 = vmatmul.mubr.bf16.gmra.mrb[0].mxu0 %v3288
      %v3429 = vpop.f32.mrb[0].mxu0
      %v3430 = vadd.f32 0.0, %v3429
      %v3431 = vpop.f32.mrb[0].mxu0
      %v3432 = vpop.f32.mrb[0].mxu0
      %v3433 = vadd.f32 0.0, %v3432
      %v3434 = vpop.f32.mrb[0].mxu0
      %3435 = vmatprep.mubr.bf16.mxu0 0
      %3436 = vmatmul.mubr.bf16.gmra.mrb[0].mxu0 %v3291
      %v3437 = vpop.f32.mrb[0].mxu0
      %v3438 = vadd.f32 0.0, %v3437
      %v3439 = vpop.f32.mrb[0].mxu0
      %v3440 = vpop.f32.mrb[0].mxu0
      %v3441 = vadd.f32 0.0, %v3440
      %v3442 = vpop.f32.mrb[0].mxu0
      %3443 = vmatprep.mubr.bf16.mxu0 0
      %3444 = vmatmul.mubr.bf16.gmra.mrb[0].mxu0 %v3294
      %v3445 = vpop.f32.mrb[0].mxu0
      %v3446 = vadd.f32 0.0, %v3445
      %v3447 = vpop.f32.mrb[0].mxu0
      %v3448 = vpop.f32.mrb[0].mxu0
      %v3449 = vadd.f32 0.0, %v3448
      %v3450 = vpop.f32.mrb[0].mxu0
      %3451 = vmatprep.mubr.bf16.mxu0 0
      %3452 = vmatmul.mubr.bf16.gmra.mrb[0].mxu0 %v3297
      %v3453 = vpop.f32.mrb[0].mxu0
      %v3454 = vadd.f32 0.0, %v3453
      %v3455 = vpop.f32.mrb[0].mxu0
      %v3456 = vpop.f32.mrb[0].mxu0
      %v3457 = vadd.f32 0.0, %v3456
      %v3458 = vpop.f32.mrb[0].mxu0
      %3459 = vdwg.mxu0
      %v3460 = vpack.c.bf16 %v3337, %v3334
      %v3461 = vpack.c.bf16 %v3345, %v3342
      %v3462 = vpack.c.bf16 %v3353, %v3350
      %v3463 = vpack.c.bf16 %v3361, %v3358
      %v3464 = vpack.c.bf16 %v3369, %v3366
      %v3465 = vpack.c.bf16 %v3377, %v3374
      %v3466 = vpack.c.bf16 %v3385, %v3382
      %v3467 = vpack.c.bf16 %v3393, %v3390
      %v3468 = vpack.c.bf16 %v3401, %v3398
      %v3469 = vpack.c.bf16 %v3409, %v3406
      %v3470 = vpack.c.bf16 %v3417, %v3414
      %v3471 = vpack.c.bf16 %v3425, %v3422
      %v3472 = vpack.c.bf16 %v3433, %v3430
      %v3473 = vpack.c.bf16 %v3441, %v3438
      %v3474 = vpack.c.bf16 %v3449, %v3446
      %v3475 = vpack.c.bf16 %v3457, %v3454
      %3476 = vst.msk [vmem:[#allocation4] sm:$0xff] %vm3045, %v3460
      %3477 = vst.msk [vmem:[#allocation4 + $0x8] sm:$0xff] %vm3045, %v3461
      %3478 = vst.msk [vmem:[#allocation4 + $0x10] sm:$0xff] %vm3045, %v3462
      %3479 = vst.msk [vmem:[#allocation4 + $0x18] sm:$0xff] %vm3045, %v3463
      %3480 = vst.msk [vmem:[#allocation4 + $0x20] sm:$0xff] %vm3045, %v3464
      %3481 = vst.msk [vmem:[#allocation4 + $0x28] sm:$0xff] %vm3045, %v3465
      %3482 = vst.msk [vmem:[#allocation4 + $0x30] sm:$0xff] %vm3045, %v3466
      %3483 = vst.msk [vmem:[#allocation4 + $0x38] sm:$0xff] %vm3045, %v3467
      %3484 = vst.msk [vmem:[#allocation4 + $0x40] sm:$0xff] %vm3045, %v3468
      %3485 = vst.msk [vmem:[#allocation4 + $0x48] sm:$0xff] %vm3045, %v3469
      %3486 = vst.msk [vmem:[#allocation4 + $0x50] sm:$0xff] %vm3045, %v3470
      %3487 = vst.msk [vmem:[#allocation4 + $0x58] sm:$0xff] %vm3045, %v3471
      %3488 = vst.msk [vmem:[#allocation4 + $0x60] sm:$0xff] %vm3045, %v3472
      %3489 = vst.msk [vmem:[#allocation4 + $0x68] sm:$0xff] %vm3045, %v3473
      %3490 = vst.msk [vmem:[#allocation4 + $0x70] sm:$0xff] %vm3045, %v3474
      %3491 = vst.msk [vmem:[#allocation4 + $0x78] sm:$0xff] %vm3045, %v3475
      %v3492 = vld [vmem:[#allocation4] sm:$0xff]
      %3493 = vst.msk [vmem:[#allocation5] sm:$0xff] %vm3045, %v3492
      %v3494 = vld [vmem:[#allocation4 + $0x8] sm:$0xff]
      %3496 = vrot.lane.b32.xlu0 %v3494, 64
      %v3497 = vpop.permute.xlu0 %3496
      %vm3499 = vcmask 1048064
      %3500 = vst.msk [vmem:[#allocation5] sm:$0xff] %vm3499, %v3497
      %v3501 = vld [vmem:[#allocation4 + $0x10] sm:$0xff]
      %3502 = vst.msk [vmem:[#allocation5 + $0x8] sm:$0xff] %vm3045, %v3501
      %v3503 = vld [vmem:[#allocation4 + $0x18] sm:$0xff]
      %3505 = vrot.lane.b32.xlu0 %v3503, 64
      %v3506 = vpop.permute.xlu0 %3505
      %3508 = vst.msk [vmem:[#allocation5 + $0x8] sm:$0xff] %vm3499, %v3506
      %v3509 = vld [vmem:[#allocation4 + $0x20] sm:$0xff]
      %3510 = vst.msk [vmem:[#allocation5 + $0x10] sm:$0xff] %vm3045, %v3509
      %v3511 = vld [vmem:[#allocation4 + $0x28] sm:$0xff]
      %3513 = vrot.lane.b32.xlu0 %v3511, 64
      %v3514 = vpop.permute.xlu0 %3513
      %3516 = vst.msk [vmem:[#allocation5 + $0x10] sm:$0xff] %vm3499, %v3514
      %v3517 = vld [vmem:[#allocation4 + $0x30] sm:$0xff]
      %3518 = vst.msk [vmem:[#allocation5 + $0x18] sm:$0xff] %vm3045, %v3517
      %v3519 = vld [vmem:[#allocation4 + $0x38] sm:$0xff]
      %3521 = vrot.lane.b32.xlu0 %v3519, 64
      %v3522 = vpop.permute.xlu0 %3521
      %3524 = vst.msk [vmem:[#allocation5 + $0x18] sm:$0xff] %vm3499, %v3522
      %v3525 = vld [vmem:[#allocation4 + $0x40] sm:$0xff]
      %3526 = vst.msk [vmem:[#allocation5 + $0x20] sm:$0xff] %vm3045, %v3525
      %v3527 = vld [vmem:[#allocation4 + $0x48] sm:$0xff]
      %3529 = vrot.lane.b32.xlu0 %v3527, 64
      %v3530 = vpop.permute.xlu0 %3529
      %3532 = vst.msk [vmem:[#allocation5 + $0x20] sm:$0xff] %vm3499, %v3530
      %v3533 = vld [vmem:[#allocation4 + $0x50] sm:$0xff]
      %3534 = vst.msk [vmem:[#allocation5 + $0x28] sm:$0xff] %vm3045, %v3533
      %v3535 = vld [vmem:[#allocation4 + $0x58] sm:$0xff]
      %3537 = vrot.lane.b32.xlu0 %v3535, 64
      %v3538 = vpop.permute.xlu0 %3537
      %3540 = vst.msk [vmem:[#allocation5 + $0x28] sm:$0xff] %vm3499, %v3538
      %v3541 = vld [vmem:[#allocation4 + $0x60] sm:$0xff]
      %3542 = vst.msk [vmem:[#allocation5 + $0x30] sm:$0xff] %vm3045, %v3541
      %v3543 = vld [vmem:[#allocation4 + $0x68] sm:$0xff]
      %3545 = vrot.lane.b32.xlu0 %v3543, 64
      %v3546 = vpop.permute.xlu0 %3545
      %3548 = vst.msk [vmem:[#allocation5 + $0x30] sm:$0xff] %vm3499, %v3546
      %v3549 = vld [vmem:[#allocation4 + $0x70] sm:$0xff]
      %3550 = vst.msk [vmem:[#allocation5 + $0x38] sm:$0xff] %vm3045, %v3549
      %v3551 = vld [vmem:[#allocation4 + $0x78] sm:$0xff]
      %3553 = vrot.lane.b32.xlu0 %v3551, 64
      %v3554 = vpop.permute.xlu0 %3553
      %3556 = vst.msk [vmem:[#allocation5 + $0x38] sm:$0xff] %vm3499, %v3554
      %v3557 = vld [vmem:[#allocation5] sm:$0xff]
      %v3558 = vld [vmem:[#allocation5 + $0x8] sm:$0xff]
      %v3559 = vld [vmem:[#allocation5 + $0x10] sm:$0xff]
      %v3560 = vld [vmem:[#allocation5 + $0x18] sm:$0xff]
      %v3561 = vld [vmem:[#allocation5 + $0x20] sm:$0xff]
      %v3562 = vld [vmem:[#allocation5 + $0x28] sm:$0xff]
      %v3563 = vld [vmem:[#allocation5 + $0x30] sm:$0xff]
      %v3564 = vld [vmem:[#allocation5 + $0x38] sm:$0xff]
      %v3565 = vld [vmem:[%s7] sm:$0xf]
      %v3566 = vld [vmem:[%s7 + $0x4] sm:$0xf]
      %v3567 = vld [vmem:[%s7 + $0x8] sm:$0xf]
      %v3568 = vld [vmem:[%s7 + $0xc] sm:$0xf]
      %v3569 = vld [vmem:[%s7 + $0x10] sm:$0xf]
      %v3570 = vld [vmem:[%s7 + $0x14] sm:$0xf]
      %v3571 = vld [vmem:[%s7 + $0x18] sm:$0xf]
      %v3572 = vld [vmem:[%s7 + $0x1c] sm:$0xf]
      %v3573 = vld [vmem:[%s7 + $0x20] sm:$0xf]
      %v3574 = vld [vmem:[%s7 + $0x24] sm:$0xf]
      %v3575 = vld [vmem:[%s7 + $0x28] sm:$0xf]
      %v3576 = vld [vmem:[%s7 + $0x2c] sm:$0xf]
      %v3577 = vld [vmem:[%s7 + $0x30] sm:$0xf]
      %v3578 = vld [vmem:[%s7 + $0x34] sm:$0xf]
      %v3579 = vld [vmem:[%s7 + $0x38] sm:$0xf]
      %v3580 = vld [vmem:[%s7 + $0x3c] sm:$0xf]
      %v3581 = vld [vmem:[%s7 + $0x40] sm:$0xf]
      %v3582 = vld [vmem:[%s7 + $0x44] sm:$0xf]
      %v3583 = vld [vmem:[%s7 + $0x48] sm:$0xf]
      %v3584 = vld [vmem:[%s7 + $0x4c] sm:$0xf]
      %v3585 = vld [vmem:[%s7 + $0x50] sm:$0xf]
      %v3586 = vld [vmem:[%s7 + $0x54] sm:$0xf]
      %v3587 = vld [vmem:[%s7 + $0x58] sm:$0xf]
      %v3588 = vld [vmem:[%s7 + $0x5c] sm:$0xf]
      %v3589 = vld [vmem:[%s7 + $0x60] sm:$0xf]
      %v3590 = vld [vmem:[%s7 + $0x64] sm:$0xf]
      %v3591 = vld [vmem:[%s7 + $0x68] sm:$0xf]
      %v3592 = vld [vmem:[%s7 + $0x6c] sm:$0xf]
      %v3593 = vld [vmem:[%s7 + $0x70] sm:$0xf]
      %v3594 = vld [vmem:[%s7 + $0x74] sm:$0xf]
      %v3595 = vld [vmem:[%s7 + $0x78] sm:$0xf]
      %v3596 = vld [vmem:[%s7 + $0x7c] sm:$0xf]
      %v3597 = vld [vmem:[%s7 + $0x80] sm:$0xf]
      %v3598 = vld [vmem:[%s7 + $0x84] sm:$0xf]
      %v3599 = vld [vmem:[%s7 + $0x88] sm:$0xf]
      %v3600 = vld [vmem:[%s7 + $0x8c] sm:$0xf]
      %v3601 = vld [vmem:[%s7 + $0x90] sm:$0xf]
      %v3602 = vld [vmem:[%s7 + $0x94] sm:$0xf]
      %v3603 = vld [vmem:[%s7 + $0x98] sm:$0xf]
      %v3604 = vld [vmem:[%s7 + $0x9c] sm:$0xf]
      %v3605 = vld [vmem:[%s7 + $0xa0] sm:$0xf]
      %v3606 = vld [vmem:[%s7 + $0xa4] sm:$0xf]
      %v3607 = vld [vmem:[%s7 + $0xa8] sm:$0xf]
      %v3608 = vld [vmem:[%s7 + $0xac] sm:$0xf]
      %v3609 = vld [vmem:[%s7 + $0xb0] sm:$0xf]
      %v3610 = vld [vmem:[%s7 + $0xb4] sm:$0xf]
      %v3611 = vld [vmem:[%s7 + $0xb8] sm:$0xf]
      %v3612 = vld [vmem:[%s7 + $0xbc] sm:$0xf]
      %v3613 = vld [vmem:[%s7 + $0xc0] sm:$0xf]
      %v3614 = vld [vmem:[%s7 + $0xc4] sm:$0xf]
      %v3615 = vld [vmem:[%s7 + $0xc8] sm:$0xf]
      %v3616 = vld [vmem:[%s7 + $0xcc] sm:$0xf]
      %v3617 = vld [vmem:[%s7 + $0xd0] sm:$0xf]
      %v3618 = vld [vmem:[%s7 + $0xd4] sm:$0xf]
      %v3619 = vld [vmem:[%s7 + $0xd8] sm:$0xf]
      %v3620 = vld [vmem:[%s7 + $0xdc] sm:$0xf]
      %v3621 = vld [vmem:[%s7 + $0xe0] sm:$0xf]
      %v3622 = vld [vmem:[%s7 + $0xe4] sm:$0xf]
      %v3623 = vld [vmem:[%s7 + $0xe8] sm:$0xf]
      %v3624 = vld [vmem:[%s7 + $0xec] sm:$0xf]
      %v3625 = vld [vmem:[%s7 + $0xf0] sm:$0xf]
      %v3626 = vld [vmem:[%s7 + $0xf4] sm:$0xf]
      %v3627 = vld [vmem:[%s7 + $0xf8] sm:$0xf]
      %v3628 = vld [vmem:[%s7 + $0xfc] sm:$0xf]
      %v3629 = vld [vmem:[%s7 + $0x100] sm:$0xf]
      %v3630 = vld [vmem:[%s7 + $0x104] sm:$0xf]
      %v3631 = vld [vmem:[%s7 + $0x108] sm:$0xf]
      %v3632 = vld [vmem:[%s7 + $0x10c] sm:$0xf]
      %v3633 = vld [vmem:[%s7 + $0x110] sm:$0xf]
      %v3634 = vld [vmem:[%s7 + $0x114] sm:$0xf]
      %v3635 = vld [vmem:[%s7 + $0x118] sm:$0xf]
      %v3636 = vld [vmem:[%s7 + $0x11c] sm:$0xf]
      %v3637 = vld [vmem:[%s7 + $0x120] sm:$0xf]
      %v3638 = vld [vmem:[%s7 + $0x124] sm:$0xf]
      %v3639 = vld [vmem:[%s7 + $0x128] sm:$0xf]
      %v3640 = vld [vmem:[%s7 + $0x12c] sm:$0xf]
      %v3641 = vld [vmem:[%s7 + $0x130] sm:$0xf]
      %v3642 = vld [vmem:[%s7 + $0x134] sm:$0xf]
      %v3643 = vld [vmem:[%s7 + $0x138] sm:$0xf]
      %v3644 = vld [vmem:[%s7 + $0x13c] sm:$0xf]
      %v3645 = vld [vmem:[%s7 + $0x140] sm:$0xf]
      %v3646 = vld [vmem:[%s7 + $0x144] sm:$0xf]
      %v3647 = vld [vmem:[%s7 + $0x148] sm:$0xf]
      %v3648 = vld [vmem:[%s7 + $0x14c] sm:$0xf]
      %v3649 = vld [vmem:[%s7 + $0x150] sm:$0xf]
      %v3650 = vld [vmem:[%s7 + $0x154] sm:$0xf]
      %v3651 = vld [vmem:[%s7 + $0x158] sm:$0xf]
      %v3652 = vld [vmem:[%s7 + $0x15c] sm:$0xf]
      %v3653 = vld [vmem:[%s7 + $0x160] sm:$0xf]
      %v3654 = vld [vmem:[%s7 + $0x164] sm:$0xf]
      %v3655 = vld [vmem:[%s7 + $0x168] sm:$0xf]
      %v3656 = vld [vmem:[%s7 + $0x16c] sm:$0xf]
      %v3657 = vld [vmem:[%s7 + $0x170] sm:$0xf]
      %v3658 = vld [vmem:[%s7 + $0x174] sm:$0xf]
      %v3659 = vld [vmem:[%s7 + $0x178] sm:$0xf]
      %v3660 = vld [vmem:[%s7 + $0x17c] sm:$0xf]
      %v3661 = vld [vmem:[%s7 + $0x180] sm:$0xf]
      %v3662 = vld [vmem:[%s7 + $0x184] sm:$0xf]
      %v3663 = vld [vmem:[%s7 + $0x188] sm:$0xf]
      %v3664 = vld [vmem:[%s7 + $0x18c] sm:$0xf]
      %v3665 = vld [vmem:[%s7 + $0x190] sm:$0xf]
      %v3666 = vld [vmem:[%s7 + $0x194] sm:$0xf]
      %v3667 = vld [vmem:[%s7 + $0x198] sm:$0xf]
      %v3668 = vld [vmem:[%s7 + $0x19c] sm:$0xf]
      %v3669 = vld [vmem:[%s7 + $0x1a0] sm:$0xf]
      %v3670 = vld [vmem:[%s7 + $0x1a4] sm:$0xf]
      %v3671 = vld [vmem:[%s7 + $0x1a8] sm:$0xf]
      %v3672 = vld [vmem:[%s7 + $0x1ac] sm:$0xf]
      %v3673 = vld [vmem:[%s7 + $0x1b0] sm:$0xf]
      %v3674 = vld [vmem:[%s7 + $0x1b4] sm:$0xf]
      %v3675 = vld [vmem:[%s7 + $0x1b8] sm:$0xf]
      %v3676 = vld [vmem:[%s7 + $0x1bc] sm:$0xf]
      %v3677 = vld [vmem:[%s7 + $0x1c0] sm:$0xf]
      %v3678 = vld [vmem:[%s7 + $0x1c4] sm:$0xf]
      %v3679 = vld [vmem:[%s7 + $0x1c8] sm:$0xf]
      %v3680 = vld [vmem:[%s7 + $0x1cc] sm:$0xf]
      %v3681 = vld [vmem:[%s7 + $0x1d0] sm:$0xf]
      %v3682 = vld [vmem:[%s7 + $0x1d4] sm:$0xf]
      %v3683 = vld [vmem:[%s7 + $0x1d8] sm:$0xf]
      %v3684 = vld [vmem:[%s7 + $0x1dc] sm:$0xf]
      %v3685 = vld [vmem:[%s7 + $0x1e0] sm:$0xf]
      %v3686 = vld [vmem:[%s7 + $0x1e4] sm:$0xf]
      %v3687 = vld [vmem:[%s7 + $0x1e8] sm:$0xf]
      %v3688 = vld [vmem:[%s7 + $0x1ec] sm:$0xf]
      %v3689 = vld [vmem:[%s7 + $0x1f0] sm:$0xf]
      %v3690 = vld [vmem:[%s7 + $0x1f4] sm:$0xf]
      %v3691 = vld [vmem:[%s7 + $0x1f8] sm:$0xf]
      %v3692 = vld [vmem:[%s7 + $0x1fc] sm:$0xf]
      %v3693 = vld [vmem:[%s8] sm:$0x1]
      %v3695 = vlaneseq
      %v3696 = vshrl.u32 %v3695, 7
      %v3697 = vsub.s32 0, %v3696
      %v3698 = vrot.slane %v3693, %v3697
      %v3828 = vunpack.c.l.b16 %v3565
      %v3829 = vunpack.c.l.b16 %v3566
      %v3830 = vunpack.c.l.b16 %v3567
      %v3831 = vunpack.c.l.b16 %v3568
      %v3832 = vunpack.c.l.b16 %v3569
      %v3833 = vunpack.c.l.b16 %v3570
      %v3834 = vunpack.c.l.b16 %v3571
      %v3835 = vunpack.c.l.b16 %v3572
      %v3836 = vunpack.c.l.b16 %v3573
      %v3837 = vunpack.c.l.b16 %v3574
      %v3838 = vunpack.c.l.b16 %v3575
      %v3839 = vunpack.c.l.b16 %v3576
      %v3840 = vunpack.c.l.b16 %v3577
      %v3841 = vunpack.c.l.b16 %v3578
      %v3842 = vunpack.c.l.b16 %v3579
      %v3843 = vunpack.c.l.b16 %v3580
      %v3844 = vunpack.c.l.b16 %v3581
      %v3845 = vunpack.c.l.b16 %v3582
      %v3846 = vunpack.c.l.b16 %v3583
      %v3847 = vunpack.c.l.b16 %v3584
      %v3848 = vunpack.c.l.b16 %v3585
      %v3849 = vunpack.c.l.b16 %v3586
      %v3850 = vunpack.c.l.b16 %v3587
      %v3851 = vunpack.c.l.b16 %v3588
      %v3852 = vunpack.c.l.b16 %v3589
      %v3853 = vunpack.c.l.b16 %v3590
      %v3854 = vunpack.c.l.b16 %v3591
      %v3855 = vunpack.c.l.b16 %v3592
      %v3856 = vunpack.c.l.b16 %v3593
      %v3857 = vunpack.c.l.b16 %v3594
      %v3858 = vunpack.c.l.b16 %v3595
      %v3859 = vunpack.c.l.b16 %v3596
      %v3860 = vunpack.c.l.b16 %v3597
      %v3861 = vunpack.c.l.b16 %v3598
      %v3862 = vunpack.c.l.b16 %v3599
      %v3863 = vunpack.c.l.b16 %v3600
      %v3864 = vunpack.c.l.b16 %v3601
      %v3865 = vunpack.c.l.b16 %v3602
      %v3866 = vunpack.c.l.b16 %v3603
      %v3867 = vunpack.c.l.b16 %v3604
      %v3868 = vunpack.c.l.b16 %v3605
      %v3869 = vunpack.c.l.b16 %v3606
      %v3870 = vunpack.c.l.b16 %v3607
      %v3871 = vunpack.c.l.b16 %v3608
      %v3872 = vunpack.c.l.b16 %v3609
      %v3873 = vunpack.c.l.b16 %v3610
      %v3874 = vunpack.c.l.b16 %v3611
      %v3875 = vunpack.c.l.b16 %v3612
      %v3876 = vunpack.c.l.b16 %v3613
      %v3877 = vunpack.c.l.b16 %v3614
      %v3878 = vunpack.c.l.b16 %v3615
      %v3879 = vunpack.c.l.b16 %v3616
      %v3880 = vunpack.c.l.b16 %v3617
      %v3881 = vunpack.c.l.b16 %v3618
      %v3882 = vunpack.c.l.b16 %v3619
      %v3883 = vunpack.c.l.b16 %v3620
      %v3884 = vunpack.c.l.b16 %v3621
      %v3885 = vunpack.c.l.b16 %v3622
      %v3886 = vunpack.c.l.b16 %v3623
      %v3887 = vunpack.c.l.b16 %v3624
      %v3888 = vunpack.c.l.b16 %v3625
      %v3889 = vunpack.c.l.b16 %v3626
      %v3890 = vunpack.c.l.b16 %v3627
      %v3891 = vunpack.c.l.b16 %v3628
      %v3892 = vunpack.c.l.b16 %v3629
      %v3893 = vunpack.c.l.b16 %v3630
      %v3894 = vunpack.c.l.b16 %v3631
      %v3895 = vunpack.c.l.b16 %v3632
      %v3896 = vunpack.c.l.b16 %v3633
      %v3897 = vunpack.c.l.b16 %v3634
      %v3898 = vunpack.c.l.b16 %v3635
      %v3899 = vunpack.c.l.b16 %v3636
      %v3900 = vunpack.c.l.b16 %v3637
      %v3901 = vunpack.c.l.b16 %v3638
      %v3902 = vunpack.c.l.b16 %v3639
      %v3903 = vunpack.c.l.b16 %v3640
      %v3904 = vunpack.c.l.b16 %v3641
      %v3905 = vunpack.c.l.b16 %v3642
      %v3906 = vunpack.c.l.b16 %v3643
      %v3907 = vunpack.c.l.b16 %v3644
      %v3908 = vunpack.c.l.b16 %v3645
      %v3909 = vunpack.c.l.b16 %v3646
      %v3910 = vunpack.c.l.b16 %v3647
      %v3911 = vunpack.c.l.b16 %v3648
      %v3912 = vunpack.c.l.b16 %v3649
      %v3913 = vunpack.c.l.b16 %v3650
      %v3914 = vunpack.c.l.b16 %v3651
      %v3915 = vunpack.c.l.b16 %v3652
      %v3916 = vunpack.c.l.b16 %v3653
      %v3917 = vunpack.c.l.b16 %v3654
      %v3918 = vunpack.c.l.b16 %v3655
      %v3919 = vunpack.c.l.b16 %v3656
      %v3920 = vunpack.c.l.b16 %v3657
      %v3921 = vunpack.c.l.b16 %v3658
      %v3922 = vunpack.c.l.b16 %v3659
      %v3923 = vunpack.c.l.b16 %v3660
      %v3924 = vunpack.c.l.b16 %v3661
      %v3925 = vunpack.c.l.b16 %v3662
      %v3926 = vunpack.c.l.b16 %v3663
      %v3927 = vunpack.c.l.b16 %v3664
      %v3928 = vunpack.c.l.b16 %v3665
      %v3929 = vunpack.c.l.b16 %v3666
      %v3930 = vunpack.c.l.b16 %v3667
      %v3931 = vunpack.c.l.b16 %v3668
      %v3932 = vunpack.c.l.b16 %v3669
      %v3933 = vunpack.c.l.b16 %v3670
      %v3934 = vunpack.c.l.b16 %v3671
      %v3935 = vunpack.c.l.b16 %v3672
      %v3936 = vunpack.c.l.b16 %v3673
      %v3937 = vunpack.c.l.b16 %v3674
      %v3938 = vunpack.c.l.b16 %v3675
      %v3939 = vunpack.c.l.b16 %v3676
      %v3940 = vunpack.c.l.b16 %v3677
      %v3941 = vunpack.c.l.b16 %v3678
      %v3942 = vunpack.c.l.b16 %v3679
      %v3943 = vunpack.c.l.b16 %v3680
      %v3944 = vunpack.c.l.b16 %v3681
      %v3945 = vunpack.c.l.b16 %v3682
      %v3946 = vunpack.c.l.b16 %v3683
      %v3947 = vunpack.c.l.b16 %v3684
      %v3948 = vunpack.c.l.b16 %v3685
      %v3949 = vunpack.c.l.b16 %v3686
      %v3950 = vunpack.c.l.b16 %v3687
      %v3951 = vunpack.c.l.b16 %v3688
      %v3952 = vunpack.c.l.b16 %v3689
      %v3953 = vunpack.c.l.b16 %v3690
      %v3954 = vunpack.c.l.b16 %v3691
      %v3955 = vunpack.c.l.b16 %v3692
      %v3956 = vpack.c.b16 %v3829, %v3828
      %v3957 = vpack.c.b16 %v3831, %v3830
      %v3958 = vpack.c.b16 %v3833, %v3832
      %v3959 = vpack.c.b16 %v3835, %v3834
      %v3960 = vpack.c.b16 %v3837, %v3836
      %v3961 = vpack.c.b16 %v3839, %v3838
      %v3962 = vpack.c.b16 %v3841, %v3840
      %v3963 = vpack.c.b16 %v3843, %v3842
      %v3964 = vpack.c.b16 %v3845, %v3844
      %v3965 = vpack.c.b16 %v3847, %v3846
      %v3966 = vpack.c.b16 %v3849, %v3848
      %v3967 = vpack.c.b16 %v3851, %v3850
      %v3968 = vpack.c.b16 %v3853, %v3852
      %v3969 = vpack.c.b16 %v3855, %v3854
      %v3970 = vpack.c.b16 %v3857, %v3856
      %v3971 = vpack.c.b16 %v3859, %v3858
      %v3972 = vpack.c.b16 %v3861, %v3860
      %v3973 = vpack.c.b16 %v3863, %v3862
      %v3974 = vpack.c.b16 %v3865, %v3864
      %v3975 = vpack.c.b16 %v3867, %v3866
      %v3976 = vpack.c.b16 %v3869, %v3868
      %v3977 = vpack.c.b16 %v3871, %v3870
      %v3978 = vpack.c.b16 %v3873, %v3872
      %v3979 = vpack.c.b16 %v3875, %v3874
      %v3980 = vpack.c.b16 %v3877, %v3876
      %v3981 = vpack.c.b16 %v3879, %v3878
      %v3982 = vpack.c.b16 %v3881, %v3880
      %v3983 = vpack.c.b16 %v3883, %v3882
      %v3984 = vpack.c.b16 %v3885, %v3884
      %v3985 = vpack.c.b16 %v3887, %v3886
      %v3986 = vpack.c.b16 %v3889, %v3888
      %v3987 = vpack.c.b16 %v3891, %v3890
      %v3988 = vpack.c.b16 %v3893, %v3892
      %v3989 = vpack.c.b16 %v3895, %v3894
      %v3990 = vpack.c.b16 %v3897, %v3896
      %v3991 = vpack.c.b16 %v3899, %v3898
      %v3992 = vpack.c.b16 %v3901, %v3900
      %v3993 = vpack.c.b16 %v3903, %v3902
      %v3994 = vpack.c.b16 %v3905, %v3904
      %v3995 = vpack.c.b16 %v3907, %v3906
      %v3996 = vpack.c.b16 %v3909, %v3908
      %v3997 = vpack.c.b16 %v3911, %v3910
      %v3998 = vpack.c.b16 %v3913, %v3912
      %v3999 = vpack.c.b16 %v3915, %v3914
      %v4000 = vpack.c.b16 %v3917, %v3916
      %v4001 = vpack.c.b16 %v3919, %v3918
      %v4002 = vpack.c.b16 %v3921, %v3920
      %v4003 = vpack.c.b16 %v3923, %v3922
      %v4004 = vpack.c.b16 %v3925, %v3924
      %v4005 = vpack.c.b16 %v3927, %v3926
      %v4006 = vpack.c.b16 %v3929, %v3928
      %v4007 = vpack.c.b16 %v3931, %v3930
      %v4008 = vpack.c.b16 %v3933, %v3932
      %v4009 = vpack.c.b16 %v3935, %v3934
      %v4010 = vpack.c.b16 %v3937, %v3936
      %v4011 = vpack.c.b16 %v3939, %v3938
      %v4012 = vpack.c.b16 %v3941, %v3940
      %v4013 = vpack.c.b16 %v3943, %v3942
      %v4014 = vpack.c.b16 %v3945, %v3944
      %v4015 = vpack.c.b16 %v3947, %v3946
      %v4016 = vpack.c.b16 %v3949, %v3948
      %v4017 = vpack.c.b16 %v3951, %v3950
      %v4018 = vpack.c.b16 %v3953, %v3952
      %v4019 = vpack.c.b16 %v3955, %v3954
      %4084 = vmatprep.subr.bf16.mxu0 0
      %4085 = vmatpush1.bf16.msra.mxu0 %v3956
      %4086 = vmatprep.subr.bf16.mxu0 0
      %4087 = vmatpush1.bf16.msra.mxu0 %v3957
      %4088 = vmatprep.subr.bf16.mxu0 0
      %4089 = vmatpush1.bf16.msra.mxu0 %v3958
      %4090 = vmatprep.subr.bf16.mxu0 0
      %4091 = vmatpush1.bf16.msra.mxu0 %v3959
      %4092 = vmatprep.subr.bf16.mxu0 0
      %4093 = vmatpush1.bf16.msra.mxu0 %v3960
      %4094 = vmatprep.subr.bf16.mxu0 0
      %4095 = vmatpush1.bf16.msra.mxu0 %v3961
      %4096 = vmatprep.subr.bf16.mxu0 0
      %4097 = vmatpush1.bf16.msra.mxu0 %v3962
      %4098 = vmatprep.subr.bf16.mxu0 0
      %4099 = vmatpush1.bf16.msra.mxu0 %v3963
      %4100 = vmatprep.subr.bf16.mxu0 0
      %4101 = vmatpush1.bf16.msra.mxu0 %v3964
      %4102 = vmatprep.subr.bf16.mxu0 0
      %4103 = vmatpush1.bf16.msra.mxu0 %v3965
      %4104 = vmatprep.subr.bf16.mxu0 0
      %4105 = vmatpush1.bf16.msra.mxu0 %v3966
      %4106 = vmatprep.subr.bf16.mxu0 0
      %4107 = vmatpush1.bf16.msra.mxu0 %v3967
      %4108 = vmatprep.subr.bf16.mxu0 0
      %4109 = vmatpush1.bf16.msra.mxu0 %v3968
      %4110 = vmatprep.subr.bf16.mxu0 0
      %4111 = vmatpush1.bf16.msra.mxu0 %v3969
      %4112 = vmatprep.subr.bf16.mxu0 0
      %4113 = vmatpush1.bf16.msra.mxu0 %v3970
      %4114 = vmatprep.subr.bf16.mxu0 0
      %4115 = vmatpush1.bf16.msra.mxu0 %v3971
      %4116 = vmatprep.mubr.bf16.mxu0 %v3558
      %4117 = vmatmul.mubr.bf16.gmra.mrb[0].mxu0 %v3557
      %v4118 = vpop.f32.mrb[0].mxu0
      %v4119 = vadd.f32 %v3698, %v4118
      %v4120 = vpop.f32.mrb[0].mxu0
      %v4121 = vpop.f32.mrb[0].mxu0
      %v4122 = vadd.f32 %v3698, %v4121
      %v4123 = vpop.f32.mrb[0].mxu0
      %4124 = vdwg.mxu0
      %4125 = vmatprep.subr.bf16.mxu0 0
      %4126 = vmatpush1.bf16.msra.mxu0 %v3972
      %4127 = vmatprep.subr.bf16.mxu0 0
      %4128 = vmatpush1.bf16.msra.mxu0 %v3973
      %4129 = vmatprep.subr.bf16.mxu0 0
      %4130 = vmatpush1.bf16.msra.mxu0 %v3974
      %4131 = vmatprep.subr.bf16.mxu0 0
      %4132 = vmatpush1.bf16.msra.mxu0 %v3975
      %4133 = vmatprep.subr.bf16.mxu0 0
      %4134 = vmatpush1.bf16.msra.mxu0 %v3976
      %4135 = vmatprep.subr.bf16.mxu0 0
      %4136 = vmatpush1.bf16.msra.mxu0 %v3977
      %4137 = vmatprep.subr.bf16.mxu0 0
      %4138 = vmatpush1.bf16.msra.mxu0 %v3978
      %4139 = vmatprep.subr.bf16.mxu0 0
      %4140 = vmatpush1.bf16.msra.mxu0 %v3979
      %4141 = vmatprep.subr.bf16.mxu0 0
      %4142 = vmatpush1.bf16.msra.mxu0 %v3980
      %4143 = vmatprep.subr.bf16.mxu0 0
      %4144 = vmatpush1.bf16.msra.mxu0 %v3981
      %4145 = vmatprep.subr.bf16.mxu0 0
      %4146 = vmatpush1.bf16.msra.mxu0 %v3982
      %4147 = vmatprep.subr.bf16.mxu0 0
      %4148 = vmatpush1.bf16.msra.mxu0 %v3983
      %4149 = vmatprep.subr.bf16.mxu0 0
      %4150 = vmatpush1.bf16.msra.mxu0 %v3984
      %4151 = vmatprep.subr.bf16.mxu0 0
      %4152 = vmatpush1.bf16.msra.mxu0 %v3985
      %4153 = vmatprep.subr.bf16.mxu0 0
      %4154 = vmatpush1.bf16.msra.mxu0 %v3986
      %4155 = vmatprep.subr.bf16.mxu0 0
      %4156 = vmatpush1.bf16.msra.mxu0 %v3987
      %4157 = vmatprep.mubr.bf16.mxu0 %v3560
      %4158 = vmatmul.mubr.bf16.gmra.mrb[0].mxu0 %v3559
      %v4159 = vpop.f32.mrb[0].mxu0
      %v4160 = vadd.f32 %v4119, %v4159
      %v4161 = vpop.f32.mrb[0].mxu0
      %v4162 = vpop.f32.mrb[0].mxu0
      %v4163 = vadd.f32 %v4122, %v4162
      %v4164 = vpop.f32.mrb[0].mxu0
      %4165 = vdwg.mxu0
      %4166 = vmatprep.subr.bf16.mxu0 0
      %4167 = vmatpush1.bf16.msra.mxu0 %v3988
      %4168 = vmatprep.subr.bf16.mxu0 0
      %4169 = vmatpush1.bf16.msra.mxu0 %v3989
      %4170 = vmatprep.subr.bf16.mxu0 0
      %4171 = vmatpush1.bf16.msra.mxu0 %v3990
      %4172 = vmatprep.subr.bf16.mxu0 0
      %4173 = vmatpush1.bf16.msra.mxu0 %v3991
      %4174 = vmatprep.subr.bf16.mxu0 0
      %4175 = vmatpush1.bf16.msra.mxu0 %v3992
      %4176 = vmatprep.subr.bf16.mxu0 0
      %4177 = vmatpush1.bf16.msra.mxu0 %v3993
      %4178 = vmatprep.subr.bf16.mxu0 0
      %4179 = vmatpush1.bf16.msra.mxu0 %v3994
      %4180 = vmatprep.subr.bf16.mxu0 0
      %4181 = vmatpush1.bf16.msra.mxu0 %v3995
      %4182 = vmatprep.subr.bf16.mxu0 0
      %4183 = vmatpush1.bf16.msra.mxu0 %v3996
      %4184 = vmatprep.subr.bf16.mxu0 0
      %4185 = vmatpush1.bf16.msra.mxu0 %v3997
      %4186 = vmatprep.subr.bf16.mxu0 0
      %4187 = vmatpush1.bf16.msra.mxu0 %v3998
      %4188 = vmatprep.subr.bf16.mxu0 0
      %4189 = vmatpush1.bf16.msra.mxu0 %v3999
      %4190 = vmatprep.subr.bf16.mxu0 0
      %4191 = vmatpush1.bf16.msra.mxu0 %v4000
      %4192 = vmatprep.subr.bf16.mxu0 0
      %4193 = vmatpush1.bf16.msra.mxu0 %v4001
      %4194 = vmatprep.subr.bf16.mxu0 0
      %4195 = vmatpush1.bf16.msra.mxu0 %v4002
      %4196 = vmatprep.subr.bf16.mxu0 0
      %4197 = vmatpush1.bf16.msra.mxu0 %v4003
      %4198 = vmatprep.mubr.bf16.mxu0 %v3562
      %4199 = vmatmul.mubr.bf16.gmra.mrb[0].mxu0 %v3561
      %v4200 = vpop.f32.mrb[0].mxu0
      %v4201 = vadd.f32 %v4160, %v4200
      %v4202 = vpop.f32.mrb[0].mxu0
      %v4203 = vpop.f32.mrb[0].mxu0
      %v4204 = vadd.f32 %v4163, %v4203
      %v4205 = vpop.f32.mrb[0].mxu0
      %4206 = vdwg.mxu0
      %4207 = vmatprep.subr.bf16.mxu0 0
      %4208 = vmatpush1.bf16.msra.mxu0 %v4004
      %4209 = vmatprep.subr.bf16.mxu0 0
      %4210 = vmatpush1.bf16.msra.mxu0 %v4005
      %4211 = vmatprep.subr.bf16.mxu0 0
      %4212 = vmatpush1.bf16.msra.mxu0 %v4006
      %4213 = vmatprep.subr.bf16.mxu0 0
      %4214 = vmatpush1.bf16.msra.mxu0 %v4007
      %4215 = vmatprep.subr.bf16.mxu0 0
      %4216 = vmatpush1.bf16.msra.mxu0 %v4008
      %4217 = vmatprep.subr.bf16.mxu0 0
      %4218 = vmatpush1.bf16.msra.mxu0 %v4009
      %4219 = vmatprep.subr.bf16.mxu0 0
      %4220 = vmatpush1.bf16.msra.mxu0 %v4010
      %4221 = vmatprep.subr.bf16.mxu0 0
      %4222 = vmatpush1.bf16.msra.mxu0 %v4011
      %4223 = vmatprep.subr.bf16.mxu0 0
      %4224 = vmatpush1.bf16.msra.mxu0 %v4012
      %4225 = vmatprep.subr.bf16.mxu0 0
      %4226 = vmatpush1.bf16.msra.mxu0 %v4013
      %4227 = vmatprep.subr.bf16.mxu0 0
      %4228 = vmatpush1.bf16.msra.mxu0 %v4014
      %4229 = vmatprep.subr.bf16.mxu0 0
      %4230 = vmatpush1.bf16.msra.mxu0 %v4015
      %4231 = vmatprep.subr.bf16.mxu0 0
      %4232 = vmatpush1.bf16.msra.mxu0 %v4016
      %4233 = vmatprep.subr.bf16.mxu0 0
      %4234 = vmatpush1.bf16.msra.mxu0 %v4017
      %4235 = vmatprep.subr.bf16.mxu0 0
      %4236 = vmatpush1.bf16.msra.mxu0 %v4018
      %4237 = vmatprep.subr.bf16.mxu0 0
      %4238 = vmatpush1.bf16.msra.mxu0 %v4019
      %4239 = vmatprep.mubr.bf16.mxu0 %v3564
      %4240 = vmatmul.mubr.bf16.gmra.mrb[0].mxu0 %v3563
      %v4241 = vpop.f32.mrb[0].mxu0
      %v4242 = vadd.f32 %v4201, %v4241
      %v4243 = vpop.f32.mrb[0].mxu0
      %v4244 = vpop.f32.mrb[0].mxu0
      %v4245 = vadd.f32 %v4204, %v4244
      %v4246 = vpop.f32.mrb[0].mxu0
      %4247 = vdwg.mxu0
      %v4248 = vadd.f32 %v4242, %v4245
      %v4249 = vrot.slane %v4248, 4
      %v4250 = vadd.f32 %v4248, %v4249
      %v4251 = vrot.slane %v4250, 2
      %v4252 = vadd.f32 %v4250, %v4251
      %v4253 = vrot.slane %v4252, 1
      %v4254 = vadd.f32 %v4252, %v4253
      %v4255 = vmul.f32 %v4254, 0.0625
      %v4256 = vmul.f32 %v4242, %v4242
      %v4257 = vmul.f32 %v4245, %v4245
      %v4258 = vadd.f32 %v4256, %v4257
      %v4259 = vrot.slane %v4258, 4
      %v4260 = vadd.f32 %v4258, %v4259
      %v4261 = vrot.slane %v4260, 2
      %v4262 = vadd.f32 %v4260, %v4261
      %v4263 = vrot.slane %v4262, 1
      %v4264 = vadd.f32 %v4262, %v4263
      %v4265 = vmul.f32 %v4264, 0.0625
      %v4266 = vmul.f32 %v4255, %v4255
      %v4267 = vsub.f32 %v4265, %v4266
      %v4268 = vmax.f32 %v4267, 0.0
      %v4269 = vsub.f32 %v4242, %v4255
      %v4270 = vsub.f32 %v4245, %v4255
      %v4271 = vadd.f32 %v4268, 1e-05
      %v4272 = vrsqrt.pop %v4271
      %v4273 = vmul.f32 %v4269, %v4272
      %v4274 = vmul.f32 %v4270, %v4272
      %v4275 = vmul.f32 %v4273, 0.2
      %v4276 = vmul.f32 %v4274, 0.2
      %v4277 = vmax.f32 %v4273, %v4275
      %v4278 = vmax.f32 %v4274, %v4276
      %v4279 = vpack.c.bf16 %v4278, %v4277
      %v4280 = vld [vmem:[%s9] sm:$0xf]
      %v4281 = vld [vmem:[%s9 + $0x4] sm:$0xf]
      %v4282 = vld [vmem:[%s9 + $0x8] sm:$0xf]
      %v4283 = vld [vmem:[%s9 + $0xc] sm:$0xf]
      %v4284 = vld [vmem:[%s9 + $0x10] sm:$0xf]
      %v4285 = vld [vmem:[%s9 + $0x14] sm:$0xf]
      %v4286 = vld [vmem:[%s9 + $0x18] sm:$0xf]
      %v4287 = vld [vmem:[%s9 + $0x1c] sm:$0xf]
      %v4296 = vunpack.c.l.b16 %v4280
      %v4297 = vunpack.c.l.b16 %v4281
      %v4298 = vunpack.c.l.b16 %v4282
      %v4299 = vunpack.c.l.b16 %v4283
      %v4300 = vunpack.c.l.b16 %v4284
      %v4301 = vunpack.c.l.b16 %v4285
      %v4302 = vunpack.c.l.b16 %v4286
      %v4303 = vunpack.c.l.b16 %v4287
      %v4304 = vpack.c.b16 %v4297, %v4296
      %v4305 = vpack.c.b16 %v4299, %v4298
      %v4306 = vpack.c.b16 %v4301, %v4300
      %v4307 = vpack.c.b16 %v4303, %v4302
      %vm4308 = vcmask 130048
      %v4310 = vsel %vm4308, %v4304, 0
      %v4313 = vsel %vm4308, %v4305, 0
      %v4316 = vsel %vm4308, %v4306, 0
      %v4319 = vsel %vm4308, %v4307, 0
      %4321 = vmatprep.subr.bf16.mxu0 0
      %4322 = vmatpush1.bf16.msra.mxu0 %v4279
      %4323 = vmatprep.subr.bf16.mxu0 0
      %4324 = vmatpush1.bf16.msra.mxu0 0
      %4325 = vmatprep.subr.bf16.mxu0 0
      %4326 = vmatpush1.bf16.msra.mxu0 0
      %4327 = vmatprep.subr.bf16.mxu0 0
      %4328 = vmatpush1.bf16.msra.mxu0 0
      %4329 = vmatprep.subr.bf16.mxu0 0
      %4330 = vmatpush1.bf16.msra.mxu0 0
      %4331 = vmatprep.subr.bf16.mxu0 0
      %4332 = vmatpush1.bf16.msra.mxu0 0
      %4333 = vmatprep.subr.bf16.mxu0 0
      %4334 = vmatpush1.bf16.msra.mxu0 0
      %4335 = vmatprep.subr.bf16.mxu0 0
      %4336 = vmatpush1.bf16.msra.mxu0 0
      %4337 = vmatprep.subr.bf16.mxu0 0
      %4338 = vmatpush1.bf16.msra.mxu0 0
      %4339 = vmatprep.subr.bf16.mxu0 0
      %4340 = vmatpush1.bf16.msra.mxu0 0
      %4341 = vmatprep.subr.bf16.mxu0 0
      %4342 = vmatpush1.bf16.msra.mxu0 0
      %4343 = vmatprep.subr.bf16.mxu0 0
      %4344 = vmatpush1.bf16.msra.mxu0 0
      %4345 = vmatprep.subr.bf16.mxu0 0
      %4346 = vmatpush1.bf16.msra.mxu0 0
      %4347 = vmatprep.subr.bf16.mxu0 0
      %4348 = vmatpush1.bf16.msra.mxu0 0
      %4349 = vmatprep.subr.bf16.mxu0 0
      %4350 = vmatpush1.bf16.msra.mxu0 0
      %4351 = vmatprep.subr.bf16.mxu0 0
      %4352 = vmatpush1.bf16.msra.mxu0 0
      %4353 = vmatprep.mubr.bf16.mxu0 0
      %4354 = vmatmul.mubr.bf16.gmra.mrb[0].mxu0 %v4310
      %v4355 = vpop.f32.mrb[0].mxu0
      %v4356 = vadd.f32 0.0, %v4355
      %v4357 = vpop.f32.mrb[0].mxu0
      %v4358 = vpop.f32.mrb[0].mxu0
      %v4359 = vadd.f32 0.0, %v4358
      %v4360 = vpop.f32.mrb[0].mxu0
      %4361 = vmatprep.mubr.bf16.mxu0 0
      %4362 = vmatmul.mubr.bf16.gmra.mrb[0].mxu0 %v4313
      %v4363 = vpop.f32.mrb[0].mxu0
      %v4364 = vadd.f32 0.0, %v4363
      %v4365 = vpop.f32.mrb[0].mxu0
      %v4366 = vpop.f32.mrb[0].mxu0
      %v4367 = vadd.f32 0.0, %v4366
      %v4368 = vpop.f32.mrb[0].mxu0
      %4369 = vmatprep.mubr.bf16.mxu0 0
      %4370 = vmatmul.mubr.bf16.gmra.mrb[0].mxu0 %v4316
      %v4371 = vpop.f32.mrb[0].mxu0
      %v4372 = vadd.f32 0.0, %v4371
      %v4373 = vpop.f32.mrb[0].mxu0
      %v4374 = vpop.f32.mrb[0].mxu0
      %v4375 = vadd.f32 0.0, %v4374
      %v4376 = vpop.f32.mrb[0].mxu0
      %4377 = vmatprep.mubr.bf16.mxu0 0
      %4378 = vmatmul.mubr.bf16.gmra.mrb[0].mxu0 %v4319
      %v4379 = vpop.f32.mrb[0].mxu0
      %v4380 = vadd.f32 0.0, %v4379
      %v4381 = vpop.f32.mrb[0].mxu0
      %v4382 = vpop.f32.mrb[0].mxu0
      %v4383 = vadd.f32 0.0, %v4382
      %v4384 = vpop.f32.mrb[0].mxu0
      %4385 = vdwg.mxu0
      %v4386 = vpack.c.bf16 %v4359, %v4356
      %v4387 = vpack.c.bf16 %v4367, %v4364
      %v4388 = vpack.c.bf16 %v4375, %v4372
      %v4389 = vpack.c.bf16 %v4383, %v4380
      %4390 = vst [vmem:[#allocation6] sm:$0xff] %v4386
      %4391 = vst [vmem:[#allocation6 + $0x8] sm:$0xff] %v4387
      %4392 = vst [vmem:[#allocation6 + $0x10] sm:$0xff] %v4388
      %4393 = vst [vmem:[#allocation6 + $0x18] sm:$0xff] %v4389
      %v4394 = vld [vmem:[#allocation6] sm:$0x3]
      %4395 = vst [vmem:[#allocation7] sm:$0x3] %v4394
      %v4396 = vld [vmem:[#allocation6] sm:$0xc]
      %v4399 = vunpack.c.l.s4 1983009808
      %v4400 = vunpack.c.0.s8 %v4399
      %v4401 = vlaneseq
      %v4402 = vshrl.u32 %v4401, 7
      %v4403 = vsub.s32 %v4400, %v4402
      %v4404 = vrot.slane %v4396, %v4403
      %v4405 = vcombine.high %v4404, %v4404
      %4407 = vst [vmem:[#allocation7 + $0x2] sm:$0x3] %v4405
      %v4408 = vld [vmem:[#allocation6] sm:$0x30]
      %v4410 = vcombine.high %v4408, %v4408
      %v4412 = vunpack.c.l.s4 1983009808
      %v4413 = vunpack.c.0.s8 %v4412
      %v4414 = vlaneseq
      %v4415 = vshrl.u32 %v4414, 7
      %v4416 = vsub.s32 %v4413, %v4415
      %v4417 = vrot.slane %v4410, %v4416
      %4419 = vst [vmem:[#allocation7 + $0x4] sm:$0x3] %v4417
      %v4420 = vld [vmem:[#allocation6] sm:$0xc0]
      %v4422 = vcombine.high %v4420, %v4420
      %v4424 = vunpack.c.l.s4 1983009808
      %v4425 = vunpack.c.0.s8 %v4424
      %v4426 = vlaneseq
      %v4427 = vshrl.u32 %v4426, 7
      %v4428 = vsub.s32 %v4425, %v4427
      %v4429 = vrot.slane %v4422, %v4428
      %v4430 = vcombine.high %v4429, %v4429
      %4432 = vst [vmem:[#allocation7 + $0x6] sm:$0x3] %v4430
      %v4433 = vld [vmem:[#allocation6 + $0x8] sm:$0x3]
      %4434 = vst [vmem:[#allocation7 + $0x8] sm:$0x3] %v4433
      %v4435 = vld [vmem:[#allocation6 + $0x8] sm:$0xc]
      %v4438 = vunpack.c.l.s4 1983009808
      %v4439 = vunpack.c.0.s8 %v4438
      %v4440 = vlaneseq
      %v4441 = vshrl.u32 %v4440, 7
      %v4442 = vsub.s32 %v4439, %v4441
      %v4443 = vrot.slane %v4435, %v4442
      %v4444 = vcombine.high %v4443, %v4443
      %4446 = vst [vmem:[#allocation7 + $0xa] sm:$0x3] %v4444
      %v4447 = vld [vmem:[#allocation6 + $0x8] sm:$0x30]
      %v4449 = vcombine.high %v4447, %v4447
      %v4451 = vunpack.c.l.s4 1983009808
      %v4452 = vunpack.c.0.s8 %v4451
      %v4453 = vlaneseq
      %v4454 = vshrl.u32 %v4453, 7
      %v4455 = vsub.s32 %v4452, %v4454
      %v4456 = vrot.slane %v4449, %v4455
      %4458 = vst [vmem:[#allocation7 + $0xc] sm:$0x3] %v4456
      %v4459 = vld [vmem:[#allocation6 + $0x8] sm:$0xc0]
      %v4461 = vcombine.high %v4459, %v4459
      %v4463 = vunpack.c.l.s4 1983009808
      %v4464 = vunpack.c.0.s8 %v4463
      %v4465 = vlaneseq
      %v4466 = vshrl.u32 %v4465, 7
      %v4467 = vsub.s32 %v4464, %v4466
      %v4468 = vrot.slane %v4461, %v4467
      %v4469 = vcombine.high %v4468, %v4468
      %4471 = vst [vmem:[#allocation7 + $0xe] sm:$0x3] %v4469
      %v4472 = vld [vmem:[#allocation6 + $0x10] sm:$0x3]
      %4473 = vst [vmem:[#allocation7 + $0x10] sm:$0x3] %v4472
      %v4474 = vld [vmem:[#allocation6 + $0x10] sm:$0xc]
      %v4477 = vunpack.c.l.s4 1983009808
      %v4478 = vunpack.c.0.s8 %v4477
      %v4479 = vlaneseq
      %v4480 = vshrl.u32 %v4479, 7
      %v4481 = vsub.s32 %v4478, %v4480
      %v4482 = vrot.slane %v4474, %v4481
      %v4483 = vcombine.high %v4482, %v4482
      %4485 = vst [vmem:[#allocation7 + $0x12] sm:$0x3] %v4483
      %v4486 = vld [vmem:[#allocation6 + $0x10] sm:$0x30]
      %v4488 = vcombine.high %v4486, %v4486
      %v4490 = vunpack.c.l.s4 1983009808
      %v4491 = vunpack.c.0.s8 %v4490
      %v4492 = vlaneseq
      %v4493 = vshrl.u32 %v4492, 7
      %v4494 = vsub.s32 %v4491, %v4493
      %v4495 = vrot.slane %v4488, %v4494
      %4497 = vst [vmem:[#allocation7 + $0x14] sm:$0x3] %v4495
      %v4498 = vld [vmem:[#allocation6 + $0x10] sm:$0xc0]
      %v4500 = vcombine.high %v4498, %v4498
      %v4502 = vunpack.c.l.s4 1983009808
      %v4503 = vunpack.c.0.s8 %v4502
      %v4504 = vlaneseq
      %v4505 = vshrl.u32 %v4504, 7
      %v4506 = vsub.s32 %v4503, %v4505
      %v4507 = vrot.slane %v4500, %v4506
      %v4508 = vcombine.high %v4507, %v4507
      %4510 = vst [vmem:[#allocation7 + $0x16] sm:$0x3] %v4508
      %v4511 = vld [vmem:[#allocation6 + $0x18] sm:$0x3]
      %4512 = vst [vmem:[#allocation7 + $0x18] sm:$0x3] %v4511
      %v4513 = vld [vmem:[#allocation6 + $0x18] sm:$0xc]
      %v4516 = vunpack.c.l.s4 1983009808
      %v4517 = vunpack.c.0.s8 %v4516
      %v4518 = vlaneseq
      %v4519 = vshrl.u32 %v4518, 7
      %v4520 = vsub.s32 %v4517, %v4519
      %v4521 = vrot.slane %v4513, %v4520
      %v4522 = vcombine.high %v4521, %v4521
      %4524 = vst [vmem:[#allocation7 + $0x1a] sm:$0x3] %v4522
      %v4525 = vld [vmem:[#allocation6 + $0x18] sm:$0x30]
      %v4527 = vcombine.high %v4525, %v4525
      %v4529 = vunpack.c.l.s4 1983009808
      %v4530 = vunpack.c.0.s8 %v4529
      %v4531 = vlaneseq
      %v4532 = vshrl.u32 %v4531, 7
      %v4533 = vsub.s32 %v4530, %v4532
      %v4534 = vrot.slane %v4527, %v4533
      %4536 = vst [vmem:[#allocation7 + $0x1c] sm:$0x3] %v4534
      %v4537 = vld [vmem:[#allocation6 + $0x18] sm:$0xc0]
      %v4539 = vcombine.high %v4537, %v4537
      %v4541 = vunpack.c.l.s4 1983009808
      %v4542 = vunpack.c.0.s8 %v4541
      %v4543 = vlaneseq
      %v4544 = vshrl.u32 %v4543, 7
      %v4545 = vsub.s32 %v4542, %v4544
      %v4546 = vrot.slane %v4539, %v4545
      %v4547 = vcombine.high %v4546, %v4546
      %4549 = vst [vmem:[#allocation7 + $0x1e] sm:$0x3] %v4547
      %v4550 = vld [vmem:[#allocation7] sm:$0xff]
      %v4551 = vld [vmem:[#allocation7 + $0x8] sm:$0xff]
      %v4552 = vld [vmem:[#allocation7 + $0x10] sm:$0xff]
      %v4553 = vld [vmem:[#allocation7 + $0x18] sm:$0xff]
      %v4554 = vld [vmem:[%s10] sm:$0xff]
      %v4555 = vld [vmem:[%s10 + $0x8] sm:$0xff]
      %v4556 = vld [vmem:[%s10 + $0x10] sm:$0xff]
      %v4557 = vld [vmem:[%s10 + $0x18] sm:$0xff]
      %v4558 = vld [vmem:[%s10 + $0x20] sm:$0xff]
      %v4559 = vld [vmem:[%s10 + $0x28] sm:$0xff]
      %v4560 = vld [vmem:[%s10 + $0x30] sm:$0xff]
      %v4561 = vld [vmem:[%s10 + $0x38] sm:$0xff]
      %v4562 = vld [vmem:[%s10 + $0x40] sm:$0xff]
      %v4563 = vld [vmem:[%s10 + $0x48] sm:$0xff]
      %v4564 = vld [vmem:[%s10 + $0x50] sm:$0xff]
      %v4565 = vld [vmem:[%s10 + $0x58] sm:$0xff]
      %v4566 = vld [vmem:[%s10 + $0x60] sm:$0xff]
      %v4567 = vld [vmem:[%s10 + $0x68] sm:$0xff]
      %v4568 = vld [vmem:[%s10 + $0x70] sm:$0xff]
      %v4569 = vld [vmem:[%s10 + $0x78] sm:$0xff]
      %v4570 = vld [vmem:[%s10 + $0x80] sm:$0xff]
      %v4571 = vld [vmem:[%s10 + $0x88] sm:$0xff]
      %v4572 = vld [vmem:[%s10 + $0x90] sm:$0xff]
      %v4573 = vld [vmem:[%s10 + $0x98] sm:$0xff]
      %v4574 = vld [vmem:[%s10 + $0xa0] sm:$0xff]
      %v4575 = vld [vmem:[%s10 + $0xa8] sm:$0xff]
      %v4576 = vld [vmem:[%s10 + $0xb0] sm:$0xff]
      %v4577 = vld [vmem:[%s10 + $0xb8] sm:$0xff]
      %v4578 = vld [vmem:[%s10 + $0xc0] sm:$0xff]
      %v4579 = vld [vmem:[%s10 + $0xc8] sm:$0xff]
      %v4580 = vld [vmem:[%s10 + $0xd0] sm:$0xff]
      %v4581 = vld [vmem:[%s10 + $0xd8] sm:$0xff]
      %v4582 = vld [vmem:[%s10 + $0xe0] sm:$0xff]
      %v4583 = vld [vmem:[%s10 + $0xe8] sm:$0xff]
      %v4584 = vld [vmem:[%s10 + $0xf0] sm:$0xff]
      %v4585 = vld [vmem:[%s10 + $0xf8] sm:$0xff]
      %v4586 = vld [vmem:[%s10 + $0x100] sm:$0xff]
      %v4587 = vld [vmem:[%s10 + $0x108] sm:$0xff]
      %v4588 = vld [vmem:[%s10 + $0x110] sm:$0xff]
      %v4589 = vld [vmem:[%s10 + $0x118] sm:$0xff]
      %v4590 = vld [vmem:[%s10 + $0x120] sm:$0xff]
      %v4591 = vld [vmem:[%s10 + $0x128] sm:$0xff]
      %v4592 = vld [vmem:[%s10 + $0x130] sm:$0xff]
      %v4593 = vld [vmem:[%s10 + $0x138] sm:$0xff]
      %v4594 = vld [vmem:[%s10 + $0x140] sm:$0xff]
      %v4595 = vld [vmem:[%s10 + $0x148] sm:$0xff]
      %v4596 = vld [vmem:[%s10 + $0x150] sm:$0xff]
      %v4597 = vld [vmem:[%s10 + $0x158] sm:$0xff]
      %v4598 = vld [vmem:[%s10 + $0x160] sm:$0xff]
      %v4599 = vld [vmem:[%s10 + $0x168] sm:$0xff]
      %v4600 = vld [vmem:[%s10 + $0x170] sm:$0xff]
      %v4601 = vld [vmem:[%s10 + $0x178] sm:$0xff]
      %v4602 = vld [vmem:[%s10 + $0x180] sm:$0xff]
      %v4603 = vld [vmem:[%s10 + $0x188] sm:$0xff]
      %v4604 = vld [vmem:[%s10 + $0x190] sm:$0xff]
      %v4605 = vld [vmem:[%s10 + $0x198] sm:$0xff]
      %v4606 = vld [vmem:[%s10 + $0x1a0] sm:$0xff]
      %v4607 = vld [vmem:[%s10 + $0x1a8] sm:$0xff]
      %v4608 = vld [vmem:[%s10 + $0x1b0] sm:$0xff]
      %v4609 = vld [vmem:[%s10 + $0x1b8] sm:$0xff]
      %v4610 = vld [vmem:[%s10 + $0x1c0] sm:$0xff]
      %v4611 = vld [vmem:[%s10 + $0x1c8] sm:$0xff]
      %v4612 = vld [vmem:[%s10 + $0x1d0] sm:$0xff]
      %v4613 = vld [vmem:[%s10 + $0x1d8] sm:$0xff]
      %v4614 = vld [vmem:[%s10 + $0x1e0] sm:$0xff]
      %v4615 = vld [vmem:[%s10 + $0x1e8] sm:$0xff]
      %v4616 = vld [vmem:[%s10 + $0x1f0] sm:$0xff]
      %v4617 = vld [vmem:[%s10 + $0x1f8] sm:$0xff]
      %v4618 = vld [vmem:[%s10 + $0x200] sm:$0xff]
      %v4619 = vld [vmem:[%s10 + $0x208] sm:$0xff]
      %v4620 = vld [vmem:[%s10 + $0x210] sm:$0xff]
      %v4621 = vld [vmem:[%s10 + $0x218] sm:$0xff]
      %v4622 = vld [vmem:[%s10 + $0x220] sm:$0xff]
      %v4623 = vld [vmem:[%s10 + $0x228] sm:$0xff]
      %v4624 = vld [vmem:[%s10 + $0x230] sm:$0xff]
      %v4625 = vld [vmem:[%s10 + $0x238] sm:$0xff]
      %v4626 = vld [vmem:[%s10 + $0x240] sm:$0xff]
      %v4627 = vld [vmem:[%s10 + $0x248] sm:$0xff]
      %v4628 = vld [vmem:[%s10 + $0x250] sm:$0xff]
      %v4629 = vld [vmem:[%s10 + $0x258] sm:$0xff]
      %v4630 = vld [vmem:[%s10 + $0x260] sm:$0xff]
      %v4631 = vld [vmem:[%s10 + $0x268] sm:$0xff]
      %v4632 = vld [vmem:[%s10 + $0x270] sm:$0xff]
      %v4633 = vld [vmem:[%s10 + $0x278] sm:$0xff]
      %v4634 = vld [vmem:[%s10 + $0x280] sm:$0xff]
      %v4635 = vld [vmem:[%s10 + $0x288] sm:$0xff]
      %v4636 = vld [vmem:[%s10 + $0x290] sm:$0xff]
      %v4637 = vld [vmem:[%s10 + $0x298] sm:$0xff]
      %v4638 = vld [vmem:[%s10 + $0x2a0] sm:$0xff]
      %v4639 = vld [vmem:[%s10 + $0x2a8] sm:$0xff]
      %v4640 = vld [vmem:[%s10 + $0x2b0] sm:$0xff]
      %v4641 = vld [vmem:[%s10 + $0x2b8] sm:$0xff]
      %v4642 = vld [vmem:[%s10 + $0x2c0] sm:$0xff]
      %v4643 = vld [vmem:[%s10 + $0x2c8] sm:$0xff]
      %v4644 = vld [vmem:[%s10 + $0x2d0] sm:$0xff]
      %v4645 = vld [vmem:[%s10 + $0x2d8] sm:$0xff]
      %v4646 = vld [vmem:[%s10 + $0x2e0] sm:$0xff]
      %v4647 = vld [vmem:[%s10 + $0x2e8] sm:$0xff]
      %v4648 = vld [vmem:[%s10 + $0x2f0] sm:$0xff]
      %v4649 = vld [vmem:[%s10 + $0x2f8] sm:$0xff]
      %v4650 = vld [vmem:[%s10 + $0x300] sm:$0xff]
      %v4651 = vld [vmem:[%s10 + $0x308] sm:$0xff]
      %v4652 = vld [vmem:[%s10 + $0x310] sm:$0xff]
      %v4653 = vld [vmem:[%s10 + $0x318] sm:$0xff]
      %v4654 = vld [vmem:[%s10 + $0x320] sm:$0xff]
      %v4655 = vld [vmem:[%s10 + $0x328] sm:$0xff]
      %v4656 = vld [vmem:[%s10 + $0x330] sm:$0xff]
      %v4657 = vld [vmem:[%s10 + $0x338] sm:$0xff]
      %v4658 = vld [vmem:[%s10 + $0x340] sm:$0xff]
      %v4659 = vld [vmem:[%s10 + $0x348] sm:$0xff]
      %v4660 = vld [vmem:[%s10 + $0x350] sm:$0xff]
      %v4661 = vld [vmem:[%s10 + $0x358] sm:$0xff]
      %v4662 = vld [vmem:[%s10 + $0x360] sm:$0xff]
      %v4663 = vld [vmem:[%s10 + $0x368] sm:$0xff]
      %v4664 = vld [vmem:[%s10 + $0x370] sm:$0xff]
      %v4665 = vld [vmem:[%s10 + $0x378] sm:$0xff]
      %v4666 = vld [vmem:[%s10 + $0x380] sm:$0xff]
      %v4667 = vld [vmem:[%s10 + $0x388] sm:$0xff]
      %v4668 = vld [vmem:[%s10 + $0x390] sm:$0xff]
      %v4669 = vld [vmem:[%s10 + $0x398] sm:$0xff]
      %v4670 = vld [vmem:[%s10 + $0x3a0] sm:$0xff]
      %v4671 = vld [vmem:[%s10 + $0x3a8] sm:$0xff]
      %v4672 = vld [vmem:[%s10 + $0x3b0] sm:$0xff]
      %v4673 = vld [vmem:[%s10 + $0x3b8] sm:$0xff]
      %v4674 = vld [vmem:[%s10 + $0x3c0] sm:$0xff]
      %v4675 = vld [vmem:[%s10 + $0x3c8] sm:$0xff]
      %v4676 = vld [vmem:[%s10 + $0x3d0] sm:$0xff]
      %v4677 = vld [vmem:[%s10 + $0x3d8] sm:$0xff]
      %v4678 = vld [vmem:[%s10 + $0x3e0] sm:$0xff]
      %v4679 = vld [vmem:[%s10 + $0x3e8] sm:$0xff]
      %v4680 = vld [vmem:[%s10 + $0x3f0] sm:$0xff]
      %v4681 = vld [vmem:[%s10 + $0x3f8] sm:$0xff]
      %v4682 = vld [vmem:[%s10 + $0x400] sm:$0xff]
      %v4683 = vld [vmem:[%s10 + $0x408] sm:$0xff]
      %v4684 = vld [vmem:[%s10 + $0x410] sm:$0xff]
      %v4685 = vld [vmem:[%s10 + $0x418] sm:$0xff]
      %v4686 = vld [vmem:[%s10 + $0x420] sm:$0xff]
      %v4687 = vld [vmem:[%s10 + $0x428] sm:$0xff]
      %v4688 = vld [vmem:[%s10 + $0x430] sm:$0xff]
      %v4689 = vld [vmem:[%s10 + $0x438] sm:$0xff]
      %v4690 = vld [vmem:[%s10 + $0x440] sm:$0xff]
      %v4691 = vld [vmem:[%s10 + $0x448] sm:$0xff]
      %v4692 = vld [vmem:[%s10 + $0x450] sm:$0xff]
      %v4693 = vld [vmem:[%s10 + $0x458] sm:$0xff]
      %v4694 = vld [vmem:[%s10 + $0x460] sm:$0xff]
      %v4695 = vld [vmem:[%s10 + $0x468] sm:$0xff]
      %v4696 = vld [vmem:[%s10 + $0x470] sm:$0xff]
      %v4697 = vld [vmem:[%s10 + $0x478] sm:$0xff]
      %v4698 = vld [vmem:[%s10 + $0x480] sm:$0xff]
      %v4699 = vld [vmem:[%s10 + $0x488] sm:$0xff]
      %v4700 = vld [vmem:[%s10 + $0x490] sm:$0xff]
      %v4701 = vld [vmem:[%s10 + $0x498] sm:$0xff]
      %v4702 = vld [vmem:[%s10 + $0x4a0] sm:$0xff]
      %v4703 = vld [vmem:[%s10 + $0x4a8] sm:$0xff]
      %v4704 = vld [vmem:[%s10 + $0x4b0] sm:$0xff]
      %v4705 = vld [vmem:[%s10 + $0x4b8] sm:$0xff]
      %v4706 = vld [vmem:[%s10 + $0x4c0] sm:$0xff]
      %v4707 = vld [vmem:[%s10 + $0x4c8] sm:$0xff]
      %v4708 = vld [vmem:[%s10 + $0x4d0] sm:$0xff]
      %v4709 = vld [vmem:[%s10 + $0x4d8] sm:$0xff]
      %v4710 = vld [vmem:[%s10 + $0x4e0] sm:$0xff]
      %v4711 = vld [vmem:[%s10 + $0x4e8] sm:$0xff]
      %v4712 = vld [vmem:[%s10 + $0x4f0] sm:$0xff]
      %v4713 = vld [vmem:[%s10 + $0x4f8] sm:$0xff]
      %v4714 = vld [vmem:[%s10 + $0x500] sm:$0xff]
      %v4715 = vld [vmem:[%s10 + $0x508] sm:$0xff]
      %v4716 = vld [vmem:[%s10 + $0x510] sm:$0xff]
      %v4717 = vld [vmem:[%s10 + $0x518] sm:$0xff]
      %v4718 = vld [vmem:[%s10 + $0x520] sm:$0xff]
      %v4719 = vld [vmem:[%s10 + $0x528] sm:$0xff]
      %v4720 = vld [vmem:[%s10 + $0x530] sm:$0xff]
      %v4721 = vld [vmem:[%s10 + $0x538] sm:$0xff]
      %v4722 = vld [vmem:[%s10 + $0x540] sm:$0xff]
      %v4723 = vld [vmem:[%s10 + $0x548] sm:$0xff]
      %v4724 = vld [vmem:[%s10 + $0x550] sm:$0xff]
      %v4725 = vld [vmem:[%s10 + $0x558] sm:$0xff]
      %v4726 = vld [vmem:[%s10 + $0x560] sm:$0xff]
      %v4727 = vld [vmem:[%s10 + $0x568] sm:$0xff]
      %v4728 = vld [vmem:[%s10 + $0x570] sm:$0xff]
      %v4729 = vld [vmem:[%s10 + $0x578] sm:$0xff]
      %v4730 = vld [vmem:[%s10 + $0x580] sm:$0xff]
      %v4731 = vld [vmem:[%s10 + $0x588] sm:$0xff]
      %v4732 = vld [vmem:[%s10 + $0x590] sm:$0xff]
      %v4733 = vld [vmem:[%s10 + $0x598] sm:$0xff]
      %v4734 = vld [vmem:[%s10 + $0x5a0] sm:$0xff]
      %v4735 = vld [vmem:[%s10 + $0x5a8] sm:$0xff]
      %v4736 = vld [vmem:[%s10 + $0x5b0] sm:$0xff]
      %v4737 = vld [vmem:[%s10 + $0x5b8] sm:$0xff]
      %v4738 = vld [vmem:[%s10 + $0x5c0] sm:$0xff]
      %v4739 = vld [vmem:[%s10 + $0x5c8] sm:$0xff]
      %v4740 = vld [vmem:[%s10 + $0x5d0] sm:$0xff]
      %v4741 = vld [vmem:[%s10 + $0x5d8] sm:$0xff]
      %v4742 = vld [vmem:[%s10 + $0x5e0] sm:$0xff]
      %v4743 = vld [vmem:[%s10 + $0x5e8] sm:$0xff]
      %v4744 = vld [vmem:[%s10 + $0x5f0] sm:$0xff]
      %v4745 = vld [vmem:[%s10 + $0x5f8] sm:$0xff]
      %v4746 = vld [vmem:[%s10 + $0x600] sm:$0xff]
      %v4747 = vld [vmem:[%s10 + $0x608] sm:$0xff]
      %v4748 = vld [vmem:[%s10 + $0x610] sm:$0xff]
      %v4749 = vld [vmem:[%s10 + $0x618] sm:$0xff]
      %v4750 = vld [vmem:[%s10 + $0x620] sm:$0xff]
      %v4751 = vld [vmem:[%s10 + $0x628] sm:$0xff]
      %v4752 = vld [vmem:[%s10 + $0x630] sm:$0xff]
      %v4753 = vld [vmem:[%s10 + $0x638] sm:$0xff]
      %v4754 = vld [vmem:[%s10 + $0x640] sm:$0xff]
      %v4755 = vld [vmem:[%s10 + $0x648] sm:$0xff]
      %v4756 = vld [vmem:[%s10 + $0x650] sm:$0xff]
      %v4757 = vld [vmem:[%s10 + $0x658] sm:$0xff]
      %v4758 = vld [vmem:[%s10 + $0x660] sm:$0xff]
      %v4759 = vld [vmem:[%s10 + $0x668] sm:$0xff]
      %v4760 = vld [vmem:[%s10 + $0x670] sm:$0xff]
      %v4761 = vld [vmem:[%s10 + $0x678] sm:$0xff]
      %v4762 = vld [vmem:[%s10 + $0x680] sm:$0xff]
      %v4763 = vld [vmem:[%s10 + $0x688] sm:$0xff]
      %v4764 = vld [vmem:[%s10 + $0x690] sm:$0xff]
      %v4765 = vld [vmem:[%s10 + $0x698] sm:$0xff]
      %v4766 = vld [vmem:[%s10 + $0x6a0] sm:$0xff]
      %v4767 = vld [vmem:[%s10 + $0x6a8] sm:$0xff]
      %v4768 = vld [vmem:[%s10 + $0x6b0] sm:$0xff]
      %v4769 = vld [vmem:[%s10 + $0x6b8] sm:$0xff]
      %v4770 = vld [vmem:[%s10 + $0x6c0] sm:$0xff]
      %v4771 = vld [vmem:[%s10 + $0x6c8] sm:$0xff]
      %v4772 = vld [vmem:[%s10 + $0x6d0] sm:$0xff]
      %v4773 = vld [vmem:[%s10 + $0x6d8] sm:$0xff]
      %v4774 = vld [vmem:[%s10 + $0x6e0] sm:$0xff]
      %v4775 = vld [vmem:[%s10 + $0x6e8] sm:$0xff]
      %v4776 = vld [vmem:[%s10 + $0x6f0] sm:$0xff]
      %v4777 = vld [vmem:[%s10 + $0x6f8] sm:$0xff]
      %v4778 = vld [vmem:[%s10 + $0x700] sm:$0xff]
      %v4779 = vld [vmem:[%s10 + $0x708] sm:$0xff]
      %v4780 = vld [vmem:[%s10 + $0x710] sm:$0xff]
      %v4781 = vld [vmem:[%s10 + $0x718] sm:$0xff]
      %v4782 = vld [vmem:[%s10 + $0x720] sm:$0xff]
      %v4783 = vld [vmem:[%s10 + $0x728] sm:$0xff]
      %v4784 = vld [vmem:[%s10 + $0x730] sm:$0xff]
      %v4785 = vld [vmem:[%s10 + $0x738] sm:$0xff]
      %v4786 = vld [vmem:[%s10 + $0x740] sm:$0xff]
      %v4787 = vld [vmem:[%s10 + $0x748] sm:$0xff]
      %v4788 = vld [vmem:[%s10 + $0x750] sm:$0xff]
      %v4789 = vld [vmem:[%s10 + $0x758] sm:$0xff]
      %v4790 = vld [vmem:[%s10 + $0x760] sm:$0xff]
      %v4791 = vld [vmem:[%s10 + $0x768] sm:$0xff]
      %v4792 = vld [vmem:[%s10 + $0x770] sm:$0xff]
      %v4793 = vld [vmem:[%s10 + $0x778] sm:$0xff]
      %v4794 = vld [vmem:[%s10 + $0x780] sm:$0xff]
      %v4795 = vld [vmem:[%s10 + $0x788] sm:$0xff]
      %v4796 = vld [vmem:[%s10 + $0x790] sm:$0xff]
      %v4797 = vld [vmem:[%s10 + $0x798] sm:$0xff]
      %v4798 = vld [vmem:[%s10 + $0x7a0] sm:$0xff]
      %v4799 = vld [vmem:[%s10 + $0x7a8] sm:$0xff]
      %v4800 = vld [vmem:[%s10 + $0x7b0] sm:$0xff]
      %v4801 = vld [vmem:[%s10 + $0x7b8] sm:$0xff]
      %v4802 = vld [vmem:[%s10 + $0x7c0] sm:$0xff]
      %v4803 = vld [vmem:[%s10 + $0x7c8] sm:$0xff]
      %v4804 = vld [vmem:[%s10 + $0x7d0] sm:$0xff]
      %v4805 = vld [vmem:[%s10 + $0x7d8] sm:$0xff]
      %v4806 = vld [vmem:[%s10 + $0x7e0] sm:$0xff]
      %v4807 = vld [vmem:[%s10 + $0x7e8] sm:$0xff]
      %v4808 = vld [vmem:[%s10 + $0x7f0] sm:$0xff]
      %v4809 = vld [vmem:[%s10 + $0x7f8] sm:$0xff]
      %v4810 = vld [vmem:[%s11] sm:$0x3]
      %v4812 = vlaneseq
      %v4813 = vshrl.u32 %v4812, 7
      %v4814 = vsub.s32 0, %v4813
      %v4815 = vrot.slane %v4810, %v4814
      %v4816 = vlaneseq
      %v4817 = vshrl.u32 %v4816, 7
      %v4818 = vsub.s32 1, %v4817
      %v4819 = vrot.slane %v4810, %v4818
      %v4826 = vcombine.high %v4550, %v4550
      %v4828 = vunpack.c.l.s4 1983009808
      %v4829 = vunpack.c.0.s8 %v4828
      %v4830 = vlaneseq
      %v4831 = vshrl.u32 %v4830, 7
      %v4832 = vsub.s32 %v4829, %v4831
      %v4833 = vrot.slane %v4550, %v4832
      %v4835 = vunpack.c.l.s4 1983009808
      %v4836 = vunpack.c.0.s8 %v4835
      %v4837 = vlaneseq
      %v4838 = vshrl.u32 %v4837, 7
      %v4839 = vsub.s32 %v4836, %v4838
      %v4840 = vrot.slane %v4826, %v4839
      %v4841 = vcombine.high %v4833, %v4833
      %v4842 = vcombine.high %v4840, %v4840
      %v4843 = vcombine.high %v4551, %v4551
      %v4845 = vunpack.c.l.s4 1983009808
      %v4846 = vunpack.c.0.s8 %v4845
      %v4847 = vlaneseq
      %v4848 = vshrl.u32 %v4847, 7
      %v4849 = vsub.s32 %v4846, %v4848
      %v4850 = vrot.slane %v4551, %v4849
      %v4852 = vunpack.c.l.s4 1983009808
      %v4853 = vunpack.c.0.s8 %v4852
      %v4854 = vlaneseq
      %v4855 = vshrl.u32 %v4854, 7
      %v4856 = vsub.s32 %v4853, %v4855
      %v4857 = vrot.slane %v4843, %v4856
      %v4858 = vcombine.high %v4850, %v4850
      %v4859 = vcombine.high %v4857, %v4857
      %v4860 = vcombine.high %v4552, %v4552
      %v4862 = vunpack.c.l.s4 1983009808
      %v4863 = vunpack.c.0.s8 %v4862
      %v4864 = vlaneseq
      %v4865 = vshrl.u32 %v4864, 7
      %v4866 = vsub.s32 %v4863, %v4865
      %v4867 = vrot.slane %v4552, %v4866
      %v4869 = vunpack.c.l.s4 1983009808
      %v4870 = vunpack.c.0.s8 %v4869
      %v4871 = vlaneseq
      %v4872 = vshrl.u32 %v4871, 7
      %v4873 = vsub.s32 %v4870, %v4872
      %v4874 = vrot.slane %v4860, %v4873
      %v4875 = vcombine.high %v4867, %v4867
      %v4876 = vcombine.high %v4874, %v4874
      %v4877 = vcombine.high %v4553, %v4553
      %v4879 = vunpack.c.l.s4 1983009808
      %v4880 = vunpack.c.0.s8 %v4879
      %v4881 = vlaneseq
      %v4882 = vshrl.u32 %v4881, 7
      %v4883 = vsub.s32 %v4880, %v4882
      %v4884 = vrot.slane %v4553, %v4883
      %v4886 = vunpack.c.l.s4 1983009808
      %v4887 = vunpack.c.0.s8 %v4886
      %v4888 = vlaneseq
      %v4889 = vshrl.u32 %v4888, 7
      %v4890 = vsub.s32 %v4887, %v4889
      %v4891 = vrot.slane %v4877, %v4890
      %v4892 = vcombine.high %v4884, %v4884
      %v4893 = vcombine.high %v4891, %v4891
      %v5166 = vunpack.c.l.b16 %v4554
      %v5167 = vunpack.c.h.b16 %v4554
      %v5168 = vunpack.c.l.b16 %v4555
      %v5169 = vunpack.c.h.b16 %v4555
      %v5170 = vunpack.c.l.b16 %v4556
      %v5171 = vunpack.c.h.b16 %v4556
      %v5172 = vunpack.c.l.b16 %v4557
      %v5173 = vunpack.c.h.b16 %v4557
      %v5174 = vunpack.c.l.b16 %v4558
      %v5175 = vunpack.c.h.b16 %v4558
      %v5176 = vunpack.c.l.b16 %v4559
      %v5177 = vunpack.c.h.b16 %v4559
      %v5178 = vunpack.c.l.b16 %v4560
      %v5179 = vunpack.c.h.b16 %v4560
      %v5180 = vunpack.c.l.b16 %v4561
      %v5181 = vunpack.c.h.b16 %v4561
      %v5182 = vunpack.c.l.b16 %v4562
      %v5183 = vunpack.c.h.b16 %v4562
      %v5184 = vunpack.c.l.b16 %v4563
      %v5185 = vunpack.c.h.b16 %v4563
      %v5186 = vunpack.c.l.b16 %v4564
      %v5187 = vunpack.c.h.b16 %v4564
      %v5188 = vunpack.c.l.b16 %v4565
      %v5189 = vunpack.c.h.b16 %v4565
      %v5190 = vunpack.c.l.b16 %v4566
      %v5191 = vunpack.c.h.b16 %v4566
      %v5192 = vunpack.c.l.b16 %v4567
      %v5193 = vunpack.c.h.b16 %v4567
      %v5194 = vunpack.c.l.b16 %v4568
      %v5195 = vunpack.c.h.b16 %v4568
      %v5196 = vunpack.c.l.b16 %v4569
      %v5197 = vunpack.c.h.b16 %v4569
      %v5198 = vunpack.c.l.b16 %v4570
      %v5199 = vunpack.c.h.b16 %v4570
      %v5200 = vunpack.c.l.b16 %v4571
      %v5201 = vunpack.c.h.b16 %v4571
      %v5202 = vunpack.c.l.b16 %v4572
      %v5203 = vunpack.c.h.b16 %v4572
      %v5204 = vunpack.c.l.b16 %v4573
      %v5205 = vunpack.c.h.b16 %v4573
      %v5206 = vunpack.c.l.b16 %v4574
      %v5207 = vunpack.c.h.b16 %v4574
      %v5208 = vunpack.c.l.b16 %v4575
      %v5209 = vunpack.c.h.b16 %v4575
      %v5210 = vunpack.c.l.b16 %v4576
      %v5211 = vunpack.c.h.b16 %v4576
      %v5212 = vunpack.c.l.b16 %v4577
      %v5213 = vunpack.c.h.b16 %v4577
      %v5214 = vunpack.c.l.b16 %v4578
      %v5215 = vunpack.c.h.b16 %v4578
      %v5216 = vunpack.c.l.b16 %v4579
      %v5217 = vunpack.c.h.b16 %v4579
      %v5218 = vunpack.c.l.b16 %v4580
      %v5219 = vunpack.c.h.b16 %v4580
      %v5220 = vunpack.c.l.b16 %v4581
      %v5221 = vunpack.c.h.b16 %v4581
      %v5222 = vunpack.c.l.b16 %v4582
      %v5223 = vunpack.c.h.b16 %v4582
      %v5224 = vunpack.c.l.b16 %v4583
      %v5225 = vunpack.c.h.b16 %v4583
      %v5226 = vunpack.c.l.b16 %v4584
      %v5227 = vunpack.c.h.b16 %v4584
      %v5228 = vunpack.c.l.b16 %v4585
      %v5229 = vunpack.c.h.b16 %v4585
      %v5230 = vunpack.c.l.b16 %v4586
      %v5231 = vunpack.c.h.b16 %v4586
      %v5232 = vunpack.c.l.b16 %v4587
      %v5233 = vunpack.c.h.b16 %v4587
      %v5234 = vunpack.c.l.b16 %v4588
      %v5235 = vunpack.c.h.b16 %v4588
      %v5236 = vunpack.c.l.b16 %v4589
      %v5237 = vunpack.c.h.b16 %v4589
      %v5238 = vunpack.c.l.b16 %v4590
      %v5239 = vunpack.c.h.b16 %v4590
      %v5240 = vunpack.c.l.b16 %v4591
      %v5241 = vunpack.c.h.b16 %v4591
      %v5242 = vunpack.c.l.b16 %v4592
      %v5243 = vunpack.c.h.b16 %v4592
      %v5244 = vunpack.c.l.b16 %v4593
      %v5245 = vunpack.c.h.b16 %v4593
      %v5246 = vunpack.c.l.b16 %v4594
      %v5247 = vunpack.c.h.b16 %v4594
      %v5248 = vunpack.c.l.b16 %v4595
      %v5249 = vunpack.c.h.b16 %v4595
      %v5250 = vunpack.c.l.b16 %v4596
      %v5251 = vunpack.c.h.b16 %v4596
      %v5252 = vunpack.c.l.b16 %v4597
      %v5253 = vunpack.c.h.b16 %v4597
      %v5254 = vunpack.c.l.b16 %v4598
      %v5255 = vunpack.c.h.b16 %v4598
      %v5256 = vunpack.c.l.b16 %v4599
      %v5257 = vunpack.c.h.b16 %v4599
      %v5258 = vunpack.c.l.b16 %v4600
      %v5259 = vunpack.c.h.b16 %v4600
      %v5260 = vunpack.c.l.b16 %v4601
      %v5261 = vunpack.c.h.b16 %v4601
      %v5262 = vunpack.c.l.b16 %v4602
      %v5263 = vunpack.c.h.b16 %v4602
      %v5264 = vunpack.c.l.b16 %v4603
      %v5265 = vunpack.c.h.b16 %v4603
      %v5266 = vunpack.c.l.b16 %v4604
      %v5267 = vunpack.c.h.b16 %v4604
      %v5268 = vunpack.c.l.b16 %v4605
      %v5269 = vunpack.c.h.b16 %v4605
      %v5270 = vunpack.c.l.b16 %v4606
      %v5271 = vunpack.c.h.b16 %v4606
      %v5272 = vunpack.c.l.b16 %v4607
      %v5273 = vunpack.c.h.b16 %v4607
      %v5274 = vunpack.c.l.b16 %v4608
      %v5275 = vunpack.c.h.b16 %v4608
      %v5276 = vunpack.c.l.b16 %v4609
      %v5277 = vunpack.c.h.b16 %v4609
      %v5278 = vunpack.c.l.b16 %v4610
      %v5279 = vunpack.c.h.b16 %v4610
      %v5280 = vunpack.c.l.b16 %v4611
      %v5281 = vunpack.c.h.b16 %v4611
      %v5282 = vunpack.c.l.b16 %v4612
      %v5283 = vunpack.c.h.b16 %v4612
      %v5284 = vunpack.c.l.b16 %v4613
      %v5285 = vunpack.c.h.b16 %v4613
      %v5286 = vunpack.c.l.b16 %v4614
      %v5287 = vunpack.c.h.b16 %v4614
      %v5288 = vunpack.c.l.b16 %v4615
      %v5289 = vunpack.c.h.b16 %v4615
      %v5290 = vunpack.c.l.b16 %v4616
      %v5291 = vunpack.c.h.b16 %v4616
      %v5292 = vunpack.c.l.b16 %v4617
      %v5293 = vunpack.c.h.b16 %v4617
      %v5294 = vunpack.c.l.b16 %v4618
      %v5295 = vunpack.c.h.b16 %v4618
      %v5296 = vunpack.c.l.b16 %v4619
      %v5297 = vunpack.c.h.b16 %v4619
      %v5298 = vunpack.c.l.b16 %v4620
      %v5299 = vunpack.c.h.b16 %v4620
      %v5300 = vunpack.c.l.b16 %v4621
      %v5301 = vunpack.c.h.b16 %v4621
      %v5302 = vunpack.c.l.b16 %v4622
      %v5303 = vunpack.c.h.b16 %v4622
      %v5304 = vunpack.c.l.b16 %v4623
      %v5305 = vunpack.c.h.b16 %v4623
      %v5306 = vunpack.c.l.b16 %v4624
      %v5307 = vunpack.c.h.b16 %v4624
      %v5308 = vunpack.c.l.b16 %v4625
      %v5309 = vunpack.c.h.b16 %v4625
      %v5310 = vunpack.c.l.b16 %v4626
      %v5311 = vunpack.c.h.b16 %v4626
      %v5312 = vunpack.c.l.b16 %v4627
      %v5313 = vunpack.c.h.b16 %v4627
      %v5314 = vunpack.c.l.b16 %v4628
      %v5315 = vunpack.c.h.b16 %v4628
      %v5316 = vunpack.c.l.b16 %v4629
      %v5317 = vunpack.c.h.b16 %v4629
      %v5318 = vunpack.c.l.b16 %v4630
      %v5319 = vunpack.c.h.b16 %v4630
      %v5320 = vunpack.c.l.b16 %v4631
      %v5321 = vunpack.c.h.b16 %v4631
      %v5322 = vunpack.c.l.b16 %v4632
      %v5323 = vunpack.c.h.b16 %v4632
      %v5324 = vunpack.c.l.b16 %v4633
      %v5325 = vunpack.c.h.b16 %v4633
      %v5326 = vunpack.c.l.b16 %v4634
      %v5327 = vunpack.c.h.b16 %v4634
      %v5328 = vunpack.c.l.b16 %v4635
      %v5329 = vunpack.c.h.b16 %v4635
      %v5330 = vunpack.c.l.b16 %v4636
      %v5331 = vunpack.c.h.b16 %v4636
      %v5332 = vunpack.c.l.b16 %v4637
      %v5333 = vunpack.c.h.b16 %v4637
      %v5334 = vunpack.c.l.b16 %v4638
      %v5335 = vunpack.c.h.b16 %v4638
      %v5336 = vunpack.c.l.b16 %v4639
      %v5337 = vunpack.c.h.b16 %v4639
      %v5338 = vunpack.c.l.b16 %v4640
      %v5339 = vunpack.c.h.b16 %v4640
      %v5340 = vunpack.c.l.b16 %v4641
      %v5341 = vunpack.c.h.b16 %v4641
      %v5342 = vunpack.c.l.b16 %v4642
      %v5343 = vunpack.c.h.b16 %v4642
      %v5344 = vunpack.c.l.b16 %v4643
      %v5345 = vunpack.c.h.b16 %v4643
      %v5346 = vunpack.c.l.b16 %v4644
      %v5347 = vunpack.c.h.b16 %v4644
      %v5348 = vunpack.c.l.b16 %v4645
      %v5349 = vunpack.c.h.b16 %v4645
      %v5350 = vunpack.c.l.b16 %v4646
      %v5351 = vunpack.c.h.b16 %v4646
      %v5352 = vunpack.c.l.b16 %v4647
      %v5353 = vunpack.c.h.b16 %v4647
      %v5354 = vunpack.c.l.b16 %v4648
      %v5355 = vunpack.c.h.b16 %v4648
      %v5356 = vunpack.c.l.b16 %v4649
      %v5357 = vunpack.c.h.b16 %v4649
      %v5358 = vunpack.c.l.b16 %v4650
      %v5359 = vunpack.c.h.b16 %v4650
      %v5360 = vunpack.c.l.b16 %v4651
      %v5361 = vunpack.c.h.b16 %v4651
      %v5362 = vunpack.c.l.b16 %v4652
      %v5363 = vunpack.c.h.b16 %v4652
      %v5364 = vunpack.c.l.b16 %v4653
      %v5365 = vunpack.c.h.b16 %v4653
      %v5366 = vunpack.c.l.b16 %v4654
      %v5367 = vunpack.c.h.b16 %v4654
      %v5368 = vunpack.c.l.b16 %v4655
      %v5369 = vunpack.c.h.b16 %v4655
      %v5370 = vunpack.c.l.b16 %v4656
      %v5371 = vunpack.c.h.b16 %v4656
      %v5372 = vunpack.c.l.b16 %v4657
      %v5373 = vunpack.c.h.b16 %v4657
      %v5374 = vunpack.c.l.b16 %v4658
      %v5375 = vunpack.c.h.b16 %v4658
      %v5376 = vunpack.c.l.b16 %v4659
      %v5377 = vunpack.c.h.b16 %v4659
      %v5378 = vunpack.c.l.b16 %v4660
      %v5379 = vunpack.c.h.b16 %v4660
      %v5380 = vunpack.c.l.b16 %v4661
      %v5381 = vunpack.c.h.b16 %v4661
      %v5382 = vunpack.c.l.b16 %v4662
      %v5383 = vunpack.c.h.b16 %v4662
      %v5384 = vunpack.c.l.b16 %v4663
      %v5385 = vunpack.c.h.b16 %v4663
      %v5386 = vunpack.c.l.b16 %v4664
      %v5387 = vunpack.c.h.b16 %v4664
      %v5388 = vunpack.c.l.b16 %v4665
      %v5389 = vunpack.c.h.b16 %v4665
      %v5390 = vunpack.c.l.b16 %v4666
      %v5391 = vunpack.c.h.b16 %v4666
      %v5392 = vunpack.c.l.b16 %v4667
      %v5393 = vunpack.c.h.b16 %v4667
      %v5394 = vunpack.c.l.b16 %v4668
      %v5395 = vunpack.c.h.b16 %v4668
      %v5396 = vunpack.c.l.b16 %v4669
      %v5397 = vunpack.c.h.b16 %v4669
      %v5398 = vunpack.c.l.b16 %v4670
      %v5399 = vunpack.c.h.b16 %v4670
      %v5400 = vunpack.c.l.b16 %v4671
      %v5401 = vunpack.c.h.b16 %v4671
      %v5402 = vunpack.c.l.b16 %v4672
      %v5403 = vunpack.c.h.b16 %v4672
      %v5404 = vunpack.c.l.b16 %v4673
      %v5405 = vunpack.c.h.b16 %v4673
      %v5406 = vunpack.c.l.b16 %v4674
      %v5407 = vunpack.c.h.b16 %v4674
      %v5408 = vunpack.c.l.b16 %v4675
      %v5409 = vunpack.c.h.b16 %v4675
      %v5410 = vunpack.c.l.b16 %v4676
      %v5411 = vunpack.c.h.b16 %v4676
      %v5412 = vunpack.c.l.b16 %v4677
      %v5413 = vunpack.c.h.b16 %v4677
      %v5414 = vunpack.c.l.b16 %v4678
      %v5415 = vunpack.c.h.b16 %v4678
      %v5416 = vunpack.c.l.b16 %v4679
      %v5417 = vunpack.c.h.b16 %v4679
      %v5418 = vunpack.c.l.b16 %v4680
      %v5419 = vunpack.c.h.b16 %v4680
      %v5420 = vunpack.c.l.b16 %v4681
      %v5421 = vunpack.c.h.b16 %v4681
      %v5422 = vunpack.c.l.b16 %v4682
      %v5423 = vunpack.c.h.b16 %v4682
      %v5424 = vunpack.c.l.b16 %v4683
      %v5425 = vunpack.c.h.b16 %v4683
      %v5426 = vunpack.c.l.b16 %v4684
      %v5427 = vunpack.c.h.b16 %v4684
      %v5428 = vunpack.c.l.b16 %v4685
      %v5429 = vunpack.c.h.b16 %v4685
      %v5430 = vunpack.c.l.b16 %v4686
      %v5431 = vunpack.c.h.b16 %v4686
      %v5432 = vunpack.c.l.b16 %v4687
      %v5433 = vunpack.c.h.b16 %v4687
      %v5434 = vunpack.c.l.b16 %v4688
      %v5435 = vunpack.c.h.b16 %v4688
      %v5436 = vunpack.c.l.b16 %v4689
      %v5437 = vunpack.c.h.b16 %v4689
      %v5438 = vunpack.c.l.b16 %v4690
      %v5439 = vunpack.c.h.b16 %v4690
      %v5440 = vunpack.c.l.b16 %v4691
      %v5441 = vunpack.c.h.b16 %v4691
      %v5442 = vunpack.c.l.b16 %v4692
      %v5443 = vunpack.c.h.b16 %v4692
      %v5444 = vunpack.c.l.b16 %v4693
      %v5445 = vunpack.c.h.b16 %v4693
      %v5446 = vunpack.c.l.b16 %v4694
      %v5447 = vunpack.c.h.b16 %v4694
      %v5448 = vunpack.c.l.b16 %v4695
      %v5449 = vunpack.c.h.b16 %v4695
      %v5450 = vunpack.c.l.b16 %v4696
      %v5451 = vunpack.c.h.b16 %v4696
      %v5452 = vunpack.c.l.b16 %v4697
      %v5453 = vunpack.c.h.b16 %v4697
      %v5454 = vunpack.c.l.b16 %v4698
      %v5455 = vunpack.c.h.b16 %v4698
      %v5456 = vunpack.c.l.b16 %v4699
      %v5457 = vunpack.c.h.b16 %v4699
      %v5458 = vunpack.c.l.b16 %v4700
      %v5459 = vunpack.c.h.b16 %v4700
      %v5460 = vunpack.c.l.b16 %v4701
      %v5461 = vunpack.c.h.b16 %v4701
      %v5462 = vunpack.c.l.b16 %v4702
      %v5463 = vunpack.c.h.b16 %v4702
      %v5464 = vunpack.c.l.b16 %v4703
      %v5465 = vunpack.c.h.b16 %v4703
      %v5466 = vunpack.c.l.b16 %v4704
      %v5467 = vunpack.c.h.b16 %v4704
      %v5468 = vunpack.c.l.b16 %v4705
      %v5469 = vunpack.c.h.b16 %v4705
      %v5470 = vunpack.c.l.b16 %v4706
      %v5471 = vunpack.c.h.b16 %v4706
      %v5472 = vunpack.c.l.b16 %v4707
      %v5473 = vunpack.c.h.b16 %v4707
      %v5474 = vunpack.c.l.b16 %v4708
      %v5475 = vunpack.c.h.b16 %v4708
      %v5476 = vunpack.c.l.b16 %v4709
      %v5477 = vunpack.c.h.b16 %v4709
      %v5478 = vunpack.c.l.b16 %v4710
      %v5479 = vunpack.c.h.b16 %v4710
      %v5480 = vunpack.c.l.b16 %v4711
      %v5481 = vunpack.c.h.b16 %v4711
      %v5482 = vunpack.c.l.b16 %v4712
      %v5483 = vunpack.c.h.b16 %v4712
      %v5484 = vunpack.c.l.b16 %v4713
      %v5485 = vunpack.c.h.b16 %v4713
      %v5486 = vunpack.c.l.b16 %v4714
      %v5487 = vunpack.c.h.b16 %v4714
      %v5488 = vunpack.c.l.b16 %v4715
      %v5489 = vunpack.c.h.b16 %v4715
      %v5490 = vunpack.c.l.b16 %v4716
      %v5491 = vunpack.c.h.b16 %v4716
      %v5492 = vunpack.c.l.b16 %v4717
      %v5493 = vunpack.c.h.b16 %v4717
      %v5494 = vunpack.c.l.b16 %v4718
      %v5495 = vunpack.c.h.b16 %v4718
      %v5496 = vunpack.c.l.b16 %v4719
      %v5497 = vunpack.c.h.b16 %v4719
      %v5498 = vunpack.c.l.b16 %v4720
      %v5499 = vunpack.c.h.b16 %v4720
      %v5500 = vunpack.c.l.b16 %v4721
      %v5501 = vunpack.c.h.b16 %v4721
      %v5502 = vunpack.c.l.b16 %v4722
      %v5503 = vunpack.c.h.b16 %v4722
      %v5504 = vunpack.c.l.b16 %v4723
      %v5505 = vunpack.c.h.b16 %v4723
      %v5506 = vunpack.c.l.b16 %v4724
      %v5507 = vunpack.c.h.b16 %v4724
      %v5508 = vunpack.c.l.b16 %v4725
      %v5509 = vunpack.c.h.b16 %v4725
      %v5510 = vunpack.c.l.b16 %v4726
      %v5511 = vunpack.c.h.b16 %v4726
      %v5512 = vunpack.c.l.b16 %v4727
      %v5513 = vunpack.c.h.b16 %v4727
      %v5514 = vunpack.c.l.b16 %v4728
      %v5515 = vunpack.c.h.b16 %v4728
      %v5516 = vunpack.c.l.b16 %v4729
      %v5517 = vunpack.c.h.b16 %v4729
      %v5518 = vunpack.c.l.b16 %v4730
      %v5519 = vunpack.c.h.b16 %v4730
      %v5520 = vunpack.c.l.b16 %v4731
      %v5521 = vunpack.c.h.b16 %v4731
      %v5522 = vunpack.c.l.b16 %v4732
      %v5523 = vunpack.c.h.b16 %v4732
      %v5524 = vunpack.c.l.b16 %v4733
      %v5525 = vunpack.c.h.b16 %v4733
      %v5526 = vunpack.c.l.b16 %v4734
      %v5527 = vunpack.c.h.b16 %v4734
      %v5528 = vunpack.c.l.b16 %v4735
      %v5529 = vunpack.c.h.b16 %v4735
      %v5530 = vunpack.c.l.b16 %v4736
      %v5531 = vunpack.c.h.b16 %v4736
      %v5532 = vunpack.c.l.b16 %v4737
      %v5533 = vunpack.c.h.b16 %v4737
      %v5534 = vunpack.c.l.b16 %v4738
      %v5535 = vunpack.c.h.b16 %v4738
      %v5536 = vunpack.c.l.b16 %v4739
      %v5537 = vunpack.c.h.b16 %v4739
      %v5538 = vunpack.c.l.b16 %v4740
      %v5539 = vunpack.c.h.b16 %v4740
      %v5540 = vunpack.c.l.b16 %v4741
      %v5541 = vunpack.c.h.b16 %v4741
      %v5542 = vunpack.c.l.b16 %v4742
      %v5543 = vunpack.c.h.b16 %v4742
      %v5544 = vunpack.c.l.b16 %v4743
      %v5545 = vunpack.c.h.b16 %v4743
      %v5546 = vunpack.c.l.b16 %v4744
      %v5547 = vunpack.c.h.b16 %v4744
      %v5548 = vunpack.c.l.b16 %v4745
      %v5549 = vunpack.c.h.b16 %v4745
      %v5550 = vunpack.c.l.b16 %v4746
      %v5551 = vunpack.c.h.b16 %v4746
      %v5552 = vunpack.c.l.b16 %v4747
      %v5553 = vunpack.c.h.b16 %v4747
      %v5554 = vunpack.c.l.b16 %v4748
      %v5555 = vunpack.c.h.b16 %v4748
      %v5556 = vunpack.c.l.b16 %v4749
      %v5557 = vunpack.c.h.b16 %v4749
      %v5558 = vunpack.c.l.b16 %v4750
      %v5559 = vunpack.c.h.b16 %v4750
      %v5560 = vunpack.c.l.b16 %v4751
      %v5561 = vunpack.c.h.b16 %v4751
      %v5562 = vunpack.c.l.b16 %v4752
      %v5563 = vunpack.c.h.b16 %v4752
      %v5564 = vunpack.c.l.b16 %v4753
      %v5565 = vunpack.c.h.b16 %v4753
      %v5566 = vunpack.c.l.b16 %v4754
      %v5567 = vunpack.c.h.b16 %v4754
      %v5568 = vunpack.c.l.b16 %v4755
      %v5569 = vunpack.c.h.b16 %v4755
      %v5570 = vunpack.c.l.b16 %v4756
      %v5571 = vunpack.c.h.b16 %v4756
      %v5572 = vunpack.c.l.b16 %v4757
      %v5573 = vunpack.c.h.b16 %v4757
      %v5574 = vunpack.c.l.b16 %v4758
      %v5575 = vunpack.c.h.b16 %v4758
      %v5576 = vunpack.c.l.b16 %v4759
      %v5577 = vunpack.c.h.b16 %v4759
      %v5578 = vunpack.c.l.b16 %v4760
      %v5579 = vunpack.c.h.b16 %v4760
      %v5580 = vunpack.c.l.b16 %v4761
      %v5581 = vunpack.c.h.b16 %v4761
      %v5582 = vunpack.c.l.b16 %v4762
      %v5583 = vunpack.c.h.b16 %v4762
      %v5584 = vunpack.c.l.b16 %v4763
      %v5585 = vunpack.c.h.b16 %v4763
      %v5586 = vunpack.c.l.b16 %v4764
      %v5587 = vunpack.c.h.b16 %v4764
      %v5588 = vunpack.c.l.b16 %v4765
      %v5589 = vunpack.c.h.b16 %v4765
      %v5590 = vunpack.c.l.b16 %v4766
      %v5591 = vunpack.c.h.b16 %v4766
      %v5592 = vunpack.c.l.b16 %v4767
      %v5593 = vunpack.c.h.b16 %v4767
      %v5594 = vunpack.c.l.b16 %v4768
      %v5595 = vunpack.c.h.b16 %v4768
      %v5596 = vunpack.c.l.b16 %v4769
      %v5597 = vunpack.c.h.b16 %v4769
      %v5598 = vunpack.c.l.b16 %v4770
      %v5599 = vunpack.c.h.b16 %v4770
      %v5600 = vunpack.c.l.b16 %v4771
      %v5601 = vunpack.c.h.b16 %v4771
      %v5602 = vunpack.c.l.b16 %v4772
      %v5603 = vunpack.c.h.b16 %v4772
      %v5604 = vunpack.c.l.b16 %v4773
      %v5605 = vunpack.c.h.b16 %v4773
      %v5606 = vunpack.c.l.b16 %v4774
      %v5607 = vunpack.c.h.b16 %v4774
      %v5608 = vunpack.c.l.b16 %v4775
      %v5609 = vunpack.c.h.b16 %v4775
      %v5610 = vunpack.c.l.b16 %v4776
      %v5611 = vunpack.c.h.b16 %v4776
      %v5612 = vunpack.c.l.b16 %v4777
      %v5613 = vunpack.c.h.b16 %v4777
      %v5614 = vunpack.c.l.b16 %v4778
      %v5615 = vunpack.c.h.b16 %v4778
      %v5616 = vunpack.c.l.b16 %v4779
      %v5617 = vunpack.c.h.b16 %v4779
      %v5618 = vunpack.c.l.b16 %v4780
      %v5619 = vunpack.c.h.b16 %v4780
      %v5620 = vunpack.c.l.b16 %v4781
      %v5621 = vunpack.c.h.b16 %v4781
      %v5622 = vunpack.c.l.b16 %v4782
      %v5623 = vunpack.c.h.b16 %v4782
      %v5624 = vunpack.c.l.b16 %v4783
      %v5625 = vunpack.c.h.b16 %v4783
      %v5626 = vunpack.c.l.b16 %v4784
      %v5627 = vunpack.c.h.b16 %v4784
      %v5628 = vunpack.c.l.b16 %v4785
      %v5629 = vunpack.c.h.b16 %v4785
      %v5630 = vunpack.c.l.b16 %v4786
      %v5631 = vunpack.c.h.b16 %v4786
      %v5632 = vunpack.c.l.b16 %v4787
      %v5633 = vunpack.c.h.b16 %v4787
      %v5634 = vunpack.c.l.b16 %v4788
      %v5635 = vunpack.c.h.b16 %v4788
      %v5636 = vunpack.c.l.b16 %v4789
      %v5637 = vunpack.c.h.b16 %v4789
      %v5638 = vunpack.c.l.b16 %v4790
      %v5639 = vunpack.c.h.b16 %v4790
      %v5640 = vunpack.c.l.b16 %v4791
      %v5641 = vunpack.c.h.b16 %v4791
      %v5642 = vunpack.c.l.b16 %v4792
      %v5643 = vunpack.c.h.b16 %v4792
      %v5644 = vunpack.c.l.b16 %v4793
      %v5645 = vunpack.c.h.b16 %v4793
      %v5646 = vunpack.c.l.b16 %v4794
      %v5647 = vunpack.c.h.b16 %v4794
      %v5648 = vunpack.c.l.b16 %v4795
      %v5649 = vunpack.c.h.b16 %v4795
      %v5650 = vunpack.c.l.b16 %v4796
      %v5651 = vunpack.c.h.b16 %v4796
      %v5652 = vunpack.c.l.b16 %v4797
      %v5653 = vunpack.c.h.b16 %v4797
      %v5654 = vunpack.c.l.b16 %v4798
      %v5655 = vunpack.c.h.b16 %v4798
      %v5656 = vunpack.c.l.b16 %v4799
      %v5657 = vunpack.c.h.b16 %v4799
      %v5658 = vunpack.c.l.b16 %v4800
      %v5659 = vunpack.c.h.b16 %v4800
      %v5660 = vunpack.c.l.b16 %v4801
      %v5661 = vunpack.c.h.b16 %v4801
      %v5662 = vunpack.c.l.b16 %v4802
      %v5663 = vunpack.c.h.b16 %v4802
      %v5664 = vunpack.c.l.b16 %v4803
      %v5665 = vunpack.c.h.b16 %v4803
      %v5666 = vunpack.c.l.b16 %v4804
      %v5667 = vunpack.c.h.b16 %v4804
      %v5668 = vunpack.c.l.b16 %v4805
      %v5669 = vunpack.c.h.b16 %v4805
      %v5670 = vunpack.c.l.b16 %v4806
      %v5671 = vunpack.c.h.b16 %v4806
      %v5672 = vunpack.c.l.b16 %v4807
      %v5673 = vunpack.c.h.b16 %v4807
      %v5674 = vunpack.c.l.b16 %v4808
      %v5675 = vunpack.c.h.b16 %v4808
      %v5676 = vunpack.c.l.b16 %v4809
      %v5677 = vunpack.c.h.b16 %v4809
      %v5678 = vpack.c.b16 %v5168, %v5166
      %v5679 = vpack.c.b16 %v5169, %v5167
      %v5680 = vpack.c.b16 %v5172, %v5170
      %v5681 = vpack.c.b16 %v5173, %v5171
      %v5682 = vpack.c.b16 %v5176, %v5174
      %v5683 = vpack.c.b16 %v5177, %v5175
      %v5684 = vpack.c.b16 %v5180, %v5178
      %v5685 = vpack.c.b16 %v5181, %v5179
      %v5686 = vpack.c.b16 %v5184, %v5182
      %v5687 = vpack.c.b16 %v5185, %v5183
      %v5688 = vpack.c.b16 %v5188, %v5186
      %v5689 = vpack.c.b16 %v5189, %v5187
      %v5690 = vpack.c.b16 %v5192, %v5190
      %v5691 = vpack.c.b16 %v5193, %v5191
      %v5692 = vpack.c.b16 %v5196, %v5194
      %v5693 = vpack.c.b16 %v5197, %v5195
      %v5694 = vpack.c.b16 %v5200, %v5198
      %v5695 = vpack.c.b16 %v5201, %v5199
      %v5696 = vpack.c.b16 %v5204, %v5202
      %v5697 = vpack.c.b16 %v5205, %v5203
      %v5698 = vpack.c.b16 %v5208, %v5206
      %v5699 = vpack.c.b16 %v5209, %v5207
      %v5700 = vpack.c.b16 %v5212, %v5210
      %v5701 = vpack.c.b16 %v5213, %v5211
      %v5702 = vpack.c.b16 %v5216, %v5214
      %v5703 = vpack.c.b16 %v5217, %v5215
      %v5704 = vpack.c.b16 %v5220, %v5218
      %v5705 = vpack.c.b16 %v5221, %v5219
      %v5706 = vpack.c.b16 %v5224, %v5222
      %v5707 = vpack.c.b16 %v5225, %v5223
      %v5708 = vpack.c.b16 %v5228, %v5226
      %v5709 = vpack.c.b16 %v5229, %v5227
      %v5710 = vpack.c.b16 %v5232, %v5230
      %v5711 = vpack.c.b16 %v5233, %v5231
      %v5712 = vpack.c.b16 %v5236, %v5234
      %v5713 = vpack.c.b16 %v5237, %v5235
      %v5714 = vpack.c.b16 %v5240, %v5238
      %v5715 = vpack.c.b16 %v5241, %v5239
      %v5716 = vpack.c.b16 %v5244, %v5242
      %v5717 = vpack.c.b16 %v5245, %v5243
      %v5718 = vpack.c.b16 %v5248, %v5246
      %v5719 = vpack.c.b16 %v5249, %v5247
      %v5720 = vpack.c.b16 %v5252, %v5250
      %v5721 = vpack.c.b16 %v5253, %v5251
      %v5722 = vpack.c.b16 %v5256, %v5254
      %v5723 = vpack.c.b16 %v5257, %v5255
      %v5724 = vpack.c.b16 %v5260, %v5258
      %v5725 = vpack.c.b16 %v5261, %v5259
      %v5726 = vpack.c.b16 %v5264, %v5262
      %v5727 = vpack.c.b16 %v5265, %v5263
      %v5728 = vpack.c.b16 %v5268, %v5266
      %v5729 = vpack.c.b16 %v5269, %v5267
      %v5730 = vpack.c.b16 %v5272, %v5270
      %v5731 = vpack.c.b16 %v5273, %v5271
      %v5732 = vpack.c.b16 %v5276, %v5274
      %v5733 = vpack.c.b16 %v5277, %v5275
      %v5734 = vpack.c.b16 %v5280, %v5278
      %v5735 = vpack.c.b16 %v5281, %v5279
      %v5736 = vpack.c.b16 %v5284, %v5282
      %v5737 = vpack.c.b16 %v5285, %v5283
      %v5738 = vpack.c.b16 %v5288, %v5286
      %v5739 = vpack.c.b16 %v5289, %v5287
      %v5740 = vpack.c.b16 %v5292, %v5290
      %v5741 = vpack.c.b16 %v5293, %v5291
      %v5742 = vpack.c.b16 %v5296, %v5294
      %v5743 = vpack.c.b16 %v5297, %v5295
      %v5744 = vpack.c.b16 %v5300, %v5298
      %v5745 = vpack.c.b16 %v5301, %v5299
      %v5746 = vpack.c.b16 %v5304, %v5302
      %v5747 = vpack.c.b16 %v5305, %v5303
      %v5748 = vpack.c.b16 %v5308, %v5306
      %v5749 = vpack.c.b16 %v5309, %v5307
      %v5750 = vpack.c.b16 %v5312, %v5310
      %v5751 = vpack.c.b16 %v5313, %v5311
      %v5752 = vpack.c.b16 %v5316, %v5314
      %v5753 = vpack.c.b16 %v5317, %v5315
      %v5754 = vpack.c.b16 %v5320, %v5318
      %v5755 = vpack.c.b16 %v5321, %v5319
      %v5756 = vpack.c.b16 %v5324, %v5322
      %v5757 = vpack.c.b16 %v5325, %v5323
      %v5758 = vpack.c.b16 %v5328, %v5326
      %v5759 = vpack.c.b16 %v5329, %v5327
      %v5760 = vpack.c.b16 %v5332, %v5330
      %v5761 = vpack.c.b16 %v5333, %v5331
      %v5762 = vpack.c.b16 %v5336, %v5334
      %v5763 = vpack.c.b16 %v5337, %v5335
      %v5764 = vpack.c.b16 %v5340, %v5338
      %v5765 = vpack.c.b16 %v5341, %v5339
      %v5766 = vpack.c.b16 %v5344, %v5342
      %v5767 = vpack.c.b16 %v5345, %v5343
      %v5768 = vpack.c.b16 %v5348, %v5346
      %v5769 = vpack.c.b16 %v5349, %v5347
      %v5770 = vpack.c.b16 %v5352, %v5350
      %v5771 = vpack.c.b16 %v5353, %v5351
      %v5772 = vpack.c.b16 %v5356, %v5354
      %v5773 = vpack.c.b16 %v5357, %v5355
      %v5774 = vpack.c.b16 %v5360, %v5358
      %v5775 = vpack.c.b16 %v5361, %v5359
      %v5776 = vpack.c.b16 %v5364, %v5362
      %v5777 = vpack.c.b16 %v5365, %v5363
      %v5778 = vpack.c.b16 %v5368, %v5366
      %v5779 = vpack.c.b16 %v5369, %v5367
      %v5780 = vpack.c.b16 %v5372, %v5370
      %v5781 = vpack.c.b16 %v5373, %v5371
      %v5782 = vpack.c.b16 %v5376, %v5374
      %v5783 = vpack.c.b16 %v5377, %v5375
      %v5784 = vpack.c.b16 %v5380, %v5378
      %v5785 = vpack.c.b16 %v5381, %v5379
      %v5786 = vpack.c.b16 %v5384, %v5382
      %v5787 = vpack.c.b16 %v5385, %v5383
      %v5788 = vpack.c.b16 %v5388, %v5386
      %v5789 = vpack.c.b16 %v5389, %v5387
      %v5790 = vpack.c.b16 %v5392, %v5390
      %v5791 = vpack.c.b16 %v5393, %v5391
      %v5792 = vpack.c.b16 %v5396, %v5394
      %v5793 = vpack.c.b16 %v5397, %v5395
      %v5794 = vpack.c.b16 %v5400, %v5398
      %v5795 = vpack.c.b16 %v5401, %v5399
      %v5796 = vpack.c.b16 %v5404, %v5402
      %v5797 = vpack.c.b16 %v5405, %v5403
      %v5798 = vpack.c.b16 %v5408, %v5406
      %v5799 = vpack.c.b16 %v5409, %v5407
      %v5800 = vpack.c.b16 %v5412, %v5410
      %v5801 = vpack.c.b16 %v5413, %v5411
      %v5802 = vpack.c.b16 %v5416, %v5414
      %v5803 = vpack.c.b16 %v5417, %v5415
      %v5804 = vpack.c.b16 %v5420, %v5418
      %v5805 = vpack.c.b16 %v5421, %v5419
      %v5806 = vpack.c.b16 %v5424, %v5422
      %v5807 = vpack.c.b16 %v5425, %v5423
      %v5808 = vpack.c.b16 %v5428, %v5426
      %v5809 = vpack.c.b16 %v5429, %v5427
      %v5810 = vpack.c.b16 %v5432, %v5430
      %v5811 = vpack.c.b16 %v5433, %v5431
      %v5812 = vpack.c.b16 %v5436, %v5434
      %v5813 = vpack.c.b16 %v5437, %v5435
      %v5814 = vpack.c.b16 %v5440, %v5438
      %v5815 = vpack.c.b16 %v5441, %v5439
      %v5816 = vpack.c.b16 %v5444, %v5442
      %v5817 = vpack.c.b16 %v5445, %v5443
      %v5818 = vpack.c.b16 %v5448, %v5446
      %v5819 = vpack.c.b16 %v5449, %v5447
      %v5820 = vpack.c.b16 %v5452, %v5450
      %v5821 = vpack.c.b16 %v5453, %v5451
      %v5822 = vpack.c.b16 %v5456, %v5454
      %v5823 = vpack.c.b16 %v5457, %v5455
      %v5824 = vpack.c.b16 %v5460, %v5458
      %v5825 = vpack.c.b16 %v5461, %v5459
      %v5826 = vpack.c.b16 %v5464, %v5462
      %v5827 = vpack.c.b16 %v5465, %v5463
      %v5828 = vpack.c.b16 %v5468, %v5466
      %v5829 = vpack.c.b16 %v5469, %v5467
      %v5830 = vpack.c.b16 %v5472, %v5470
      %v5831 = vpack.c.b16 %v5473, %v5471
      %v5832 = vpack.c.b16 %v5476, %v5474
      %v5833 = vpack.c.b16 %v5477, %v5475
      %v5834 = vpack.c.b16 %v5480, %v5478
      %v5835 = vpack.c.b16 %v5481, %v5479
      %v5836 = vpack.c.b16 %v5484, %v5482
      %v5837 = vpack.c.b16 %v5485, %v5483
      %v5838 = vpack.c.b16 %v5488, %v5486
      %v5839 = vpack.c.b16 %v5489, %v5487
      %v5840 = vpack.c.b16 %v5492, %v5490
      %v5841 = vpack.c.b16 %v5493, %v5491
      %v5842 = vpack.c.b16 %v5496, %v5494
      %v5843 = vpack.c.b16 %v5497, %v5495
      %v5844 = vpack.c.b16 %v5500, %v5498
      %v5845 = vpack.c.b16 %v5501, %v5499
      %v5846 = vpack.c.b16 %v5504, %v5502
      %v5847 = vpack.c.b16 %v5505, %v5503
      %v5848 = vpack.c.b16 %v5508, %v5506
      %v5849 = vpack.c.b16 %v5509, %v5507
      %v5850 = vpack.c.b16 %v5512, %v5510
      %v5851 = vpack.c.b16 %v5513, %v5511
      %v5852 = vpack.c.b16 %v5516, %v5514
      %v5853 = vpack.c.b16 %v5517, %v5515
      %v5854 = vpack.c.b16 %v5520, %v5518
      %v5855 = vpack.c.b16 %v5521, %v5519
      %v5856 = vpack.c.b16 %v5524, %v5522
      %v5857 = vpack.c.b16 %v5525, %v5523
      %v5858 = vpack.c.b16 %v5528, %v5526
      %v5859 = vpack.c.b16 %v5529, %v5527
      %v5860 = vpack.c.b16 %v5532, %v5530
      %v5861 = vpack.c.b16 %v5533, %v5531
      %v5862 = vpack.c.b16 %v5536, %v5534
      %v5863 = vpack.c.b16 %v5537, %v5535
      %v5864 = vpack.c.b16 %v5540, %v5538
      %v5865 = vpack.c.b16 %v5541, %v5539
      %v5866 = vpack.c.b16 %v5544, %v5542
      %v5867 = vpack.c.b16 %v5545, %v5543
      %v5868 = vpack.c.b16 %v5548, %v5546
      %v5869 = vpack.c.b16 %v5549, %v5547
      %v5870 = vpack.c.b16 %v5552, %v5550
      %v5871 = vpack.c.b16 %v5553, %v5551
      %v5872 = vpack.c.b16 %v5556, %v5554
      %v5873 = vpack.c.b16 %v5557, %v5555
      %v5874 = vpack.c.b16 %v5560, %v5558
      %v5875 = vpack.c.b16 %v5561, %v5559
      %v5876 = vpack.c.b16 %v5564, %v5562
      %v5877 = vpack.c.b16 %v5565, %v5563
      %v5878 = vpack.c.b16 %v5568, %v5566
      %v5879 = vpack.c.b16 %v5569, %v5567
      %v5880 = vpack.c.b16 %v5572, %v5570
      %v5881 = vpack.c.b16 %v5573, %v5571
      %v5882 = vpack.c.b16 %v5576, %v5574
      %v5883 = vpack.c.b16 %v5577, %v5575
      %v5884 = vpack.c.b16 %v5580, %v5578
      %v5885 = vpack.c.b16 %v5581, %v5579
      %v5886 = vpack.c.b16 %v5584, %v5582
      %v5887 = vpack.c.b16 %v5585, %v5583
      %v5888 = vpack.c.b16 %v5588, %v5586
      %v5889 = vpack.c.b16 %v5589, %v5587
      %v5890 = vpack.c.b16 %v5592, %v5590
      %v5891 = vpack.c.b16 %v5593, %v5591
      %v5892 = vpack.c.b16 %v5596, %v5594
      %v5893 = vpack.c.b16 %v5597, %v5595
      %v5894 = vpack.c.b16 %v5600, %v5598
      %v5895 = vpack.c.b16 %v5601, %v5599
      %v5896 = vpack.c.b16 %v5604, %v5602
      %v5897 = vpack.c.b16 %v5605, %v5603
      %v5898 = vpack.c.b16 %v5608, %v5606
      %v5899 = vpack.c.b16 %v5609, %v5607
      %v5900 = vpack.c.b16 %v5612, %v5610
      %v5901 = vpack.c.b16 %v5613, %v5611
      %v5902 = vpack.c.b16 %v5616, %v5614
      %v5903 = vpack.c.b16 %v5617, %v5615
      %v5904 = vpack.c.b16 %v5620, %v5618
      %v5905 = vpack.c.b16 %v5621, %v5619
      %v5906 = vpack.c.b16 %v5624, %v5622
      %v5907 = vpack.c.b16 %v5625, %v5623
      %v5908 = vpack.c.b16 %v5628, %v5626
      %v5909 = vpack.c.b16 %v5629, %v5627
      %v5910 = vpack.c.b16 %v5632, %v5630
      %v5911 = vpack.c.b16 %v5633, %v5631
      %v5912 = vpack.c.b16 %v5636, %v5634
      %v5913 = vpack.c.b16 %v5637, %v5635
      %v5914 = vpack.c.b16 %v5640, %v5638
      %v5915 = vpack.c.b16 %v5641, %v5639
      %v5916 = vpack.c.b16 %v5644, %v5642
      %v5917 = vpack.c.b16 %v5645, %v5643
      %v5918 = vpack.c.b16 %v5648, %v5646
      %v5919 = vpack.c.b16 %v5649, %v5647
      %v5920 = vpack.c.b16 %v5652, %v5650
      %v5921 = vpack.c.b16 %v5653, %v5651
      %v5922 = vpack.c.b16 %v5656, %v5654
      %v5923 = vpack.c.b16 %v5657, %v5655
      %v5924 = vpack.c.b16 %v5660, %v5658
      %v5925 = vpack.c.b16 %v5661, %v5659
      %v5926 = vpack.c.b16 %v5664, %v5662
      %v5927 = vpack.c.b16 %v5665, %v5663
      %v5928 = vpack.c.b16 %v5668, %v5666
      %v5929 = vpack.c.b16 %v5669, %v5667
      %v5930 = vpack.c.b16 %v5672, %v5670
      %v5931 = vpack.c.b16 %v5673, %v5671
      %v5932 = vpack.c.b16 %v5676, %v5674
      %v5933 = vpack.c.b16 %v5677, %v5675
      %6190 = vmatprep.subr.bf16.mxu0 %v5679
      %6191 = vmatpush1.bf16.msra.mxu0 %v5678
      %6192 = vmatprep.subr.bf16.mxu0 %v5681
      %6193 = vmatpush1.bf16.msra.mxu0 %v5680
      %6194 = vmatprep.subr.bf16.mxu0 %v5683
      %6195 = vmatpush1.bf16.msra.mxu0 %v5682
      %6196 = vmatprep.subr.bf16.mxu0 %v5685
      %6197 = vmatpush1.bf16.msra.mxu0 %v5684
      %6198 = vmatprep.subr.bf16.mxu0 %v5687
      %6199 = vmatpush1.bf16.msra.mxu0 %v5686
      %6200 = vmatprep.subr.bf16.mxu0 %v5689
      %6201 = vmatpush1.bf16.msra.mxu0 %v5688
      %6202 = vmatprep.subr.bf16.mxu0 %v5691
      %6203 = vmatpush1.bf16.msra.mxu0 %v5690
      %6204 = vmatprep.subr.bf16.mxu0 %v5693
      %6205 = vmatpush1.bf16.msra.mxu0 %v5692
      %6206 = vmatprep.subr.bf16.mxu0 %v5695
      %6207 = vmatpush1.bf16.msra.mxu0 %v5694
      %6208 = vmatprep.subr.bf16.mxu0 %v5697
      %6209 = vmatpush1.bf16.msra.mxu0 %v5696
      %6210 = vmatprep.subr.bf16.mxu0 %v5699
      %6211 = vmatpush1.bf16.msra.mxu0 %v5698
      %6212 = vmatprep.subr.bf16.mxu0 %v5701
      %6213 = vmatpush1.bf16.msra.mxu0 %v5700
      %6214 = vmatprep.subr.bf16.mxu0 %v5703
      %6215 = vmatpush1.bf16.msra.mxu0 %v5702
      %6216 = vmatprep.subr.bf16.mxu0 %v5705
      %6217 = vmatpush1.bf16.msra.mxu0 %v5704
      %6218 = vmatprep.subr.bf16.mxu0 %v5707
      %6219 = vmatpush1.bf16.msra.mxu0 %v5706
      %6220 = vmatprep.subr.bf16.mxu0 %v5709
      %6221 = vmatpush1.bf16.msra.mxu0 %v5708
      %6222 = vmatprep.mubr.bf16.mxu0 %v4841
      %6223 = vmatmul.mubr.bf16.gmra.mrb[0].mxu0 %v4833
      %v6224 = vpop.f32.mrb[0].mxu0
      %v6225 = vadd.f32 %v4815, %v6224
      %v6226 = vpop.f32.mrb[0].mxu0
      %v6227 = vadd.f32 %v4819, %v6226
      %v6228 = vpop.f32.mrb[0].mxu0
      %v6229 = vpop.f32.mrb[0].mxu0
      %6230 = vdwg.mxu0
      %6231 = vmatprep.subr.bf16.mxu0 %v5711
      %6232 = vmatpush1.bf16.msra.mxu0 %v5710
      %6233 = vmatprep.subr.bf16.mxu0 %v5713
      %6234 = vmatpush1.bf16.msra.mxu0 %v5712
      %6235 = vmatprep.subr.bf16.mxu0 %v5715
      %6236 = vmatpush1.bf16.msra.mxu0 %v5714
      %6237 = vmatprep.subr.bf16.mxu0 %v5717
      %6238 = vmatpush1.bf16.msra.mxu0 %v5716
      %6239 = vmatprep.subr.bf16.mxu0 %v5719
      %6240 = vmatpush1.bf16.msra.mxu0 %v5718
      %6241 = vmatprep.subr.bf16.mxu0 %v5721
      %6242 = vmatpush1.bf16.msra.mxu0 %v5720
      %6243 = vmatprep.subr.bf16.mxu0 %v5723
      %6244 = vmatpush1.bf16.msra.mxu0 %v5722
      %6245 = vmatprep.subr.bf16.mxu0 %v5725
      %6246 = vmatpush1.bf16.msra.mxu0 %v5724
      %6247 = vmatprep.subr.bf16.mxu0 %v5727
      %6248 = vmatpush1.bf16.msra.mxu0 %v5726
      %6249 = vmatprep.subr.bf16.mxu0 %v5729
      %6250 = vmatpush1.bf16.msra.mxu0 %v5728
      %6251 = vmatprep.subr.bf16.mxu0 %v5731
      %6252 = vmatpush1.bf16.msra.mxu0 %v5730
      %6253 = vmatprep.subr.bf16.mxu0 %v5733
      %6254 = vmatpush1.bf16.msra.mxu0 %v5732
      %6255 = vmatprep.subr.bf16.mxu0 %v5735
      %6256 = vmatpush1.bf16.msra.mxu0 %v5734
      %6257 = vmatprep.subr.bf16.mxu0 %v5737
      %6258 = vmatpush1.bf16.msra.mxu0 %v5736
      %6259 = vmatprep.subr.bf16.mxu0 %v5739
      %6260 = vmatpush1.bf16.msra.mxu0 %v5738
      %6261 = vmatprep.subr.bf16.mxu0 %v5741
      %6262 = vmatpush1.bf16.msra.mxu0 %v5740
      %6263 = vmatprep.mubr.bf16.mxu0 %v4842
      %6264 = vmatmul.mubr.bf16.gmra.mrb[0].mxu0 %v4840
      %v6265 = vpop.f32.mrb[0].mxu0
      %v6266 = vadd.f32 %v6225, %v6265
      %v6267 = vpop.f32.mrb[0].mxu0
      %v6268 = vadd.f32 %v6227, %v6267
      %v6269 = vpop.f32.mrb[0].mxu0
      %v6270 = vpop.f32.mrb[0].mxu0
      %6271 = vdwg.mxu0
      %6272 = vmatprep.subr.bf16.mxu0 %v5743
      %6273 = vmatpush1.bf16.msra.mxu0 %v5742
      %6274 = vmatprep.subr.bf16.mxu0 %v5745
      %6275 = vmatpush1.bf16.msra.mxu0 %v5744
      %6276 = vmatprep.subr.bf16.mxu0 %v5747
      %6277 = vmatpush1.bf16.msra.mxu0 %v5746
      %6278 = vmatprep.subr.bf16.mxu0 %v5749
      %6279 = vmatpush1.bf16.msra.mxu0 %v5748
      %6280 = vmatprep.subr.bf16.mxu0 %v5751
      %6281 = vmatpush1.bf16.msra.mxu0 %v5750
      %6282 = vmatprep.subr.bf16.mxu0 %v5753
      %6283 = vmatpush1.bf16.msra.mxu0 %v5752
      %6284 = vmatprep.subr.bf16.mxu0 %v5755
      %6285 = vmatpush1.bf16.msra.mxu0 %v5754
      %6286 = vmatprep.subr.bf16.mxu0 %v5757
      %6287 = vmatpush1.bf16.msra.mxu0 %v5756
      %6288 = vmatprep.subr.bf16.mxu0 %v5759
      %6289 = vmatpush1.bf16.msra.mxu0 %v5758
      %6290 = vmatprep.subr.bf16.mxu0 %v5761
      %6291 = vmatpush1.bf16.msra.mxu0 %v5760
      %6292 = vmatprep.subr.bf16.mxu0 %v5763
      %6293 = vmatpush1.bf16.msra.mxu0 %v5762
      %6294 = vmatprep.subr.bf16.mxu0 %v5765
      %6295 = vmatpush1.bf16.msra.mxu0 %v5764
      %6296 = vmatprep.subr.bf16.mxu0 %v5767
      %6297 = vmatpush1.bf16.msra.mxu0 %v5766
      %6298 = vmatprep.subr.bf16.mxu0 %v5769
      %6299 = vmatpush1.bf16.msra.mxu0 %v5768
      %6300 = vmatprep.subr.bf16.mxu0 %v5771
      %6301 = vmatpush1.bf16.msra.mxu0 %v5770
      %6302 = vmatprep.subr.bf16.mxu0 %v5773
      %6303 = vmatpush1.bf16.msra.mxu0 %v5772
      %6304 = vmatprep.mubr.bf16.mxu0 %v4858
      %6305 = vmatmul.mubr.bf16.gmra.mrb[0].mxu0 %v4850
      %v6306 = vpop.f32.mrb[0].mxu0
      %v6307 = vadd.f32 %v6266, %v6306
      %v6308 = vpop.f32.mrb[0].mxu0
      %v6309 = vadd.f32 %v6268, %v6308
      %v6310 = vpop.f32.mrb[0].mxu0
      %v6311 = vpop.f32.mrb[0].mxu0
      %6312 = vdwg.mxu0
      %6313 = vmatprep.subr.bf16.mxu0 %v5775
      %6314 = vmatpush1.bf16.msra.mxu0 %v5774
      %6315 = vmatprep.subr.bf16.mxu0 %v5777
      %6316 = vmatpush1.bf16.msra.mxu0 %v5776
      %6317 = vmatprep.subr.bf16.mxu0 %v5779
      %6318 = vmatpush1.bf16.msra.mxu0 %v5778
      %6319 = vmatprep.subr.bf16.mxu0 %v5781
      %6320 = vmatpush1.bf16.msra.mxu0 %v5780
      %6321 = vmatprep.subr.bf16.mxu0 %v5783
      %6322 = vmatpush1.bf16.msra.mxu0 %v5782
      %6323 = vmatprep.subr.bf16.mxu0 %v5785
      %6324 = vmatpush1.bf16.msra.mxu0 %v5784
      %6325 = vmatprep.subr.bf16.mxu0 %v5787
      %6326 = vmatpush1.bf16.msra.mxu0 %v5786
      %6327 = vmatprep.subr.bf16.mxu0 %v5789
      %6328 = vmatpush1.bf16.msra.mxu0 %v5788
      %6329 = vmatprep.subr.bf16.mxu0 %v5791
      %6330 = vmatpush1.bf16.msra.mxu0 %v5790
      %6331 = vmatprep.subr.bf16.mxu0 %v5793
      %6332 = vmatpush1.bf16.msra.mxu0 %v5792
      %6333 = vmatprep.subr.bf16.mxu0 %v5795
      %6334 = vmatpush1.bf16.msra.mxu0 %v5794
      %6335 = vmatprep.subr.bf16.mxu0 %v5797
      %6336 = vmatpush1.bf16.msra.mxu0 %v5796
      %6337 = vmatprep.subr.bf16.mxu0 %v5799
      %6338 = vmatpush1.bf16.msra.mxu0 %v5798
      %6339 = vmatprep.subr.bf16.mxu0 %v5801
      %6340 = vmatpush1.bf16.msra.mxu0 %v5800
      %6341 = vmatprep.subr.bf16.mxu0 %v5803
      %6342 = vmatpush1.bf16.msra.mxu0 %v5802
      %6343 = vmatprep.subr.bf16.mxu0 %v5805
      %6344 = vmatpush1.bf16.msra.mxu0 %v5804
      %6345 = vmatprep.mubr.bf16.mxu0 %v4859
      %6346 = vmatmul.mubr.bf16.gmra.mrb[0].mxu0 %v4857
      %v6347 = vpop.f32.mrb[0].mxu0
      %v6348 = vadd.f32 %v6307, %v6347
      %v6349 = vpop.f32.mrb[0].mxu0
      %v6350 = vadd.f32 %v6309, %v6349
      %v6351 = vpop.f32.mrb[0].mxu0
      %v6352 = vpop.f32.mrb[0].mxu0
      %6353 = vdwg.mxu0
      %6354 = vmatprep.subr.bf16.mxu0 %v5807
      %6355 = vmatpush1.bf16.msra.mxu0 %v5806
      %6356 = vmatprep.subr.bf16.mxu0 %v5809
      %6357 = vmatpush1.bf16.msra.mxu0 %v5808
      %6358 = vmatprep.subr.bf16.mxu0 %v5811
      %6359 = vmatpush1.bf16.msra.mxu0 %v5810
      %6360 = vmatprep.subr.bf16.mxu0 %v5813
      %6361 = vmatpush1.bf16.msra.mxu0 %v5812
      %6362 = vmatprep.subr.bf16.mxu0 %v5815
      %6363 = vmatpush1.bf16.msra.mxu0 %v5814
      %6364 = vmatprep.subr.bf16.mxu0 %v5817
      %6365 = vmatpush1.bf16.msra.mxu0 %v5816
      %6366 = vmatprep.subr.bf16.mxu0 %v5819
      %6367 = vmatpush1.bf16.msra.mxu0 %v5818
      %6368 = vmatprep.subr.bf16.mxu0 %v5821
      %6369 = vmatpush1.bf16.msra.mxu0 %v5820
      %6370 = vmatprep.subr.bf16.mxu0 %v5823
      %6371 = vmatpush1.bf16.msra.mxu0 %v5822
      %6372 = vmatprep.subr.bf16.mxu0 %v5825
      %6373 = vmatpush1.bf16.msra.mxu0 %v5824
      %6374 = vmatprep.subr.bf16.mxu0 %v5827
      %6375 = vmatpush1.bf16.msra.mxu0 %v5826
      %6376 = vmatprep.subr.bf16.mxu0 %v5829
      %6377 = vmatpush1.bf16.msra.mxu0 %v5828
      %6378 = vmatprep.subr.bf16.mxu0 %v5831
      %6379 = vmatpush1.bf16.msra.mxu0 %v5830
      %6380 = vmatprep.subr.bf16.mxu0 %v5833
      %6381 = vmatpush1.bf16.msra.mxu0 %v5832
      %6382 = vmatprep.subr.bf16.mxu0 %v5835
      %6383 = vmatpush1.bf16.msra.mxu0 %v5834
      %6384 = vmatprep.subr.bf16.mxu0 %v5837
      %6385 = vmatpush1.bf16.msra.mxu0 %v5836
      %6386 = vmatprep.mubr.bf16.mxu0 %v4875
      %6387 = vmatmul.mubr.bf16.gmra.mrb[0].mxu0 %v4867
      %v6388 = vpop.f32.mrb[0].mxu0
      %v6389 = vadd.f32 %v6348, %v6388
      %v6390 = vpop.f32.mrb[0].mxu0
      %v6391 = vadd.f32 %v6350, %v6390
      %v6392 = vpop.f32.mrb[0].mxu0
      %v6393 = vpop.f32.mrb[0].mxu0
      %6394 = vdwg.mxu0
      %6395 = vmatprep.subr.bf16.mxu0 %v5839
      %6396 = vmatpush1.bf16.msra.mxu0 %v5838
      %6397 = vmatprep.subr.bf16.mxu0 %v5841
      %6398 = vmatpush1.bf16.msra.mxu0 %v5840
      %6399 = vmatprep.subr.bf16.mxu0 %v5843
      %6400 = vmatpush1.bf16.msra.mxu0 %v5842
      %6401 = vmatprep.subr.bf16.mxu0 %v5845
      %6402 = vmatpush1.bf16.msra.mxu0 %v5844
      %6403 = vmatprep.subr.bf16.mxu0 %v5847
      %6404 = vmatpush1.bf16.msra.mxu0 %v5846
      %6405 = vmatprep.subr.bf16.mxu0 %v5849
      %6406 = vmatpush1.bf16.msra.mxu0 %v5848
      %6407 = vmatprep.subr.bf16.mxu0 %v5851
      %6408 = vmatpush1.bf16.msra.mxu0 %v5850
      %6409 = vmatprep.subr.bf16.mxu0 %v5853
      %6410 = vmatpush1.bf16.msra.mxu0 %v5852
      %6411 = vmatprep.subr.bf16.mxu0 %v5855
      %6412 = vmatpush1.bf16.msra.mxu0 %v5854
      %6413 = vmatprep.subr.bf16.mxu0 %v5857
      %6414 = vmatpush1.bf16.msra.mxu0 %v5856
      %6415 = vmatprep.subr.bf16.mxu0 %v5859
      %6416 = vmatpush1.bf16.msra.mxu0 %v5858
      %6417 = vmatprep.subr.bf16.mxu0 %v5861
      %6418 = vmatpush1.bf16.msra.mxu0 %v5860
      %6419 = vmatprep.subr.bf16.mxu0 %v5863
      %6420 = vmatpush1.bf16.msra.mxu0 %v5862
      %6421 = vmatprep.subr.bf16.mxu0 %v5865
      %6422 = vmatpush1.bf16.msra.mxu0 %v5864
      %6423 = vmatprep.subr.bf16.mxu0 %v5867
      %6424 = vmatpush1.bf16.msra.mxu0 %v5866
      %6425 = vmatprep.subr.bf16.mxu0 %v5869
      %6426 = vmatpush1.bf16.msra.mxu0 %v5868
      %6427 = vmatprep.mubr.bf16.mxu0 %v4876
      %6428 = vmatmul.mubr.bf16.gmra.mrb[0].mxu0 %v4874
      %v6429 = vpop.f32.mrb[0].mxu0
      %v6430 = vadd.f32 %v6389, %v6429
      %v6431 = vpop.f32.mrb[0].mxu0
      %v6432 = vadd.f32 %v6391, %v6431
      %v6433 = vpop.f32.mrb[0].mxu0
      %v6434 = vpop.f32.mrb[0].mxu0
      %6435 = vdwg.mxu0
      %6436 = vmatprep.subr.bf16.mxu0 %v5871
      %6437 = vmatpush1.bf16.msra.mxu0 %v5870
      %6438 = vmatprep.subr.bf16.mxu0 %v5873
      %6439 = vmatpush1.bf16.msra.mxu0 %v5872
      %6440 = vmatprep.subr.bf16.mxu0 %v5875
      %6441 = vmatpush1.bf16.msra.mxu0 %v5874
      %6442 = vmatprep.subr.bf16.mxu0 %v5877
      %6443 = vmatpush1.bf16.msra.mxu0 %v5876
      %6444 = vmatprep.subr.bf16.mxu0 %v5879
      %6445 = vmatpush1.bf16.msra.mxu0 %v5878
      %6446 = vmatprep.subr.bf16.mxu0 %v5881
      %6447 = vmatpush1.bf16.msra.mxu0 %v5880
      %6448 = vmatprep.subr.bf16.mxu0 %v5883
      %6449 = vmatpush1.bf16.msra.mxu0 %v5882
      %6450 = vmatprep.subr.bf16.mxu0 %v5885
      %6451 = vmatpush1.bf16.msra.mxu0 %v5884
      %6452 = vmatprep.subr.bf16.mxu0 %v5887
      %6453 = vmatpush1.bf16.msra.mxu0 %v5886
      %6454 = vmatprep.subr.bf16.mxu0 %v5889
      %6455 = vmatpush1.bf16.msra.mxu0 %v5888
      %6456 = vmatprep.subr.bf16.mxu0 %v5891
      %6457 = vmatpush1.bf16.msra.mxu0 %v5890
      %6458 = vmatprep.subr.bf16.mxu0 %v5893
      %6459 = vmatpush1.bf16.msra.mxu0 %v5892
      %6460 = vmatprep.subr.bf16.mxu0 %v5895
      %6461 = vmatpush1.bf16.msra.mxu0 %v5894
      %6462 = vmatprep.subr.bf16.mxu0 %v5897
      %6463 = vmatpush1.bf16.msra.mxu0 %v5896
      %6464 = vmatprep.subr.bf16.mxu0 %v5899
      %6465 = vmatpush1.bf16.msra.mxu0 %v5898
      %6466 = vmatprep.subr.bf16.mxu0 %v5901
      %6467 = vmatpush1.bf16.msra.mxu0 %v5900
      %6468 = vmatprep.mubr.bf16.mxu0 %v4892
      %6469 = vmatmul.mubr.bf16.gmra.mrb[0].mxu0 %v4884
      %v6470 = vpop.f32.mrb[0].mxu0
      %v6471 = vadd.f32 %v6430, %v6470
      %v6472 = vpop.f32.mrb[0].mxu0
      %v6473 = vadd.f32 %v6432, %v6472
      %v6474 = vpop.f32.mrb[0].mxu0
      %v6475 = vpop.f32.mrb[0].mxu0
      %6476 = vdwg.mxu0
      %6477 = vmatprep.subr.bf16.mxu0 %v5903
      %6478 = vmatpush1.bf16.msra.mxu0 %v5902
      %6479 = vmatprep.subr.bf16.mxu0 %v5905
      %6480 = vmatpush1.bf16.msra.mxu0 %v5904
      %6481 = vmatprep.subr.bf16.mxu0 %v5907
      %6482 = vmatpush1.bf16.msra.mxu0 %v5906
      %6483 = vmatprep.subr.bf16.mxu0 %v5909
      %6484 = vmatpush1.bf16.msra.mxu0 %v5908
      %6485 = vmatprep.subr.bf16.mxu0 %v5911
      %6486 = vmatpush1.bf16.msra.mxu0 %v5910
      %6487 = vmatprep.subr.bf16.mxu0 %v5913
      %6488 = vmatpush1.bf16.msra.mxu0 %v5912
      %6489 = vmatprep.subr.bf16.mxu0 %v5915
      %6490 = vmatpush1.bf16.msra.mxu0 %v5914
      %6491 = vmatprep.subr.bf16.mxu0 %v5917
      %6492 = vmatpush1.bf16.msra.mxu0 %v5916
      %6493 = vmatprep.subr.bf16.mxu0 %v5919
      %6494 = vmatpush1.bf16.msra.mxu0 %v5918
      %6495 = vmatprep.subr.bf16.mxu0 %v5921
      %6496 = vmatpush1.bf16.msra.mxu0 %v5920
      %6497 = vmatprep.subr.bf16.mxu0 %v5923
      %6498 = vmatpush1.bf16.msra.mxu0 %v5922
      %6499 = vmatprep.subr.bf16.mxu0 %v5925
      %6500 = vmatpush1.bf16.msra.mxu0 %v5924
      %6501 = vmatprep.subr.bf16.mxu0 %v5927
      %6502 = vmatpush1.bf16.msra.mxu0 %v5926
      %6503 = vmatprep.subr.bf16.mxu0 %v5929
      %6504 = vmatpush1.bf16.msra.mxu0 %v5928
      %6505 = vmatprep.subr.bf16.mxu0 %v5931
      %6506 = vmatpush1.bf16.msra.mxu0 %v5930
      %6507 = vmatprep.subr.bf16.mxu0 %v5933
      %6508 = vmatpush1.bf16.msra.mxu0 %v5932
      %6509 = vmatprep.mubr.bf16.mxu0 %v4893
      %6510 = vmatmul.mubr.bf16.gmra.mrb[0].mxu0 %v4891
      %v6511 = vpop.f32.mrb[0].mxu0
      %v6512 = vadd.f32 %v6471, %v6511
      %v6513 = vpop.f32.mrb[0].mxu0
      %v6514 = vadd.f32 %v6473, %v6513
      %v6515 = vpop.f32.mrb[0].mxu0
      %v6516 = vpop.f32.mrb[0].mxu0
      %6517 = vdwg.mxu0
      %vm6518 = vcmask 1043456
      %v6519 = vsel %vm6518, %v6512, 0.0
      %v6520 = vrot.slane %v6519, 4
      %v6521 = vadd.f32 %v6519, %v6520
      %v6522 = vrot.slane %v6521, 2
      %v6523 = vadd.f32 %v6521, %v6522
      %v6524 = vrot.slane %v6523, 1
      %v6525 = vadd.f32 %v6523, %v6524
      %v6526 = vsel %vm6518, %v6514, 0.0
      %v6527 = vrot.slane %v6526, 4
      %v6528 = vadd.f32 %v6526, %v6527
      %v6529 = vrot.slane %v6528, 2
      %v6530 = vadd.f32 %v6528, %v6529
      %v6531 = vrot.slane %v6530, 1
      %v6532 = vadd.f32 %v6530, %v6531
      %v6533 = vmul.f32 %v6525, 0.25
      %v6534 = vmul.f32 %v6532, 0.25
      %v6535 = vmul.f32 %v6512, %v6512
      %v6536 = vmul.f32 %v6514, %v6514
      %v6537 = vsel %vm6518, %v6535, 0.0
      %v6538 = vrot.slane %v6537, 4
      %v6539 = vadd.f32 %v6537, %v6538
      %v6540 = vrot.slane %v6539, 2
      %v6541 = vadd.f32 %v6539, %v6540
      %v6542 = vrot.slane %v6541, 1
      %v6543 = vadd.f32 %v6541, %v6542
      %v6544 = vsel %vm6518, %v6536, 0.0
      %v6545 = vrot.slane %v6544, 4
      %v6546 = vadd.f32 %v6544, %v6545
      %v6547 = vrot.slane %v6546, 2
      %v6548 = vadd.f32 %v6546, %v6547
      %v6549 = vrot.slane %v6548, 1
      %v6550 = vadd.f32 %v6548, %v6549
      %v6551 = vmul.f32 %v6543, 0.25
      %v6552 = vmul.f32 %v6550, 0.25
      %v6553 = vmul.f32 %v6533, %v6533
      %v6554 = vmul.f32 %v6534, %v6534
      %v6555 = vsub.f32 %v6551, %v6553
      %v6556 = vsub.f32 %v6552, %v6554
      %v6557 = vmax.f32 %v6555, 0.0
      %v6558 = vmax.f32 %v6556, 0.0
      %v6559 = vsub.f32 %v6512, %v6533
      %v6560 = vsub.f32 %v6514, %v6534
      %v6561 = vadd.f32 %v6557, 1e-05
      %v6562 = vadd.f32 %v6558, 1e-05
      %v6563 = vrsqrt.pop %v6561
      %v6564 = vrsqrt.pop %v6562
      %v6565 = vmul.f32 %v6559, %v6563
      %v6566 = vmul.f32 %v6560, %v6564
      %v6567 = vmul.f32 %v6565, 0.2
      %v6568 = vmul.f32 %v6566, 0.2
      %v6569 = vmax.f32 %v6565, %v6567
      %v6570 = vmax.f32 %v6566, %v6568
      %v6571 = vpack.c.bf16 %v6569, %v6569
      %v6572 = vpack.c.bf16 %v6570, %v6570
      %v6575 = vcombine.low %v6571, %v6572
      %v6577 = vunpack.c.l.s4 1983009808
      %v6578 = vunpack.c.0.s8 %v6577
      %v6579 = vlaneseq
      %v6580 = vshrl.u32 %v6579, 7
      %v6581 = vsub.s32 %v6578, %v6580
      %v6582 = vrot.slane %v6575, %v6581
      %6584 = vst [vmem:[#allocation8] sm:$0xf] %v6582
      %v6585 = vld [vmem:[#allocation8] sm:$0x5]
      %v6588 = vunpack.c.l.s4 1966171168
      %v6589 = vunpack.c.0.s8 %v6588
      %v6590 = vlaneseq
      %v6591 = vshrl.u32 %v6590, 7
      %v6592 = vsub.s32 %v6589, %v6591
      %v6593 = vrot.slane %v6585, %v6592
      %vm6595 = vcmask 1040384
      %vm6596 = vsmask.f32 256
      %vm6597 = vmand %vm6595, %vm6596
      %vm6598 = vcmask 1041409
      %vm6599 = vsmask.f32 1280
      %vm6600 = vmand %vm6598, %vm6599
      %vm6601 = vmor %vm6600, %vm6597
      %v6602 = vld [vmem:[#allocation9] sm:$0x3]
      %v6603 = vsel %vm6601, %v6593, %v6602
      %6604 = vst [vmem:[#allocation9] sm:$0x3] %v6603
      %v6605 = vld [vmem:[#allocation8] sm:$0x5]
      %v6608 = vunpack.c.l.s4 1966171168
      %v6609 = vunpack.c.0.s8 %v6608
      %v6610 = vlaneseq
      %v6611 = vshrl.u32 %v6610, 7
      %v6612 = vsub.s32 %v6609, %v6611
      %v6613 = vrot.slane %v6605, %v6612
      %v6615 = vshrl.u32 %v6613, 16
      %v6617 = vrot.slane %v6615, 7
      %v6618 = vrot.slane %v6617, 1
      %v6620 = vld [vmem:[#allocation9 + $0x2] sm:$0x3]
      %v6621 = vsel %vm6601, %v6618, %v6620
      %6622 = vst [vmem:[#allocation9 + $0x2] sm:$0x3] %v6621
      %v6623 = vld [vmem:[#allocation8] sm:$0xa]
      %v6626 = vunpack.c.l.s4 1966171168
      %v6627 = vunpack.c.0.s8 %v6626
      %v6628 = vlaneseq
      %v6629 = vshrl.u32 %v6628, 7
      %v6630 = vsub.s32 %v6627, %v6629
      %v6631 = vrot.slane %v6623, %v6630
      %v6632 = vcombine.high %v6631, %v6631
      %v6634 = vld [vmem:[#allocation9 + $0x4] sm:$0x3]
      %v6635 = vsel %vm6601, %v6632, %v6634
      %6636 = vst [vmem:[#allocation9 + $0x4] sm:$0x3] %v6635
      %v6637 = vld [vmem:[#allocation8] sm:$0xa]
      %v6640 = vunpack.c.l.s4 1966171168
      %v6641 = vunpack.c.0.s8 %v6640
      %v6642 = vlaneseq
      %v6643 = vshrl.u32 %v6642, 7
      %v6644 = vsub.s32 %v6641, %v6643
      %v6645 = vrot.slane %v6637, %v6644
      %v6646 = vcombine.high %v6645, %v6645
      %v6648 = vshrl.u32 %v6646, 16
      %v6650 = vrot.slane %v6648, 7
      %v6651 = vrot.slane %v6650, 1
      %v6653 = vld [vmem:[#allocation9 + $0x6] sm:$0x3]
      %v6654 = vsel %vm6601, %v6651, %v6653
      %6655 = vst [vmem:[#allocation9 + $0x6] sm:$0x3] %v6654
      %v6656 = vld [vmem:[#allocation9] sm:$0xff]
      %v6657 = vld [vmem:[%s12] sm:$0xf]
      %v6658 = vld [vmem:[%s12 + $0x4] sm:$0xf]
      %v6659 = vld [vmem:[%s12 + $0x8] sm:$0xf]
      %v6660 = vld [vmem:[%s12 + $0xc] sm:$0xf]
      %v6661 = vld [vmem:[%s12 + $0x10] sm:$0xf]
      %v6662 = vld [vmem:[%s12 + $0x14] sm:$0xf]
      %v6663 = vld [vmem:[%s12 + $0x18] sm:$0xf]
      %v6664 = vld [vmem:[%s12 + $0x1c] sm:$0xf]
      %v6665 = vld [vmem:[%s12 + $0x20] sm:$0xf]
      %v6666 = vld [vmem:[%s12 + $0x24] sm:$0xf]
      %v6667 = vld [vmem:[%s12 + $0x28] sm:$0xf]
      %v6668 = vld [vmem:[%s12 + $0x2c] sm:$0xf]
      %v6669 = vld [vmem:[%s12 + $0x30] sm:$0xf]
      %v6670 = vld [vmem:[%s12 + $0x34] sm:$0xf]
      %v6671 = vld [vmem:[%s12 + $0x38] sm:$0xf]
      %v6672 = vld [vmem:[%s12 + $0x3c] sm:$0xf]
      %v6673 = vld [vmem:[%s12 + $0x40] sm:$0xf]
      %v6674 = vld [vmem:[%s12 + $0x44] sm:$0xf]
      %v6675 = vld [vmem:[%s12 + $0x48] sm:$0xf]
      %v6676 = vld [vmem:[%s12 + $0x4c] sm:$0xf]
      %v6677 = vld [vmem:[%s12 + $0x50] sm:$0xf]
      %v6678 = vld [vmem:[%s12 + $0x54] sm:$0xf]
      %v6679 = vld [vmem:[%s12 + $0x58] sm:$0xf]
      %v6680 = vld [vmem:[%s12 + $0x5c] sm:$0xf]
      %v6681 = vld [vmem:[%s12 + $0x60] sm:$0xf]
      %v6682 = vld [vmem:[%s12 + $0x64] sm:$0xf]
      %v6683 = vld [vmem:[%s12 + $0x68] sm:$0xf]
      %v6684 = vld [vmem:[%s12 + $0x6c] sm:$0xf]
      %v6685 = vld [vmem:[%s12 + $0x70] sm:$0xf]
      %v6686 = vld [vmem:[%s12 + $0x74] sm:$0xf]
      %v6687 = vld [vmem:[%s12 + $0x78] sm:$0xf]
      %v6688 = vld [vmem:[%s12 + $0x7c] sm:$0xf]
      %v6689 = vld [vmem:[%s12 + $0x80] sm:$0xf]
      %v6690 = vld [vmem:[%s12 + $0x84] sm:$0xf]
      %v6691 = vld [vmem:[%s12 + $0x88] sm:$0xf]
      %v6692 = vld [vmem:[%s12 + $0x8c] sm:$0xf]
      %v6693 = vld [vmem:[%s12 + $0x90] sm:$0xf]
      %v6694 = vld [vmem:[%s12 + $0x94] sm:$0xf]
      %v6695 = vld [vmem:[%s12 + $0x98] sm:$0xf]
      %v6696 = vld [vmem:[%s12 + $0x9c] sm:$0xf]
      %v6697 = vld [vmem:[%s12 + $0xa0] sm:$0xf]
      %v6698 = vld [vmem:[%s12 + $0xa4] sm:$0xf]
      %v6699 = vld [vmem:[%s12 + $0xa8] sm:$0xf]
      %v6700 = vld [vmem:[%s12 + $0xac] sm:$0xf]
      %v6701 = vld [vmem:[%s12 + $0xb0] sm:$0xf]
      %v6702 = vld [vmem:[%s12 + $0xb4] sm:$0xf]
      %v6703 = vld [vmem:[%s12 + $0xb8] sm:$0xf]
      %v6704 = vld [vmem:[%s12 + $0xbc] sm:$0xf]
      %v6705 = vld [vmem:[%s12 + $0xc0] sm:$0xf]
      %v6706 = vld [vmem:[%s12 + $0xc4] sm:$0xf]
      %v6707 = vld [vmem:[%s12 + $0xc8] sm:$0xf]
      %v6708 = vld [vmem:[%s12 + $0xcc] sm:$0xf]
      %v6709 = vld [vmem:[%s12 + $0xd0] sm:$0xf]
      %v6710 = vld [vmem:[%s12 + $0xd4] sm:$0xf]
      %v6711 = vld [vmem:[%s12 + $0xd8] sm:$0xf]
      %v6712 = vld [vmem:[%s12 + $0xdc] sm:$0xf]
      %v6713 = vld [vmem:[%s12 + $0xe0] sm:$0xf]
      %v6714 = vld [vmem:[%s12 + $0xe4] sm:$0xf]
      %v6715 = vld [vmem:[%s12 + $0xe8] sm:$0xf]
      %v6716 = vld [vmem:[%s12 + $0xec] sm:$0xf]
      %v6717 = vld [vmem:[%s12 + $0xf0] sm:$0xf]
      %v6718 = vld [vmem:[%s12 + $0xf4] sm:$0xf]
      %v6719 = vld [vmem:[%s12 + $0xf8] sm:$0xf]
      %v6720 = vld [vmem:[%s12 + $0xfc] sm:$0xf]
      %v6721 = vld [vmem:[%s12 + $0x100] sm:$0xf]
      %v6722 = vld [vmem:[%s12 + $0x104] sm:$0xf]
      %v6723 = vld [vmem:[%s12 + $0x108] sm:$0xf]
      %v6724 = vld [vmem:[%s12 + $0x10c] sm:$0xf]
      %v6725 = vld [vmem:[%s12 + $0x110] sm:$0xf]
      %v6726 = vld [vmem:[%s12 + $0x114] sm:$0xf]
      %v6727 = vld [vmem:[%s12 + $0x118] sm:$0xf]
      %v6728 = vld [vmem:[%s12 + $0x11c] sm:$0xf]
      %v6729 = vld [vmem:[%s12 + $0x120] sm:$0xf]
      %v6730 = vld [vmem:[%s12 + $0x124] sm:$0xf]
      %v6731 = vld [vmem:[%s12 + $0x128] sm:$0xf]
      %v6732 = vld [vmem:[%s12 + $0x12c] sm:$0xf]
      %v6733 = vld [vmem:[%s12 + $0x130] sm:$0xf]
      %v6734 = vld [vmem:[%s12 + $0x134] sm:$0xf]
      %v6735 = vld [vmem:[%s12 + $0x138] sm:$0xf]
      %v6736 = vld [vmem:[%s12 + $0x13c] sm:$0xf]
      %v6737 = vld [vmem:[%s12 + $0x140] sm:$0xf]
      %v6738 = vld [vmem:[%s12 + $0x144] sm:$0xf]
      %v6739 = vld [vmem:[%s12 + $0x148] sm:$0xf]
      %v6740 = vld [vmem:[%s12 + $0x14c] sm:$0xf]
      %v6741 = vld [vmem:[%s12 + $0x150] sm:$0xf]
      %v6742 = vld [vmem:[%s12 + $0x154] sm:$0xf]
      %v6743 = vld [vmem:[%s12 + $0x158] sm:$0xf]
      %v6744 = vld [vmem:[%s12 + $0x15c] sm:$0xf]
      %v6745 = vld [vmem:[%s12 + $0x160] sm:$0xf]
      %v6746 = vld [vmem:[%s12 + $0x164] sm:$0xf]
      %v6747 = vld [vmem:[%s12 + $0x168] sm:$0xf]
      %v6748 = vld [vmem:[%s12 + $0x16c] sm:$0xf]
      %v6749 = vld [vmem:[%s12 + $0x170] sm:$0xf]
      %v6750 = vld [vmem:[%s12 + $0x174] sm:$0xf]
      %v6751 = vld [vmem:[%s12 + $0x178] sm:$0xf]
      %v6752 = vld [vmem:[%s12 + $0x17c] sm:$0xf]
      %v6753 = vld [vmem:[%s12 + $0x180] sm:$0xf]
      %v6754 = vld [vmem:[%s12 + $0x184] sm:$0xf]
      %v6755 = vld [vmem:[%s12 + $0x188] sm:$0xf]
      %v6756 = vld [vmem:[%s12 + $0x18c] sm:$0xf]
      %v6757 = vld [vmem:[%s12 + $0x190] sm:$0xf]
      %v6758 = vld [vmem:[%s12 + $0x194] sm:$0xf]
      %v6759 = vld [vmem:[%s12 + $0x198] sm:$0xf]
      %v6760 = vld [vmem:[%s12 + $0x19c] sm:$0xf]
      %v6761 = vld [vmem:[%s12 + $0x1a0] sm:$0xf]
      %v6762 = vld [vmem:[%s12 + $0x1a4] sm:$0xf]
      %v6763 = vld [vmem:[%s12 + $0x1a8] sm:$0xf]
      %v6764 = vld [vmem:[%s12 + $0x1ac] sm:$0xf]
      %v6765 = vld [vmem:[%s12 + $0x1b0] sm:$0xf]
      %v6766 = vld [vmem:[%s12 + $0x1b4] sm:$0xf]
      %v6767 = vld [vmem:[%s12 + $0x1b8] sm:$0xf]
      %v6768 = vld [vmem:[%s12 + $0x1bc] sm:$0xf]
      %v6769 = vld [vmem:[%s12 + $0x1c0] sm:$0xf]
      %v6770 = vld [vmem:[%s12 + $0x1c4] sm:$0xf]
      %v6771 = vld [vmem:[%s12 + $0x1c8] sm:$0xf]
      %v6772 = vld [vmem:[%s12 + $0x1cc] sm:$0xf]
      %v6773 = vld [vmem:[%s12 + $0x1d0] sm:$0xf]
      %v6774 = vld [vmem:[%s12 + $0x1d4] sm:$0xf]
      %v6775 = vld [vmem:[%s12 + $0x1d8] sm:$0xf]
      %v6776 = vld [vmem:[%s12 + $0x1dc] sm:$0xf]
      %v6777 = vld [vmem:[%s12 + $0x1e0] sm:$0xf]
      %v6778 = vld [vmem:[%s12 + $0x1e4] sm:$0xf]
      %v6779 = vld [vmem:[%s12 + $0x1e8] sm:$0xf]
      %v6780 = vld [vmem:[%s12 + $0x1ec] sm:$0xf]
      %v6781 = vld [vmem:[%s12 + $0x1f0] sm:$0xf]
      %v6782 = vld [vmem:[%s12 + $0x1f4] sm:$0xf]
      %v6783 = vld [vmem:[%s12 + $0x1f8] sm:$0xf]
      %v6784 = vld [vmem:[%s12 + $0x1fc] sm:$0xf]
      %v6786 = vcombine.high %v6656, %v6656
      %v6788 = vunpack.c.l.s4 1966171168
      %v6789 = vunpack.c.0.s8 %v6788
      %v6790 = vlaneseq
      %v6791 = vshrl.u32 %v6790, 7
      %v6792 = vsub.s32 %v6789, %v6791
      %v6793 = vrot.slane %v6656, %v6792
      %v6795 = vunpack.c.l.s4 1966171168
      %v6796 = vunpack.c.0.s8 %v6795
      %v6797 = vlaneseq
      %v6798 = vshrl.u32 %v6797, 7
      %v6799 = vsub.s32 %v6796, %v6798
      %v6800 = vrot.slane %v6786, %v6799
      %v6801 = vcombine.high %v6793, %v6793
      %v6802 = vcombine.high %v6800, %v6800
      %v6804 = vunpack.c.l.s4 1966171168
      %v6805 = vunpack.c.0.s8 %v6804
      %v6806 = vlaneseq
      %v6807 = vshrl.u32 %v6806, 7
      %v6808 = vsub.s32 %v6805, %v6807
      %v6809 = vrot.slane %v6793, %v6808
      %v6811 = vunpack.c.l.s4 1966171168
      %v6812 = vunpack.c.0.s8 %v6811
      %v6813 = vlaneseq
      %v6814 = vshrl.u32 %v6813, 7
      %v6815 = vsub.s32 %v6812, %v6814
      %v6816 = vrot.slane %v6800, %v6815
      %v6818 = vunpack.c.l.s4 1966171168
      %v6819 = vunpack.c.0.s8 %v6818
      %v6820 = vlaneseq
      %v6821 = vshrl.u32 %v6820, 7
      %v6822 = vsub.s32 %v6819, %v6821
      %v6823 = vrot.slane %v6801, %v6822
      %v6825 = vunpack.c.l.s4 1966171168
      %v6826 = vunpack.c.0.s8 %v6825
      %v6827 = vlaneseq
      %v6828 = vshrl.u32 %v6827, 7
      %v6829 = vsub.s32 %v6826, %v6828
      %v6830 = vrot.slane %v6802, %v6829
      %v6831 = vcombine.high %v6809, %v6809
      %v6832 = vcombine.high %v6816, %v6816
      %v6833 = vcombine.high %v6823, %v6823
      %v6834 = vcombine.high %v6830, %v6830
      %v6971 = vunpack.c.l.b16 %v6657
      %v6972 = vunpack.c.l.b16 %v6658
      %v6973 = vunpack.c.l.b16 %v6659
      %v6974 = vunpack.c.l.b16 %v6660
      %v6975 = vunpack.c.l.b16 %v6661
      %v6976 = vunpack.c.l.b16 %v6662
      %v6977 = vunpack.c.l.b16 %v6663
      %v6978 = vunpack.c.l.b16 %v6664
      %v6979 = vunpack.c.l.b16 %v6665
      %v6980 = vunpack.c.l.b16 %v6666
      %v6981 = vunpack.c.l.b16 %v6667
      %v6982 = vunpack.c.l.b16 %v6668
      %v6983 = vunpack.c.l.b16 %v6669
      %v6984 = vunpack.c.l.b16 %v6670
      %v6985 = vunpack.c.l.b16 %v6671
      %v6986 = vunpack.c.l.b16 %v6672
      %v6987 = vunpack.c.l.b16 %v6673
      %v6988 = vunpack.c.l.b16 %v6674
      %v6989 = vunpack.c.l.b16 %v6675
      %v6990 = vunpack.c.l.b16 %v6676
      %v6991 = vunpack.c.l.b16 %v6677
      %v6992 = vunpack.c.l.b16 %v6678
      %v6993 = vunpack.c.l.b16 %v6679
      %v6994 = vunpack.c.l.b16 %v6680
      %v6995 = vunpack.c.l.b16 %v6681
      %v6996 = vunpack.c.l.b16 %v6682
      %v6997 = vunpack.c.l.b16 %v6683
      %v6998 = vunpack.c.l.b16 %v6684
      %v6999 = vunpack.c.l.b16 %v6685
      %v7000 = vunpack.c.l.b16 %v6686
      %v7001 = vunpack.c.l.b16 %v6687
      %v7002 = vunpack.c.l.b16 %v6688
      %v7003 = vunpack.c.l.b16 %v6689
      %v7004 = vunpack.c.l.b16 %v6690
      %v7005 = vunpack.c.l.b16 %v6691
      %v7006 = vunpack.c.l.b16 %v6692
      %v7007 = vunpack.c.l.b16 %v6693
      %v7008 = vunpack.c.l.b16 %v6694
      %v7009 = vunpack.c.l.b16 %v6695
      %v7010 = vunpack.c.l.b16 %v6696
      %v7011 = vunpack.c.l.b16 %v6697
      %v7012 = vunpack.c.l.b16 %v6698
      %v7013 = vunpack.c.l.b16 %v6699
      %v7014 = vunpack.c.l.b16 %v6700
      %v7015 = vunpack.c.l.b16 %v6701
      %v7016 = vunpack.c.l.b16 %v6702
      %v7017 = vunpack.c.l.b16 %v6703
      %v7018 = vunpack.c.l.b16 %v6704
      %v7019 = vunpack.c.l.b16 %v6705
      %v7020 = vunpack.c.l.b16 %v6706
      %v7021 = vunpack.c.l.b16 %v6707
      %v7022 = vunpack.c.l.b16 %v6708
      %v7023 = vunpack.c.l.b16 %v6709
      %v7024 = vunpack.c.l.b16 %v6710
      %v7025 = vunpack.c.l.b16 %v6711
      %v7026 = vunpack.c.l.b16 %v6712
      %v7027 = vunpack.c.l.b16 %v6713
      %v7028 = vunpack.c.l.b16 %v6714
      %v7029 = vunpack.c.l.b16 %v6715
      %v7030 = vunpack.c.l.b16 %v6716
      %v7031 = vunpack.c.l.b16 %v6717
      %v7032 = vunpack.c.l.b16 %v6718
      %v7033 = vunpack.c.l.b16 %v6719
      %v7034 = vunpack.c.l.b16 %v6720
      %v7035 = vunpack.c.l.b16 %v6721
      %v7036 = vunpack.c.l.b16 %v6722
      %v7037 = vunpack.c.l.b16 %v6723
      %v7038 = vunpack.c.l.b16 %v6724
      %v7039 = vunpack.c.l.b16 %v6725
      %v7040 = vunpack.c.l.b16 %v6726
      %v7041 = vunpack.c.l.b16 %v6727
      %v7042 = vunpack.c.l.b16 %v6728
      %v7043 = vunpack.c.l.b16 %v6729
      %v7044 = vunpack.c.l.b16 %v6730
      %v7045 = vunpack.c.l.b16 %v6731
      %v7046 = vunpack.c.l.b16 %v6732
      %v7047 = vunpack.c.l.b16 %v6733
      %v7048 = vunpack.c.l.b16 %v6734
      %v7049 = vunpack.c.l.b16 %v6735
      %v7050 = vunpack.c.l.b16 %v6736
      %v7051 = vunpack.c.l.b16 %v6737
      %v7052 = vunpack.c.l.b16 %v6738
      %v7053 = vunpack.c.l.b16 %v6739
      %v7054 = vunpack.c.l.b16 %v6740
      %v7055 = vunpack.c.l.b16 %v6741
      %v7056 = vunpack.c.l.b16 %v6742
      %v7057 = vunpack.c.l.b16 %v6743
      %v7058 = vunpack.c.l.b16 %v6744
      %v7059 = vunpack.c.l.b16 %v6745
      %v7060 = vunpack.c.l.b16 %v6746
      %v7061 = vunpack.c.l.b16 %v6747
      %v7062 = vunpack.c.l.b16 %v6748
      %v7063 = vunpack.c.l.b16 %v6749
      %v7064 = vunpack.c.l.b16 %v6750
      %v7065 = vunpack.c.l.b16 %v6751
      %v7066 = vunpack.c.l.b16 %v6752
      %v7067 = vunpack.c.l.b16 %v6753
      %v7068 = vunpack.c.l.b16 %v6754
      %v7069 = vunpack.c.l.b16 %v6755
      %v7070 = vunpack.c.l.b16 %v6756
      %v7071 = vunpack.c.l.b16 %v6757
      %v7072 = vunpack.c.l.b16 %v6758
      %v7073 = vunpack.c.l.b16 %v6759
      %v7074 = vunpack.c.l.b16 %v6760
      %v7075 = vunpack.c.l.b16 %v6761
      %v7076 = vunpack.c.l.b16 %v6762
      %v7077 = vunpack.c.l.b16 %v6763
      %v7078 = vunpack.c.l.b16 %v6764
      %v7079 = vunpack.c.l.b16 %v6765
      %v7080 = vunpack.c.l.b16 %v6766
      %v7081 = vunpack.c.l.b16 %v6767
      %v7082 = vunpack.c.l.b16 %v6768
      %v7083 = vunpack.c.l.b16 %v6769
      %v7084 = vunpack.c.l.b16 %v6770
      %v7085 = vunpack.c.l.b16 %v6771
      %v7086 = vunpack.c.l.b16 %v6772
      %v7087 = vunpack.c.l.b16 %v6773
      %v7088 = vunpack.c.l.b16 %v6774
      %v7089 = vunpack.c.l.b16 %v6775
      %v7090 = vunpack.c.l.b16 %v6776
      %v7091 = vunpack.c.l.b16 %v6777
      %v7092 = vunpack.c.l.b16 %v6778
      %v7093 = vunpack.c.l.b16 %v6779
      %v7094 = vunpack.c.l.b16 %v6780
      %v7095 = vunpack.c.l.b16 %v6781
      %v7096 = vunpack.c.l.b16 %v6782
      %v7097 = vunpack.c.l.b16 %v6783
      %v7098 = vunpack.c.l.b16 %v6784
      %v7099 = vpack.c.b16 %v6972, %v6971
      %v7100 = vpack.c.b16 %v6974, %v6973
      %v7101 = vpack.c.b16 %v6976, %v6975
      %v7102 = vpack.c.b16 %v6978, %v6977
      %v7103 = vpack.c.b16 %v6980, %v6979
      %v7104 = vpack.c.b16 %v6982, %v6981
      %v7105 = vpack.c.b16 %v6984, %v6983
      %v7106 = vpack.c.b16 %v6986, %v6985
      %v7107 = vpack.c.b16 %v6988, %v6987
      %v7108 = vpack.c.b16 %v6990, %v6989
      %v7109 = vpack.c.b16 %v6992, %v6991
      %v7110 = vpack.c.b16 %v6994, %v6993
      %v7111 = vpack.c.b16 %v6996, %v6995
      %v7112 = vpack.c.b16 %v6998, %v6997
      %v7113 = vpack.c.b16 %v7000, %v6999
      %v7114 = vpack.c.b16 %v7002, %v7001
      %v7115 = vpack.c.b16 %v7004, %v7003
      %v7116 = vpack.c.b16 %v7006, %v7005
      %v7117 = vpack.c.b16 %v7008, %v7007
      %v7118 = vpack.c.b16 %v7010, %v7009
      %v7119 = vpack.c.b16 %v7012, %v7011
      %v7120 = vpack.c.b16 %v7014, %v7013
      %v7121 = vpack.c.b16 %v7016, %v7015
      %v7122 = vpack.c.b16 %v7018, %v7017
      %v7123 = vpack.c.b16 %v7020, %v7019
      %v7124 = vpack.c.b16 %v7022, %v7021
      %v7125 = vpack.c.b16 %v7024, %v7023
      %v7126 = vpack.c.b16 %v7026, %v7025
      %v7127 = vpack.c.b16 %v7028, %v7027
      %v7128 = vpack.c.b16 %v7030, %v7029
      %v7129 = vpack.c.b16 %v7032, %v7031
      %v7130 = vpack.c.b16 %v7034, %v7033
      %v7131 = vpack.c.b16 %v7036, %v7035
      %v7132 = vpack.c.b16 %v7038, %v7037
      %v7133 = vpack.c.b16 %v7040, %v7039
      %v7134 = vpack.c.b16 %v7042, %v7041
      %v7135 = vpack.c.b16 %v7044, %v7043
      %v7136 = vpack.c.b16 %v7046, %v7045
      %v7137 = vpack.c.b16 %v7048, %v7047
      %v7138 = vpack.c.b16 %v7050, %v7049
      %v7139 = vpack.c.b16 %v7052, %v7051
      %v7140 = vpack.c.b16 %v7054, %v7053
      %v7141 = vpack.c.b16 %v7056, %v7055
      %v7142 = vpack.c.b16 %v7058, %v7057
      %v7143 = vpack.c.b16 %v7060, %v7059
      %v7144 = vpack.c.b16 %v7062, %v7061
      %v7145 = vpack.c.b16 %v7064, %v7063
      %v7146 = vpack.c.b16 %v7066, %v7065
      %v7147 = vpack.c.b16 %v7068, %v7067
      %v7148 = vpack.c.b16 %v7070, %v7069
      %v7149 = vpack.c.b16 %v7072, %v7071
      %v7150 = vpack.c.b16 %v7074, %v7073
      %v7151 = vpack.c.b16 %v7076, %v7075
      %v7152 = vpack.c.b16 %v7078, %v7077
      %v7153 = vpack.c.b16 %v7080, %v7079
      %v7154 = vpack.c.b16 %v7082, %v7081
      %v7155 = vpack.c.b16 %v7084, %v7083
      %v7156 = vpack.c.b16 %v7086, %v7085
      %v7157 = vpack.c.b16 %v7088, %v7087
      %v7158 = vpack.c.b16 %v7090, %v7089
      %v7159 = vpack.c.b16 %v7092, %v7091
      %v7160 = vpack.c.b16 %v7094, %v7093
      %v7161 = vpack.c.b16 %v7096, %v7095
      %v7162 = vpack.c.b16 %v7098, %v7097
      %7227 = vmatprep.subr.bf16.mxu0 0
      %7228 = vmatpush1.bf16.msra.mxu0 %v7099
      %7229 = vmatprep.subr.bf16.mxu0 0
      %7230 = vmatpush1.bf16.msra.mxu0 %v7100
      %7231 = vmatprep.subr.bf16.mxu0 0
      %7232 = vmatpush1.bf16.msra.mxu0 %v7101
      %7233 = vmatprep.subr.bf16.mxu0 0
      %7234 = vmatpush1.bf16.msra.mxu0 %v7102
      %7235 = vmatprep.subr.bf16.mxu0 0
      %7236 = vmatpush1.bf16.msra.mxu0 %v7103
      %7237 = vmatprep.subr.bf16.mxu0 0
      %7238 = vmatpush1.bf16.msra.mxu0 %v7104
      %7239 = vmatprep.subr.bf16.mxu0 0
      %7240 = vmatpush1.bf16.msra.mxu0 %v7105
      %7241 = vmatprep.subr.bf16.mxu0 0
      %7242 = vmatpush1.bf16.msra.mxu0 %v7106
      %7243 = vmatprep.subr.bf16.mxu0 0
      %7244 = vmatpush1.bf16.msra.mxu0 %v7107
      %7245 = vmatprep.subr.bf16.mxu0 0
      %7246 = vmatpush1.bf16.msra.mxu0 %v7108
      %7247 = vmatprep.subr.bf16.mxu0 0
      %7248 = vmatpush1.bf16.msra.mxu0 %v7109
      %7249 = vmatprep.subr.bf16.mxu0 0
      %7250 = vmatpush1.bf16.msra.mxu0 %v7110
      %7251 = vmatprep.subr.bf16.mxu0 0
      %7252 = vmatpush1.bf16.msra.mxu0 %v7111
      %7253 = vmatprep.subr.bf16.mxu0 0
      %7254 = vmatpush1.bf16.msra.mxu0 %v7112
      %7255 = vmatprep.subr.bf16.mxu0 0
      %7256 = vmatpush1.bf16.msra.mxu0 %v7113
      %7257 = vmatprep.subr.bf16.mxu0 0
      %7258 = vmatpush1.bf16.msra.mxu0 %v7114
      %7259 = vmatprep.mubr.bf16.mxu0 %v6823
      %7260 = vmatmul.mubr.bf16.gmra.mrb[0].mxu0 %v6809
      %v7261 = vpop.f32.mrb[0].mxu0
      %v7262 = vadd.f32 0.0, %v7261
      %v7263 = vpop.f32.mrb[0].mxu0
      %v7264 = vpop.f32.mrb[0].mxu0
      %v7265 = vpop.f32.mrb[0].mxu0
      %7266 = vdwg.mxu0
      %7267 = vmatprep.subr.bf16.mxu0 0
      %7268 = vmatpush1.bf16.msra.mxu0 %v7115
      %7269 = vmatprep.subr.bf16.mxu0 0
      %7270 = vmatpush1.bf16.msra.mxu0 %v7116
      %7271 = vmatprep.subr.bf16.mxu0 0
      %7272 = vmatpush1.bf16.msra.mxu0 %v7117
      %7273 = vmatprep.subr.bf16.mxu0 0
      %7274 = vmatpush1.bf16.msra.mxu0 %v7118
      %7275 = vmatprep.subr.bf16.mxu0 0
      %7276 = vmatpush1.bf16.msra.mxu0 %v7119
      %7277 = vmatprep.subr.bf16.mxu0 0
      %7278 = vmatpush1.bf16.msra.mxu0 %v7120
      %7279 = vmatprep.subr.bf16.mxu0 0
      %7280 = vmatpush1.bf16.msra.mxu0 %v7121
      %7281 = vmatprep.subr.bf16.mxu0 0
      %7282 = vmatpush1.bf16.msra.mxu0 %v7122
      %7283 = vmatprep.subr.bf16.mxu0 0
      %7284 = vmatpush1.bf16.msra.mxu0 %v7123
      %7285 = vmatprep.subr.bf16.mxu0 0
      %7286 = vmatpush1.bf16.msra.mxu0 %v7124
      %7287 = vmatprep.subr.bf16.mxu0 0
      %7288 = vmatpush1.bf16.msra.mxu0 %v7125
      %7289 = vmatprep.subr.bf16.mxu0 0
      %7290 = vmatpush1.bf16.msra.mxu0 %v7126
      %7291 = vmatprep.subr.bf16.mxu0 0
      %7292 = vmatpush1.bf16.msra.mxu0 %v7127
      %7293 = vmatprep.subr.bf16.mxu0 0
      %7294 = vmatpush1.bf16.msra.mxu0 %v7128
      %7295 = vmatprep.subr.bf16.mxu0 0
      %7296 = vmatpush1.bf16.msra.mxu0 %v7129
      %7297 = vmatprep.subr.bf16.mxu0 0
      %7298 = vmatpush1.bf16.msra.mxu0 %v7130
      %7299 = vmatprep.mubr.bf16.mxu0 %v6833
      %7300 = vmatmul.mubr.bf16.gmra.mrb[0].mxu0 %v6831
      %v7301 = vpop.f32.mrb[0].mxu0
      %v7302 = vadd.f32 %v7262, %v7301
      %v7303 = vpop.f32.mrb[0].mxu0
      %v7304 = vpop.f32.mrb[0].mxu0
      %v7305 = vpop.f32.mrb[0].mxu0
      %7306 = vdwg.mxu0
      %7307 = vmatprep.subr.bf16.mxu0 0
      %7308 = vmatpush1.bf16.msra.mxu0 %v7131
      %7309 = vmatprep.subr.bf16.mxu0 0
      %7310 = vmatpush1.bf16.msra.mxu0 %v7132
      %7311 = vmatprep.subr.bf16.mxu0 0
      %7312 = vmatpush1.bf16.msra.mxu0 %v7133
      %7313 = vmatprep.subr.bf16.mxu0 0
      %7314 = vmatpush1.bf16.msra.mxu0 %v7134
      %7315 = vmatprep.subr.bf16.mxu0 0
      %7316 = vmatpush1.bf16.msra.mxu0 %v7135
      %7317 = vmatprep.subr.bf16.mxu0 0
      %7318 = vmatpush1.bf16.msra.mxu0 %v7136
      %7319 = vmatprep.subr.bf16.mxu0 0
      %7320 = vmatpush1.bf16.msra.mxu0 %v7137
      %7321 = vmatprep.subr.bf16.mxu0 0
      %7322 = vmatpush1.bf16.msra.mxu0 %v7138
      %7323 = vmatprep.subr.bf16.mxu0 0
      %7324 = vmatpush1.bf16.msra.mxu0 %v7139
      %7325 = vmatprep.subr.bf16.mxu0 0
      %7326 = vmatpush1.bf16.msra.mxu0 %v7140
      %7327 = vmatprep.subr.bf16.mxu0 0
      %7328 = vmatpush1.bf16.msra.mxu0 %v7141
      %7329 = vmatprep.subr.bf16.mxu0 0
      %7330 = vmatpush1.bf16.msra.mxu0 %v7142
      %7331 = vmatprep.subr.bf16.mxu0 0
      %7332 = vmatpush1.bf16.msra.mxu0 %v7143
      %7333 = vmatprep.subr.bf16.mxu0 0
      %7334 = vmatpush1.bf16.msra.mxu0 %v7144
      %7335 = vmatprep.subr.bf16.mxu0 0
      %7336 = vmatpush1.bf16.msra.mxu0 %v7145
      %7337 = vmatprep.subr.bf16.mxu0 0
      %7338 = vmatpush1.bf16.msra.mxu0 %v7146
      %7339 = vmatprep.mubr.bf16.mxu0 %v6830
      %7340 = vmatmul.mubr.bf16.gmra.mrb[0].mxu0 %v6816
      %v7341 = vpop.f32.mrb[0].mxu0
      %v7342 = vadd.f32 %v7302, %v7341
      %v7343 = vpop.f32.mrb[0].mxu0
      %v7344 = vpop.f32.mrb[0].mxu0
      %v7345 = vpop.f32.mrb[0].mxu0
      %7346 = vdwg.mxu0
      %7347 = vmatprep.subr.bf16.mxu0 0
      %7348 = vmatpush1.bf16.msra.mxu0 %v7147
      %7349 = vmatprep.subr.bf16.mxu0 0
      %7350 = vmatpush1.bf16.msra.mxu0 %v7148
      %7351 = vmatprep.subr.bf16.mxu0 0
      %7352 = vmatpush1.bf16.msra.mxu0 %v7149
      %7353 = vmatprep.subr.bf16.mxu0 0
      %7354 = vmatpush1.bf16.msra.mxu0 %v7150
      %7355 = vmatprep.subr.bf16.mxu0 0
      %7356 = vmatpush1.bf16.msra.mxu0 %v7151
      %7357 = vmatprep.subr.bf16.mxu0 0
      %7358 = vmatpush1.bf16.msra.mxu0 %v7152
      %7359 = vmatprep.subr.bf16.mxu0 0
      %7360 = vmatpush1.bf16.msra.mxu0 %v7153
      %7361 = vmatprep.subr.bf16.mxu0 0
      %7362 = vmatpush1.bf16.msra.mxu0 %v7154
      %7363 = vmatprep.subr.bf16.mxu0 0
      %7364 = vmatpush1.bf16.msra.mxu0 %v7155
      %7365 = vmatprep.subr.bf16.mxu0 0
      %7366 = vmatpush1.bf16.msra.mxu0 %v7156
      %7367 = vmatprep.subr.bf16.mxu0 0
      %7368 = vmatpush1.bf16.msra.mxu0 %v7157
      %7369 = vmatprep.subr.bf16.mxu0 0
      %7370 = vmatpush1.bf16.msra.mxu0 %v7158
      %7371 = vmatprep.subr.bf16.mxu0 0
      %7372 = vmatpush1.bf16.msra.mxu0 %v7159
      %7373 = vmatprep.subr.bf16.mxu0 0
      %7374 = vmatpush1.bf16.msra.mxu0 %v7160
      %7375 = vmatprep.subr.bf16.mxu0 0
      %7376 = vmatpush1.bf16.msra.mxu0 %v7161
      %7377 = vmatprep.subr.bf16.mxu0 0
      %7378 = vmatpush1.bf16.msra.mxu0 %v7162
      %7379 = vmatprep.mubr.bf16.mxu0 %v6834
      %7380 = vmatmul.mubr.bf16.gmra.mrb[0].mxu0 %v6832
      %v7381 = vpop.f32.mrb[0].mxu0
      %v7382 = vadd.f32 %v7342, %v7381
      %v7383 = vpop.f32.mrb[0].mxu0
      %v7384 = vpop.f32.mrb[0].mxu0
      %v7385 = vpop.f32.mrb[0].mxu0
      %7386 = vdwg.mxu0
      %vm7387 = vcmask 24576
      %7388 = vst.msk [vmem:[%s436] sm:$0x1] %vm7387, %v7382
      %p7389 = scmp.lt.s32.totalorder %s24, 1
      %s7390 = scalar_select %p7389, %s24, 1
      %s7391 = scalar_lea.vmem %s13, %s7390
      // Predicated region
      $region73: #{patchgan_forward.1} parent=71 // pred_check
        %p7392 = pneg %p320
      $region74: #{patchgan_forward.1} parent=71 // pred_check_branch
        %7394 = sbr.rel (%p7392) target = $region76
      $region75: #{patchgan_forward.1} parent=71 // pred_region
        _
      $region76: #{patchgan_forward.1} parent=71 // pred_fallthru
        _
    $region72: #{patchgan_forward.1} parent=5 // pred_fallthru
      _
    %p7395 = scmp.le.s32.totalorder 2, %s19
    // Predicated region
    $region77: #{patchgan_forward.1} parent=5 // pred_check
      %p7396 = pneg %p7395
    $region78: #{patchgan_forward.1} parent=5 // pred_check_branch
      %7398 = sbr.rel (%p7396) target = $region80
    $region79: #{patchgan_forward.1} parent=5 // pred_region
      %s7399 = ssub.s32 %s19, 2
      // Predicated region
      $region81: #{patchgan_forward.1} parent=79 // pred_check
        %p7400 = pneg %p326
      $region82: #{patchgan_forward.1} parent=79 // pred_check_branch
        %7402 = sbr.rel (%p7400) target = $region84
      $region83: #{patchgan_forward.1} parent=79 // pred_region
        %p7403 = scmp.lt.s32.totalorder %s25, 1
        %s7404 = scalar_select %p7403, %s25, 1
        %s7405 = scalar_lea.vmem %s13, %s7404
      $region84: #{patchgan_forward.1} parent=79 // pred_fallthru
        _
    $region80: #{patchgan_forward.1} parent=5 // pred_fallthru
      _
  $region6: #{patchgan_forward.1} parent=0 // loop_footer
    %s23 = sadd.s32 1, %s19
  $region7: #{patchgan_forward.1} parent=0 // loop_footer_branch
    %18 = sbr.rel target = $region3
  $region8: #{patchgan_forward.1} parent=0 // loop_exit
    _

</llo_original>
